<compile_context>
chip_gen: v7x
topology: tpu7x:2x2x1
jax: 0.10.0
libtpu: 0.0.40
codegen_flags: <defaults>
</compile_context>

<pallas_src>
import functools

import jax
import jax.numpy as jnp
import numpy as np
from jax.experimental import pallas as pl
from jax.experimental.pallas import tpu as pltpu

BN_EPS = 1e-5
_INV_SQRT2 = 0.7071067811865476


@functools.lru_cache(maxsize=None)
def _vmem_limit_bytes():
    # Generation-aware VMEM budget: ~half of physical VMEM (≈64 MiB on v5e/v6e with 128 MiB
    # physical, 32 MiB on v7x with 64 MiB physical), clamped to [32, 96] MiB.  Falls back to
    # a safe 32 MiB if the hardware query is unavailable.
    default = 32 * 1024 * 1024
    try:
        info = pltpu.get_tpu_info()
        cap = getattr(info, "vmem_capacity_bytes", None)
        if cap:
            return int(min(max(default, int(cap) // 2), 96 * 1024 * 1024))
    except Exception:  # no TPU / API mismatch -> conservative default
        pass
    return default


# ----------------------------- in-kernel math -------------------------------
def _erf(x):
    # Abramowitz & Stegun 7.1.26 polynomial (|err| < 1.5e-7), built only from ops with
    # guaranteed Mosaic lowerings.  The tanh-form GELU was evaluated but its ~4e-4 deviation
    # is amplified by the two BatchNorm normalizations and can breach the 2e-3 bound.
    a1, a2, a3, a4, a5 = 0.254829592, -0.284496736, 1.421413741, -1.453152027, 1.061405429
    p = 0.3275911
    sign = jnp.where(x >= 0.0, 1.0, -1.0)
    ax = jnp.abs(x)
    # Divide moved off the VALU path (perf review).  approx=True would ride the EUP vrcp but
    # its ~2^-12 error, amplified by two BatchNorms, risks the 2e-3 bound -> approx=False.
    t = pl.reciprocal(1.0 + p * ax, approx=False)
    poly = ((((a5 * t + a4) * t + a3) * t + a2) * t + a1) * t
    return sign * (1.0 - poly * jnp.exp(-ax * ax))


def _gelu_exact(x):
    # matches PyTorch nn.GELU() default (erf-based, approximate='none')
    return 0.5 * x * (1.0 + _erf(x * _INV_SQRT2))


def _zero_halo(pad_ref, *, H, W, pad, off_h, off_w):
    # Zero only the halo strips that the tap loop can read (not the full scratch).  This is
    # safe regardless of how a 'parallel' grid axis is split across TensorCores, unlike a
    # one-time memset gated on pl.program_id(0) == 0 (each core owns a private scratch).
    # The interior [off_h:off_h+H, off_w:off_w+W, :] is fully overwritten every step; any
    # column < off_w - pad is never read by a tap, so it may stay uninitialized.
    if pad == 0:
        return
    Hp, Wp, C = pad_ref.shape
    dt = pad_ref.dtype
    pad_ref[0:off_h, :, :] = jnp.zeros((off_h, Wp, C), dt)                       # top rows
    pad_ref[off_h + H:Hp, :, :] = jnp.zeros((Hp - off_h - H, Wp, C), dt)         # bottom rows
    pad_ref[off_h:off_h + H, 0:off_w, :] = jnp.zeros((H, off_w, C), dt)          # left cols
    pad_ref[off_h:off_h + H, off_w + W:Wp, :] = jnp.zeros((H, Wp - off_w - W, C), dt)  # right


def _dw_conv_bias_gelu(pad_ref, w_ref, b_ref, *, H, W, K, off_h, off_w):
    pad = K // 2
    C = pad_ref.shape[-1]
    acc = jnp.zeros((H, W, C), jnp.float32)
    # K*K static taps read from the VMEM halo scratch (VMEM re-reads, not HBM re-reads).
    # TODO(synk): a pltpu.roll-based formulation of the dj (sublane) shifts would cut
    # misaligned vld pressure further, but sublane rolls on a non-8-aligned axis are a
    # lowering risk; static ref slices kept for robustness.
    for di in range(K):
        r0 = off_h - pad + di
        for dj in range(K):
            c0 = off_w - pad + dj
            w_tap = w_ref[di * K + dj, :].astype(pad_ref.dtype)
            acc = acc + (pad_ref[r0:r0 + H, c0:c0 + W, :] * w_tap).astype(jnp.float32)
    return _gelu_exact(acc + b_ref[...])


# ------------------------------- kernels ------------------------------------
def _dc_stats_kernel(x_ref, w_ref, b_ref, y_ref, sum_ref, sq_ref, pad_ref,
                     *, H, W, K, off_h, off_w):
    """DC pass 1: y = GELU(dwconv(x)+b) cached to HBM + per-channel sum / sumsq of y."""
    _zero_halo(pad_ref, H=H, W=W, pad=K // 2, off_h=off_h, off_w=off_w)
    pad_ref[off_h:off_h + H, off_w:off_w + W, :] = x_ref[0].astype(pad_ref.dtype)
    y = _dw_conv_bias_gelu(pad_ref, w_ref, b_ref, H=H, W=W, K=K, off_h=off_h, off_w=off_w)
    y_ref[0] = y.astype(y_ref.dtype)           # cache -> DC pass 2 never recomputes the conv
    y2 = y.reshape(H * W, y.shape[-1])
    sum_ref[0] = jnp.sum(y2, axis=0, keepdims=True)
    sq_ref[0] = jnp.sum(y2 * y2, axis=0, keepdims=True)


def _dc_apply_pc_stats_kernel(x_ref, y_ref, sc_ref, sh_ref, pw_ref, pb_ref,
                              xdc_ref, psum_ref, psq_ref,
                              *, H, W, compute_dtype):
    """DC pass 2 (folded BN + residual) consuming cached y, fused with PC pass 1 (stats)."""
    y = y_ref[0].astype(jnp.float32)
    x_dc = y * sc_ref[...] + sh_ref[...] + x_ref[0].astype(jnp.float32)
    cin = x_dc.shape[-1]
    if xdc_ref.dtype == jnp.float32:
        xdc_ref[0] = x_dc                      # no cast round trip when the store is f32
        x2 = x_dc.reshape(H * W, cin)
    else:
        x_store = x_dc.astype(xdc_ref.dtype)
        xdc_ref[0] = x_store
        x2 = x_store.astype(jnp.float32).reshape(H * W, cin)   # stats use the stored value
    # fused pointwise stats: z = GELU(x_dc @ W_pw + b_pw); accumulate per-channel sum/sumsq
    z = jnp.dot(x2.astype(compute_dtype), pw_ref[...].astype(compute_dtype),
                preferred_element_type=jnp.float32) + pb_ref[...]
    z = _gelu_exact(z)
    psum_ref[0] = jnp.sum(z, axis=0, keepdims=True)
    psq_ref[0] = jnp.sum(z * z, axis=0, keepdims=True)


def _pc_apply_kernel(x_ref, w_ref, b_ref, sc_ref, sh_ref, o_ref,
                     *, residual, compute_dtype):
    """PC pass 2: 1x1 conv as matmul + GELU + folded BN (+ residual), per row tile."""
    x2 = x_ref[...]
    z = jnp.dot(x2.astype(compute_dtype), w_ref[...].astype(compute_dtype),
                preferred_element_type=jnp.float32) + b_ref[...]
    z = _gelu_exact(z)
    z = z * sc_ref[...] + sh_ref[...]
    if residual:
        z = z + x2.astype(jnp.float32)
    o_ref[...] = z.astype(o_ref.dtype)


# ------------------------------- wrappers ------------------------------------
def _halo_offsets(pad):
    off_h = pad                                    # leading (non-tiled) dim: any offset ok
    off_w = ((pad + 7) // 8) * 8 if pad else 0     # sublane dim: keep interior store aligned
    return off_h, off_w


def _pick_row_tile(m, cin, cout, itemsize):
    # Prefer 512 then 1024 row tiles (perf review: amortize ~0.35us/step and improve MXU/DMA
    # cadence), capped by a VMEM-derived bound; fall back to the full (always-legal) extent.
    budget = _vmem_limit_bytes() // 2              # headroom for weights / double-buffering

    def fits(t):
        return 2 * t * (cin + cout) * itemsize <= budget

    for t in (512, 1024, 256, 128, 64, 32, 16, 8):
        if m % t == 0 and fits(t):
            return t
    return m


def _dc_stats(x, w_kkc, b, *, compute_dtype, y_dtype):
    B, H, W, C = x.shape
    K = w_kkc.shape[0]
    pad = K // 2
    off_h, off_w = _halo_offsets(pad)
    Hp, Wp = off_h + H + pad, off_w + W + pad
    kern = functools.partial(_dc_stats_kernel, H=H, W=W, K=K, off_h=off_h, off_w=off_w)
    return pl.pallas_call(
        kern,
        out_shape=(jax.ShapeDtypeStruct((B, H, W, C), y_dtype),
                   jax.ShapeDtypeStruct((B, 1, C), jnp.float32),
                   jax.ShapeDtypeStruct((B, 1, C), jnp.float32)),
        grid=(B,),
        in_specs=[
            pl.BlockSpec((1, H, W, C), lambda i: (i, 0, 0, 0)),
            pl.BlockSpec((K * K, C), lambda i: (0, 0)),
            pl.BlockSpec((1, C), lambda i: (0, 0)),
        ],
        out_specs=(
            pl.BlockSpec((1, H, W, C), lambda i: (i, 0, 0, 0)),
            pl.BlockSpec((1, 1, C), lambda i: (i, 0, 0)),
            pl.BlockSpec((1, 1, C), lambda i: (i, 0, 0)),
        ),
        scratch_shapes=[pltpu.VMEM((Hp, Wp, C), compute_dtype)],
        compiler_params=pltpu.CompilerParams(
            dimension_semantics=("parallel",), vmem_limit_bytes=_vmem_limit_bytes()),
    )(x, w_kkc.reshape(K * K, C), b.reshape(1, C))


def _dc_apply_pc_stats(x, y, dc_scale, dc_shift, pw_w, pw_b, *, compute_dtype):
    B, H, W, C = x.shape
    Cout = pw_w.shape[1]
    kern = functools.partial(_dc_apply_pc_stats_kernel, H=H, W=W, compute_dtype=compute_dtype)
    return pl.pallas_call(
        kern,
        out_shape=(jax.ShapeDtypeStruct((B, H, W, C), x.dtype),
                   jax.ShapeDtypeStruct((B, 1, Cout), jnp.float32),
                   jax.ShapeDtypeStruct((B, 1, Cout), jnp.float32)),
        grid=(B,),
        in_specs=[
            pl.BlockSpec((1, H, W, C), lambda i: (i, 0, 0, 0)),
            pl.BlockSpec((1, H, W, C), lambda i: (i, 0, 0, 0)),
            pl.BlockSpec((1, C), lambda i: (0, 0)),
            pl.BlockSpec((1, C), lambda i: (0, 0)),
            pl.BlockSpec((C, Cout), lambda i: (0, 0)),
            pl.BlockSpec((1, Cout), lambda i: (0, 0)),
        ],
        out_specs=(
            pl.BlockSpec((1, H, W, C), lambda i: (i, 0, 0, 0)),
            pl.BlockSpec((1, 1, Cout), lambda i: (i, 0, 0)),
            pl.BlockSpec((1, 1, Cout), lambda i: (i, 0, 0)),
        ),
        compiler_params=pltpu.CompilerParams(
            dimension_semantics=("parallel",), vmem_limit_bytes=_vmem_limit_bytes()),
    )(x, y, dc_scale.reshape(1, C), dc_shift.reshape(1, C), pw_w, pw_b.reshape(1, Cout))


def _pc_apply(x2d, pw_w, pw_b, pc_scale, pc_shift, *, compute_dtype):
    M, Cin = x2d.shape
    Cout = pw_w.shape[1]
    TM = _pick_row_tile(M, Cin, Cout, np.dtype(x2d.dtype).itemsize)
    kern = functools.partial(_pc_apply_kernel, residual=(Cin == Cout),
                             compute_dtype=compute_dtype)
    return pl.pallas_call(
        kern,
        out_shape=jax.ShapeDtypeStruct((M, Cout), x2d.dtype),
        grid=(M // TM,),
        in_specs=[
            pl.BlockSpec((TM, Cin), lambda i: (i, 0)),
            pl.BlockSpec((Cin, Cout), lambda i: (0, 0)),
            pl.BlockSpec((1, Cout), lambda i: (0, 0)),
            pl.BlockSpec((1, Cout), lambda i: (0, 0)),
            pl.BlockSpec((1, Cout), lambda i: (0, 0)),
        ],
        out_specs=pl.BlockSpec((TM, Cout), lambda i: (i, 0)),
        compiler_params=pltpu.CompilerParams(
            dimension_semantics=("parallel",), vmem_limit_bytes=_vmem_limit_bytes()),
    )(x2d, pw_w, pw_b.reshape(1, Cout), pc_scale.reshape(1, Cout), pc_shift.reshape(1, Cout))


def convmixer_block_nhwc(x, params, *, compute_dtype=jnp.float32):
    """x: (B,H,W,C) NHWC.  Preferred entry point (no transpose passes) for stacked blocks.

    compute_dtype=jnp.bfloat16 is the recommended setting on v6e/v7x (bf16 VALU/MXU, halved
    weight and scratch VMEM); v5e should stay f32 (no bf16 VPU/EUP).  Accumulation is f32
    regardless.  The default f32 path matches the PyTorch reference to ~1e-6."""
    B, H, W, C = x.shape
    K = params["dw_w"].shape[0]
    assert K % 2 == 1, "padding='same' path implemented for odd kernel sizes"
    n = float(B * H * W)
    cd = compute_dtype
    cd_is_f32 = np.dtype(cd) == np.dtype(np.float32)
    # y feeds the residual-carrying DC output, not just BN stats, so it is cached in f32 on
    # the exact path; bf16 only when the whole compute path is already bf16.
    y_dtype = jnp.float32 if cd_is_f32 else jnp.bfloat16
    dw_w = params["dw_w"] if cd_is_f32 else params["dw_w"].astype(cd)
    pw_w = params["pw_w"] if cd_is_f32 else params["pw_w"].astype(cd)

    # ---- DC pass 1: cache y = GELU(dwconv(x)+b) and its global BN partial stats -----------
    y, s, ss = _dc_stats(x, dw_w, params["dw_b"], compute_dtype=cd, y_dtype=y_dtype)
    mean = jnp.sum(s, axis=(0, 1)) / n
    # NOTE: E[x^2]-mean^2 in f32 can cancel at very large n; fine at these scales (see review).
    var = jnp.maximum(jnp.sum(ss, axis=(0, 1)) / n - mean * mean, 0.0)   # biased, as PyTorch
    dc_scale = params["dw_gamma"] * jax.lax.rsqrt(var + BN_EPS)
    dc_shift = params["dw_beta"] - mean * dc_scale

    # ---- DC pass 2 (apply + residual, from cached y) fused with PC pass 1 (stats) ----------
    x_dc, ps, pss = _dc_apply_pc_stats(x, y, dc_scale, dc_shift,
                                       pw_w, params["pw_b"], compute_dtype=cd)
    pmean = jnp.sum(ps, axis=(0, 1)) / n
    pvar = jnp.maximum(jnp.sum(pss, axis=(0, 1)) / n - pmean * pmean, 0.0)
    pc_scale = params["pw_gamma"] * jax.lax.rsqrt(pvar + BN_EPS)
    pc_shift = params["pw_beta"] - pmean * pc_scale

    # ---- PC pass 2 (apply + optional residual), tiled over flattened rows ------------------
    Cout = params["pw_w"].shape[1]
    out2 = _pc_apply(x_dc.reshape(B * H * W, C), pw_w, params["pw_b"],
                     pc_scale, pc_shift, compute_dtype=cd)
    return out2.reshape(B, H, W, Cout)


def convmixer_block(x_nchw, params, *, compute_dtype=jnp.float32):
    # PyTorch-style NCHW boundary.  Stacked blocks should call convmixer_block_nhwc directly
    # to avoid a full-tensor transpose pass per block.
    x = jnp.transpose(x_nchw, (0, 2, 3, 1))  # NCHW -> NHWC
    y = convmixer_block_nhwc(x, params, compute_dtype=compute_dtype)
    return jnp.transpose(y, (0, 3, 1, 2))    # NHWC -> NCHW


# --------------------------- pure-JAX reference ------------------------------
def _ref_gelu(x):
    return 0.5 * x * (1.0 + jax.scipy.special.erf(x * _INV_SQRT2))


def _ref_bn(y, gamma, beta):
    mean = y.mean(axis=(0, 1, 2), keepdims=True)
    var = ((y - mean) ** 2).mean(axis=(0, 1, 2), keepdims=True)
    return (y - mean) * jax.lax.rsqrt(var + BN_EPS) * gamma + beta


def ref_convmixer_block(x_nchw, params):
    x = jnp.transpose(x_nchw, (0, 2, 3, 1))
    C = x.shape[3]
    K = params["dw_w"].shape[0]
    rhs = params["dw_w"].reshape(K, K, 1, C)  # HWIO, grouped
    y = jax.lax.conv_general_dilated(
        x, rhs, window_strides=(1, 1), padding="SAME",
        dimension_numbers=("NHWC", "HWIO", "NHWC"),
        feature_group_count=C) + params["dw_b"]
    x = _ref_bn(_ref_gelu(y), params["dw_gamma"], params["dw_beta"]) + x
    z = jnp.einsum("bhwc,co->bhwo", x, params["pw_w"]) + params["pw_b"]
    z = _ref_bn(_ref_gelu(z), params["pw_gamma"], params["pw_beta"])
    if params["pw_w"].shape[0] == params["pw_w"].shape[1]:
        z = z + x
    return jnp.transpose(z, (0, 3, 1, 2))


# --------------------------------- main --------------------------------------
if __name__ == "__main__":
    B, C, Hs, Ws = 2, 4, 16, 16          # batch, dim (=indim=outdim), spatial
    K = 3                                 # kernel_size
    dim, indim, outdim = C, C, C

    key = jax.random.PRNGKey(0)
    ks = jax.random.split(key, 9)
    x = jax.random.normal(ks[0], (B, C, Hs, Ws), jnp.float32)

    params = {
        # DepthwiseConv: Conv2d(dim, dim, K, groups=dim) -> taps stored as (K, K, dim)
        "dw_w": 0.3 * jax.random.normal(ks[1], (K, K, dim), jnp.float32),
        "dw_b": 0.1 * jax.random.normal(ks[2], (dim,), jnp.float32),
        "dw_gamma": 1.0 + 0.1 * jax.random.normal(ks[3], (dim,), jnp.float32),
        "dw_beta": 0.1 * jax.random.normal(ks[4], (dim,), jnp.float32),
        # PointwiseConv: Conv2d(indim, outdim, 1) -> weight stored as (indim, outdim)
        "pw_w": 0.3 * jax.random.normal(ks[5], (indim, outdim), jnp.float32),
        "pw_b": 0.1 * jax.random.normal(ks[6], (outdim,), jnp.float32),
        "pw_gamma": 1.0 + 0.1 * jax.random.normal(ks[7], (outdim,), jnp.float32),
        "pw_beta": 0.1 * jax.random.normal(ks[8], (outdim,), jnp.float32),
    }

    out = jax.block_until_ready(jax.jit(convmixer_block)(x, params))
    ref = jax.block_until_ready(ref_convmixer_block(x, params))

    assert out.shape == (B, outdim, Hs, Ws) and out.dtype == jnp.float32
    np.testing.assert_allclose(np.asarray(out), np.asarray(ref), rtol=2e-3, atol=2e-3)
    print("KERNEL_OK")
</pallas_src>

<mosaic_0001>
module attributes {stable_mosaic.version = 11 : i64} {
  func.func @_dc_stats_kernel(%arg0: i32, %arg1: memref<1x16x16x4xf32, #tpu.memory_space<vmem>>, %arg2: memref<9x4xf32, #tpu.memory_space<vmem>>, %arg3: memref<1x4xf32, #tpu.memory_space<vmem>>, %arg4: memref<1x16x16x4xf32, #tpu.memory_space<vmem>>, %arg5: memref<1x1x4xf32, #tpu.memory_space<vmem>>, %arg6: memref<1x1x4xf32, #tpu.memory_space<vmem>>, %arg7: memref<18x25x4xf32, #tpu.memory_space<vmem>>) attributes {dimension_semantics = [#tpu.dimension_semantics<parallel>], iteration_bounds = array<i64: 2>, scalar_prefetch = 0 : i64, scratch_operands = 1 : i64, tpu.core_type = #tpu.core_type<tc>, window_params = [{transform_indices = @transform_0, window_bounds = array<i64: 1, 16, 16, 4>}, {pipeline_mode = #tpu.pipeline_mode<synchronous>, transform_indices = @transform_1, window_bounds = array<i64: 9, 4>}, {pipeline_mode = #tpu.pipeline_mode<synchronous>, transform_indices = @transform_2, window_bounds = array<i64: 1, 4>}, {transform_indices = @transform_3, window_bounds = array<i64: 1, 16, 16, 4>}, {transform_indices = @transform_4, window_bounds = array<i64: 1, 1, 4>}, {transform_indices = @transform_5, window_bounds = array<i64: 1, 1, 4>}]} {
    %cst = arith.constant 0.000000e+00 : f32
    %0 = vector.broadcast %cst : f32 to vector<1x25x4xf32>
    %c0 = arith.constant 0 : index
    %c0_0 = arith.constant 0 : index
    %c0_1 = arith.constant 0 : index
    %1 = vector.load %arg7[%c0, %c0_0, %c0_1] : memref<18x25x4xf32, #tpu.memory_space<vmem>>, vector<1x25x4xf32>
    tpu.vector_store %arg7[%c0, %c0_0, %c0_1], %0 {strides = array<i32>} : memref<18x25x4xf32, #tpu.memory_space<vmem>>, vector<1x25x4xf32>,
    %cst_2 = arith.constant 0.000000e+00 : f32
    %2 = vector.broadcast %cst_2 : f32 to vector<1x25x4xf32>
    %c17 = arith.constant 17 : index
    %c0_3 = arith.constant 0 : index
    %c0_4 = arith.constant 0 : index
    %3 = vector.load %arg7[%c17, %c0_3, %c0_4] : memref<18x25x4xf32, #tpu.memory_space<vmem>>, vector<1x25x4xf32>
    tpu.vector_store %arg7[%c17, %c0_3, %c0_4], %2 {strides = array<i32>} : memref<18x25x4xf32, #tpu.memory_space<vmem>>, vector<1x25x4xf32>,
    %cst_5 = arith.constant 0.000000e+00 : f32
    %4 = vector.broadcast %cst_5 : f32 to vector<16x8x4xf32>
    %c1 = arith.constant 1 : index
    %c0_6 = arith.constant 0 : index
    %c0_7 = arith.constant 0 : index
    %5 = vector.load %arg7[%c1, %c0_6, %c0_7] : memref<18x25x4xf32, #tpu.memory_space<vmem>>, vector<16x8x4xf32>
    tpu.vector_store %arg7[%c1, %c0_6, %c0_7], %4 {strides = array<i32>} : memref<18x25x4xf32, #tpu.memory_space<vmem>>, vector<16x8x4xf32>,
    %cst_8 = arith.constant 0.000000e+00 : f32
    %6 = vector.broadcast %cst_8 : f32 to vector<16x1x4xf32>
    %c1_9 = arith.constant 1 : index
    %c24 = arith.constant 24 : index
    %c0_10 = arith.constant 0 : index
    %7 = vector.load %arg7[%c1_9, %c24, %c0_10] : memref<18x25x4xf32, #tpu.memory_space<vmem>>, vector<16x1x4xf32>
    tpu.vector_store %arg7[%c1_9, %c24, %c0_10], %6 {strides = array<i32>} : memref<18x25x4xf32, #tpu.memory_space<vmem>>, vector<16x1x4xf32>,
    %c0_11 = arith.constant 0 : index
    %c0_12 = arith.constant 0 : index
    %c0_13 = arith.constant 0 : index
    %c0_14 = arith.constant 0 : index
    %8 = vector.load %arg1[%c0_11, %c0_12, %c0_13, %c0_14] : memref<1x16x16x4xf32, #tpu.memory_space<vmem>>, vector<1x16x16x4xf32>
    %9 = vector.shape_cast %8 : vector<1x16x16x4xf32> to vector<16x16x4xf32>
    %c1_15 = arith.constant 1 : index
    %c8 = arith.constant 8 : index
    %c0_16 = arith.constant 0 : index
    %10 = vector.load %arg7[%c1_15, %c8, %c0_16] : memref<18x25x4xf32, #tpu.memory_space<vmem>>, vector<16x16x4xf32>
    tpu.vector_store %arg7[%c1_15, %c8, %c0_16], %9 {strides = array<i32>} : memref<18x25x4xf32, #tpu.memory_space<vmem>>, vector<16x16x4xf32>,
    %cst_17 = arith.constant 0.000000e+00 : f32
    %11 = vector.broadcast %cst_17 : f32 to vector<16x16x4xf32>
    %c0_18 = arith.constant 0 : index
    %c0_19 = arith.constant 0 : index
    %12 = vector.load %arg2[%c0_18, %c0_19] : memref<9x4xf32, #tpu.memory_space<vmem>>, vector<1x4xf32>
    %13 = vector.shape_cast %12 : vector<1x4xf32> to vector<4xf32>
    %c0_20 = arith.constant 0 : index
    %c7 = arith.constant 7 : index
    %c0_21 = arith.constant 0 : index
    %14 = vector.load %arg7[%c0_20, %c7, %c0_21] : memref<18x25x4xf32, #tpu.memory_space<vmem>>, vector<16x16x4xf32>
    %15 = vector.shape_cast %13 : vector<4xf32> to vector<1x1x4xf32>
    %16 = vector.broadcast %15 : vector<1x1x4xf32> to vector<16x16x4xf32>
    %17 = arith.mulf %14, %16 : vector<16x16x4xf32>
    %18 = arith.addf %11, %17 : vector<16x16x4xf32>
    %c1_22 = arith.constant 1 : index
    %c0_23 = arith.constant 0 : index
    %19 = vector.load %arg2[%c1_22, %c0_23] : memref<9x4xf32, #tpu.memory_space<vmem>>, vector<1x4xf32>
    %20 = vector.shape_cast %19 : vector<1x4xf32> to vector<4xf32>
    %c0_24 = arith.constant 0 : index
    %c8_25 = arith.constant 8 : index
    %c0_26 = arith.constant 0 : index
    %21 = vector.load %arg7[%c0_24, %c8_25, %c0_26] : memref<18x25x4xf32, #tpu.memory_space<vmem>>, vector<16x16x4xf32>
    %22 = vector.shape_cast %20 : vector<4xf32> to vector<1x1x4xf32>
    %23 = vector.broadcast %22 : vector<1x1x4xf32> to vector<16x16x4xf32>
    %24 = arith.mulf %21, %23 : vector<16x16x4xf32>
    %25 = arith.addf %18, %24 : vector<16x16x4xf32>
    %c2 = arith.constant 2 : index
    %c0_27 = arith.constant 0 : index
    %26 = vector.load %arg2[%c2, %c0_27] : memref<9x4xf32, #tpu.memory_space<vmem>>, vector<1x4xf32>
    %27 = vector.shape_cast %26 : vector<1x4xf32> to vector<4xf32>
    %c0_28 = arith.constant 0 : index
    %c9 = arith.constant 9 : index
    %c0_29 = arith.constant 0 : index
    %28 = vector.load %arg7[%c0_28, %c9, %c0_29] : memref<18x25x4xf32, #tpu.memory_space<vmem>>, vector<16x16x4xf32>
    %29 = vector.shape_cast %27 : vector<4xf32> to vector<1x1x4xf32>
    %30 = vector.broadcast %29 : vector<1x1x4xf32> to vector<16x16x4xf32>
    %31 = arith.mulf %28, %30 : vector<16x16x4xf32>
    %32 = arith.addf %25, %31 : vector<16x16x4xf32>
    %c3 = arith.constant 3 : index
    %c0_30 = arith.constant 0 : index
    %33 = vector.load %arg2[%c3, %c0_30] : memref<9x4xf32, #tpu.memory_space<vmem>>, vector<1x4xf32>
    %34 = vector.shape_cast %33 : vector<1x4xf32> to vector<4xf32>
    %c1_31 = arith.constant 1 : index
    %c7_32 = arith.constant 7 : index
    %c0_33 = arith.constant 0 : index
    %35 = vector.load %arg7[%c1_31, %c7_32, %c0_33] : memref<18x25x4xf32, #tpu.memory_space<vmem>>, vector<16x16x4xf32>
    %36 = vector.shape_cast %34 : vector<4xf32> to vector<1x1x4xf32>
    %37 = vector.broadcast %36 : vector<1x1x4xf32> to vector<16x16x4xf32>
    %38 = arith.mulf %35, %37 : vector<16x16x4xf32>
    %39 = arith.addf %32, %38 : vector<16x16x4xf32>
    %c4 = arith.constant 4 : index
    %c0_34 = arith.constant 0 : index
    %40 = vector.load %arg2[%c4, %c0_34] : memref<9x4xf32, #tpu.memory_space<vmem>>, vector<1x4xf32>
    %41 = vector.shape_cast %40 : vector<1x4xf32> to vector<4xf32>
    %c1_35 = arith.constant 1 : index
    %c8_36 = arith.constant 8 : index
    %c0_37 = arith.constant 0 : index
    %42 = vector.load %arg7[%c1_35, %c8_36, %c0_37] : memref<18x25x4xf32, #tpu.memory_space<vmem>>, vector<16x16x4xf32>
    %43 = vector.shape_cast %41 : vector<4xf32> to vector<1x1x4xf32>
    %44 = vector.broadcast %43 : vector<1x1x4xf32> to vector<16x16x4xf32>
    %45 = arith.mulf %42, %44 : vector<16x16x4xf32>
    %46 = arith.addf %39, %45 : vector<16x16x4xf32>
    %c5 = arith.constant 5 : index
    %c0_38 = arith.constant 0 : index
    %47 = vector.load %arg2[%c5, %c0_38] : memref<9x4xf32, #tpu.memory_space<vmem>>, vector<1x4xf32>
    %48 = vector.shape_cast %47 : vector<1x4xf32> to vector<4xf32>
    %c1_39 = arith.constant 1 : index
    %c9_40 = arith.constant 9 : index
    %c0_41 = arith.constant 0 : index
    %49 = vector.load %arg7[%c1_39, %c9_40, %c0_41] : memref<18x25x4xf32, #tpu.memory_space<vmem>>, vector<16x16x4xf32>
    %50 = vector.shape_cast %48 : vector<4xf32> to vector<1x1x4xf32>
    %51 = vector.broadcast %50 : vector<1x1x4xf32> to vector<16x16x4xf32>
    %52 = arith.mulf %49, %51 : vector<16x16x4xf32>
    %53 = arith.addf %46, %52 : vector<16x16x4xf32>
    %c6 = arith.constant 6 : index
    %c0_42 = arith.constant 0 : index
    %54 = vector.load %arg2[%c6, %c0_42] : memref<9x4xf32, #tpu.memory_space<vmem>>, vector<1x4xf32>
    %55 = vector.shape_cast %54 : vector<1x4xf32> to vector<4xf32>
    %c2_43 = arith.constant 2 : index
    %c7_44 = arith.constant 7 : index
    %c0_45 = arith.constant 0 : index
    %56 = vector.load %arg7[%c2_43, %c7_44, %c0_45] : memref<18x25x4xf32, #tpu.memory_space<vmem>>, vector<16x16x4xf32>
    %57 = vector.shape_cast %55 : vector<4xf32> to vector<1x1x4xf32>
    %58 = vector.broadcast %57 : vector<1x1x4xf32> to vector<16x16x4xf32>
    %59 = arith.mulf %56, %58 : vector<16x16x4xf32>
    %60 = arith.addf %53, %59 : vector<16x16x4xf32>
    %c7_46 = arith.constant 7 : index
    %c0_47 = arith.constant 0 : index
    %61 = vector.load %arg2[%c7_46, %c0_47] : memref<9x4xf32, #tpu.memory_space<vmem>>, vector<1x4xf32>
    %62 = vector.shape_cast %61 : vector<1x4xf32> to vector<4xf32>
    %c2_48 = arith.constant 2 : index
    %c8_49 = arith.constant 8 : index
    %c0_50 = arith.constant 0 : index
    %63 = vector.load %arg7[%c2_48, %c8_49, %c0_50] : memref<18x25x4xf32, #tpu.memory_space<vmem>>, vector<16x16x4xf32>
    %64 = vector.shape_cast %62 : vector<4xf32> to vector<1x1x4xf32>
    %65 = vector.broadcast %64 : vector<1x1x4xf32> to vector<16x16x4xf32>
    %66 = arith.mulf %63, %65 : vector<16x16x4xf32>
    %67 = arith.addf %60, %66 : vector<16x16x4xf32>
    %c8_51 = arith.constant 8 : index
    %c0_52 = arith.constant 0 : index
    %68 = vector.load %arg2[%c8_51, %c0_52] : memref<9x4xf32, #tpu.memory_space<vmem>>, vector<1x4xf32>
    %69 = vector.shape_cast %68 : vector<1x4xf32> to vector<4xf32>
    %c2_53 = arith.constant 2 : index
    %c9_54 = arith.constant 9 : index
    %c0_55 = arith.constant 0 : index
    %70 = vector.load %arg7[%c2_53, %c9_54, %c0_55] : memref<18x25x4xf32, #tpu.memory_space<vmem>>, vector<16x16x4xf32>
    %71 = vector.shape_cast %69 : vector<4xf32> to vector<1x1x4xf32>
    %72 = vector.broadcast %71 : vector<1x1x4xf32> to vector<16x16x4xf32>
    %73 = arith.mulf %70, %72 : vector<16x16x4xf32>
    %74 = arith.addf %67, %73 : vector<16x16x4xf32>
    %c0_56 = arith.constant 0 : index
    %c0_57 = arith.constant 0 : index
    %75 = vector.load %arg3[%c0_56, %c0_57] : memref<1x4xf32, #tpu.memory_space<vmem>>, vector<1x4xf32>
    %76 = vector.shape_cast %75 : vector<1x4xf32> to vector<1x1x4xf32>
    %77 = vector.broadcast %76 : vector<1x1x4xf32> to vector<16x16x4xf32>
    %78 = arith.addf %74, %77 : vector<16x16x4xf32>
    %cst_58 = arith.constant 5.000000e-01 : f32
    %79 = vector.broadcast %cst_58 : f32 to vector<16x16x4xf32>
    %80 = arith.mulf %79, %78 : vector<16x16x4xf32>
    %cst_59 = arith.constant 0.707106769 : f32
    %81 = vector.broadcast %cst_59 : f32 to vector<16x16x4xf32>
    %82 = arith.mulf %78, %81 : vector<16x16x4xf32>
    %cst_60 = arith.constant 0.000000e+00 : f32
    %83 = vector.broadcast %cst_60 : f32 to vector<16x16x4xf32>
    %84 = arith.cmpf oge, %82, %83 : vector<16x16x4xf32>
    %cst_61 = arith.constant 1.000000e+00 : f32
    %cst_62 = arith.constant -1.000000e+00 : f32
    %85 = vector.broadcast %cst_61 : f32 to vector<16x16x4xf32>
    %86 = vector.broadcast %cst_62 : f32 to vector<16x16x4xf32>
    %87 = arith.select %84, %85, %86 : vector<16x16x4xi1>, vector<16x16x4xf32>
    %88 = math.absf %82 : vector<16x16x4xf32>
    %cst_63 = arith.constant 0.327591091 : f32
    %89 = vector.broadcast %cst_63 : f32 to vector<16x16x4xf32>
    %90 = arith.mulf %89, %88 : vector<16x16x4xf32>
    %cst_64 = arith.constant 1.000000e+00 : f32
    %91 = vector.broadcast %cst_64 : f32 to vector<16x16x4xf32>
    %92 = arith.addf %91, %90 : vector<16x16x4xf32>
    %93 = tpu.reciprocal %92 : vector<16x16x4xf32> -> vector<16x16x4xf32>
    %cst_65 = arith.constant 1.06140542 : f32
    %94 = vector.broadcast %cst_65 : f32 to vector<16x16x4xf32>
    %95 = arith.mulf %94, %93 : vector<16x16x4xf32>
    %cst_66 = arith.constant -1.45315206 : f32
    %96 = vector.broadcast %cst_66 : f32 to vector<16x16x4xf32>
    %97 = arith.addf %95, %96 : vector<16x16x4xf32>
    %98 = arith.mulf %97, %93 : vector<16x16x4xf32>
    %cst_67 = arith.constant 1.42141378 : f32
    %99 = vector.broadcast %cst_67 : f32 to vector<16x16x4xf32>
    %100 = arith.addf %98, %99 : vector<16x16x4xf32>
    %101 = arith.mulf %100, %93 : vector<16x16x4xf32>
    %cst_68 = arith.constant -0.284496725 : f32
    %102 = vector.broadcast %cst_68 : f32 to vector<16x16x4xf32>
    %103 = arith.addf %101, %102 : vector<16x16x4xf32>
    %104 = arith.mulf %103, %93 : vector<16x16x4xf32>
    %cst_69 = arith.constant 0.254829586 : f32
    %105 = vector.broadcast %cst_69 : f32 to vector<16x16x4xf32>
    %106 = arith.addf %104, %105 : vector<16x16x4xf32>
    %107 = arith.mulf %106, %93 : vector<16x16x4xf32>
    %cst_70 = arith.constant 0.000000e+00 : f32
    %108 = vector.broadcast %cst_70 : f32 to vector<16x16x4xf32>
    %109 = arith.subf %108, %88 : vector<16x16x4xf32>
    %110 = arith.mulf %109, %88 : vector<16x16x4xf32>
    %111 = math.exp %110 : vector<16x16x4xf32>
    %112 = arith.mulf %107, %111 : vector<16x16x4xf32>
    %cst_71 = arith.constant 1.000000e+00 : f32
    %113 = vector.broadcast %cst_71 : f32 to vector<16x16x4xf32>
    %114 = arith.subf %113, %112 : vector<16x16x4xf32>
    %115 = arith.mulf %87, %114 : vector<16x16x4xf32>
    %cst_72 = arith.constant 1.000000e+00 : f32
    %116 = vector.broadcast %cst_72 : f32 to vector<16x16x4xf32>
    %117 = arith.addf %116, %115 : vector<16x16x4xf32>
    %118 = arith.mulf %80, %117 : vector<16x16x4xf32>
    %c0_73 = arith.constant 0 : index
    %c0_74 = arith.constant 0 : index
    %c0_75 = arith.constant 0 : index
    %c0_76 = arith.constant 0 : index
    %119 = vector.load %arg4[%c0_73, %c0_74, %c0_75, %c0_76] : memref<1x16x16x4xf32, #tpu.memory_space<vmem>>, vector<1x16x16x4xf32>
    %120 = vector.shape_cast %119 : vector<1x16x16x4xf32> to vector<16x16x4xf32>
    %121 = vector.shape_cast %118 : vector<16x16x4xf32> to vector<1x16x16x4xf32>
    tpu.vector_store %arg4[%c0_73, %c0_74, %c0_75, %c0_76], %121 {strides = array<i32>} : memref<1x16x16x4xf32, #tpu.memory_space<vmem>>, vector<1x16x16x4xf32>,
    %122 = vector.shape_cast %118 : vector<16x16x4xf32> to vector<256x4xf32>
    %cst_77 = arith.constant dense<0.000000e+00> : vector<4xf32>
    %123 = vector.multi_reduction <add>, %122, %cst_77 [0] : vector<256x4xf32> to vector<4xf32>
    %124 = vector.shape_cast %123 : vector<4xf32> to vector<1x4xf32>
    %c0_78 = arith.constant 0 : index
    %c0_79 = arith.constant 0 : index
    %c0_80 = arith.constant 0 : index
    %125 = vector.load %arg5[%c0_78, %c0_79, %c0_80] : memref<1x1x4xf32, #tpu.memory_space<vmem>>, vector<1x1x4xf32>
    %126 = vector.shape_cast %125 : vector<1x1x4xf32> to vector<1x4xf32>
    %127 = vector.shape_cast %124 : vector<1x4xf32> to vector<1x1x4xf32>
    tpu.vector_store %arg5[%c0_78, %c0_79, %c0_80], %127 {strides = array<i32>} : memref<1x1x4xf32, #tpu.memory_space<vmem>>, vector<1x1x4xf32>,
    %128 = arith.mulf %122, %122 : vector<256x4xf32>
    %cst_81 = arith.constant dense<0.000000e+00> : vector<4xf32>
    %129 = vector.multi_reduction <add>, %128, %cst_81 [0] : vector<256x4xf32> to vector<4xf32>
    %130 = vector.shape_cast %129 : vector<4xf32> to vector<1x4xf32>
    %c0_82 = arith.constant 0 : index
    %c0_83 = arith.constant 0 : index
    %c0_84 = arith.constant 0 : index
    %131 = vector.load %arg6[%c0_82, %c0_83, %c0_84] : memref<1x1x4xf32, #tpu.memory_space<vmem>>, vector<1x1x4xf32>
    %132 = vector.shape_cast %131 : vector<1x1x4xf32> to vector<1x4xf32>
    %133 = vector.shape_cast %130 : vector<1x4xf32> to vector<1x1x4xf32>
    tpu.vector_store %arg6[%c0_82, %c0_83, %c0_84], %133 {strides = array<i32>} : memref<1x1x4xf32, #tpu.memory_space<vmem>>, vector<1x1x4xf32>,
    return
  }
  func.func @transform_0(%arg0: i32) -> (i32, i32, i32, i32) {
    %c0_i32 = arith.constant 0 : i32
    %c0_i32_0 = arith.constant 0 : i32
    %c0_i32_1 = arith.constant 0 : i32
    %c0_i32_2 = arith.constant 0 : i32
    return %arg0, %c0_i32, %c0_i32_0, %c0_i32_1 : i32, i32, i32, i32
  }
  func.func @transform_1(%arg0: i32) -> (i32, i32) {
    %c0_i32 = arith.constant 0 : i32
    %c0_i32_0 = arith.constant 0 : i32
    %c0_i32_1 = arith.constant 0 : i32
    return %c0_i32, %c0_i32_0 : i32, i32
  }
  func.func @transform_2(%arg0: i32) -> (i32, i32) {
    %c0_i32 = arith.constant 0 : i32
    %c0_i32_0 = arith.constant 0 : i32
    %c0_i32_1 = arith.constant 0 : i32
    return %c0_i32, %c0_i32_0 : i32, i32
  }
  func.func @transform_3(%arg0: i32) -> (i32, i32, i32, i32) {
    %c0_i32 = arith.constant 0 : i32
    %c0_i32_0 = arith.constant 0 : i32
    %c0_i32_1 = arith.constant 0 : i32
    %c0_i32_2 = arith.constant 0 : i32
    return %arg0, %c0_i32, %c0_i32_0, %c0_i32_1 : i32, i32, i32, i32
  }
  func.func @transform_4(%arg0: i32) -> (i32, i32, i32) {
    %c0_i32 = arith.constant 0 : i32
    %c0_i32_0 = arith.constant 0 : i32
    %c0_i32_1 = arith.constant 0 : i32
    return %arg0, %c0_i32, %c0_i32_0 : i32, i32, i32
  }
  func.func @transform_5(%arg0: i32) -> (i32, i32, i32) {
    %c0_i32 = arith.constant 0 : i32
    %c0_i32_0 = arith.constant 0 : i32
    %c0_i32_1 = arith.constant 0 : i32
    return %arg0, %c0_i32, %c0_i32_0 : i32, i32, i32
  }
}

module attributes {stable_mosaic.version = 11 : i64} {
  func.func @_dc_apply_pc_stats_kernel(%arg0: i32, %arg1: memref<1x16x16x4xf32, #tpu.memory_space<vmem>>, %arg2: memref<1x16x16x4xf32, #tpu.memory_space<vmem>>, %arg3: memref<1x4xf32, #tpu.memory_space<vmem>>, %arg4: memref<1x4xf32, #tpu.memory_space<vmem>>, %arg5: memref<4x4xf32, #tpu.memory_space<vmem>>, %arg6: memref<1x4xf32, #tpu.memory_space<vmem>>, %arg7: memref<1x16x16x4xf32, #tpu.memory_space<vmem>>, %arg8: memref<1x1x4xf32, #tpu.memory_space<vmem>>, %arg9: memref<1x1x4xf32, #tpu.memory_space<vmem>>) attributes {dimension_semantics = [#tpu.dimension_semantics<parallel>], iteration_bounds = array<i64: 2>, scalar_prefetch = 0 : i64, scratch_operands = 0 : i64, tpu.core_type = #tpu.core_type<tc>, window_params = [{transform_indices = @transform_0, window_bounds = array<i64: 1, 16, 16, 4>}, {transform_indices = @transform_1, window_bounds = array<i64: 1, 16, 16, 4>}, {pipeline_mode = #tpu.pipeline_mode<synchronous>, transform_indices = @transform_2, window_bounds = array<i64: 1, 4>}, {pipeline_mode = #tpu.pipeline_mode<synchronous>, transform_indices = @transform_3, window_bounds = array<i64: 1, 4>}, {pipeline_mode = #tpu.pipeline_mode<synchronous>, transform_indices = @transform_4, window_bounds = array<i64: 4, 4>}, {pipeline_mode = #tpu.pipeline_mode<synchronous>, transform_indices = @transform_5, window_bounds = array<i64: 1, 4>}, {transform_indices = @transform_6, window_bounds = array<i64: 1, 16, 16, 4>}, {transform_indices = @transform_7, window_bounds = array<i64: 1, 1, 4>}, {transform_indices = @transform_8, window_bounds = array<i64: 1, 1, 4>}]} {
    %c0 = arith.constant 0 : index
    %c0_0 = arith.constant 0 : index
    %c0_1 = arith.constant 0 : index
    %c0_2 = arith.constant 0 : index
    %0 = vector.load %arg2[%c0, %c0_0, %c0_1, %c0_2] : memref<1x16x16x4xf32, #tpu.memory_space<vmem>>, vector<1x16x16x4xf32>
    %1 = vector.shape_cast %0 : vector<1x16x16x4xf32> to vector<16x16x4xf32>
    %c0_3 = arith.constant 0 : index
    %c0_4 = arith.constant 0 : index
    %2 = vector.load %arg3[%c0_3, %c0_4] : memref<1x4xf32, #tpu.memory_space<vmem>>, vector<1x4xf32>
    %3 = vector.shape_cast %2 : vector<1x4xf32> to vector<1x1x4xf32>
    %4 = vector.broadcast %3 : vector<1x1x4xf32> to vector<16x16x4xf32>
    %5 = arith.mulf %1, %4 : vector<16x16x4xf32>
    %c0_5 = arith.constant 0 : index
    %c0_6 = arith.constant 0 : index
    %6 = vector.load %arg4[%c0_5, %c0_6] : memref<1x4xf32, #tpu.memory_space<vmem>>, vector<1x4xf32>
    %7 = vector.shape_cast %6 : vector<1x4xf32> to vector<1x1x4xf32>
    %8 = vector.broadcast %7 : vector<1x1x4xf32> to vector<16x16x4xf32>
    %9 = arith.addf %5, %8 : vector<16x16x4xf32>
    %c0_7 = arith.constant 0 : index
    %c0_8 = arith.constant 0 : index
    %c0_9 = arith.constant 0 : index
    %c0_10 = arith.constant 0 : index
    %10 = vector.load %arg1[%c0_7, %c0_8, %c0_9, %c0_10] : memref<1x16x16x4xf32, #tpu.memory_space<vmem>>, vector<1x16x16x4xf32>
    %11 = vector.shape_cast %10 : vector<1x16x16x4xf32> to vector<16x16x4xf32>
    %12 = arith.addf %9, %11 : vector<16x16x4xf32>
    %c0_11 = arith.constant 0 : index
    %c0_12 = arith.constant 0 : index
    %c0_13 = arith.constant 0 : index
    %c0_14 = arith.constant 0 : index
    %13 = vector.load %arg7[%c0_11, %c0_12, %c0_13, %c0_14] : memref<1x16x16x4xf32, #tpu.memory_space<vmem>>, vector<1x16x16x4xf32>
    %14 = vector.shape_cast %13 : vector<1x16x16x4xf32> to vector<16x16x4xf32>
    %15 = vector.shape_cast %12 : vector<16x16x4xf32> to vector<1x16x16x4xf32>
    tpu.vector_store %arg7[%c0_11, %c0_12, %c0_13, %c0_14], %15 {strides = array<i32>} : memref<1x16x16x4xf32, #tpu.memory_space<vmem>>, vector<1x16x16x4xf32>,
    %16 = vector.shape_cast %12 : vector<16x16x4xf32> to vector<256x4xf32>
    %c0_15 = arith.constant 0 : index
    %c0_16 = arith.constant 0 : index
    %17 = vector.load %arg5[%c0_15, %c0_16] : memref<4x4xf32, #tpu.memory_space<vmem>>, vector<4x4xf32>
    %cst = arith.constant dense<0.000000e+00> : vector<256x4xf32>
    %18 = tpu.matmul %16, %17, %cst {dimension_numbers = #tpu.dot_dimension_numbers<[1], [0], [0], [1], [0, 0, 1, 1], [], []>} : vector<256x4xf32>, vector<4x4xf32>, vector<256x4xf32> -> vector<256x4xf32>
    %c0_17 = arith.constant 0 : index
    %c0_18 = arith.constant 0 : index
    %19 = vector.load %arg6[%c0_17, %c0_18] : memref<1x4xf32, #tpu.memory_space<vmem>>, vector<1x4xf32>
    %20 = vector.broadcast %19 : vector<1x4xf32> to vector<256x4xf32>
    %21 = arith.addf %18, %20 : vector<256x4xf32>
    %cst_19 = arith.constant 5.000000e-01 : f32
    %22 = vector.broadcast %cst_19 : f32 to vector<256x4xf32>
    %23 = arith.mulf %22, %21 : vector<256x4xf32>
    %cst_20 = arith.constant 0.707106769 : f32
    %24 = vector.broadcast %cst_20 : f32 to vector<256x4xf32>
    %25 = arith.mulf %21, %24 : vector<256x4xf32>
    %cst_21 = arith.constant 0.000000e+00 : f32
    %26 = vector.broadcast %cst_21 : f32 to vector<256x4xf32>
    %27 = arith.cmpf oge, %25, %26 : vector<256x4xf32>
    %cst_22 = arith.constant 1.000000e+00 : f32
    %cst_23 = arith.constant -1.000000e+00 : f32
    %28 = vector.broadcast %cst_22 : f32 to vector<256x4xf32>
    %29 = vector.broadcast %cst_23 : f32 to vector<256x4xf32>
    %30 = arith.select %27, %28, %29 : vector<256x4xi1>, vector<256x4xf32>
    %31 = math.absf %25 : vector<256x4xf32>
    %cst_24 = arith.constant 0.327591091 : f32
    %32 = vector.broadcast %cst_24 : f32 to vector<256x4xf32>
    %33 = arith.mulf %32, %31 : vector<256x4xf32>
    %cst_25 = arith.constant 1.000000e+00 : f32
    %34 = vector.broadcast %cst_25 : f32 to vector<256x4xf32>
    %35 = arith.addf %34, %33 : vector<256x4xf32>
    %36 = tpu.reciprocal %35 : vector<256x4xf32> -> vector<256x4xf32>
    %cst_26 = arith.constant 1.06140542 : f32
    %37 = vector.broadcast %cst_26 : f32 to vector<256x4xf32>
    %38 = arith.mulf %37, %36 : vector<256x4xf32>
    %cst_27 = arith.constant -1.45315206 : f32
    %39 = vector.broadcast %cst_27 : f32 to vector<256x4xf32>
    %40 = arith.addf %38, %39 : vector<256x4xf32>
    %41 = arith.mulf %40, %36 : vector<256x4xf32>
    %cst_28 = arith.constant 1.42141378 : f32
    %42 = vector.broadcast %cst_28 : f32 to vector<256x4xf32>
    %43 = arith.addf %41, %42 : vector<256x4xf32>
    %44 = arith.mulf %43, %36 : vector<256x4xf32>
    %cst_29 = arith.constant -0.284496725 : f32
    %45 = vector.broadcast %cst_29 : f32 to vector<256x4xf32>
    %46 = arith.addf %44, %45 : vector<256x4xf32>
    %47 = arith.mulf %46, %36 : vector<256x4xf32>
    %cst_30 = arith.constant 0.254829586 : f32
    %48 = vector.broadcast %cst_30 : f32 to vector<256x4xf32>
    %49 = arith.addf %47, %48 : vector<256x4xf32>
    %50 = arith.mulf %49, %36 : vector<256x4xf32>
    %cst_31 = arith.constant 0.000000e+00 : f32
    %51 = vector.broadcast %cst_31 : f32 to vector<256x4xf32>
    %52 = arith.subf %51, %31 : vector<256x4xf32>
    %53 = arith.mulf %52, %31 : vector<256x4xf32>
    %54 = math.exp %53 : vector<256x4xf32>
    %55 = arith.mulf %50, %54 : vector<256x4xf32>
    %cst_32 = arith.constant 1.000000e+00 : f32
    %56 = vector.broadcast %cst_32 : f32 to vector<256x4xf32>
    %57 = arith.subf %56, %55 : vector<256x4xf32>
    %58 = arith.mulf %30, %57 : vector<256x4xf32>
    %cst_33 = arith.constant 1.000000e+00 : f32
    %59 = vector.broadcast %cst_33 : f32 to vector<256x4xf32>
    %60 = arith.addf %59, %58 : vector<256x4xf32>
    %61 = arith.mulf %23, %60 : vector<256x4xf32>
    %cst_34 = arith.constant dense<0.000000e+00> : vector<4xf32>
    %62 = vector.multi_reduction <add>, %61, %cst_34 [0] : vector<256x4xf32> to vector<4xf32>
    %63 = vector.shape_cast %62 : vector<4xf32> to vector<1x4xf32>
    %c0_35 = arith.constant 0 : index
    %c0_36 = arith.constant 0 : index
    %c0_37 = arith.constant 0 : index
    %64 = vector.load %arg8[%c0_35, %c0_36, %c0_37] : memref<1x1x4xf32, #tpu.memory_space<vmem>>, vector<1x1x4xf32>
    %65 = vector.shape_cast %64 : vector<1x1x4xf32> to vector<1x4xf32>
    %66 = vector.shape_cast %63 : vector<1x4xf32> to vector<1x1x4xf32>
    tpu.vector_store %arg8[%c0_35, %c0_36, %c0_37], %66 {strides = array<i32>} : memref<1x1x4xf32, #tpu.memory_space<vmem>>, vector<1x1x4xf32>,
    %67 = arith.mulf %61, %61 : vector<256x4xf32>
    %cst_38 = arith.constant dense<0.000000e+00> : vector<4xf32>
    %68 = vector.multi_reduction <add>, %67, %cst_38 [0] : vector<256x4xf32> to vector<4xf32>
    %69 = vector.shape_cast %68 : vector<4xf32> to vector<1x4xf32>
    %c0_39 = arith.constant 0 : index
    %c0_40 = arith.constant 0 : index
    %c0_41 = arith.constant 0 : index
    %70 = vector.load %arg9[%c0_39, %c0_40, %c0_41] : memref<1x1x4xf32, #tpu.memory_space<vmem>>, vector<1x1x4xf32>
    %71 = vector.shape_cast %70 : vector<1x1x4xf32> to vector<1x4xf32>
    %72 = vector.shape_cast %69 : vector<1x4xf32> to vector<1x1x4xf32>
    tpu.vector_store %arg9[%c0_39, %c0_40, %c0_41], %72 {strides = array<i32>} : memref<1x1x4xf32, #tpu.memory_space<vmem>>, vector<1x1x4xf32>,
    return
  }
  func.func @transform_0(%arg0: i32) -> (i32, i32, i32, i32) {
    %c0_i32 = arith.constant 0 : i32
    %c0_i32_0 = arith.constant 0 : i32
    %c0_i32_1 = arith.constant 0 : i32
    %c0_i32_2 = arith.constant 0 : i32
    return %arg0, %c0_i32, %c0_i32_0, %c0_i32_1 : i32, i32, i32, i32
  }
  func.func @transform_1(%arg0: i32) -> (i32, i32, i32, i32) {
    %c0_i32 = arith.constant 0 : i32
    %c0_i32_0 = arith.constant 0 : i32
    %c0_i32_1 = arith.constant 0 : i32
    %c0_i32_2 = arith.constant 0 : i32
    return %arg0, %c0_i32, %c0_i32_0, %c0_i32_1 : i32, i32, i32, i32
  }
  func.func @transform_2(%arg0: i32) -> (i32, i32) {
    %c0_i32 = arith.constant 0 : i32
    %c0_i32_0 = arith.constant 0 : i32
    %c0_i32_1 = arith.constant 0 : i32
    return %c0_i32, %c0_i32_0 : i32, i32
  }
  func.func @transform_3(%arg0: i32) -> (i32, i32) {
    %c0_i32 = arith.constant 0 : i32
    %c0_i32_0 = arith.constant 0 : i32
    %c0_i32_1 = arith.constant 0 : i32
    return %c0_i32, %c0_i32_0 : i32, i32
  }
  func.func @transform_4(%arg0: i32) -> (i32, i32) {
    %c0_i32 = arith.constant 0 : i32
    %c0_i32_0 = arith.constant 0 : i32
    %c0_i32_1 = arith.constant 0 : i32
    return %c0_i32, %c0_i32_0 : i32, i32
  }
  func.func @transform_5(%arg0: i32) -> (i32, i32) {
    %c0_i32 = arith.constant 0 : i32
    %c0_i32_0 = arith.constant 0 : i32
    %c0_i32_1 = arith.constant 0 : i32
    return %c0_i32, %c0_i32_0 : i32, i32
  }
  func.func @transform_6(%arg0: i32) -> (i32, i32, i32, i32) {
    %c0_i32 = arith.constant 0 : i32
    %c0_i32_0 = arith.constant 0 : i32
    %c0_i32_1 = arith.constant 0 : i32
    %c0_i32_2 = arith.constant 0 : i32
    return %arg0, %c0_i32, %c0_i32_0, %c0_i32_1 : i32, i32, i32, i32
  }
  func.func @transform_7(%arg0: i32) -> (i32, i32, i32) {
    %c0_i32 = arith.constant 0 : i32
    %c0_i32_0 = arith.constant 0 : i32
    %c0_i32_1 = arith.constant 0 : i32
    return %arg0, %c0_i32, %c0_i32_0 : i32, i32, i32
  }
  func.func @transform_8(%arg0: i32) -> (i32, i32, i32) {
    %c0_i32 = arith.constant 0 : i32
    %c0_i32_0 = arith.constant 0 : i32
    %c0_i32_1 = arith.constant 0 : i32
    return %arg0, %c0_i32, %c0_i32_0 : i32, i32, i32
  }
}

module attributes {stable_mosaic.version = 11 : i64} {
  func.func @_pc_apply_kernel(%arg0: i32, %arg1: memref<512x4xf32, #tpu.memory_space<vmem>>, %arg2: memref<4x4xf32, #tpu.memory_space<vmem>>, %arg3: memref<1x4xf32, #tpu.memory_space<vmem>>, %arg4: memref<1x4xf32, #tpu.memory_space<vmem>>, %arg5: memref<1x4xf32, #tpu.memory_space<vmem>>, %arg6: memref<512x4xf32, #tpu.memory_space<vmem>>) attributes {dimension_semantics = [#tpu.dimension_semantics<parallel>], iteration_bounds = array<i64: 1>, scalar_prefetch = 0 : i64, scratch_operands = 0 : i64, tpu.core_type = #tpu.core_type<tc>, window_params = [{transform_indices = @transform_0, window_bounds = array<i64: 512, 4>}, {pipeline_mode = #tpu.pipeline_mode<synchronous>, transform_indices = @transform_1, window_bounds = array<i64: 4, 4>}, {pipeline_mode = #tpu.pipeline_mode<synchronous>, transform_indices = @transform_2, window_bounds = array<i64: 1, 4>}, {pipeline_mode = #tpu.pipeline_mode<synchronous>, transform_indices = @transform_3, window_bounds = array<i64: 1, 4>}, {pipeline_mode = #tpu.pipeline_mode<synchronous>, transform_indices = @transform_4, window_bounds = array<i64: 1, 4>}, {transform_indices = @transform_5, window_bounds = array<i64: 512, 4>}]} {
    %c0 = arith.constant 0 : index
    %c0_0 = arith.constant 0 : index
    %0 = vector.load %arg1[%c0, %c0_0] : memref<512x4xf32, #tpu.memory_space<vmem>>, vector<512x4xf32>
    %c0_1 = arith.constant 0 : index
    %c0_2 = arith.constant 0 : index
    %1 = vector.load %arg2[%c0_1, %c0_2] : memref<4x4xf32, #tpu.memory_space<vmem>>, vector<4x4xf32>
    %cst = arith.constant dense<0.000000e+00> : vector<512x4xf32>
    %2 = tpu.matmul %0, %1, %cst {dimension_numbers = #tpu.dot_dimension_numbers<[1], [0], [0], [1], [0, 0, 1, 1], [], []>} : vector<512x4xf32>, vector<4x4xf32>, vector<512x4xf32> -> vector<512x4xf32>
    %c0_3 = arith.constant 0 : index
    %c0_4 = arith.constant 0 : index
    %3 = vector.load %arg3[%c0_3, %c0_4] : memref<1x4xf32, #tpu.memory_space<vmem>>, vector<1x4xf32>
    %4 = vector.broadcast %3 : vector<1x4xf32> to vector<512x4xf32>
    %5 = arith.addf %2, %4 : vector<512x4xf32>
    %cst_5 = arith.constant 5.000000e-01 : f32
    %6 = vector.broadcast %cst_5 : f32 to vector<512x4xf32>
    %7 = arith.mulf %6, %5 : vector<512x4xf32>
    %cst_6 = arith.constant 0.707106769 : f32
    %8 = vector.broadcast %cst_6 : f32 to vector<512x4xf32>
    %9 = arith.mulf %5, %8 : vector<512x4xf32>
    %cst_7 = arith.constant 0.000000e+00 : f32
    %10 = vector.broadcast %cst_7 : f32 to vector<512x4xf32>
    %11 = arith.cmpf oge, %9, %10 : vector<512x4xf32>
    %cst_8 = arith.constant 1.000000e+00 : f32
    %cst_9 = arith.constant -1.000000e+00 : f32
    %12 = vector.broadcast %cst_8 : f32 to vector<512x4xf32>
    %13 = vector.broadcast %cst_9 : f32 to vector<512x4xf32>
    %14 = arith.select %11, %12, %13 : vector<512x4xi1>, vector<512x4xf32>
    %15 = math.absf %9 : vector<512x4xf32>
    %cst_10 = arith.constant 0.327591091 : f32
    %16 = vector.broadcast %cst_10 : f32 to vector<512x4xf32>
    %17 = arith.mulf %16, %15 : vector<512x4xf32>
    %cst_11 = arith.constant 1.000000e+00 : f32
    %18 = vector.broadcast %cst_11 : f32 to vector<512x4xf32>
    %19 = arith.addf %18, %17 : vector<512x4xf32>
    %20 = tpu.reciprocal %19 : vector<512x4xf32> -> vector<512x4xf32>
    %cst_12 = arith.constant 1.06140542 : f32
    %21 = vector.broadcast %cst_12 : f32 to vector<512x4xf32>
    %22 = arith.mulf %21, %20 : vector<512x4xf32>
    %cst_13 = arith.constant -1.45315206 : f32
    %23 = vector.broadcast %cst_13 : f32 to vector<512x4xf32>
    %24 = arith.addf %22, %23 : vector<512x4xf32>
    %25 = arith.mulf %24, %20 : vector<512x4xf32>
    %cst_14 = arith.constant 1.42141378 : f32
    %26 = vector.broadcast %cst_14 : f32 to vector<512x4xf32>
    %27 = arith.addf %25, %26 : vector<512x4xf32>
    %28 = arith.mulf %27, %20 : vector<512x4xf32>
    %cst_15 = arith.constant -0.284496725 : f32
    %29 = vector.broadcast %cst_15 : f32 to vector<512x4xf32>
    %30 = arith.addf %28, %29 : vector<512x4xf32>
    %31 = arith.mulf %30, %20 : vector<512x4xf32>
    %cst_16 = arith.constant 0.254829586 : f32
    %32 = vector.broadcast %cst_16 : f32 to vector<512x4xf32>
    %33 = arith.addf %31, %32 : vector<512x4xf32>
    %34 = arith.mulf %33, %20 : vector<512x4xf32>
    %cst_17 = arith.constant 0.000000e+00 : f32
    %35 = vector.broadcast %cst_17 : f32 to vector<512x4xf32>
    %36 = arith.subf %35, %15 : vector<512x4xf32>
    %37 = arith.mulf %36, %15 : vector<512x4xf32>
    %38 = math.exp %37 : vector<512x4xf32>
    %39 = arith.mulf %34, %38 : vector<512x4xf32>
    %cst_18 = arith.constant 1.000000e+00 : f32
    %40 = vector.broadcast %cst_18 : f32 to vector<512x4xf32>
    %41 = arith.subf %40, %39 : vector<512x4xf32>
    %42 = arith.mulf %14, %41 : vector<512x4xf32>
    %cst_19 = arith.constant 1.000000e+00 : f32
    %43 = vector.broadcast %cst_19 : f32 to vector<512x4xf32>
    %44 = arith.addf %43, %42 : vector<512x4xf32>
    %45 = arith.mulf %7, %44 : vector<512x4xf32>
    %c0_20 = arith.constant 0 : index
    %c0_21 = arith.constant 0 : index
    %46 = vector.load %arg4[%c0_20, %c0_21] : memref<1x4xf32, #tpu.memory_space<vmem>>, vector<1x4xf32>
    %47 = vector.broadcast %46 : vector<1x4xf32> to vector<512x4xf32>
    %48 = arith.mulf %45, %47 : vector<512x4xf32>
    %c0_22 = arith.constant 0 : index
    %c0_23 = arith.constant 0 : index
    %49 = vector.load %arg5[%c0_22, %c0_23] : memref<1x4xf32, #tpu.memory_space<vmem>>, vector<1x4xf32>
    %50 = vector.broadcast %49 : vector<1x4xf32> to vector<512x4xf32>
    %51 = arith.addf %48, %50 : vector<512x4xf32>
    %52 = arith.addf %51, %0 : vector<512x4xf32>
    %c0_24 = arith.constant 0 : index
    %c0_25 = arith.constant 0 : index
    %53 = vector.load %arg6[%c0_24, %c0_25] : memref<512x4xf32, #tpu.memory_space<vmem>>, vector<512x4xf32>
    tpu.vector_store %arg6[%c0_24, %c0_25], %52 {strides = array<i32>} : memref<512x4xf32, #tpu.memory_space<vmem>>, vector<512x4xf32>,
    return
  }
  func.func @transform_0(%arg0: i32) -> (i32, i32) {
    %c0_i32 = arith.constant 0 : i32
    %c0_i32_0 = arith.constant 0 : i32
    return %arg0, %c0_i32 : i32, i32
  }
  func.func @transform_1(%arg0: i32) -> (i32, i32) {
    %c0_i32 = arith.constant 0 : i32
    %c0_i32_0 = arith.constant 0 : i32
    %c0_i32_1 = arith.constant 0 : i32
    return %c0_i32, %c0_i32_0 : i32, i32
  }
  func.func @transform_2(%arg0: i32) -> (i32, i32) {
    %c0_i32 = arith.constant 0 : i32
    %c0_i32_0 = arith.constant 0 : i32
    %c0_i32_1 = arith.constant 0 : i32
    return %c0_i32, %c0_i32_0 : i32, i32
  }
  func.func @transform_3(%arg0: i32) -> (i32, i32) {
    %c0_i32 = arith.constant 0 : i32
    %c0_i32_0 = arith.constant 0 : i32
    %c0_i32_1 = arith.constant 0 : i32
    return %c0_i32, %c0_i32_0 : i32, i32
  }
  func.func @transform_4(%arg0: i32) -> (i32, i32) {
    %c0_i32 = arith.constant 0 : i32
    %c0_i32_0 = arith.constant 0 : i32
    %c0_i32_1 = arith.constant 0 : i32
    return %c0_i32, %c0_i32_0 : i32, i32
  }
  func.func @transform_5(%arg0: i32) -> (i32, i32) {
    %c0_i32 = arith.constant 0 : i32
    %c0_i32_0 = arith.constant 0 : i32
    return %arg0, %c0_i32 : i32, i32
  }
}

</mosaic_0001>

<llo_original>
// kernel: convmixer_block.4
$region0: #{convmixer_block.4}
  #allocation0 [shape = 'u32[]', space=smem, size = 0x4, offset = 0x4, fixed_abs, tag = 'smem constant byte address 0x4 - core index']
  #allocation1 [shape = 'u32[144,128]{1,0:T(1,128)}', space=vmem, size = 0x12000, scoped, tag = 'internal scratch']
  %s0 = inlined_call_operand.vmem [shape: f32[2,16,16,4], index: 0, kind: input, shape index: {}]
  %s1 = inlined_call_operand.vmem [shape: f32[2,16,16,4], index: 1, kind: input, shape index: {}]
  %s2 = inlined_call_operand.vmem [shape: f32[1,4], index: 2, kind: input, shape index: {}]
  %s3 = inlined_call_operand.vmem [shape: f32[1,4], index: 3, kind: input, shape index: {}]
  %s4 = inlined_call_operand.vmem [shape: f32[4,4], index: 4, kind: input, shape index: {}]
  %s5 = inlined_call_operand.vmem [shape: f32[1,4], index: 5, kind: input, shape index: {}]
  %s6 = inlined_call_operand.vmem [shape: f32[2,16,16,4], index: 6, kind: output, shape index: {0}]
  %s7 = inlined_call_operand.vmem [shape: f32[2,1,4], index: 7, kind: output, shape index: {1}]
  %s8 = inlined_call_operand.vmem [shape: f32[2,1,4], index: 8, kind: output, shape index: {2}]
  %9 = xla_tuple %s6, %s7, %s8
  %s10 = sld [smem:[#allocation0]]
  $region73: #{convmixer_block.4} parent=0
    _
  %s12 = ssub.s32 1, %s10
  %s13 = scalar_select 0, %s12, %s10
  loop: start=0, step=1, limit=4
  $region2: #{convmixer_block.4} parent=0 // loop_pre_header
    _
  $region3: #{convmixer_block.4} parent=0 // loop_header
    %s15 = sphi 0, %s19
    %p16 = scmp.ge.s32.totalorder %s15, 4
    %s25 = sphi 0, %s27
    %s28 = sphi 0, %s25
    %s29 = sphi 0, %s28
    %s45 = sphi 0, %s29
    %s51 = sphi 0, %s53
    %s54 = sphi 0, %s51
    %s55 = sphi 0, %s54
    %s71 = sphi 0, %s55
    %s75 = sphi 0, %s75
    %s77 = sphi 0, %s75
    %s78 = sphi 0, %s77
    %s92 = sphi 0, %s78
    %s96 = sphi 0, %s96
    %s98 = sphi 0, %s96
    %s99 = sphi 0, %s98
    %s113 = sphi 0, %s99
    %s117 = sphi 0, %s117
    %s119 = sphi 0, %s117
    %s120 = sphi 0, %s119
    %s134 = sphi 0, %s120
    %s138 = sphi 0, %s138
    %s140 = sphi 0, %s138
    %s141 = sphi 0, %s140
    %s155 = sphi 0, %s141
    %s161 = sphi 0, %s163
    %s164 = sphi 0, %s161
    %s165 = sphi 0, %s164
    %s181 = sphi 0, %s165
    %s187 = sphi 0, %s189
    %s190 = sphi 0, %s187
    %s191 = sphi 0, %s190
    %s207 = sphi 0, %s191
    %s213 = sphi 0, %s215
    %s216 = sphi 0, %s213
    %s217 = sphi 0, %s216
    %s233 = sphi 0, %s217
  $region4: #{convmixer_block.4} parent=0 // loop_header_branch
    %18 = sbr.rel (%p16) target = $region8
  $region5: #{convmixer_block.4} parent=0 // loop_body
    %s20 = ssub.s32 %s15, 1
    %s21 = ssub.s32 %s15, 2
    %s22 = sadd.s32 %s15, 1
    %s23 = ssub.s32 %s15, %s22
    %p24 = scmp.eq.s32.totalorder %s23, 0
    %s26 = sadd.s32 %s25, 1
    %s27 = scalar_select %p24, %s25, %s26
    %p30 = pneg %p24
    %p31 = scmp.eq.s32.totalorder %s15, 1
    %p32 = por %p30, %p31
    %p33 = scmp.ne.s32.totalorder %s25, %s28
    %p34 = scmp.eq.s32.totalorder %s15, 0
    %p35 = por %p33, %p34
    %p36 = scmp.ne.s32.totalorder %s25, %s28
    %p37 = scmp.eq.s32.totalorder %s20, 1
    %p38 = por %p36, %p37
    %p39 = scmp.ne.s32.totalorder %s28, %s29
    %p40 = scmp.eq.s32.totalorder %s20, 0
    %p41 = por %p39, %p40
    %p42 = scmp.ne.s32.totalorder %s28, %s29
    %p43 = scmp.eq.s32.totalorder %s21, 1
    %p44 = por %p42, %p43
    %p46 = scmp.ne.s32.totalorder %s29, %s45
    %p47 = scmp.eq.s32.totalorder %s21, 0
    %p48 = por %p46, %p47
    %s49 = ssub.s32 %s15, %s22
    %p50 = scmp.eq.s32.totalorder %s49, 0
    %s52 = sadd.s32 %s51, 1
    %s53 = scalar_select %p50, %s51, %s52
    %p56 = pneg %p50
    %p57 = scmp.eq.s32.totalorder %s15, 1
    %p58 = por %p56, %p57
    %p59 = scmp.ne.s32.totalorder %s51, %s54
    %p60 = scmp.eq.s32.totalorder %s15, 0
    %p61 = por %p59, %p60
    %p62 = scmp.ne.s32.totalorder %s51, %s54
    %p63 = scmp.eq.s32.totalorder %s20, 1
    %p64 = por %p62, %p63
    %p65 = scmp.ne.s32.totalorder %s54, %s55
    %p66 = scmp.eq.s32.totalorder %s20, 0
    %p67 = por %p65, %p66
    %p68 = scmp.ne.s32.totalorder %s54, %s55
    %p69 = scmp.eq.s32.totalorder %s21, 1
    %p70 = por %p68, %p69
    %p72 = scmp.ne.s32.totalorder %s55, %s71
    %p73 = scmp.eq.s32.totalorder %s21, 0
    %p74 = por %p72, %p73
    %s76 = sadd.s32 %s75, 1
    %p79 = scmp.eq.s32.totalorder %s15, 1
    %p80 = scmp.ne.s32.totalorder %s75, %s77
    %p81 = scmp.eq.s32.totalorder %s15, 0
    %p82 = por %p80, %p81
    %p83 = scmp.ne.s32.totalorder %s75, %s77
    %p84 = scmp.eq.s32.totalorder %s20, 1
    %p85 = por %p83, %p84
    %p86 = scmp.ne.s32.totalorder %s77, %s78
    %p87 = scmp.eq.s32.totalorder %s20, 0
    %p88 = por %p86, %p87
    %p89 = scmp.ne.s32.totalorder %s77, %s78
    %p90 = scmp.eq.s32.totalorder %s21, 1
    %p91 = por %p89, %p90
    %p93 = scmp.ne.s32.totalorder %s78, %s92
    %p94 = scmp.eq.s32.totalorder %s21, 0
    %p95 = por %p93, %p94
    %s97 = sadd.s32 %s96, 1
    %p100 = scmp.eq.s32.totalorder %s15, 1
    %p101 = scmp.ne.s32.totalorder %s96, %s98
    %p102 = scmp.eq.s32.totalorder %s15, 0
    %p103 = por %p101, %p102
    %p104 = scmp.ne.s32.totalorder %s96, %s98
    %p105 = scmp.eq.s32.totalorder %s20, 1
    %p106 = por %p104, %p105
    %p107 = scmp.ne.s32.totalorder %s98, %s99
    %p108 = scmp.eq.s32.totalorder %s20, 0
    %p109 = por %p107, %p108
    %p110 = scmp.ne.s32.totalorder %s98, %s99
    %p111 = scmp.eq.s32.totalorder %s21, 1
    %p112 = por %p110, %p111
    %p114 = scmp.ne.s32.totalorder %s99, %s113
    %p115 = scmp.eq.s32.totalorder %s21, 0
    %p116 = por %p114, %p115
    %s118 = sadd.s32 %s117, 1
    %p121 = scmp.eq.s32.totalorder %s15, 1
    %p122 = scmp.ne.s32.totalorder %s117, %s119
    %p123 = scmp.eq.s32.totalorder %s15, 0
    %p124 = por %p122, %p123
    %p125 = scmp.ne.s32.totalorder %s117, %s119
    %p126 = scmp.eq.s32.totalorder %s20, 1
    %p127 = por %p125, %p126
    %p128 = scmp.ne.s32.totalorder %s119, %s120
    %p129 = scmp.eq.s32.totalorder %s20, 0
    %p130 = por %p128, %p129
    %p131 = scmp.ne.s32.totalorder %s119, %s120
    %p132 = scmp.eq.s32.totalorder %s21, 1
    %p133 = por %p131, %p132
    %p135 = scmp.ne.s32.totalorder %s120, %s134
    %p136 = scmp.eq.s32.totalorder %s21, 0
    %p137 = por %p135, %p136
    %s139 = sadd.s32 %s138, 1
    %p142 = scmp.eq.s32.totalorder %s15, 1
    %p143 = scmp.ne.s32.totalorder %s138, %s140
    %p144 = scmp.eq.s32.totalorder %s15, 0
    %p145 = por %p143, %p144
    %p146 = scmp.ne.s32.totalorder %s138, %s140
    %p147 = scmp.eq.s32.totalorder %s20, 1
    %p148 = por %p146, %p147
    %p149 = scmp.ne.s32.totalorder %s140, %s141
    %p150 = scmp.eq.s32.totalorder %s20, 0
    %p151 = por %p149, %p150
    %p152 = scmp.ne.s32.totalorder %s140, %s141
    %p153 = scmp.eq.s32.totalorder %s21, 1
    %p154 = por %p152, %p153
    %p156 = scmp.ne.s32.totalorder %s141, %s155
    %p157 = scmp.eq.s32.totalorder %s21, 0
    %p158 = por %p156, %p157
    %s159 = ssub.s32 %s15, %s22
    %p160 = scmp.eq.s32.totalorder %s159, 0
    %s162 = sadd.s32 %s161, 1
    %s163 = scalar_select %p160, %s161, %s162
    %p166 = pneg %p160
    %p167 = scmp.eq.s32.totalorder %s15, 1
    %p168 = por %p166, %p167
    %p169 = scmp.ne.s32.totalorder %s161, %s164
    %p170 = scmp.eq.s32.totalorder %s15, 0
    %p171 = por %p169, %p170
    %p172 = scmp.ne.s32.totalorder %s161, %s164
    %p173 = scmp.eq.s32.totalorder %s20, 1
    %p174 = por %p172, %p173
    %p175 = scmp.ne.s32.totalorder %s164, %s165
    %p176 = scmp.eq.s32.totalorder %s20, 0
    %p177 = por %p175, %p176
    %p178 = scmp.ne.s32.totalorder %s164, %s165
    %p179 = scmp.eq.s32.totalorder %s21, 1
    %p180 = por %p178, %p179
    %p182 = scmp.ne.s32.totalorder %s165, %s181
    %p183 = scmp.eq.s32.totalorder %s21, 0
    %p184 = por %p182, %p183
    %s185 = ssub.s32 %s15, %s22
    %p186 = scmp.eq.s32.totalorder %s185, 0
    %s188 = sadd.s32 %s187, 1
    %s189 = scalar_select %p186, %s187, %s188
    %p192 = pneg %p186
    %p193 = scmp.eq.s32.totalorder %s15, 1
    %p194 = por %p192, %p193
    %p195 = scmp.ne.s32.totalorder %s187, %s190
    %p196 = scmp.eq.s32.totalorder %s15, 0
    %p197 = por %p195, %p196
    %p198 = scmp.ne.s32.totalorder %s187, %s190
    %p199 = scmp.eq.s32.totalorder %s20, 1
    %p200 = por %p198, %p199
    %p201 = scmp.ne.s32.totalorder %s190, %s191
    %p202 = scmp.eq.s32.totalorder %s20, 0
    %p203 = por %p201, %p202
    %p204 = scmp.ne.s32.totalorder %s190, %s191
    %p205 = scmp.eq.s32.totalorder %s21, 1
    %p206 = por %p204, %p205
    %p208 = scmp.ne.s32.totalorder %s191, %s207
    %p209 = scmp.eq.s32.totalorder %s21, 0
    %p210 = por %p208, %p209
    %s211 = ssub.s32 %s15, %s22
    %p212 = scmp.eq.s32.totalorder %s211, 0
    %s214 = sadd.s32 %s213, 1
    %s215 = scalar_select %p212, %s213, %s214
    %p218 = pneg %p212
    %p219 = scmp.eq.s32.totalorder %s15, 1
    %p220 = por %p218, %p219
    %p221 = scmp.ne.s32.totalorder %s213, %s216
    %p222 = scmp.eq.s32.totalorder %s15, 0
    %p223 = por %p221, %p222
    %p224 = scmp.ne.s32.totalorder %s213, %s216
    %p225 = scmp.eq.s32.totalorder %s20, 1
    %p226 = por %p224, %p225
    %p227 = scmp.ne.s32.totalorder %s216, %s217
    %p228 = scmp.eq.s32.totalorder %s20, 0
    %p229 = por %p227, %p228
    %p230 = scmp.ne.s32.totalorder %s216, %s217
    %p231 = scmp.eq.s32.totalorder %s21, 1
    %p232 = por %p230, %p231
    %p234 = scmp.ne.s32.totalorder %s217, %s233
    %p235 = scmp.eq.s32.totalorder %s21, 0
    %p236 = por %p234, %p235
    %p237 = scmp.le.s32.totalorder 1, %s15
    %p238 = scmp.lt.s32.totalorder %s15, 3
    %p239 = pnand %p237, %p238
    %p240 = pneg %p239
    // Predicated region
    $region9: #{convmixer_block.4} parent=5 // pred_check
      _
    $region10: #{convmixer_block.4} parent=5 // pred_check_branch
      %242 = sbr.rel (%p239) target = $region12
    $region11: #{convmixer_block.4} parent=5 // pred_region
      %s243 = ssub.s32 %s15, 1
      // Predicated region
      $region13: #{convmixer_block.4} parent=11 // pred_check
        %p244 = pneg %p88
      $region14: #{convmixer_block.4} parent=11 // pred_check_branch
        %246 = sbr.rel (%p244) target = $region16
      $region15: #{convmixer_block.4} parent=11 // pred_region
        _
      $region16: #{convmixer_block.4} parent=11 // pred_fallthru
        _
      // Predicated region
      $region17: #{convmixer_block.4} parent=11 // pred_check
        %p247 = pneg %p109
      $region18: #{convmixer_block.4} parent=11 // pred_check_branch
        %249 = sbr.rel (%p247) target = $region20
      $region19: #{convmixer_block.4} parent=11 // pred_region
        _
      $region20: #{convmixer_block.4} parent=11 // pred_fallthru
        _
      // Predicated region
      $region21: #{convmixer_block.4} parent=11 // pred_check
        %p250 = pneg %p130
      $region22: #{convmixer_block.4} parent=11 // pred_check_branch
        %252 = sbr.rel (%p250) target = $region24
      $region23: #{convmixer_block.4} parent=11 // pred_region
        _
      $region24: #{convmixer_block.4} parent=11 // pred_fallthru
        _
      // Predicated region
      $region25: #{convmixer_block.4} parent=11 // pred_check
        %p253 = pneg %p151
      $region26: #{convmixer_block.4} parent=11 // pred_check_branch
        %255 = sbr.rel (%p253) target = $region28
      $region27: #{convmixer_block.4} parent=11 // pred_region
        _
      $region28: #{convmixer_block.4} parent=11 // pred_fallthru
        _
    $region12: #{convmixer_block.4} parent=5 // pred_fallthru
      _
    %p256 = scmp.lt.s32.totalorder %s15, 2
    // Predicated region
    $region29: #{convmixer_block.4} parent=5 // pred_check
      %p257 = pneg %p256
    $region30: #{convmixer_block.4} parent=5 // pred_check_branch
      %259 = sbr.rel (%p257) target = $region32
    $region31: #{convmixer_block.4} parent=5 // pred_region
      // Predicated region
      $region33: #{convmixer_block.4} parent=31 // pred_check
        %p260 = pneg %p35
      $region34: #{convmixer_block.4} parent=31 // pred_check_branch
        %262 = sbr.rel (%p260) target = $region36
      $region35: #{convmixer_block.4} parent=31 // pred_region
        %p263 = scmp.lt.s32.totalorder %s15, 1
        %s264 = scalar_select %p263, %s15, 1
        %s265 = smul.addr %s264, 32
        %s266 = smul.addr %s265, 8
        %s267 = scalar_lea.vmem %s0, %s266
      $region36: #{convmixer_block.4} parent=31 // pred_fallthru
        _
      // Predicated region
      $region37: #{convmixer_block.4} parent=31 // pred_check
        %p268 = pneg %p61
      $region38: #{convmixer_block.4} parent=31 // pred_check_branch
        %270 = sbr.rel (%p268) target = $region40
      $region39: #{convmixer_block.4} parent=31 // pred_region
        %p271 = scmp.lt.s32.totalorder %s15, 1
        %s272 = scalar_select %p271, %s15, 1
        %s273 = smul.addr %s272, 32
        %s274 = smul.addr %s273, 8
        %s275 = scalar_lea.vmem %s1, %s274
      $region40: #{convmixer_block.4} parent=31 // pred_fallthru
        _
    $region32: #{convmixer_block.4} parent=5 // pred_fallthru
      _
    %p276 = scmp.le.s32.totalorder 1, %s15
    %p277 = scmp.lt.s32.totalorder %s15, 3
    %p278 = pnand %p276, %p277
    %p279 = pneg %p278
    // Predicated region
    $region41: #{convmixer_block.4} parent=5 // pred_check
      _
    $region42: #{convmixer_block.4} parent=5 // pred_check_branch
      %281 = sbr.rel (%p278) target = $region44
    $region43: #{convmixer_block.4} parent=5 // pred_region
      %s282 = ssub.s32 %s15, 1
      %p283 = scmp.lt.s32.totalorder %s20, 1
      %s284 = scalar_select %p283, %s20, 1
      %s285 = smul.addr %s284, 32
      %s286 = smul.addr %s285, 8
      %s287 = scalar_lea.vmem %s0, %s286
      %p288 = pneg %p41
      %p289 = pneg %p38
      %p290 = scmp.lt.s32.totalorder %s20, 1
      %s291 = scalar_select %p290, %s20, 1
      %s292 = smul.addr %s291, 32
      %s293 = smul.addr %s292, 8
      %s294 = scalar_lea.vmem %s1, %s293
      %p295 = pneg %p67
      %p296 = pneg %p64
      %p297 = pneg %p88
      %p298 = pneg %p85
      %p299 = pneg %p109
      %p300 = pneg %p106
      %p301 = pneg %p130
      %p302 = pneg %p127
      %p303 = pneg %p151
      %p304 = pneg %p148
      %p305 = pneg %p177
      %p306 = pneg %p174
      %p307 = scmp.lt.s32.totalorder %s20, 1
      %s308 = scalar_select %p307, %s20, 1
      %s309 = smul.addr %s308, 32
      %s310 = smul.addr %s309, 8
      %s311 = scalar_lea.vmem %s6, %s310
      %p312 = pneg %p203
      %p313 = pneg %p200
      %p314 = scmp.lt.s32.totalorder %s20, 1
      %s315 = scalar_select %p314, %s20, 1
      %s316 = scalar_lea.vmem %s7, %s315
      %p317 = pneg %p229
      %p318 = pneg %p226
      %p319 = scmp.lt.s32.totalorder %s20, 1
      %s320 = scalar_select %p319, %s20, 1
      %s321 = scalar_lea.vmem %s8, %s320
      %p322 = scmp.lt.s32.totalorder %s20, 1
      %s323 = scalar_select %p322, %s20, 1
      %s324 = smul.addr %s323, 32
      %s325 = smul.addr %s324, 8
      %s326 = scalar_lea.vmem %s0, %s325
      %p327 = scmp.lt.s32.totalorder %s20, 1
      %s328 = scalar_select %p327, %s20, 1
      %s329 = smul.addr %s328, 32
      %s330 = smul.addr %s329, 8
      %s331 = scalar_lea.vmem %s1, %s330
      %p332 = scmp.lt.s32.totalorder %s20, 1
      %s333 = scalar_select %p332, %s20, 1
      %s334 = smul.addr %s333, 32
      %s335 = smul.addr %s334, 8
      %s336 = scalar_lea.vmem %s6, %s335
      %p337 = scmp.lt.s32.totalorder %s20, 1
      %s338 = scalar_select %p337, %s20, 1
      %s339 = scalar_lea.vmem %s7, %s338
      %p340 = scmp.lt.s32.totalorder %s20, 1
      %s341 = scalar_select %p340, %s20, 1
      %s342 = scalar_lea.vmem %s8, %s341
      %v343 = vld [vmem:[%s331] sm:$0xff]
      %v344 = vld [vmem:[%s331 + $0x8] sm:$0xff]
      %v345 = vld [vmem:[%s331 + $0x10] sm:$0xff]
      %v346 = vld [vmem:[%s331 + $0x18] sm:$0xff]
      %v347 = vld [vmem:[%s331 + $0x20] sm:$0xff]
      %v348 = vld [vmem:[%s331 + $0x28] sm:$0xff]
      %v349 = vld [vmem:[%s331 + $0x30] sm:$0xff]
      %v350 = vld [vmem:[%s331 + $0x38] sm:$0xff]
      %v351 = vld [vmem:[%s331 + $0x40] sm:$0xff]
      %v352 = vld [vmem:[%s331 + $0x48] sm:$0xff]
      %v353 = vld [vmem:[%s331 + $0x50] sm:$0xff]
      %v354 = vld [vmem:[%s331 + $0x58] sm:$0xff]
      %v355 = vld [vmem:[%s331 + $0x60] sm:$0xff]
      %v356 = vld [vmem:[%s331 + $0x68] sm:$0xff]
      %v357 = vld [vmem:[%s331 + $0x70] sm:$0xff]
      %v358 = vld [vmem:[%s331 + $0x78] sm:$0xff]
      %v359 = vld [vmem:[%s331 + $0x80] sm:$0xff]
      %v360 = vld [vmem:[%s331 + $0x88] sm:$0xff]
      %v361 = vld [vmem:[%s331 + $0x90] sm:$0xff]
      %v362 = vld [vmem:[%s331 + $0x98] sm:$0xff]
      %v363 = vld [vmem:[%s331 + $0xa0] sm:$0xff]
      %v364 = vld [vmem:[%s331 + $0xa8] sm:$0xff]
      %v365 = vld [vmem:[%s331 + $0xb0] sm:$0xff]
      %v366 = vld [vmem:[%s331 + $0xb8] sm:$0xff]
      %v367 = vld [vmem:[%s331 + $0xc0] sm:$0xff]
      %v368 = vld [vmem:[%s331 + $0xc8] sm:$0xff]
      %v369 = vld [vmem:[%s331 + $0xd0] sm:$0xff]
      %v370 = vld [vmem:[%s331 + $0xd8] sm:$0xff]
      %v371 = vld [vmem:[%s331 + $0xe0] sm:$0xff]
      %v372 = vld [vmem:[%s331 + $0xe8] sm:$0xff]
      %v373 = vld [vmem:[%s331 + $0xf0] sm:$0xff]
      %v374 = vld [vmem:[%s331 + $0xf8] sm:$0xff]
      %v375 = vld [vmem:[%s2] sm:$0x1]
      %v377 = vlaneseq
      %v378 = vshrl.u32 %v377, 7
      %v379 = vsub.s32 0, %v378
      %v380 = vrot.slane %v375, %v379
      %v382 = vmul.f32 %v343, %v380
      %v383 = vmul.f32 %v344, %v380
      %v384 = vmul.f32 %v345, %v380
      %v385 = vmul.f32 %v346, %v380
      %v386 = vmul.f32 %v347, %v380
      %v387 = vmul.f32 %v348, %v380
      %v388 = vmul.f32 %v349, %v380
      %v389 = vmul.f32 %v350, %v380
      %v390 = vmul.f32 %v351, %v380
      %v391 = vmul.f32 %v352, %v380
      %v392 = vmul.f32 %v353, %v380
      %v393 = vmul.f32 %v354, %v380
      %v394 = vmul.f32 %v355, %v380
      %v395 = vmul.f32 %v356, %v380
      %v396 = vmul.f32 %v357, %v380
      %v397 = vmul.f32 %v358, %v380
      %v398 = vmul.f32 %v359, %v380
      %v399 = vmul.f32 %v360, %v380
      %v400 = vmul.f32 %v361, %v380
      %v401 = vmul.f32 %v362, %v380
      %v402 = vmul.f32 %v363, %v380
      %v403 = vmul.f32 %v364, %v380
      %v404 = vmul.f32 %v365, %v380
      %v405 = vmul.f32 %v366, %v380
      %v406 = vmul.f32 %v367, %v380
      %v407 = vmul.f32 %v368, %v380
      %v408 = vmul.f32 %v369, %v380
      %v409 = vmul.f32 %v370, %v380
      %v410 = vmul.f32 %v371, %v380
      %v411 = vmul.f32 %v372, %v380
      %v412 = vmul.f32 %v373, %v380
      %v413 = vmul.f32 %v374, %v380
      %v414 = vld [vmem:[%s3] sm:$0x1]
      %v416 = vlaneseq
      %v417 = vshrl.u32 %v416, 7
      %v418 = vsub.s32 0, %v417
      %v419 = vrot.slane %v414, %v418
      %v421 = vadd.f32 %v382, %v419
      %v422 = vadd.f32 %v383, %v419
      %v423 = vadd.f32 %v384, %v419
      %v424 = vadd.f32 %v385, %v419
      %v425 = vadd.f32 %v386, %v419
      %v426 = vadd.f32 %v387, %v419
      %v427 = vadd.f32 %v388, %v419
      %v428 = vadd.f32 %v389, %v419
      %v429 = vadd.f32 %v390, %v419
      %v430 = vadd.f32 %v391, %v419
      %v431 = vadd.f32 %v392, %v419
      %v432 = vadd.f32 %v393, %v419
      %v433 = vadd.f32 %v394, %v419
      %v434 = vadd.f32 %v395, %v419
      %v435 = vadd.f32 %v396, %v419
      %v436 = vadd.f32 %v397, %v419
      %v437 = vadd.f32 %v398, %v419
      %v438 = vadd.f32 %v399, %v419
      %v439 = vadd.f32 %v400, %v419
      %v440 = vadd.f32 %v401, %v419
      %v441 = vadd.f32 %v402, %v419
      %v442 = vadd.f32 %v403, %v419
      %v443 = vadd.f32 %v404, %v419
      %v444 = vadd.f32 %v405, %v419
      %v445 = vadd.f32 %v406, %v419
      %v446 = vadd.f32 %v407, %v419
      %v447 = vadd.f32 %v408, %v419
      %v448 = vadd.f32 %v409, %v419
      %v449 = vadd.f32 %v410, %v419
      %v450 = vadd.f32 %v411, %v419
      %v451 = vadd.f32 %v412, %v419
      %v452 = vadd.f32 %v413, %v419
      %v453 = vld [vmem:[%s326] sm:$0xff]
      %v454 = vld [vmem:[%s326 + $0x8] sm:$0xff]
      %v455 = vld [vmem:[%s326 + $0x10] sm:$0xff]
      %v456 = vld [vmem:[%s326 + $0x18] sm:$0xff]
      %v457 = vld [vmem:[%s326 + $0x20] sm:$0xff]
      %v458 = vld [vmem:[%s326 + $0x28] sm:$0xff]
      %v459 = vld [vmem:[%s326 + $0x30] sm:$0xff]
      %v460 = vld [vmem:[%s326 + $0x38] sm:$0xff]
      %v461 = vld [vmem:[%s326 + $0x40] sm:$0xff]
      %v462 = vld [vmem:[%s326 + $0x48] sm:$0xff]
      %v463 = vld [vmem:[%s326 + $0x50] sm:$0xff]
      %v464 = vld [vmem:[%s326 + $0x58] sm:$0xff]
      %v465 = vld [vmem:[%s326 + $0x60] sm:$0xff]
      %v466 = vld [vmem:[%s326 + $0x68] sm:$0xff]
      %v467 = vld [vmem:[%s326 + $0x70] sm:$0xff]
      %v468 = vld [vmem:[%s326 + $0x78] sm:$0xff]
      %v469 = vld [vmem:[%s326 + $0x80] sm:$0xff]
      %v470 = vld [vmem:[%s326 + $0x88] sm:$0xff]
      %v471 = vld [vmem:[%s326 + $0x90] sm:$0xff]
      %v472 = vld [vmem:[%s326 + $0x98] sm:$0xff]
      %v473 = vld [vmem:[%s326 + $0xa0] sm:$0xff]
      %v474 = vld [vmem:[%s326 + $0xa8] sm:$0xff]
      %v475 = vld [vmem:[%s326 + $0xb0] sm:$0xff]
      %v476 = vld [vmem:[%s326 + $0xb8] sm:$0xff]
      %v477 = vld [vmem:[%s326 + $0xc0] sm:$0xff]
      %v478 = vld [vmem:[%s326 + $0xc8] sm:$0xff]
      %v479 = vld [vmem:[%s326 + $0xd0] sm:$0xff]
      %v480 = vld [vmem:[%s326 + $0xd8] sm:$0xff]
      %v481 = vld [vmem:[%s326 + $0xe0] sm:$0xff]
      %v482 = vld [vmem:[%s326 + $0xe8] sm:$0xff]
      %v483 = vld [vmem:[%s326 + $0xf0] sm:$0xff]
      %v484 = vld [vmem:[%s326 + $0xf8] sm:$0xff]
      %v485 = vadd.f32 %v421, %v453
      %v486 = vadd.f32 %v422, %v454
      %v487 = vadd.f32 %v423, %v455
      %v488 = vadd.f32 %v424, %v456
      %v489 = vadd.f32 %v425, %v457
      %v490 = vadd.f32 %v426, %v458
      %v491 = vadd.f32 %v427, %v459
      %v492 = vadd.f32 %v428, %v460
      %v493 = vadd.f32 %v429, %v461
      %v494 = vadd.f32 %v430, %v462
      %v495 = vadd.f32 %v431, %v463
      %v496 = vadd.f32 %v432, %v464
      %v497 = vadd.f32 %v433, %v465
      %v498 = vadd.f32 %v434, %v466
      %v499 = vadd.f32 %v435, %v467
      %v500 = vadd.f32 %v436, %v468
      %v501 = vadd.f32 %v437, %v469
      %v502 = vadd.f32 %v438, %v470
      %v503 = vadd.f32 %v439, %v471
      %v504 = vadd.f32 %v440, %v472
      %v505 = vadd.f32 %v441, %v473
      %v506 = vadd.f32 %v442, %v474
      %v507 = vadd.f32 %v443, %v475
      %v508 = vadd.f32 %v444, %v476
      %v509 = vadd.f32 %v445, %v477
      %v510 = vadd.f32 %v446, %v478
      %v511 = vadd.f32 %v447, %v479
      %v512 = vadd.f32 %v448, %v480
      %v513 = vadd.f32 %v449, %v481
      %v514 = vadd.f32 %v450, %v482
      %v515 = vadd.f32 %v451, %v483
      %v516 = vadd.f32 %v452, %v484
      %vm517 = vcmask 31744
      %518 = vst.msk [vmem:[%s336] sm:$0xff] %vm517, %v485
      %519 = vst.msk [vmem:[%s336 + $0x8] sm:$0xff] %vm517, %v486
      %520 = vst.msk [vmem:[%s336 + $0x10] sm:$0xff] %vm517, %v487
      %521 = vst.msk [vmem:[%s336 + $0x18] sm:$0xff] %vm517, %v488
      %522 = vst.msk [vmem:[%s336 + $0x20] sm:$0xff] %vm517, %v489
      %523 = vst.msk [vmem:[%s336 + $0x28] sm:$0xff] %vm517, %v490
      %524 = vst.msk [vmem:[%s336 + $0x30] sm:$0xff] %vm517, %v491
      %525 = vst.msk [vmem:[%s336 + $0x38] sm:$0xff] %vm517, %v492
      %526 = vst.msk [vmem:[%s336 + $0x40] sm:$0xff] %vm517, %v493
      %527 = vst.msk [vmem:[%s336 + $0x48] sm:$0xff] %vm517, %v494
      %528 = vst.msk [vmem:[%s336 + $0x50] sm:$0xff] %vm517, %v495
      %529 = vst.msk [vmem:[%s336 + $0x58] sm:$0xff] %vm517, %v496
      %530 = vst.msk [vmem:[%s336 + $0x60] sm:$0xff] %vm517, %v497
      %531 = vst.msk [vmem:[%s336 + $0x68] sm:$0xff] %vm517, %v498
      %532 = vst.msk [vmem:[%s336 + $0x70] sm:$0xff] %vm517, %v499
      %533 = vst.msk [vmem:[%s336 + $0x78] sm:$0xff] %vm517, %v500
      %534 = vst.msk [vmem:[%s336 + $0x80] sm:$0xff] %vm517, %v501
      %535 = vst.msk [vmem:[%s336 + $0x88] sm:$0xff] %vm517, %v502
      %536 = vst.msk [vmem:[%s336 + $0x90] sm:$0xff] %vm517, %v503
      %537 = vst.msk [vmem:[%s336 + $0x98] sm:$0xff] %vm517, %v504
      %538 = vst.msk [vmem:[%s336 + $0xa0] sm:$0xff] %vm517, %v505
      %539 = vst.msk [vmem:[%s336 + $0xa8] sm:$0xff] %vm517, %v506
      %540 = vst.msk [vmem:[%s336 + $0xb0] sm:$0xff] %vm517, %v507
      %541 = vst.msk [vmem:[%s336 + $0xb8] sm:$0xff] %vm517, %v508
      %542 = vst.msk [vmem:[%s336 + $0xc0] sm:$0xff] %vm517, %v509
      %543 = vst.msk [vmem:[%s336 + $0xc8] sm:$0xff] %vm517, %v510
      %544 = vst.msk [vmem:[%s336 + $0xd0] sm:$0xff] %vm517, %v511
      %545 = vst.msk [vmem:[%s336 + $0xd8] sm:$0xff] %vm517, %v512
      %546 = vst.msk [vmem:[%s336 + $0xe0] sm:$0xff] %vm517, %v513
      %547 = vst.msk [vmem:[%s336 + $0xe8] sm:$0xff] %vm517, %v514
      %548 = vst.msk [vmem:[%s336 + $0xf0] sm:$0xff] %vm517, %v515
      %549 = vst.msk [vmem:[%s336 + $0xf8] sm:$0xff] %vm517, %v516
      %v550 = vld [vmem:[%s4] sm:$0xf]
      %v551 = vld [vmem:[%s5] sm:$0x1]
      %v553 = vlaneseq
      %v554 = vshrl.u32 %v553, 7
      %v555 = vsub.s32 0, %v554
      %v556 = vrot.slane %v551, %v555
      %v559 = vsel %vm517, %v485, 0
      %v562 = vsel %vm517, %v486, 0
      %v565 = vsel %vm517, %v487, 0
      %v568 = vsel %vm517, %v488, 0
      %v571 = vsel %vm517, %v489, 0
      %v574 = vsel %vm517, %v490, 0
      %v577 = vsel %vm517, %v491, 0
      %v580 = vsel %vm517, %v492, 0
      %v583 = vsel %vm517, %v493, 0
      %v586 = vsel %vm517, %v494, 0
      %v589 = vsel %vm517, %v495, 0
      %v592 = vsel %vm517, %v496, 0
      %v595 = vsel %vm517, %v497, 0
      %v598 = vsel %vm517, %v498, 0
      %v601 = vsel %vm517, %v499, 0
      %v604 = vsel %vm517, %v500, 0
      %v607 = vsel %vm517, %v501, 0
      %v610 = vsel %vm517, %v502, 0
      %v613 = vsel %vm517, %v503, 0
      %v616 = vsel %vm517, %v504, 0
      %v619 = vsel %vm517, %v505, 0
      %v622 = vsel %vm517, %v506, 0
      %v625 = vsel %vm517, %v507, 0
      %v628 = vsel %vm517, %v508, 0
      %v631 = vsel %vm517, %v509, 0
      %v634 = vsel %vm517, %v510, 0
      %v637 = vsel %vm517, %v511, 0
      %v640 = vsel %vm517, %v512, 0
      %v643 = vsel %vm517, %v513, 0
      %v646 = vsel %vm517, %v514, 0
      %v649 = vsel %vm517, %v515, 0
      %v652 = vsel %vm517, %v516, 0
      %vm654 = vcmask 1043456
      %v656 = vsel %vm654, %v550, 0
      %658 = vmatprep.subr.mxu0 0.0
      %659 = vmatpush1.msra.mxu0 %v656
      %660 = vmatprep.subr.mxu0 0.0
      %661 = vmatpush1.msra.mxu0 0.0
      %662 = vmatprep.subr.mxu0 0.0
      %663 = vmatpush1.msra.mxu0 0.0
      %664 = vmatprep.subr.mxu0 0.0
      %665 = vmatpush1.msra.mxu0 0.0
      %666 = vmatprep.subr.mxu0 0.0
      %667 = vmatpush1.msra.mxu0 0.0
      %668 = vmatprep.subr.mxu0 0.0
      %669 = vmatpush1.msra.mxu0 0.0
      %670 = vmatprep.subr.mxu0 0.0
      %671 = vmatpush1.msra.mxu0 0.0
      %672 = vmatprep.subr.mxu0 0.0
      %673 = vmatpush1.msra.mxu0 0.0
      %674 = vmatprep.subr.mxu0 0.0
      %675 = vmatpush1.msra.mxu0 0.0
      %676 = vmatprep.subr.mxu0 0.0
      %677 = vmatpush1.msra.mxu0 0.0
      %678 = vmatprep.subr.mxu0 0.0
      %679 = vmatpush1.msra.mxu0 0.0
      %680 = vmatprep.subr.mxu0 0.0
      %681 = vmatpush1.msra.mxu0 0.0
      %682 = vmatprep.subr.mxu0 0.0
      %683 = vmatpush1.msra.mxu0 0.0
      %684 = vmatprep.subr.mxu0 0.0
      %685 = vmatpush1.msra.mxu0 0.0
      %686 = vmatprep.subr.mxu0 0.0
      %687 = vmatpush1.msra.mxu0 0.0
      %688 = vmatprep.subr.mxu0 0.0
      %689 = vmatpush1.msra.mxu0 0.0
      %690 = vmatprep.subr.mxu0 0.0
      %691 = vmatpush1.msra.mxu0 0.0
      %692 = vmatprep.subr.mxu0 0.0
      %693 = vmatpush1.msra.mxu0 0.0
      %694 = vmatprep.subr.mxu0 0.0
      %695 = vmatpush1.msra.mxu0 0.0
      %696 = vmatprep.subr.mxu0 0.0
      %697 = vmatpush1.msra.mxu0 0.0
      %698 = vmatprep.subr.mxu0 0.0
      %699 = vmatpush1.msra.mxu0 0.0
      %700 = vmatprep.subr.mxu0 0.0
      %701 = vmatpush1.msra.mxu0 0.0
      %702 = vmatprep.subr.mxu0 0.0
      %703 = vmatpush1.msra.mxu0 0.0
      %704 = vmatprep.subr.mxu0 0.0
      %705 = vmatpush1.msra.mxu0 0.0
      %706 = vmatprep.subr.mxu0 0.0
      %707 = vmatpush1.msra.mxu0 0.0
      %708 = vmatprep.subr.mxu0 0.0
      %709 = vmatpush1.msra.mxu0 0.0
      %710 = vmatprep.subr.mxu0 0.0
      %711 = vmatpush1.msra.mxu0 0.0
      %712 = vmatprep.subr.mxu0 0.0
      %713 = vmatpush1.msra.mxu0 0.0
      %714 = vmatprep.subr.mxu0 0.0
      %715 = vmatpush1.msra.mxu0 0.0
      %716 = vmatprep.subr.mxu0 0.0
      %717 = vmatpush1.msra.mxu0 0.0
      %718 = vmatprep.subr.mxu0 0.0
      %719 = vmatpush1.msra.mxu0 0.0
      %720 = vmatprep.subr.mxu0 0.0
      %721 = vmatpush1.msra.mxu0 0.0
      %722 = vmatprep.mubr.f32.mxu0 0.0
      %723 = vmatmul.mubr.f32.gmra.mrb[0].mxu0 %v559
      %v724 = vpop.f32.mrb[0].mxu0
      %v725 = vadd.f32 %v556, %v724
      %v726 = vpop.f32.mrb[0].mxu0
      %727 = vmatprep.mubr.f32.mxu0 0.0
      %728 = vmatmul.mubr.f32.gmra.mrb[0].mxu0 %v562
      %v729 = vpop.f32.mrb[0].mxu0
      %v730 = vadd.f32 %v556, %v729
      %v731 = vpop.f32.mrb[0].mxu0
      %732 = vmatprep.mubr.f32.mxu0 0.0
      %733 = vmatmul.mubr.f32.gmra.mrb[0].mxu0 %v565
      %v734 = vpop.f32.mrb[0].mxu0
      %v735 = vadd.f32 %v556, %v734
      %v736 = vpop.f32.mrb[0].mxu0
      %737 = vmatprep.mubr.f32.mxu0 0.0
      %738 = vmatmul.mubr.f32.gmra.mrb[0].mxu0 %v568
      %v739 = vpop.f32.mrb[0].mxu0
      %v740 = vadd.f32 %v556, %v739
      %v741 = vpop.f32.mrb[0].mxu0
      %742 = vmatprep.mubr.f32.mxu0 0.0
      %743 = vmatmul.mubr.f32.gmra.mrb[0].mxu0 %v571
      %v744 = vpop.f32.mrb[0].mxu0
      %v745 = vadd.f32 %v556, %v744
      %v746 = vpop.f32.mrb[0].mxu0
      %747 = vmatprep.mubr.f32.mxu0 0.0
      %748 = vmatmul.mubr.f32.gmra.mrb[0].mxu0 %v574
      %v749 = vpop.f32.mrb[0].mxu0
      %v750 = vadd.f32 %v556, %v749
      %v751 = vpop.f32.mrb[0].mxu0
      %752 = vmatprep.mubr.f32.mxu0 0.0
      %753 = vmatmul.mubr.f32.gmra.mrb[0].mxu0 %v577
      %v754 = vpop.f32.mrb[0].mxu0
      %v755 = vadd.f32 %v556, %v754
      %v756 = vpop.f32.mrb[0].mxu0
      %757 = vmatprep.mubr.f32.mxu0 0.0
      %758 = vmatmul.mubr.f32.gmra.mrb[0].mxu0 %v580
      %v759 = vpop.f32.mrb[0].mxu0
      %v760 = vadd.f32 %v556, %v759
      %v761 = vpop.f32.mrb[0].mxu0
      %762 = vmatprep.mubr.f32.mxu0 0.0
      %763 = vmatmul.mubr.f32.gmra.mrb[0].mxu0 %v583
      %v764 = vpop.f32.mrb[0].mxu0
      %v765 = vadd.f32 %v556, %v764
      %v766 = vpop.f32.mrb[0].mxu0
      %767 = vmatprep.mubr.f32.mxu0 0.0
      %768 = vmatmul.mubr.f32.gmra.mrb[0].mxu0 %v586
      %v769 = vpop.f32.mrb[0].mxu0
      %v770 = vadd.f32 %v556, %v769
      %v771 = vpop.f32.mrb[0].mxu0
      %772 = vmatprep.mubr.f32.mxu0 0.0
      %773 = vmatmul.mubr.f32.gmra.mrb[0].mxu0 %v589
      %v774 = vpop.f32.mrb[0].mxu0
      %v775 = vadd.f32 %v556, %v774
      %v776 = vpop.f32.mrb[0].mxu0
      %777 = vmatprep.mubr.f32.mxu0 0.0
      %778 = vmatmul.mubr.f32.gmra.mrb[0].mxu0 %v592
      %v779 = vpop.f32.mrb[0].mxu0
      %v780 = vadd.f32 %v556, %v779
      %v781 = vpop.f32.mrb[0].mxu0
      %782 = vmatprep.mubr.f32.mxu0 0.0
      %783 = vmatmul.mubr.f32.gmra.mrb[0].mxu0 %v595
      %v784 = vpop.f32.mrb[0].mxu0
      %v785 = vadd.f32 %v556, %v784
      %v786 = vpop.f32.mrb[0].mxu0
      %787 = vmatprep.mubr.f32.mxu0 0.0
      %788 = vmatmul.mubr.f32.gmra.mrb[0].mxu0 %v598
      %v789 = vpop.f32.mrb[0].mxu0
      %v790 = vadd.f32 %v556, %v789
      %v791 = vpop.f32.mrb[0].mxu0
      %792 = vmatprep.mubr.f32.mxu0 0.0
      %793 = vmatmul.mubr.f32.gmra.mrb[0].mxu0 %v601
      %v794 = vpop.f32.mrb[0].mxu0
      %v795 = vadd.f32 %v556, %v794
      %v796 = vpop.f32.mrb[0].mxu0
      %797 = vmatprep.mubr.f32.mxu0 0.0
      %798 = vmatmul.mubr.f32.gmra.mrb[0].mxu0 %v604
      %v799 = vpop.f32.mrb[0].mxu0
      %v800 = vadd.f32 %v556, %v799
      %v801 = vpop.f32.mrb[0].mxu0
      %802 = vmatprep.mubr.f32.mxu0 0.0
      %803 = vmatmul.mubr.f32.gmra.mrb[0].mxu0 %v607
      %v804 = vpop.f32.mrb[0].mxu0
      %v805 = vadd.f32 %v556, %v804
      %v806 = vpop.f32.mrb[0].mxu0
      %807 = vmatprep.mubr.f32.mxu0 0.0
      %808 = vmatmul.mubr.f32.gmra.mrb[0].mxu0 %v610
      %v809 = vpop.f32.mrb[0].mxu0
      %v810 = vadd.f32 %v556, %v809
      %v811 = vpop.f32.mrb[0].mxu0
      %812 = vmatprep.mubr.f32.mxu0 0.0
      %813 = vmatmul.mubr.f32.gmra.mrb[0].mxu0 %v613
      %v814 = vpop.f32.mrb[0].mxu0
      %v815 = vadd.f32 %v556, %v814
      %v816 = vpop.f32.mrb[0].mxu0
      %817 = vmatprep.mubr.f32.mxu0 0.0
      %818 = vmatmul.mubr.f32.gmra.mrb[0].mxu0 %v616
      %v819 = vpop.f32.mrb[0].mxu0
      %v820 = vadd.f32 %v556, %v819
      %v821 = vpop.f32.mrb[0].mxu0
      %822 = vmatprep.mubr.f32.mxu0 0.0
      %823 = vmatmul.mubr.f32.gmra.mrb[0].mxu0 %v619
      %v824 = vpop.f32.mrb[0].mxu0
      %v825 = vadd.f32 %v556, %v824
      %v826 = vpop.f32.mrb[0].mxu0
      %827 = vmatprep.mubr.f32.mxu0 0.0
      %828 = vmatmul.mubr.f32.gmra.mrb[0].mxu0 %v622
      %v829 = vpop.f32.mrb[0].mxu0
      %v830 = vadd.f32 %v556, %v829
      %v831 = vpop.f32.mrb[0].mxu0
      %832 = vmatprep.mubr.f32.mxu0 0.0
      %833 = vmatmul.mubr.f32.gmra.mrb[0].mxu0 %v625
      %v834 = vpop.f32.mrb[0].mxu0
      %v835 = vadd.f32 %v556, %v834
      %v836 = vpop.f32.mrb[0].mxu0
      %837 = vmatprep.mubr.f32.mxu0 0.0
      %838 = vmatmul.mubr.f32.gmra.mrb[0].mxu0 %v628
      %v839 = vpop.f32.mrb[0].mxu0
      %v840 = vadd.f32 %v556, %v839
      %v841 = vpop.f32.mrb[0].mxu0
      %842 = vmatprep.mubr.f32.mxu0 0.0
      %843 = vmatmul.mubr.f32.gmra.mrb[0].mxu0 %v631
      %v844 = vpop.f32.mrb[0].mxu0
      %v845 = vadd.f32 %v556, %v844
      %v846 = vpop.f32.mrb[0].mxu0
      %847 = vmatprep.mubr.f32.mxu0 0.0
      %848 = vmatmul.mubr.f32.gmra.mrb[0].mxu0 %v634
      %v849 = vpop.f32.mrb[0].mxu0
      %v850 = vadd.f32 %v556, %v849
      %v851 = vpop.f32.mrb[0].mxu0
      %852 = vmatprep.mubr.f32.mxu0 0.0
      %853 = vmatmul.mubr.f32.gmra.mrb[0].mxu0 %v637
      %v854 = vpop.f32.mrb[0].mxu0
      %v855 = vadd.f32 %v556, %v854
      %v856 = vpop.f32.mrb[0].mxu0
      %857 = vmatprep.mubr.f32.mxu0 0.0
      %858 = vmatmul.mubr.f32.gmra.mrb[0].mxu0 %v640
      %v859 = vpop.f32.mrb[0].mxu0
      %v860 = vadd.f32 %v556, %v859
      %v861 = vpop.f32.mrb[0].mxu0
      %862 = vmatprep.mubr.f32.mxu0 0.0
      %863 = vmatmul.mubr.f32.gmra.mrb[0].mxu0 %v643
      %v864 = vpop.f32.mrb[0].mxu0
      %v865 = vadd.f32 %v556, %v864
      %v866 = vpop.f32.mrb[0].mxu0
      %867 = vmatprep.mubr.f32.mxu0 0.0
      %868 = vmatmul.mubr.f32.gmra.mrb[0].mxu0 %v646
      %v869 = vpop.f32.mrb[0].mxu0
      %v870 = vadd.f32 %v556, %v869
      %v871 = vpop.f32.mrb[0].mxu0
      %872 = vmatprep.mubr.f32.mxu0 0.0
      %873 = vmatmul.mubr.f32.gmra.mrb[0].mxu0 %v649
      %v874 = vpop.f32.mrb[0].mxu0
      %v875 = vadd.f32 %v556, %v874
      %v876 = vpop.f32.mrb[0].mxu0
      %877 = vmatprep.mubr.f32.mxu0 0.0
      %878 = vmatmul.mubr.f32.gmra.mrb[0].mxu0 %v652
      %v879 = vpop.f32.mrb[0].mxu0
      %v880 = vadd.f32 %v556, %v879
      %v881 = vpop.f32.mrb[0].mxu0
      %882 = vdwg.mxu0
      %v883 = vmul.f32 %v725, 0.5
      %v884 = vmul.f32 %v730, 0.5
      %v885 = vmul.f32 %v735, 0.5
      %v886 = vmul.f32 %v740, 0.5
      %v887 = vmul.f32 %v745, 0.5
      %v888 = vmul.f32 %v750, 0.5
      %v889 = vmul.f32 %v755, 0.5
      %v890 = vmul.f32 %v760, 0.5
      %v891 = vmul.f32 %v765, 0.5
      %v892 = vmul.f32 %v770, 0.5
      %v893 = vmul.f32 %v775, 0.5
      %v894 = vmul.f32 %v780, 0.5
      %v895 = vmul.f32 %v785, 0.5
      %v896 = vmul.f32 %v790, 0.5
      %v897 = vmul.f32 %v795, 0.5
      %v898 = vmul.f32 %v800, 0.5
      %v899 = vmul.f32 %v805, 0.5
      %v900 = vmul.f32 %v810, 0.5
      %v901 = vmul.f32 %v815, 0.5
      %v902 = vmul.f32 %v820, 0.5
      %v903 = vmul.f32 %v825, 0.5
      %v904 = vmul.f32 %v830, 0.5
      %v905 = vmul.f32 %v835, 0.5
      %v906 = vmul.f32 %v840, 0.5
      %v907 = vmul.f32 %v845, 0.5
      %v908 = vmul.f32 %v850, 0.5
      %v909 = vmul.f32 %v855, 0.5
      %v910 = vmul.f32 %v860, 0.5
      %v911 = vmul.f32 %v865, 0.5
      %v912 = vmul.f32 %v870, 0.5
      %v913 = vmul.f32 %v875, 0.5
      %v914 = vmul.f32 %v880, 0.5
      %v915 = vmul.f32 %v725, 0.70710677
      %v916 = vmul.f32 %v730, 0.70710677
      %v917 = vmul.f32 %v735, 0.70710677
      %v918 = vmul.f32 %v740, 0.70710677
      %v919 = vmul.f32 %v745, 0.70710677
      %v920 = vmul.f32 %v750, 0.70710677
      %v921 = vmul.f32 %v755, 0.70710677
      %v922 = vmul.f32 %v760, 0.70710677
      %v923 = vmul.f32 %v765, 0.70710677
      %v924 = vmul.f32 %v770, 0.70710677
      %v925 = vmul.f32 %v775, 0.70710677
      %v926 = vmul.f32 %v780, 0.70710677
      %v927 = vmul.f32 %v785, 0.70710677
      %v928 = vmul.f32 %v790, 0.70710677
      %v929 = vmul.f32 %v795, 0.70710677
      %v930 = vmul.f32 %v800, 0.70710677
      %v931 = vmul.f32 %v805, 0.70710677
      %v932 = vmul.f32 %v810, 0.70710677
      %v933 = vmul.f32 %v815, 0.70710677
      %v934 = vmul.f32 %v820, 0.70710677
      %v935 = vmul.f32 %v825, 0.70710677
      %v936 = vmul.f32 %v830, 0.70710677
      %v937 = vmul.f32 %v835, 0.70710677
      %v938 = vmul.f32 %v840, 0.70710677
      %v939 = vmul.f32 %v845, 0.70710677
      %v940 = vmul.f32 %v850, 0.70710677
      %v941 = vmul.f32 %v855, 0.70710677
      %v942 = vmul.f32 %v860, 0.70710677
      %v943 = vmul.f32 %v865, 0.70710677
      %v944 = vmul.f32 %v870, 0.70710677
      %v945 = vmul.f32 %v875, 0.70710677
      %v946 = vmul.f32 %v880, 0.70710677
      %vm947 = vcmp.ge.f32.partialorder %v915, 0.0
      %vm948 = vcmp.ge.f32.partialorder %v916, 0.0
      %vm949 = vcmp.ge.f32.partialorder %v917, 0.0
      %vm950 = vcmp.ge.f32.partialorder %v918, 0.0
      %vm951 = vcmp.ge.f32.partialorder %v919, 0.0
      %vm952 = vcmp.ge.f32.partialorder %v920, 0.0
      %vm953 = vcmp.ge.f32.partialorder %v921, 0.0
      %vm954 = vcmp.ge.f32.partialorder %v922, 0.0
      %vm955 = vcmp.ge.f32.partialorder %v923, 0.0
      %vm956 = vcmp.ge.f32.partialorder %v924, 0.0
      %vm957 = vcmp.ge.f32.partialorder %v925, 0.0
      %vm958 = vcmp.ge.f32.partialorder %v926, 0.0
      %vm959 = vcmp.ge.f32.partialorder %v927, 0.0
      %vm960 = vcmp.ge.f32.partialorder %v928, 0.0
      %vm961 = vcmp.ge.f32.partialorder %v929, 0.0
      %vm962 = vcmp.ge.f32.partialorder %v930, 0.0
      %vm963 = vcmp.ge.f32.partialorder %v931, 0.0
      %vm964 = vcmp.ge.f32.partialorder %v932, 0.0
      %vm965 = vcmp.ge.f32.partialorder %v933, 0.0
      %vm966 = vcmp.ge.f32.partialorder %v934, 0.0
      %vm967 = vcmp.ge.f32.partialorder %v935, 0.0
      %vm968 = vcmp.ge.f32.partialorder %v936, 0.0
      %vm969 = vcmp.ge.f32.partialorder %v937, 0.0
      %vm970 = vcmp.ge.f32.partialorder %v938, 0.0
      %vm971 = vcmp.ge.f32.partialorder %v939, 0.0
      %vm972 = vcmp.ge.f32.partialorder %v940, 0.0
      %vm973 = vcmp.ge.f32.partialorder %v941, 0.0
      %vm974 = vcmp.ge.f32.partialorder %v942, 0.0
      %vm975 = vcmp.ge.f32.partialorder %v943, 0.0
      %vm976 = vcmp.ge.f32.partialorder %v944, 0.0
      %vm977 = vcmp.ge.f32.partialorder %v945, 0.0
      %vm978 = vcmp.ge.f32.partialorder %v946, 0.0
      %v979 = vsel %vm947, 1.0, -1.0
      %v980 = vsel %vm948, 1.0, -1.0
      %v981 = vsel %vm949, 1.0, -1.0
      %v982 = vsel %vm950, 1.0, -1.0
      %v983 = vsel %vm951, 1.0, -1.0
      %v984 = vsel %vm952, 1.0, -1.0
      %v985 = vsel %vm953, 1.0, -1.0
      %v986 = vsel %vm954, 1.0, -1.0
      %v987 = vsel %vm955, 1.0, -1.0
      %v988 = vsel %vm956, 1.0, -1.0
      %v989 = vsel %vm957, 1.0, -1.0
      %v990 = vsel %vm958, 1.0, -1.0
      %v991 = vsel %vm959, 1.0, -1.0
      %v992 = vsel %vm960, 1.0, -1.0
      %v993 = vsel %vm961, 1.0, -1.0
      %v994 = vsel %vm962, 1.0, -1.0
      %v995 = vsel %vm963, 1.0, -1.0
      %v996 = vsel %vm964, 1.0, -1.0
      %v997 = vsel %vm965, 1.0, -1.0
      %v998 = vsel %vm966, 1.0, -1.0
      %v999 = vsel %vm967, 1.0, -1.0
      %v1000 = vsel %vm968, 1.0, -1.0
      %v1001 = vsel %vm969, 1.0, -1.0
      %v1002 = vsel %vm970, 1.0, -1.0
      %v1003 = vsel %vm971, 1.0, -1.0
      %v1004 = vsel %vm972, 1.0, -1.0
      %v1005 = vsel %vm973, 1.0, -1.0
      %v1006 = vsel %vm974, 1.0, -1.0
      %v1007 = vsel %vm975, 1.0, -1.0
      %v1008 = vsel %vm976, 1.0, -1.0
      %v1009 = vsel %vm977, 1.0, -1.0
      %v1010 = vsel %vm978, 1.0, -1.0
      %v1011 = vand.u32 2147483647, %v915
      %v1012 = vand.u32 2147483647, %v916
      %v1013 = vand.u32 2147483647, %v917
      %v1014 = vand.u32 2147483647, %v918
      %v1015 = vand.u32 2147483647, %v919
      %v1016 = vand.u32 2147483647, %v920
      %v1017 = vand.u32 2147483647, %v921
      %v1018 = vand.u32 2147483647, %v922
      %v1019 = vand.u32 2147483647, %v923
      %v1020 = vand.u32 2147483647, %v924
      %v1021 = vand.u32 2147483647, %v925
      %v1022 = vand.u32 2147483647, %v926
      %v1023 = vand.u32 2147483647, %v927
      %v1024 = vand.u32 2147483647, %v928
      %v1025 = vand.u32 2147483647, %v929
      %v1026 = vand.u32 2147483647, %v930
      %v1027 = vand.u32 2147483647, %v931
      %v1028 = vand.u32 2147483647, %v932
      %v1029 = vand.u32 2147483647, %v933
      %v1030 = vand.u32 2147483647, %v934
      %v1031 = vand.u32 2147483647, %v935
      %v1032 = vand.u32 2147483647, %v936
      %v1033 = vand.u32 2147483647, %v937
      %v1034 = vand.u32 2147483647, %v938
      %v1035 = vand.u32 2147483647, %v939
      %v1036 = vand.u32 2147483647, %v940
      %v1037 = vand.u32 2147483647, %v941
      %v1038 = vand.u32 2147483647, %v942
      %v1039 = vand.u32 2147483647, %v943
      %v1040 = vand.u32 2147483647, %v944
      %v1041 = vand.u32 2147483647, %v945
      %v1042 = vand.u32 2147483647, %v946
      %v1043 = vmul.f32 %v1011, 0.3275911
      %v1044 = vmul.f32 %v1012, 0.3275911
      %v1045 = vmul.f32 %v1013, 0.3275911
      %v1046 = vmul.f32 %v1014, 0.3275911
      %v1047 = vmul.f32 %v1015, 0.3275911
      %v1048 = vmul.f32 %v1016, 0.3275911
      %v1049 = vmul.f32 %v1017, 0.3275911
      %v1050 = vmul.f32 %v1018, 0.3275911
      %v1051 = vmul.f32 %v1019, 0.3275911
      %v1052 = vmul.f32 %v1020, 0.3275911
      %v1053 = vmul.f32 %v1021, 0.3275911
      %v1054 = vmul.f32 %v1022, 0.3275911
      %v1055 = vmul.f32 %v1023, 0.3275911
      %v1056 = vmul.f32 %v1024, 0.3275911
      %v1057 = vmul.f32 %v1025, 0.3275911
      %v1058 = vmul.f32 %v1026, 0.3275911
      %v1059 = vmul.f32 %v1027, 0.3275911
      %v1060 = vmul.f32 %v1028, 0.3275911
      %v1061 = vmul.f32 %v1029, 0.3275911
      %v1062 = vmul.f32 %v1030, 0.3275911
      %v1063 = vmul.f32 %v1031, 0.3275911
      %v1064 = vmul.f32 %v1032, 0.3275911
      %v1065 = vmul.f32 %v1033, 0.3275911
      %v1066 = vmul.f32 %v1034, 0.3275911
      %v1067 = vmul.f32 %v1035, 0.3275911
      %v1068 = vmul.f32 %v1036, 0.3275911
      %v1069 = vmul.f32 %v1037, 0.3275911
      %v1070 = vmul.f32 %v1038, 0.3275911
      %v1071 = vmul.f32 %v1039, 0.3275911
      %v1072 = vmul.f32 %v1040, 0.3275911
      %v1073 = vmul.f32 %v1041, 0.3275911
      %v1074 = vmul.f32 %v1042, 0.3275911
      %v1075 = vadd.f32 %v1043, 1.0
      %v1076 = vadd.f32 %v1044, 1.0
      %v1077 = vadd.f32 %v1045, 1.0
      %v1078 = vadd.f32 %v1046, 1.0
      %v1079 = vadd.f32 %v1047, 1.0
      %v1080 = vadd.f32 %v1048, 1.0
      %v1081 = vadd.f32 %v1049, 1.0
      %v1082 = vadd.f32 %v1050, 1.0
      %v1083 = vadd.f32 %v1051, 1.0
      %v1084 = vadd.f32 %v1052, 1.0
      %v1085 = vadd.f32 %v1053, 1.0
      %v1086 = vadd.f32 %v1054, 1.0
      %v1087 = vadd.f32 %v1055, 1.0
      %v1088 = vadd.f32 %v1056, 1.0
      %v1089 = vadd.f32 %v1057, 1.0
      %v1090 = vadd.f32 %v1058, 1.0
      %v1091 = vadd.f32 %v1059, 1.0
      %v1092 = vadd.f32 %v1060, 1.0
      %v1093 = vadd.f32 %v1061, 1.0
      %v1094 = vadd.f32 %v1062, 1.0
      %v1095 = vadd.f32 %v1063, 1.0
      %v1096 = vadd.f32 %v1064, 1.0
      %v1097 = vadd.f32 %v1065, 1.0
      %v1098 = vadd.f32 %v1066, 1.0
      %v1099 = vadd.f32 %v1067, 1.0
      %v1100 = vadd.f32 %v1068, 1.0
      %v1101 = vadd.f32 %v1069, 1.0
      %v1102 = vadd.f32 %v1070, 1.0
      %v1103 = vadd.f32 %v1071, 1.0
      %v1104 = vadd.f32 %v1072, 1.0
      %v1105 = vadd.f32 %v1073, 1.0
      %v1106 = vadd.f32 %v1074, 1.0
      %v1107 = vrcp.pop %v1075
      %v1108 = vrcp.pop %v1076
      %v1109 = vrcp.pop %v1077
      %v1110 = vrcp.pop %v1078
      %v1111 = vrcp.pop %v1079
      %v1112 = vrcp.pop %v1080
      %v1113 = vrcp.pop %v1081
      %v1114 = vrcp.pop %v1082
      %v1115 = vrcp.pop %v1083
      %v1116 = vrcp.pop %v1084
      %v1117 = vrcp.pop %v1085
      %v1118 = vrcp.pop %v1086
      %v1119 = vrcp.pop %v1087
      %v1120 = vrcp.pop %v1088
      %v1121 = vrcp.pop %v1089
      %v1122 = vrcp.pop %v1090
      %v1123 = vrcp.pop %v1091
      %v1124 = vrcp.pop %v1092
      %v1125 = vrcp.pop %v1093
      %v1126 = vrcp.pop %v1094
      %v1127 = vrcp.pop %v1095
      %v1128 = vrcp.pop %v1096
      %v1129 = vrcp.pop %v1097
      %v1130 = vrcp.pop %v1098
      %v1131 = vrcp.pop %v1099
      %v1132 = vrcp.pop %v1100
      %v1133 = vrcp.pop %v1101
      %v1134 = vrcp.pop %v1102
      %v1135 = vrcp.pop %v1103
      %v1136 = vrcp.pop %v1104
      %v1137 = vrcp.pop %v1105
      %v1138 = vrcp.pop %v1106
      %v1139 = vmul.f32 %v1107, 1.0614054
      %v1140 = vmul.f32 %v1108, 1.0614054
      %v1141 = vmul.f32 %v1109, 1.0614054
      %v1142 = vmul.f32 %v1110, 1.0614054
      %v1143 = vmul.f32 %v1111, 1.0614054
      %v1144 = vmul.f32 %v1112, 1.0614054
      %v1145 = vmul.f32 %v1113, 1.0614054
      %v1146 = vmul.f32 %v1114, 1.0614054
      %v1147 = vmul.f32 %v1115, 1.0614054
      %v1148 = vmul.f32 %v1116, 1.0614054
      %v1149 = vmul.f32 %v1117, 1.0614054
      %v1150 = vmul.f32 %v1118, 1.0614054
      %v1151 = vmul.f32 %v1119, 1.0614054
      %v1152 = vmul.f32 %v1120, 1.0614054
      %v1153 = vmul.f32 %v1121, 1.0614054
      %v1154 = vmul.f32 %v1122, 1.0614054
      %v1155 = vmul.f32 %v1123, 1.0614054
      %v1156 = vmul.f32 %v1124, 1.0614054
      %v1157 = vmul.f32 %v1125, 1.0614054
      %v1158 = vmul.f32 %v1126, 1.0614054
      %v1159 = vmul.f32 %v1127, 1.0614054
      %v1160 = vmul.f32 %v1128, 1.0614054
      %v1161 = vmul.f32 %v1129, 1.0614054
      %v1162 = vmul.f32 %v1130, 1.0614054
      %v1163 = vmul.f32 %v1131, 1.0614054
      %v1164 = vmul.f32 %v1132, 1.0614054
      %v1165 = vmul.f32 %v1133, 1.0614054
      %v1166 = vmul.f32 %v1134, 1.0614054
      %v1167 = vmul.f32 %v1135, 1.0614054
      %v1168 = vmul.f32 %v1136, 1.0614054
      %v1169 = vmul.f32 %v1137, 1.0614054
      %v1170 = vmul.f32 %v1138, 1.0614054
      %v1171 = vadd.f32 %v1139, -1.4531521
      %v1172 = vadd.f32 %v1140, -1.4531521
      %v1173 = vadd.f32 %v1141, -1.4531521
      %v1174 = vadd.f32 %v1142, -1.4531521
      %v1175 = vadd.f32 %v1143, -1.4531521
      %v1176 = vadd.f32 %v1144, -1.4531521
      %v1177 = vadd.f32 %v1145, -1.4531521
      %v1178 = vadd.f32 %v1146, -1.4531521
      %v1179 = vadd.f32 %v1147, -1.4531521
      %v1180 = vadd.f32 %v1148, -1.4531521
      %v1181 = vadd.f32 %v1149, -1.4531521
      %v1182 = vadd.f32 %v1150, -1.4531521
      %v1183 = vadd.f32 %v1151, -1.4531521
      %v1184 = vadd.f32 %v1152, -1.4531521
      %v1185 = vadd.f32 %v1153, -1.4531521
      %v1186 = vadd.f32 %v1154, -1.4531521
      %v1187 = vadd.f32 %v1155, -1.4531521
      %v1188 = vadd.f32 %v1156, -1.4531521
      %v1189 = vadd.f32 %v1157, -1.4531521
      %v1190 = vadd.f32 %v1158, -1.4531521
      %v1191 = vadd.f32 %v1159, -1.4531521
      %v1192 = vadd.f32 %v1160, -1.4531521
      %v1193 = vadd.f32 %v1161, -1.4531521
      %v1194 = vadd.f32 %v1162, -1.4531521
      %v1195 = vadd.f32 %v1163, -1.4531521
      %v1196 = vadd.f32 %v1164, -1.4531521
      %v1197 = vadd.f32 %v1165, -1.4531521
      %v1198 = vadd.f32 %v1166, -1.4531521
      %v1199 = vadd.f32 %v1167, -1.4531521
      %v1200 = vadd.f32 %v1168, -1.4531521
      %v1201 = vadd.f32 %v1169, -1.4531521
      %v1202 = vadd.f32 %v1170, -1.4531521
      %v1203 = vmul.f32 %v1171, %v1107
      %v1204 = vmul.f32 %v1172, %v1108
      %v1205 = vmul.f32 %v1173, %v1109
      %v1206 = vmul.f32 %v1174, %v1110
      %v1207 = vmul.f32 %v1175, %v1111
      %v1208 = vmul.f32 %v1176, %v1112
      %v1209 = vmul.f32 %v1177, %v1113
      %v1210 = vmul.f32 %v1178, %v1114
      %v1211 = vmul.f32 %v1179, %v1115
      %v1212 = vmul.f32 %v1180, %v1116
      %v1213 = vmul.f32 %v1181, %v1117
      %v1214 = vmul.f32 %v1182, %v1118
      %v1215 = vmul.f32 %v1183, %v1119
      %v1216 = vmul.f32 %v1184, %v1120
      %v1217 = vmul.f32 %v1185, %v1121
      %v1218 = vmul.f32 %v1186, %v1122
      %v1219 = vmul.f32 %v1187, %v1123
      %v1220 = vmul.f32 %v1188, %v1124
      %v1221 = vmul.f32 %v1189, %v1125
      %v1222 = vmul.f32 %v1190, %v1126
      %v1223 = vmul.f32 %v1191, %v1127
      %v1224 = vmul.f32 %v1192, %v1128
      %v1225 = vmul.f32 %v1193, %v1129
      %v1226 = vmul.f32 %v1194, %v1130
      %v1227 = vmul.f32 %v1195, %v1131
      %v1228 = vmul.f32 %v1196, %v1132
      %v1229 = vmul.f32 %v1197, %v1133
      %v1230 = vmul.f32 %v1198, %v1134
      %v1231 = vmul.f32 %v1199, %v1135
      %v1232 = vmul.f32 %v1200, %v1136
      %v1233 = vmul.f32 %v1201, %v1137
      %v1234 = vmul.f32 %v1202, %v1138
      %v1235 = vadd.f32 %v1203, 1.4214138
      %v1236 = vadd.f32 %v1204, 1.4214138
      %v1237 = vadd.f32 %v1205, 1.4214138
      %v1238 = vadd.f32 %v1206, 1.4214138
      %v1239 = vadd.f32 %v1207, 1.4214138
      %v1240 = vadd.f32 %v1208, 1.4214138
      %v1241 = vadd.f32 %v1209, 1.4214138
      %v1242 = vadd.f32 %v1210, 1.4214138
      %v1243 = vadd.f32 %v1211, 1.4214138
      %v1244 = vadd.f32 %v1212, 1.4214138
      %v1245 = vadd.f32 %v1213, 1.4214138
      %v1246 = vadd.f32 %v1214, 1.4214138
      %v1247 = vadd.f32 %v1215, 1.4214138
      %v1248 = vadd.f32 %v1216, 1.4214138
      %v1249 = vadd.f32 %v1217, 1.4214138
      %v1250 = vadd.f32 %v1218, 1.4214138
      %v1251 = vadd.f32 %v1219, 1.4214138
      %v1252 = vadd.f32 %v1220, 1.4214138
      %v1253 = vadd.f32 %v1221, 1.4214138
      %v1254 = vadd.f32 %v1222, 1.4214138
      %v1255 = vadd.f32 %v1223, 1.4214138
      %v1256 = vadd.f32 %v1224, 1.4214138
      %v1257 = vadd.f32 %v1225, 1.4214138
      %v1258 = vadd.f32 %v1226, 1.4214138
      %v1259 = vadd.f32 %v1227, 1.4214138
      %v1260 = vadd.f32 %v1228, 1.4214138
      %v1261 = vadd.f32 %v1229, 1.4214138
      %v1262 = vadd.f32 %v1230, 1.4214138
      %v1263 = vadd.f32 %v1231, 1.4214138
      %v1264 = vadd.f32 %v1232, 1.4214138
      %v1265 = vadd.f32 %v1233, 1.4214138
      %v1266 = vadd.f32 %v1234, 1.4214138
      %v1267 = vmul.f32 %v1235, %v1107
      %v1268 = vmul.f32 %v1236, %v1108
      %v1269 = vmul.f32 %v1237, %v1109
      %v1270 = vmul.f32 %v1238, %v1110
      %v1271 = vmul.f32 %v1239, %v1111
      %v1272 = vmul.f32 %v1240, %v1112
      %v1273 = vmul.f32 %v1241, %v1113
      %v1274 = vmul.f32 %v1242, %v1114
      %v1275 = vmul.f32 %v1243, %v1115
      %v1276 = vmul.f32 %v1244, %v1116
      %v1277 = vmul.f32 %v1245, %v1117
      %v1278 = vmul.f32 %v1246, %v1118
      %v1279 = vmul.f32 %v1247, %v1119
      %v1280 = vmul.f32 %v1248, %v1120
      %v1281 = vmul.f32 %v1249, %v1121
      %v1282 = vmul.f32 %v1250, %v1122
      %v1283 = vmul.f32 %v1251, %v1123
      %v1284 = vmul.f32 %v1252, %v1124
      %v1285 = vmul.f32 %v1253, %v1125
      %v1286 = vmul.f32 %v1254, %v1126
      %v1287 = vmul.f32 %v1255, %v1127
      %v1288 = vmul.f32 %v1256, %v1128
      %v1289 = vmul.f32 %v1257, %v1129
      %v1290 = vmul.f32 %v1258, %v1130
      %v1291 = vmul.f32 %v1259, %v1131
      %v1292 = vmul.f32 %v1260, %v1132
      %v1293 = vmul.f32 %v1261, %v1133
      %v1294 = vmul.f32 %v1262, %v1134
      %v1295 = vmul.f32 %v1263, %v1135
      %v1296 = vmul.f32 %v1264, %v1136
      %v1297 = vmul.f32 %v1265, %v1137
      %v1298 = vmul.f32 %v1266, %v1138
      %v1299 = vadd.f32 %v1267, -0.28449672
      %v1300 = vadd.f32 %v1268, -0.28449672
      %v1301 = vadd.f32 %v1269, -0.28449672
      %v1302 = vadd.f32 %v1270, -0.28449672
      %v1303 = vadd.f32 %v1271, -0.28449672
      %v1304 = vadd.f32 %v1272, -0.28449672
      %v1305 = vadd.f32 %v1273, -0.28449672
      %v1306 = vadd.f32 %v1274, -0.28449672
      %v1307 = vadd.f32 %v1275, -0.28449672
      %v1308 = vadd.f32 %v1276, -0.28449672
      %v1309 = vadd.f32 %v1277, -0.28449672
      %v1310 = vadd.f32 %v1278, -0.28449672
      %v1311 = vadd.f32 %v1279, -0.28449672
      %v1312 = vadd.f32 %v1280, -0.28449672
      %v1313 = vadd.f32 %v1281, -0.28449672
      %v1314 = vadd.f32 %v1282, -0.28449672
      %v1315 = vadd.f32 %v1283, -0.28449672
      %v1316 = vadd.f32 %v1284, -0.28449672
      %v1317 = vadd.f32 %v1285, -0.28449672
      %v1318 = vadd.f32 %v1286, -0.28449672
      %v1319 = vadd.f32 %v1287, -0.28449672
      %v1320 = vadd.f32 %v1288, -0.28449672
      %v1321 = vadd.f32 %v1289, -0.28449672
      %v1322 = vadd.f32 %v1290, -0.28449672
      %v1323 = vadd.f32 %v1291, -0.28449672
      %v1324 = vadd.f32 %v1292, -0.28449672
      %v1325 = vadd.f32 %v1293, -0.28449672
      %v1326 = vadd.f32 %v1294, -0.28449672
      %v1327 = vadd.f32 %v1295, -0.28449672
      %v1328 = vadd.f32 %v1296, -0.28449672
      %v1329 = vadd.f32 %v1297, -0.28449672
      %v1330 = vadd.f32 %v1298, -0.28449672
      %v1331 = vmul.f32 %v1299, %v1107
      %v1332 = vmul.f32 %v1300, %v1108
      %v1333 = vmul.f32 %v1301, %v1109
      %v1334 = vmul.f32 %v1302, %v1110
      %v1335 = vmul.f32 %v1303, %v1111
      %v1336 = vmul.f32 %v1304, %v1112
      %v1337 = vmul.f32 %v1305, %v1113
      %v1338 = vmul.f32 %v1306, %v1114
      %v1339 = vmul.f32 %v1307, %v1115
      %v1340 = vmul.f32 %v1308, %v1116
      %v1341 = vmul.f32 %v1309, %v1117
      %v1342 = vmul.f32 %v1310, %v1118
      %v1343 = vmul.f32 %v1311, %v1119
      %v1344 = vmul.f32 %v1312, %v1120
      %v1345 = vmul.f32 %v1313, %v1121
      %v1346 = vmul.f32 %v1314, %v1122
      %v1347 = vmul.f32 %v1315, %v1123
      %v1348 = vmul.f32 %v1316, %v1124
      %v1349 = vmul.f32 %v1317, %v1125
      %v1350 = vmul.f32 %v1318, %v1126
      %v1351 = vmul.f32 %v1319, %v1127
      %v1352 = vmul.f32 %v1320, %v1128
      %v1353 = vmul.f32 %v1321, %v1129
      %v1354 = vmul.f32 %v1322, %v1130
      %v1355 = vmul.f32 %v1323, %v1131
      %v1356 = vmul.f32 %v1324, %v1132
      %v1357 = vmul.f32 %v1325, %v1133
      %v1358 = vmul.f32 %v1326, %v1134
      %v1359 = vmul.f32 %v1327, %v1135
      %v1360 = vmul.f32 %v1328, %v1136
      %v1361 = vmul.f32 %v1329, %v1137
      %v1362 = vmul.f32 %v1330, %v1138
      %v1363 = vadd.f32 %v1331, 0.2548296
      %v1364 = vadd.f32 %v1332, 0.2548296
      %v1365 = vadd.f32 %v1333, 0.2548296
      %v1366 = vadd.f32 %v1334, 0.2548296
      %v1367 = vadd.f32 %v1335, 0.2548296
      %v1368 = vadd.f32 %v1336, 0.2548296
      %v1369 = vadd.f32 %v1337, 0.2548296
      %v1370 = vadd.f32 %v1338, 0.2548296
      %v1371 = vadd.f32 %v1339, 0.2548296
      %v1372 = vadd.f32 %v1340, 0.2548296
      %v1373 = vadd.f32 %v1341, 0.2548296
      %v1374 = vadd.f32 %v1342, 0.2548296
      %v1375 = vadd.f32 %v1343, 0.2548296
      %v1376 = vadd.f32 %v1344, 0.2548296
      %v1377 = vadd.f32 %v1345, 0.2548296
      %v1378 = vadd.f32 %v1346, 0.2548296
      %v1379 = vadd.f32 %v1347, 0.2548296
      %v1380 = vadd.f32 %v1348, 0.2548296
      %v1381 = vadd.f32 %v1349, 0.2548296
      %v1382 = vadd.f32 %v1350, 0.2548296
      %v1383 = vadd.f32 %v1351, 0.2548296
      %v1384 = vadd.f32 %v1352, 0.2548296
      %v1385 = vadd.f32 %v1353, 0.2548296
      %v1386 = vadd.f32 %v1354, 0.2548296
      %v1387 = vadd.f32 %v1355, 0.2548296
      %v1388 = vadd.f32 %v1356, 0.2548296
      %v1389 = vadd.f32 %v1357, 0.2548296
      %v1390 = vadd.f32 %v1358, 0.2548296
      %v1391 = vadd.f32 %v1359, 0.2548296
      %v1392 = vadd.f32 %v1360, 0.2548296
      %v1393 = vadd.f32 %v1361, 0.2548296
      %v1394 = vadd.f32 %v1362, 0.2548296
      %v1395 = vmul.f32 %v1363, %v1107
      %v1396 = vmul.f32 %v1364, %v1108
      %v1397 = vmul.f32 %v1365, %v1109
      %v1398 = vmul.f32 %v1366, %v1110
      %v1399 = vmul.f32 %v1367, %v1111
      %v1400 = vmul.f32 %v1368, %v1112
      %v1401 = vmul.f32 %v1369, %v1113
      %v1402 = vmul.f32 %v1370, %v1114
      %v1403 = vmul.f32 %v1371, %v1115
      %v1404 = vmul.f32 %v1372, %v1116
      %v1405 = vmul.f32 %v1373, %v1117
      %v1406 = vmul.f32 %v1374, %v1118
      %v1407 = vmul.f32 %v1375, %v1119
      %v1408 = vmul.f32 %v1376, %v1120
      %v1409 = vmul.f32 %v1377, %v1121
      %v1410 = vmul.f32 %v1378, %v1122
      %v1411 = vmul.f32 %v1379, %v1123
      %v1412 = vmul.f32 %v1380, %v1124
      %v1413 = vmul.f32 %v1381, %v1125
      %v1414 = vmul.f32 %v1382, %v1126
      %v1415 = vmul.f32 %v1383, %v1127
      %v1416 = vmul.f32 %v1384, %v1128
      %v1417 = vmul.f32 %v1385, %v1129
      %v1418 = vmul.f32 %v1386, %v1130
      %v1419 = vmul.f32 %v1387, %v1131
      %v1420 = vmul.f32 %v1388, %v1132
      %v1421 = vmul.f32 %v1389, %v1133
      %v1422 = vmul.f32 %v1390, %v1134
      %v1423 = vmul.f32 %v1391, %v1135
      %v1424 = vmul.f32 %v1392, %v1136
      %v1425 = vmul.f32 %v1393, %v1137
      %v1426 = vmul.f32 %v1394, %v1138
      %v1427 = vsub.f32 0.0, %v1011
      %v1428 = vsub.f32 0.0, %v1012
      %v1429 = vsub.f32 0.0, %v1013
      %v1430 = vsub.f32 0.0, %v1014
      %v1431 = vsub.f32 0.0, %v1015
      %v1432 = vsub.f32 0.0, %v1016
      %v1433 = vsub.f32 0.0, %v1017
      %v1434 = vsub.f32 0.0, %v1018
      %v1435 = vsub.f32 0.0, %v1019
      %v1436 = vsub.f32 0.0, %v1020
      %v1437 = vsub.f32 0.0, %v1021
      %v1438 = vsub.f32 0.0, %v1022
      %v1439 = vsub.f32 0.0, %v1023
      %v1440 = vsub.f32 0.0, %v1024
      %v1441 = vsub.f32 0.0, %v1025
      %v1442 = vsub.f32 0.0, %v1026
      %v1443 = vsub.f32 0.0, %v1027
      %v1444 = vsub.f32 0.0, %v1028
      %v1445 = vsub.f32 0.0, %v1029
      %v1446 = vsub.f32 0.0, %v1030
      %v1447 = vsub.f32 0.0, %v1031
      %v1448 = vsub.f32 0.0, %v1032
      %v1449 = vsub.f32 0.0, %v1033
      %v1450 = vsub.f32 0.0, %v1034
      %v1451 = vsub.f32 0.0, %v1035
      %v1452 = vsub.f32 0.0, %v1036
      %v1453 = vsub.f32 0.0, %v1037
      %v1454 = vsub.f32 0.0, %v1038
      %v1455 = vsub.f32 0.0, %v1039
      %v1456 = vsub.f32 0.0, %v1040
      %v1457 = vsub.f32 0.0, %v1041
      %v1458 = vsub.f32 0.0, %v1042
      %v1459 = vmul.f32 %v1427, %v1011
      %v1460 = vmul.f32 %v1428, %v1012
      %v1461 = vmul.f32 %v1429, %v1013
      %v1462 = vmul.f32 %v1430, %v1014
      %v1463 = vmul.f32 %v1431, %v1015
      %v1464 = vmul.f32 %v1432, %v1016
      %v1465 = vmul.f32 %v1433, %v1017
      %v1466 = vmul.f32 %v1434, %v1018
      %v1467 = vmul.f32 %v1435, %v1019
      %v1468 = vmul.f32 %v1436, %v1020
      %v1469 = vmul.f32 %v1437, %v1021
      %v1470 = vmul.f32 %v1438, %v1022
      %v1471 = vmul.f32 %v1439, %v1023
      %v1472 = vmul.f32 %v1440, %v1024
      %v1473 = vmul.f32 %v1441, %v1025
      %v1474 = vmul.f32 %v1442, %v1026
      %v1475 = vmul.f32 %v1443, %v1027
      %v1476 = vmul.f32 %v1444, %v1028
      %v1477 = vmul.f32 %v1445, %v1029
      %v1478 = vmul.f32 %v1446, %v1030
      %v1479 = vmul.f32 %v1447, %v1031
      %v1480 = vmul.f32 %v1448, %v1032
      %v1481 = vmul.f32 %v1449, %v1033
      %v1482 = vmul.f32 %v1450, %v1034
      %v1483 = vmul.f32 %v1451, %v1035
      %v1484 = vmul.f32 %v1452, %v1036
      %v1485 = vmul.f32 %v1453, %v1037
      %v1486 = vmul.f32 %v1454, %v1038
      %v1487 = vmul.f32 %v1455, %v1039
      %v1488 = vmul.f32 %v1456, %v1040
      %v1489 = vmul.f32 %v1457, %v1041
      %v1490 = vmul.f32 %v1458, %v1042
      %v1491 = vmul.f32 %v1459, 1.442695
      %v1492 = vpow.pop %v1491
      %v1493 = vmul.f32 %v1460, 1.442695
      %v1494 = vpow.pop %v1493
      %v1495 = vmul.f32 %v1461, 1.442695
      %v1496 = vpow.pop %v1495
      %v1497 = vmul.f32 %v1462, 1.442695
      %v1498 = vpow.pop %v1497
      %v1499 = vmul.f32 %v1463, 1.442695
      %v1500 = vpow.pop %v1499
      %v1501 = vmul.f32 %v1464, 1.442695
      %v1502 = vpow.pop %v1501
      %v1503 = vmul.f32 %v1465, 1.442695
      %v1504 = vpow.pop %v1503
      %v1505 = vmul.f32 %v1466, 1.442695
      %v1506 = vpow.pop %v1505
      %v1507 = vmul.f32 %v1467, 1.442695
      %v1508 = vpow.pop %v1507
      %v1509 = vmul.f32 %v1468, 1.442695
      %v1510 = vpow.pop %v1509
      %v1511 = vmul.f32 %v1469, 1.442695
      %v1512 = vpow.pop %v1511
      %v1513 = vmul.f32 %v1470, 1.442695
      %v1514 = vpow.pop %v1513
      %v1515 = vmul.f32 %v1471, 1.442695
      %v1516 = vpow.pop %v1515
      %v1517 = vmul.f32 %v1472, 1.442695
      %v1518 = vpow.pop %v1517
      %v1519 = vmul.f32 %v1473, 1.442695
      %v1520 = vpow.pop %v1519
      %v1521 = vmul.f32 %v1474, 1.442695
      %v1522 = vpow.pop %v1521
      %v1523 = vmul.f32 %v1475, 1.442695
      %v1524 = vpow.pop %v1523
      %v1525 = vmul.f32 %v1476, 1.442695
      %v1526 = vpow.pop %v1525
      %v1527 = vmul.f32 %v1477, 1.442695
      %v1528 = vpow.pop %v1527
      %v1529 = vmul.f32 %v1478, 1.442695
      %v1530 = vpow.pop %v1529
      %v1531 = vmul.f32 %v1479, 1.442695
      %v1532 = vpow.pop %v1531
      %v1533 = vmul.f32 %v1480, 1.442695
      %v1534 = vpow.pop %v1533
      %v1535 = vmul.f32 %v1481, 1.442695
      %v1536 = vpow.pop %v1535
      %v1537 = vmul.f32 %v1482, 1.442695
      %v1538 = vpow.pop %v1537
      %v1539 = vmul.f32 %v1483, 1.442695
      %v1540 = vpow.pop %v1539
      %v1541 = vmul.f32 %v1484, 1.442695
      %v1542 = vpow.pop %v1541
      %v1543 = vmul.f32 %v1485, 1.442695
      %v1544 = vpow.pop %v1543
      %v1545 = vmul.f32 %v1486, 1.442695
      %v1546 = vpow.pop %v1545
      %v1547 = vmul.f32 %v1487, 1.442695
      %v1548 = vpow.pop %v1547
      %v1549 = vmul.f32 %v1488, 1.442695
      %v1550 = vpow.pop %v1549
      %v1551 = vmul.f32 %v1489, 1.442695
      %v1552 = vpow.pop %v1551
      %v1553 = vmul.f32 %v1490, 1.442695
      %v1554 = vpow.pop %v1553
      %v1555 = vmul.f32 %v1395, %v1492
      %v1556 = vmul.f32 %v1396, %v1494
      %v1557 = vmul.f32 %v1397, %v1496
      %v1558 = vmul.f32 %v1398, %v1498
      %v1559 = vmul.f32 %v1399, %v1500
      %v1560 = vmul.f32 %v1400, %v1502
      %v1561 = vmul.f32 %v1401, %v1504
      %v1562 = vmul.f32 %v1402, %v1506
      %v1563 = vmul.f32 %v1403, %v1508
      %v1564 = vmul.f32 %v1404, %v1510
      %v1565 = vmul.f32 %v1405, %v1512
      %v1566 = vmul.f32 %v1406, %v1514
      %v1567 = vmul.f32 %v1407, %v1516
      %v1568 = vmul.f32 %v1408, %v1518
      %v1569 = vmul.f32 %v1409, %v1520
      %v1570 = vmul.f32 %v1410, %v1522
      %v1571 = vmul.f32 %v1411, %v1524
      %v1572 = vmul.f32 %v1412, %v1526
      %v1573 = vmul.f32 %v1413, %v1528
      %v1574 = vmul.f32 %v1414, %v1530
      %v1575 = vmul.f32 %v1415, %v1532
      %v1576 = vmul.f32 %v1416, %v1534
      %v1577 = vmul.f32 %v1417, %v1536
      %v1578 = vmul.f32 %v1418, %v1538
      %v1579 = vmul.f32 %v1419, %v1540
      %v1580 = vmul.f32 %v1420, %v1542
      %v1581 = vmul.f32 %v1421, %v1544
      %v1582 = vmul.f32 %v1422, %v1546
      %v1583 = vmul.f32 %v1423, %v1548
      %v1584 = vmul.f32 %v1424, %v1550
      %v1585 = vmul.f32 %v1425, %v1552
      %v1586 = vmul.f32 %v1426, %v1554
      %v1587 = vsub.f32 1.0, %v1555
      %v1588 = vsub.f32 1.0, %v1556
      %v1589 = vsub.f32 1.0, %v1557
      %v1590 = vsub.f32 1.0, %v1558
      %v1591 = vsub.f32 1.0, %v1559
      %v1592 = vsub.f32 1.0, %v1560
      %v1593 = vsub.f32 1.0, %v1561
      %v1594 = vsub.f32 1.0, %v1562
      %v1595 = vsub.f32 1.0, %v1563
      %v1596 = vsub.f32 1.0, %v1564
      %v1597 = vsub.f32 1.0, %v1565
      %v1598 = vsub.f32 1.0, %v1566
      %v1599 = vsub.f32 1.0, %v1567
      %v1600 = vsub.f32 1.0, %v1568
      %v1601 = vsub.f32 1.0, %v1569
      %v1602 = vsub.f32 1.0, %v1570
      %v1603 = vsub.f32 1.0, %v1571
      %v1604 = vsub.f32 1.0, %v1572
      %v1605 = vsub.f32 1.0, %v1573
      %v1606 = vsub.f32 1.0, %v1574
      %v1607 = vsub.f32 1.0, %v1575
      %v1608 = vsub.f32 1.0, %v1576
      %v1609 = vsub.f32 1.0, %v1577
      %v1610 = vsub.f32 1.0, %v1578
      %v1611 = vsub.f32 1.0, %v1579
      %v1612 = vsub.f32 1.0, %v1580
      %v1613 = vsub.f32 1.0, %v1581
      %v1614 = vsub.f32 1.0, %v1582
      %v1615 = vsub.f32 1.0, %v1583
      %v1616 = vsub.f32 1.0, %v1584
      %v1617 = vsub.f32 1.0, %v1585
      %v1618 = vsub.f32 1.0, %v1586
      %v1619 = vmul.f32 %v979, %v1587
      %v1620 = vmul.f32 %v980, %v1588
      %v1621 = vmul.f32 %v981, %v1589
      %v1622 = vmul.f32 %v982, %v1590
      %v1623 = vmul.f32 %v983, %v1591
      %v1624 = vmul.f32 %v984, %v1592
      %v1625 = vmul.f32 %v985, %v1593
      %v1626 = vmul.f32 %v986, %v1594
      %v1627 = vmul.f32 %v987, %v1595
      %v1628 = vmul.f32 %v988, %v1596
      %v1629 = vmul.f32 %v989, %v1597
      %v1630 = vmul.f32 %v990, %v1598
      %v1631 = vmul.f32 %v991, %v1599
      %v1632 = vmul.f32 %v992, %v1600
      %v1633 = vmul.f32 %v993, %v1601
      %v1634 = vmul.f32 %v994, %v1602
      %v1635 = vmul.f32 %v995, %v1603
      %v1636 = vmul.f32 %v996, %v1604
      %v1637 = vmul.f32 %v997, %v1605
      %v1638 = vmul.f32 %v998, %v1606
      %v1639 = vmul.f32 %v999, %v1607
      %v1640 = vmul.f32 %v1000, %v1608
      %v1641 = vmul.f32 %v1001, %v1609
      %v1642 = vmul.f32 %v1002, %v1610
      %v1643 = vmul.f32 %v1003, %v1611
      %v1644 = vmul.f32 %v1004, %v1612
      %v1645 = vmul.f32 %v1005, %v1613
      %v1646 = vmul.f32 %v1006, %v1614
      %v1647 = vmul.f32 %v1007, %v1615
      %v1648 = vmul.f32 %v1008, %v1616
      %v1649 = vmul.f32 %v1009, %v1617
      %v1650 = vmul.f32 %v1010, %v1618
      %v1651 = vadd.f32 %v1619, 1.0
      %v1652 = vadd.f32 %v1620, 1.0
      %v1653 = vadd.f32 %v1621, 1.0
      %v1654 = vadd.f32 %v1622, 1.0
      %v1655 = vadd.f32 %v1623, 1.0
      %v1656 = vadd.f32 %v1624, 1.0
      %v1657 = vadd.f32 %v1625, 1.0
      %v1658 = vadd.f32 %v1626, 1.0
      %v1659 = vadd.f32 %v1627, 1.0
      %v1660 = vadd.f32 %v1628, 1.0
      %v1661 = vadd.f32 %v1629, 1.0
      %v1662 = vadd.f32 %v1630, 1.0
      %v1663 = vadd.f32 %v1631, 1.0
      %v1664 = vadd.f32 %v1632, 1.0
      %v1665 = vadd.f32 %v1633, 1.0
      %v1666 = vadd.f32 %v1634, 1.0
      %v1667 = vadd.f32 %v1635, 1.0
      %v1668 = vadd.f32 %v1636, 1.0
      %v1669 = vadd.f32 %v1637, 1.0
      %v1670 = vadd.f32 %v1638, 1.0
      %v1671 = vadd.f32 %v1639, 1.0
      %v1672 = vadd.f32 %v1640, 1.0
      %v1673 = vadd.f32 %v1641, 1.0
      %v1674 = vadd.f32 %v1642, 1.0
      %v1675 = vadd.f32 %v1643, 1.0
      %v1676 = vadd.f32 %v1644, 1.0
      %v1677 = vadd.f32 %v1645, 1.0
      %v1678 = vadd.f32 %v1646, 1.0
      %v1679 = vadd.f32 %v1647, 1.0
      %v1680 = vadd.f32 %v1648, 1.0
      %v1681 = vadd.f32 %v1649, 1.0
      %v1682 = vadd.f32 %v1650, 1.0
      %v1683 = vmul.f32 %v883, %v1651
      %v1684 = vmul.f32 %v884, %v1652
      %v1685 = vmul.f32 %v885, %v1653
      %v1686 = vmul.f32 %v886, %v1654
      %v1687 = vmul.f32 %v887, %v1655
      %v1688 = vmul.f32 %v888, %v1656
      %v1689 = vmul.f32 %v889, %v1657
      %v1690 = vmul.f32 %v890, %v1658
      %v1691 = vmul.f32 %v891, %v1659
      %v1692 = vmul.f32 %v892, %v1660
      %v1693 = vmul.f32 %v893, %v1661
      %v1694 = vmul.f32 %v894, %v1662
      %v1695 = vmul.f32 %v895, %v1663
      %v1696 = vmul.f32 %v896, %v1664
      %v1697 = vmul.f32 %v897, %v1665
      %v1698 = vmul.f32 %v898, %v1666
      %v1699 = vmul.f32 %v899, %v1667
      %v1700 = vmul.f32 %v900, %v1668
      %v1701 = vmul.f32 %v901, %v1669
      %v1702 = vmul.f32 %v902, %v1670
      %v1703 = vmul.f32 %v903, %v1671
      %v1704 = vmul.f32 %v904, %v1672
      %v1705 = vmul.f32 %v905, %v1673
      %v1706 = vmul.f32 %v906, %v1674
      %v1707 = vmul.f32 %v907, %v1675
      %v1708 = vmul.f32 %v908, %v1676
      %v1709 = vmul.f32 %v909, %v1677
      %v1710 = vmul.f32 %v910, %v1678
      %v1711 = vmul.f32 %v911, %v1679
      %v1712 = vmul.f32 %v912, %v1680
      %v1713 = vmul.f32 %v913, %v1681
      %v1714 = vmul.f32 %v914, %v1682
      %v1715 = vsel %vm517, %v1683, 0.0
      %v1716 = vsel %vm517, %v1684, 0.0
      %v1717 = vadd.f32 %v1715, %v1716
      %v1718 = vsel %vm517, %v1685, 0.0
      %v1719 = vadd.f32 %v1717, %v1718
      %v1720 = vsel %vm517, %v1686, 0.0
      %v1721 = vadd.f32 %v1719, %v1720
      %v1722 = vsel %vm517, %v1687, 0.0
      %v1723 = vadd.f32 %v1721, %v1722
      %v1724 = vsel %vm517, %v1688, 0.0
      %v1725 = vadd.f32 %v1723, %v1724
      %v1726 = vsel %vm517, %v1689, 0.0
      %v1727 = vadd.f32 %v1725, %v1726
      %v1728 = vsel %vm517, %v1690, 0.0
      %v1729 = vadd.f32 %v1727, %v1728
      %v1730 = vsel %vm517, %v1691, 0.0
      %v1731 = vadd.f32 %v1729, %v1730
      %v1732 = vsel %vm517, %v1692, 0.0
      %v1733 = vadd.f32 %v1731, %v1732
      %v1734 = vsel %vm517, %v1693, 0.0
      %v1735 = vadd.f32 %v1733, %v1734
      %v1736 = vsel %vm517, %v1694, 0.0
      %v1737 = vadd.f32 %v1735, %v1736
      %v1738 = vsel %vm517, %v1695, 0.0
      %v1739 = vadd.f32 %v1737, %v1738
      %v1740 = vsel %vm517, %v1696, 0.0
      %v1741 = vadd.f32 %v1739, %v1740
      %v1742 = vsel %vm517, %v1697, 0.0
      %v1743 = vadd.f32 %v1741, %v1742
      %v1744 = vsel %vm517, %v1698, 0.0
      %v1745 = vadd.f32 %v1743, %v1744
      %v1746 = vsel %vm517, %v1699, 0.0
      %v1747 = vadd.f32 %v1745, %v1746
      %v1748 = vsel %vm517, %v1700, 0.0
      %v1749 = vadd.f32 %v1747, %v1748
      %v1750 = vsel %vm517, %v1701, 0.0
      %v1751 = vadd.f32 %v1749, %v1750
      %v1752 = vsel %vm517, %v1702, 0.0
      %v1753 = vadd.f32 %v1751, %v1752
      %v1754 = vsel %vm517, %v1703, 0.0
      %v1755 = vadd.f32 %v1753, %v1754
      %v1756 = vsel %vm517, %v1704, 0.0
      %v1757 = vadd.f32 %v1755, %v1756
      %v1758 = vsel %vm517, %v1705, 0.0
      %v1759 = vadd.f32 %v1757, %v1758
      %v1760 = vsel %vm517, %v1706, 0.0
      %v1761 = vadd.f32 %v1759, %v1760
      %v1762 = vsel %vm517, %v1707, 0.0
      %v1763 = vadd.f32 %v1761, %v1762
      %v1764 = vsel %vm517, %v1708, 0.0
      %v1765 = vadd.f32 %v1763, %v1764
      %v1766 = vsel %vm517, %v1709, 0.0
      %v1767 = vadd.f32 %v1765, %v1766
      %v1768 = vsel %vm517, %v1710, 0.0
      %v1769 = vadd.f32 %v1767, %v1768
      %v1770 = vsel %vm517, %v1711, 0.0
      %v1771 = vadd.f32 %v1769, %v1770
      %v1772 = vsel %vm517, %v1712, 0.0
      %v1773 = vadd.f32 %v1771, %v1772
      %v1774 = vsel %vm517, %v1713, 0.0
      %v1775 = vadd.f32 %v1773, %v1774
      %v1776 = vsel %vm517, %v1714, 0.0
      %v1777 = vadd.f32 %v1775, %v1776
      %v1778 = vrot.slane %v1777, 4
      %v1779 = vadd.f32 %v1777, %v1778
      %v1780 = vrot.slane %v1779, 2
      %v1781 = vadd.f32 %v1779, %v1780
      %v1782 = vrot.slane %v1781, 1
      %v1783 = vadd.f32 %v1781, %v1782
      %vm1784 = vcmask 24576
      %1785 = vst.msk [vmem:[%s339] sm:$0x1] %vm1784, %v1783
      %v1786 = vmul.f32 %v1683, %v1683
      %v1787 = vmul.f32 %v1684, %v1684
      %v1788 = vmul.f32 %v1685, %v1685
      %v1789 = vmul.f32 %v1686, %v1686
      %v1790 = vmul.f32 %v1687, %v1687
      %v1791 = vmul.f32 %v1688, %v1688
      %v1792 = vmul.f32 %v1689, %v1689
      %v1793 = vmul.f32 %v1690, %v1690
      %v1794 = vmul.f32 %v1691, %v1691
      %v1795 = vmul.f32 %v1692, %v1692
      %v1796 = vmul.f32 %v1693, %v1693
      %v1797 = vmul.f32 %v1694, %v1694
      %v1798 = vmul.f32 %v1695, %v1695
      %v1799 = vmul.f32 %v1696, %v1696
      %v1800 = vmul.f32 %v1697, %v1697
      %v1801 = vmul.f32 %v1698, %v1698
      %v1802 = vmul.f32 %v1699, %v1699
      %v1803 = vmul.f32 %v1700, %v1700
      %v1804 = vmul.f32 %v1701, %v1701
      %v1805 = vmul.f32 %v1702, %v1702
      %v1806 = vmul.f32 %v1703, %v1703
      %v1807 = vmul.f32 %v1704, %v1704
      %v1808 = vmul.f32 %v1705, %v1705
      %v1809 = vmul.f32 %v1706, %v1706
      %v1810 = vmul.f32 %v1707, %v1707
      %v1811 = vmul.f32 %v1708, %v1708
      %v1812 = vmul.f32 %v1709, %v1709
      %v1813 = vmul.f32 %v1710, %v1710
      %v1814 = vmul.f32 %v1711, %v1711
      %v1815 = vmul.f32 %v1712, %v1712
      %v1816 = vmul.f32 %v1713, %v1713
      %v1817 = vmul.f32 %v1714, %v1714
      %v1818 = vsel %vm517, %v1786, 0.0
      %v1819 = vsel %vm517, %v1787, 0.0
      %v1820 = vadd.f32 %v1818, %v1819
      %v1821 = vsel %vm517, %v1788, 0.0
      %v1822 = vadd.f32 %v1820, %v1821
      %v1823 = vsel %vm517, %v1789, 0.0
      %v1824 = vadd.f32 %v1822, %v1823
      %v1825 = vsel %vm517, %v1790, 0.0
      %v1826 = vadd.f32 %v1824, %v1825
      %v1827 = vsel %vm517, %v1791, 0.0
      %v1828 = vadd.f32 %v1826, %v1827
      %v1829 = vsel %vm517, %v1792, 0.0
      %v1830 = vadd.f32 %v1828, %v1829
      %v1831 = vsel %vm517, %v1793, 0.0
      %v1832 = vadd.f32 %v1830, %v1831
      %v1833 = vsel %vm517, %v1794, 0.0
      %v1834 = vadd.f32 %v1832, %v1833
      %v1835 = vsel %vm517, %v1795, 0.0
      %v1836 = vadd.f32 %v1834, %v1835
      %v1837 = vsel %vm517, %v1796, 0.0
      %v1838 = vadd.f32 %v1836, %v1837
      %v1839 = vsel %vm517, %v1797, 0.0
      %v1840 = vadd.f32 %v1838, %v1839
      %v1841 = vsel %vm517, %v1798, 0.0
      %v1842 = vadd.f32 %v1840, %v1841
      %v1843 = vsel %vm517, %v1799, 0.0
      %v1844 = vadd.f32 %v1842, %v1843
      %v1845 = vsel %vm517, %v1800, 0.0
      %v1846 = vadd.f32 %v1844, %v1845
      %v1847 = vsel %vm517, %v1801, 0.0
      %v1848 = vadd.f32 %v1846, %v1847
      %v1849 = vsel %vm517, %v1802, 0.0
      %v1850 = vadd.f32 %v1848, %v1849
      %v1851 = vsel %vm517, %v1803, 0.0
      %v1852 = vadd.f32 %v1850, %v1851
      %v1853 = vsel %vm517, %v1804, 0.0
      %v1854 = vadd.f32 %v1852, %v1853
      %v1855 = vsel %vm517, %v1805, 0.0
      %v1856 = vadd.f32 %v1854, %v1855
      %v1857 = vsel %vm517, %v1806, 0.0
      %v1858 = vadd.f32 %v1856, %v1857
      %v1859 = vsel %vm517, %v1807, 0.0
      %v1860 = vadd.f32 %v1858, %v1859
      %v1861 = vsel %vm517, %v1808, 0.0
      %v1862 = vadd.f32 %v1860, %v1861
      %v1863 = vsel %vm517, %v1809, 0.0
      %v1864 = vadd.f32 %v1862, %v1863
      %v1865 = vsel %vm517, %v1810, 0.0
      %v1866 = vadd.f32 %v1864, %v1865
      %v1867 = vsel %vm517, %v1811, 0.0
      %v1868 = vadd.f32 %v1866, %v1867
      %v1869 = vsel %vm517, %v1812, 0.0
      %v1870 = vadd.f32 %v1868, %v1869
      %v1871 = vsel %vm517, %v1813, 0.0
      %v1872 = vadd.f32 %v1870, %v1871
      %v1873 = vsel %vm517, %v1814, 0.0
      %v1874 = vadd.f32 %v1872, %v1873
      %v1875 = vsel %vm517, %v1815, 0.0
      %v1876 = vadd.f32 %v1874, %v1875
      %v1877 = vsel %vm517, %v1816, 0.0
      %v1878 = vadd.f32 %v1876, %v1877
      %v1879 = vsel %vm517, %v1817, 0.0
      %v1880 = vadd.f32 %v1878, %v1879
      %v1881 = vrot.slane %v1880, 4
      %v1882 = vadd.f32 %v1880, %v1881
      %v1883 = vrot.slane %v1882, 2
      %v1884 = vadd.f32 %v1882, %v1883
      %v1885 = vrot.slane %v1884, 1
      %v1886 = vadd.f32 %v1884, %v1885
      %1887 = vst.msk [vmem:[%s342] sm:$0x1] %vm1784, %v1886
      %p1888 = scmp.lt.s32.totalorder %s20, 1
      %s1889 = scalar_select %p1888, %s20, 1
      %s1890 = smul.addr %s1889, 32
      %s1891 = smul.addr %s1890, 8
      %s1892 = scalar_lea.vmem %s6, %s1891
      %p1893 = scmp.lt.s32.totalorder %s20, 1
      %s1894 = scalar_select %p1893, %s20, 1
      %s1895 = scalar_lea.vmem %s7, %s1894
      %p1896 = scmp.lt.s32.totalorder %s20, 1
      %s1897 = scalar_select %p1896, %s20, 1
      %s1898 = scalar_lea.vmem %s8, %s1897
      // Predicated region
      $region45: #{convmixer_block.4} parent=43 // pred_check
        %p1899 = pneg %p174
      $region46: #{convmixer_block.4} parent=43 // pred_check_branch
        %1901 = sbr.rel (%p1899) target = $region48
      $region47: #{convmixer_block.4} parent=43 // pred_region
        _
      $region48: #{convmixer_block.4} parent=43 // pred_fallthru
        _
      // Predicated region
      $region49: #{convmixer_block.4} parent=43 // pred_check
        %p1902 = pneg %p200
      $region50: #{convmixer_block.4} parent=43 // pred_check_branch
        %1904 = sbr.rel (%p1902) target = $region52
      $region51: #{convmixer_block.4} parent=43 // pred_region
        _
      $region52: #{convmixer_block.4} parent=43 // pred_fallthru
        _
      // Predicated region
      $region53: #{convmixer_block.4} parent=43 // pred_check
        %p1905 = pneg %p226
      $region54: #{convmixer_block.4} parent=43 // pred_check_branch
        %1907 = sbr.rel (%p1905) target = $region56
      $region55: #{convmixer_block.4} parent=43 // pred_region
        _
      $region56: #{convmixer_block.4} parent=43 // pred_fallthru
        _
    $region44: #{convmixer_block.4} parent=5 // pred_fallthru
      _
    %p1908 = scmp.le.s32.totalorder 2, %s15
    // Predicated region
    $region57: #{convmixer_block.4} parent=5 // pred_check
      %p1909 = pneg %p1908
    $region58: #{convmixer_block.4} parent=5 // pred_check_branch
      %1911 = sbr.rel (%p1909) target = $region60
    $region59: #{convmixer_block.4} parent=5 // pred_region
      %s1912 = ssub.s32 %s15, 2
      // Predicated region
      $region61: #{convmixer_block.4} parent=59 // pred_check
        %p1913 = pneg %p180
      $region62: #{convmixer_block.4} parent=59 // pred_check_branch
        %1915 = sbr.rel (%p1913) target = $region64
      $region63: #{convmixer_block.4} parent=59 // pred_region
        %p1916 = scmp.lt.s32.totalorder %s21, 1
        %s1917 = scalar_select %p1916, %s21, 1
        %s1918 = smul.addr %s1917, 32
        %s1919 = smul.addr %s1918, 8
        %s1920 = scalar_lea.vmem %s6, %s1919
      $region64: #{convmixer_block.4} parent=59 // pred_fallthru
        _
      // Predicated region
      $region65: #{convmixer_block.4} parent=59 // pred_check
        %p1921 = pneg %p206
      $region66: #{convmixer_block.4} parent=59 // pred_check_branch
        %1923 = sbr.rel (%p1921) target = $region68
      $region67: #{convmixer_block.4} parent=59 // pred_region
        %p1924 = scmp.lt.s32.totalorder %s21, 1
        %s1925 = scalar_select %p1924, %s21, 1
        %s1926 = scalar_lea.vmem %s7, %s1925
      $region68: #{convmixer_block.4} parent=59 // pred_fallthru
        _
      // Predicated region
      $region69: #{convmixer_block.4} parent=59 // pred_check
        %p1927 = pneg %p232
      $region70: #{convmixer_block.4} parent=59 // pred_check_branch
        %1929 = sbr.rel (%p1927) target = $region72
      $region71: #{convmixer_block.4} parent=59 // pred_region
        %p1930 = scmp.lt.s32.totalorder %s21, 1
        %s1931 = scalar_select %p1930, %s21, 1
        %s1932 = scalar_lea.vmem %s8, %s1931
      $region72: #{convmixer_block.4} parent=59 // pred_fallthru
        _
    $region60: #{convmixer_block.4} parent=5 // pred_fallthru
      _
  $region6: #{convmixer_block.4} parent=0 // loop_footer
    %s19 = sadd.s32 1, %s15
  $region7: #{convmixer_block.4} parent=0 // loop_footer_branch
    %14 = sbr.rel target = $region3
  $region8: #{convmixer_block.4} parent=0 // loop_exit
    _

// kernel: convmixer_block.3
$region0: #{convmixer_block.3}
  #allocation0 [shape = 'u32[]', space=smem, size = 0x4, offset = 0x4, fixed_abs, tag = 'smem constant byte address 0x4 - core index']
  #allocation1 [shape = 'u32[144,128]{1,0:T(1,128)}', space=vmem, size = 0x12000, scoped, tag = 'internal scratch']
  #allocation2 [shape = 'f32[18,25,4]{2,1,0:T(8,128)}', space=vmem, size = 0x48000, scoped, tag = 'scratch operand']
  %s0 = inlined_call_operand.vmem [shape: f32[2,16,16,4], index: 0, kind: input, shape index: {}]
  %s1 = inlined_call_operand.vmem [shape: f32[9,4], index: 1, kind: input, shape index: {}]
  %s2 = inlined_call_operand.vmem [shape: f32[1,4], index: 2, kind: input, shape index: {}]
  %s3 = inlined_call_operand.vmem [shape: f32[2,16,16,4], index: 3, kind: output, shape index: {0}]
  %s4 = inlined_call_operand.vmem [shape: f32[2,1,4], index: 4, kind: output, shape index: {1}]
  %s5 = inlined_call_operand.vmem [shape: f32[2,1,4], index: 5, kind: output, shape index: {2}]
  %6 = xla_tuple %s3, %s4, %s5
  %s7 = sld [smem:[#allocation0]]
  $region61: #{convmixer_block.3} parent=0
    _
  %s9 = ssub.s32 1, %s7
  %s10 = scalar_select 0, %s9, %s7
  loop: start=0, step=1, limit=4
  $region2: #{convmixer_block.3} parent=0 // loop_pre_header
    _
  $region3: #{convmixer_block.3} parent=0 // loop_header
    %s12 = sphi 0, %s16
    %p13 = scmp.ge.s32.totalorder %s12, 4
    %s22 = sphi 0, %s24
    %s25 = sphi 0, %s22
    %s26 = sphi 0, %s25
    %s42 = sphi 0, %s26
    %s46 = sphi 0, %s46
    %s48 = sphi 0, %s46
    %s49 = sphi 0, %s48
    %s63 = sphi 0, %s49
    %s67 = sphi 0, %s67
    %s69 = sphi 0, %s67
    %s70 = sphi 0, %s69
    %s84 = sphi 0, %s70
    %s90 = sphi 0, %s92
    %s93 = sphi 0, %s90
    %s94 = sphi 0, %s93
    %s110 = sphi 0, %s94
    %s116 = sphi 0, %s118
    %s119 = sphi 0, %s116
    %s120 = sphi 0, %s119
    %s136 = sphi 0, %s120
    %s142 = sphi 0, %s144
    %s145 = sphi 0, %s142
    %s146 = sphi 0, %s145
    %s162 = sphi 0, %s146
  $region4: #{convmixer_block.3} parent=0 // loop_header_branch
    %15 = sbr.rel (%p13) target = $region8
  $region5: #{convmixer_block.3} parent=0 // loop_body
    %s17 = ssub.s32 %s12, 1
    %s18 = ssub.s32 %s12, 2
    %s19 = sadd.s32 %s12, 1
    %s20 = ssub.s32 %s12, %s19
    %p21 = scmp.eq.s32.totalorder %s20, 0
    %s23 = sadd.s32 %s22, 1
    %s24 = scalar_select %p21, %s22, %s23
    %p27 = pneg %p21
    %p28 = scmp.eq.s32.totalorder %s12, 1
    %p29 = por %p27, %p28
    %p30 = scmp.ne.s32.totalorder %s22, %s25
    %p31 = scmp.eq.s32.totalorder %s12, 0
    %p32 = por %p30, %p31
    %p33 = scmp.ne.s32.totalorder %s22, %s25
    %p34 = scmp.eq.s32.totalorder %s17, 1
    %p35 = por %p33, %p34
    %p36 = scmp.ne.s32.totalorder %s25, %s26
    %p37 = scmp.eq.s32.totalorder %s17, 0
    %p38 = por %p36, %p37
    %p39 = scmp.ne.s32.totalorder %s25, %s26
    %p40 = scmp.eq.s32.totalorder %s18, 1
    %p41 = por %p39, %p40
    %p43 = scmp.ne.s32.totalorder %s26, %s42
    %p44 = scmp.eq.s32.totalorder %s18, 0
    %p45 = por %p43, %p44
    %s47 = sadd.s32 %s46, 1
    %p50 = scmp.eq.s32.totalorder %s12, 1
    %p51 = scmp.ne.s32.totalorder %s46, %s48
    %p52 = scmp.eq.s32.totalorder %s12, 0
    %p53 = por %p51, %p52
    %p54 = scmp.ne.s32.totalorder %s46, %s48
    %p55 = scmp.eq.s32.totalorder %s17, 1
    %p56 = por %p54, %p55
    %p57 = scmp.ne.s32.totalorder %s48, %s49
    %p58 = scmp.eq.s32.totalorder %s17, 0
    %p59 = por %p57, %p58
    %p60 = scmp.ne.s32.totalorder %s48, %s49
    %p61 = scmp.eq.s32.totalorder %s18, 1
    %p62 = por %p60, %p61
    %p64 = scmp.ne.s32.totalorder %s49, %s63
    %p65 = scmp.eq.s32.totalorder %s18, 0
    %p66 = por %p64, %p65
    %s68 = sadd.s32 %s67, 1
    %p71 = scmp.eq.s32.totalorder %s12, 1
    %p72 = scmp.ne.s32.totalorder %s67, %s69
    %p73 = scmp.eq.s32.totalorder %s12, 0
    %p74 = por %p72, %p73
    %p75 = scmp.ne.s32.totalorder %s67, %s69
    %p76 = scmp.eq.s32.totalorder %s17, 1
    %p77 = por %p75, %p76
    %p78 = scmp.ne.s32.totalorder %s69, %s70
    %p79 = scmp.eq.s32.totalorder %s17, 0
    %p80 = por %p78, %p79
    %p81 = scmp.ne.s32.totalorder %s69, %s70
    %p82 = scmp.eq.s32.totalorder %s18, 1
    %p83 = por %p81, %p82
    %p85 = scmp.ne.s32.totalorder %s70, %s84
    %p86 = scmp.eq.s32.totalorder %s18, 0
    %p87 = por %p85, %p86
    %s88 = ssub.s32 %s12, %s19
    %p89 = scmp.eq.s32.totalorder %s88, 0
    %s91 = sadd.s32 %s90, 1
    %s92 = scalar_select %p89, %s90, %s91
    %p95 = pneg %p89
    %p96 = scmp.eq.s32.totalorder %s12, 1
    %p97 = por %p95, %p96
    %p98 = scmp.ne.s32.totalorder %s90, %s93
    %p99 = scmp.eq.s32.totalorder %s12, 0
    %p100 = por %p98, %p99
    %p101 = scmp.ne.s32.totalorder %s90, %s93
    %p102 = scmp.eq.s32.totalorder %s17, 1
    %p103 = por %p101, %p102
    %p104 = scmp.ne.s32.totalorder %s93, %s94
    %p105 = scmp.eq.s32.totalorder %s17, 0
    %p106 = por %p104, %p105
    %p107 = scmp.ne.s32.totalorder %s93, %s94
    %p108 = scmp.eq.s32.totalorder %s18, 1
    %p109 = por %p107, %p108
    %p111 = scmp.ne.s32.totalorder %s94, %s110
    %p112 = scmp.eq.s32.totalorder %s18, 0
    %p113 = por %p111, %p112
    %s114 = ssub.s32 %s12, %s19
    %p115 = scmp.eq.s32.totalorder %s114, 0
    %s117 = sadd.s32 %s116, 1
    %s118 = scalar_select %p115, %s116, %s117
    %p121 = pneg %p115
    %p122 = scmp.eq.s32.totalorder %s12, 1
    %p123 = por %p121, %p122
    %p124 = scmp.ne.s32.totalorder %s116, %s119
    %p125 = scmp.eq.s32.totalorder %s12, 0
    %p126 = por %p124, %p125
    %p127 = scmp.ne.s32.totalorder %s116, %s119
    %p128 = scmp.eq.s32.totalorder %s17, 1
    %p129 = por %p127, %p128
    %p130 = scmp.ne.s32.totalorder %s119, %s120
    %p131 = scmp.eq.s32.totalorder %s17, 0
    %p132 = por %p130, %p131
    %p133 = scmp.ne.s32.totalorder %s119, %s120
    %p134 = scmp.eq.s32.totalorder %s18, 1
    %p135 = por %p133, %p134
    %p137 = scmp.ne.s32.totalorder %s120, %s136
    %p138 = scmp.eq.s32.totalorder %s18, 0
    %p139 = por %p137, %p138
    %s140 = ssub.s32 %s12, %s19
    %p141 = scmp.eq.s32.totalorder %s140, 0
    %s143 = sadd.s32 %s142, 1
    %s144 = scalar_select %p141, %s142, %s143
    %p147 = pneg %p141
    %p148 = scmp.eq.s32.totalorder %s12, 1
    %p149 = por %p147, %p148
    %p150 = scmp.ne.s32.totalorder %s142, %s145
    %p151 = scmp.eq.s32.totalorder %s12, 0
    %p152 = por %p150, %p151
    %p153 = scmp.ne.s32.totalorder %s142, %s145
    %p154 = scmp.eq.s32.totalorder %s17, 1
    %p155 = por %p153, %p154
    %p156 = scmp.ne.s32.totalorder %s145, %s146
    %p157 = scmp.eq.s32.totalorder %s17, 0
    %p158 = por %p156, %p157
    %p159 = scmp.ne.s32.totalorder %s145, %s146
    %p160 = scmp.eq.s32.totalorder %s18, 1
    %p161 = por %p159, %p160
    %p163 = scmp.ne.s32.totalorder %s146, %s162
    %p164 = scmp.eq.s32.totalorder %s18, 0
    %p165 = por %p163, %p164
    %p166 = scmp.le.s32.totalorder 1, %s12
    %p167 = scmp.lt.s32.totalorder %s12, 3
    %p168 = pnand %p166, %p167
    %p169 = pneg %p168
    // Predicated region
    $region9: #{convmixer_block.3} parent=5 // pred_check
      _
    $region10: #{convmixer_block.3} parent=5 // pred_check_branch
      %171 = sbr.rel (%p168) target = $region12
    $region11: #{convmixer_block.3} parent=5 // pred_region
      %s172 = ssub.s32 %s12, 1
      // Predicated region
      $region13: #{convmixer_block.3} parent=11 // pred_check
        %p173 = pneg %p59
      $region14: #{convmixer_block.3} parent=11 // pred_check_branch
        %175 = sbr.rel (%p173) target = $region16
      $region15: #{convmixer_block.3} parent=11 // pred_region
        _
      $region16: #{convmixer_block.3} parent=11 // pred_fallthru
        _
      // Predicated region
      $region17: #{convmixer_block.3} parent=11 // pred_check
        %p176 = pneg %p80
      $region18: #{convmixer_block.3} parent=11 // pred_check_branch
        %178 = sbr.rel (%p176) target = $region20
      $region19: #{convmixer_block.3} parent=11 // pred_region
        _
      $region20: #{convmixer_block.3} parent=11 // pred_fallthru
        _
    $region12: #{convmixer_block.3} parent=5 // pred_fallthru
      _
    %p179 = scmp.lt.s32.totalorder %s12, 2
    // Predicated region
    $region21: #{convmixer_block.3} parent=5 // pred_check
      %p180 = pneg %p179
    $region22: #{convmixer_block.3} parent=5 // pred_check_branch
      %182 = sbr.rel (%p180) target = $region24
    $region23: #{convmixer_block.3} parent=5 // pred_region
      // Predicated region
      $region25: #{convmixer_block.3} parent=23 // pred_check
        %p183 = pneg %p32
      $region26: #{convmixer_block.3} parent=23 // pred_check_branch
        %185 = sbr.rel (%p183) target = $region28
      $region27: #{convmixer_block.3} parent=23 // pred_region
        %p186 = scmp.lt.s32.totalorder %s12, 1
        %s187 = scalar_select %p186, %s12, 1
        %s188 = smul.addr %s187, 32
        %s189 = smul.addr %s188, 8
        %s190 = scalar_lea.vmem %s0, %s189
      $region28: #{convmixer_block.3} parent=23 // pred_fallthru
        _
    $region24: #{convmixer_block.3} parent=5 // pred_fallthru
      _
    %p191 = scmp.le.s32.totalorder 1, %s12
    %p192 = scmp.lt.s32.totalorder %s12, 3
    %p193 = pnand %p191, %p192
    %p194 = pneg %p193
    // Predicated region
    $region29: #{convmixer_block.3} parent=5 // pred_check
      _
    $region30: #{convmixer_block.3} parent=5 // pred_check_branch
      %196 = sbr.rel (%p193) target = $region32
    $region31: #{convmixer_block.3} parent=5 // pred_region
      %s197 = ssub.s32 %s12, 1
      %p198 = scmp.lt.s32.totalorder %s17, 1
      %s199 = scalar_select %p198, %s17, 1
      %s200 = smul.addr %s199, 32
      %s201 = smul.addr %s200, 8
      %s202 = scalar_lea.vmem %s0, %s201
      %p203 = pneg %p38
      %p204 = pneg %p35
      %p205 = pneg %p59
      %p206 = pneg %p56
      %p207 = pneg %p80
      %p208 = pneg %p77
      %p209 = pneg %p106
      %p210 = pneg %p103
      %p211 = scmp.lt.s32.totalorder %s17, 1
      %s212 = scalar_select %p211, %s17, 1
      %s213 = smul.addr %s212, 32
      %s214 = smul.addr %s213, 8
      %s215 = scalar_lea.vmem %s3, %s214
      %p216 = pneg %p132
      %p217 = pneg %p129
      %p218 = scmp.lt.s32.totalorder %s17, 1
      %s219 = scalar_select %p218, %s17, 1
      %s220 = scalar_lea.vmem %s4, %s219
      %p221 = pneg %p158
      %p222 = pneg %p155
      %p223 = scmp.lt.s32.totalorder %s17, 1
      %s224 = scalar_select %p223, %s17, 1
      %s225 = scalar_lea.vmem %s5, %s224
      %p226 = scmp.lt.s32.totalorder %s17, 1
      %s227 = scalar_select %p226, %s17, 1
      %s228 = smul.addr %s227, 32
      %s229 = smul.addr %s228, 8
      %s230 = scalar_lea.vmem %s0, %s229
      %p231 = scmp.lt.s32.totalorder %s17, 1
      %s232 = scalar_select %p231, %s17, 1
      %s233 = smul.addr %s232, 32
      %s234 = smul.addr %s233, 8
      %s235 = scalar_lea.vmem %s3, %s234
      %p236 = scmp.lt.s32.totalorder %s17, 1
      %s237 = scalar_select %p236, %s17, 1
      %s238 = scalar_lea.vmem %s4, %s237
      %p239 = scmp.lt.s32.totalorder %s17, 1
      %s240 = scalar_select %p239, %s17, 1
      %s241 = scalar_lea.vmem %s5, %s240
      %vm242 = vcmask 31744
      %243 = vst.msk [vmem:[#allocation2] sm:$0xff] %vm242, 0.0
      %244 = vst.msk [vmem:[#allocation2 + $0x8] sm:$0xff] %vm242, 0.0
      %245 = vst.msk [vmem:[#allocation2 + $0x10] sm:$0xff] %vm242, 0.0
      %vm246 = vcmask 24576
      %247 = vst.msk [vmem:[#allocation2 + $0x18] sm:$0x1] %vm246, 0.0
      %s248 = scalar_lea.vmem [#allocation2], 544
      %249 = vst.msk [vmem:[%s248] sm:$0xff] %vm242, 0.0
      %250 = vst.msk [vmem:[%s248 + $0x8] sm:$0xff] %vm242, 0.0
      %251 = vst.msk [vmem:[%s248 + $0x10] sm:$0xff] %vm242, 0.0
      %252 = vst.msk [vmem:[%s248 + $0x18] sm:$0x1] %vm246, 0.0
      %s253 = scalar_lea.vmem [#allocation2], 32
      %254 = vst.msk [vmem:[%s253] sm:$0xff] %vm242, 0.0
      %255 = vst.msk [vmem:[%s253 + $0x20] sm:$0xff] %vm242, 0.0
      %256 = vst.msk [vmem:[%s253 + $0x40] sm:$0xff] %vm242, 0.0
      %257 = vst.msk [vmem:[%s253 + $0x60] sm:$0xff] %vm242, 0.0
      %258 = vst.msk [vmem:[%s253 + $0x80] sm:$0xff] %vm242, 0.0
      %259 = vst.msk [vmem:[%s253 + $0xa0] sm:$0xff] %vm242, 0.0
      %260 = vst.msk [vmem:[%s253 + $0xc0] sm:$0xff] %vm242, 0.0
      %261 = vst.msk [vmem:[%s253 + $0xe0] sm:$0xff] %vm242, 0.0
      %262 = vst.msk [vmem:[%s253 + $0x100] sm:$0xff] %vm242, 0.0
      %263 = vst.msk [vmem:[%s253 + $0x120] sm:$0xff] %vm242, 0.0
      %264 = vst.msk [vmem:[%s253 + $0x140] sm:$0xff] %vm242, 0.0
      %265 = vst.msk [vmem:[%s253 + $0x160] sm:$0xff] %vm242, 0.0
      %266 = vst.msk [vmem:[%s253 + $0x180] sm:$0xff] %vm242, 0.0
      %267 = vst.msk [vmem:[%s253 + $0x1a0] sm:$0xff] %vm242, 0.0
      %268 = vst.msk [vmem:[%s253 + $0x1c0] sm:$0xff] %vm242, 0.0
      %269 = vst.msk [vmem:[%s253 + $0x1e0] sm:$0xff] %vm242, 0.0
      %270 = vst.msk [vmem:[%s253 + $0x18] sm:$0x1] %vm246, 0.0
      %271 = vst.msk [vmem:[%s253 + $0x38] sm:$0x1] %vm246, 0.0
      %272 = vst.msk [vmem:[%s253 + $0x58] sm:$0x1] %vm246, 0.0
      %273 = vst.msk [vmem:[%s253 + $0x78] sm:$0x1] %vm246, 0.0
      %274 = vst.msk [vmem:[%s253 + $0x98] sm:$0x1] %vm246, 0.0
      %275 = vst.msk [vmem:[%s253 + $0xb8] sm:$0x1] %vm246, 0.0
      %276 = vst.msk [vmem:[%s253 + $0xd8] sm:$0x1] %vm246, 0.0
      %277 = vst.msk [vmem:[%s253 + $0xf8] sm:$0x1] %vm246, 0.0
      %278 = vst.msk [vmem:[%s253 + $0x118] sm:$0x1] %vm246, 0.0
      %279 = vst.msk [vmem:[%s253 + $0x138] sm:$0x1] %vm246, 0.0
      %280 = vst.msk [vmem:[%s253 + $0x158] sm:$0x1] %vm246, 0.0
      %281 = vst.msk [vmem:[%s253 + $0x178] sm:$0x1] %vm246, 0.0
      %282 = vst.msk [vmem:[%s253 + $0x198] sm:$0x1] %vm246, 0.0
      %283 = vst.msk [vmem:[%s253 + $0x1b8] sm:$0x1] %vm246, 0.0
      %284 = vst.msk [vmem:[%s253 + $0x1d8] sm:$0x1] %vm246, 0.0
      %285 = vst.msk [vmem:[%s253 + $0x1f8] sm:$0x1] %vm246, 0.0
      %v286 = vld [vmem:[%s230] sm:$0xff]
      %v287 = vld [vmem:[%s230 + $0x8] sm:$0xff]
      %v288 = vld [vmem:[%s230 + $0x10] sm:$0xff]
      %v289 = vld [vmem:[%s230 + $0x18] sm:$0xff]
      %v290 = vld [vmem:[%s230 + $0x20] sm:$0xff]
      %v291 = vld [vmem:[%s230 + $0x28] sm:$0xff]
      %v292 = vld [vmem:[%s230 + $0x30] sm:$0xff]
      %v293 = vld [vmem:[%s230 + $0x38] sm:$0xff]
      %v294 = vld [vmem:[%s230 + $0x40] sm:$0xff]
      %v295 = vld [vmem:[%s230 + $0x48] sm:$0xff]
      %v296 = vld [vmem:[%s230 + $0x50] sm:$0xff]
      %v297 = vld [vmem:[%s230 + $0x58] sm:$0xff]
      %v298 = vld [vmem:[%s230 + $0x60] sm:$0xff]
      %v299 = vld [vmem:[%s230 + $0x68] sm:$0xff]
      %v300 = vld [vmem:[%s230 + $0x70] sm:$0xff]
      %v301 = vld [vmem:[%s230 + $0x78] sm:$0xff]
      %v302 = vld [vmem:[%s230 + $0x80] sm:$0xff]
      %v303 = vld [vmem:[%s230 + $0x88] sm:$0xff]
      %v304 = vld [vmem:[%s230 + $0x90] sm:$0xff]
      %v305 = vld [vmem:[%s230 + $0x98] sm:$0xff]
      %v306 = vld [vmem:[%s230 + $0xa0] sm:$0xff]
      %v307 = vld [vmem:[%s230 + $0xa8] sm:$0xff]
      %v308 = vld [vmem:[%s230 + $0xb0] sm:$0xff]
      %v309 = vld [vmem:[%s230 + $0xb8] sm:$0xff]
      %v310 = vld [vmem:[%s230 + $0xc0] sm:$0xff]
      %v311 = vld [vmem:[%s230 + $0xc8] sm:$0xff]
      %v312 = vld [vmem:[%s230 + $0xd0] sm:$0xff]
      %v313 = vld [vmem:[%s230 + $0xd8] sm:$0xff]
      %v314 = vld [vmem:[%s230 + $0xe0] sm:$0xff]
      %v315 = vld [vmem:[%s230 + $0xe8] sm:$0xff]
      %v316 = vld [vmem:[%s230 + $0xf0] sm:$0xff]
      %v317 = vld [vmem:[%s230 + $0xf8] sm:$0xff]
      %318 = vst.msk [vmem:[%s253 + $0x8] sm:$0xff] %vm242, %v286
      %319 = vst.msk [vmem:[%s253 + $0x10] sm:$0xff] %vm242, %v287
      %320 = vst.msk [vmem:[%s253 + $0x28] sm:$0xff] %vm242, %v288
      %321 = vst.msk [vmem:[%s253 + $0x30] sm:$0xff] %vm242, %v289
      %322 = vst.msk [vmem:[%s253 + $0x48] sm:$0xff] %vm242, %v290
      %323 = vst.msk [vmem:[%s253 + $0x50] sm:$0xff] %vm242, %v291
      %324 = vst.msk [vmem:[%s253 + $0x68] sm:$0xff] %vm242, %v292
      %325 = vst.msk [vmem:[%s253 + $0x70] sm:$0xff] %vm242, %v293
      %326 = vst.msk [vmem:[%s253 + $0x88] sm:$0xff] %vm242, %v294
      %327 = vst.msk [vmem:[%s253 + $0x90] sm:$0xff] %vm242, %v295
      %328 = vst.msk [vmem:[%s253 + $0xa8] sm:$0xff] %vm242, %v296
      %329 = vst.msk [vmem:[%s253 + $0xb0] sm:$0xff] %vm242, %v297
      %330 = vst.msk [vmem:[%s253 + $0xc8] sm:$0xff] %vm242, %v298
      %331 = vst.msk [vmem:[%s253 + $0xd0] sm:$0xff] %vm242, %v299
      %332 = vst.msk [vmem:[%s253 + $0xe8] sm:$0xff] %vm242, %v300
      %333 = vst.msk [vmem:[%s253 + $0xf0] sm:$0xff] %vm242, %v301
      %334 = vst.msk [vmem:[%s253 + $0x108] sm:$0xff] %vm242, %v302
      %335 = vst.msk [vmem:[%s253 + $0x110] sm:$0xff] %vm242, %v303
      %336 = vst.msk [vmem:[%s253 + $0x128] sm:$0xff] %vm242, %v304
      %337 = vst.msk [vmem:[%s253 + $0x130] sm:$0xff] %vm242, %v305
      %338 = vst.msk [vmem:[%s253 + $0x148] sm:$0xff] %vm242, %v306
      %339 = vst.msk [vmem:[%s253 + $0x150] sm:$0xff] %vm242, %v307
      %340 = vst.msk [vmem:[%s253 + $0x168] sm:$0xff] %vm242, %v308
      %341 = vst.msk [vmem:[%s253 + $0x170] sm:$0xff] %vm242, %v309
      %342 = vst.msk [vmem:[%s253 + $0x188] sm:$0xff] %vm242, %v310
      %343 = vst.msk [vmem:[%s253 + $0x190] sm:$0xff] %vm242, %v311
      %344 = vst.msk [vmem:[%s253 + $0x1a8] sm:$0xff] %vm242, %v312
      %345 = vst.msk [vmem:[%s253 + $0x1b0] sm:$0xff] %vm242, %v313
      %346 = vst.msk [vmem:[%s253 + $0x1c8] sm:$0xff] %vm242, %v314
      %347 = vst.msk [vmem:[%s253 + $0x1d0] sm:$0xff] %vm242, %v315
      %348 = vst.msk [vmem:[%s253 + $0x1e8] sm:$0xff] %vm242, %v316
      %349 = vst.msk [vmem:[%s253 + $0x1f0] sm:$0xff] %vm242, %v317
      %v350 = vld [vmem:[%s1] sm:$0x1]
      %v351 = vld [vmem:[#allocation2 + $0x7] sm:$0xff]
      %v352 = vld [vmem:[#allocation2 + $0xf] sm:$0xff]
      %v353 = vld [vmem:[#allocation2 + $0x27] sm:$0xff]
      %v354 = vld [vmem:[#allocation2 + $0x2f] sm:$0xff]
      %v355 = vld [vmem:[#allocation2 + $0x47] sm:$0xff]
      %v356 = vld [vmem:[#allocation2 + $0x4f] sm:$0xff]
      %v357 = vld [vmem:[#allocation2 + $0x67] sm:$0xff]
      %v358 = vld [vmem:[#allocation2 + $0x6f] sm:$0xff]
      %v359 = vld [vmem:[#allocation2 + $0x87] sm:$0xff]
      %v360 = vld [vmem:[#allocation2 + $0x8f] sm:$0xff]
      %v361 = vld [vmem:[#allocation2 + $0xa7] sm:$0xff]
      %v362 = vld [vmem:[#allocation2 + $0xaf] sm:$0xff]
      %v363 = vld [vmem:[#allocation2 + $0xc7] sm:$0xff]
      %v364 = vld [vmem:[#allocation2 + $0xcf] sm:$0xff]
      %v365 = vld [vmem:[#allocation2 + $0xe7] sm:$0xff]
      %v366 = vld [vmem:[#allocation2 + $0xef] sm:$0xff]
      %v367 = vld [vmem:[#allocation2 + $0x107] sm:$0xff]
      %v368 = vld [vmem:[#allocation2 + $0x10f] sm:$0xff]
      %v369 = vld [vmem:[#allocation2 + $0x127] sm:$0xff]
      %v370 = vld [vmem:[#allocation2 + $0x12f] sm:$0xff]
      %v371 = vld [vmem:[#allocation2 + $0x147] sm:$0xff]
      %v372 = vld [vmem:[#allocation2 + $0x14f] sm:$0xff]
      %v373 = vld [vmem:[#allocation2 + $0x167] sm:$0xff]
      %v374 = vld [vmem:[#allocation2 + $0x16f] sm:$0xff]
      %v375 = vld [vmem:[#allocation2 + $0x187] sm:$0xff]
      %v376 = vld [vmem:[#allocation2 + $0x18f] sm:$0xff]
      %v377 = vld [vmem:[#allocation2 + $0x1a7] sm:$0xff]
      %v378 = vld [vmem:[#allocation2 + $0x1af] sm:$0xff]
      %v379 = vld [vmem:[#allocation2 + $0x1c7] sm:$0xff]
      %v380 = vld [vmem:[#allocation2 + $0x1cf] sm:$0xff]
      %v381 = vld [vmem:[#allocation2 + $0x1e7] sm:$0xff]
      %v382 = vld [vmem:[#allocation2 + $0x1ef] sm:$0xff]
      %v383 = vlaneseq
      %v384 = vshrl.u32 %v383, 7
      %v385 = vsub.s32 0, %v384
      %v386 = vrot.slane %v350, %v385
      %v387 = vmul.f32 %v351, %v386
      %v388 = vmul.f32 %v352, %v386
      %v389 = vmul.f32 %v353, %v386
      %v390 = vmul.f32 %v354, %v386
      %v391 = vmul.f32 %v355, %v386
      %v392 = vmul.f32 %v356, %v386
      %v393 = vmul.f32 %v357, %v386
      %v394 = vmul.f32 %v358, %v386
      %v395 = vmul.f32 %v359, %v386
      %v396 = vmul.f32 %v360, %v386
      %v397 = vmul.f32 %v361, %v386
      %v398 = vmul.f32 %v362, %v386
      %v399 = vmul.f32 %v363, %v386
      %v400 = vmul.f32 %v364, %v386
      %v401 = vmul.f32 %v365, %v386
      %v402 = vmul.f32 %v366, %v386
      %v403 = vmul.f32 %v367, %v386
      %v404 = vmul.f32 %v368, %v386
      %v405 = vmul.f32 %v369, %v386
      %v406 = vmul.f32 %v370, %v386
      %v407 = vmul.f32 %v371, %v386
      %v408 = vmul.f32 %v372, %v386
      %v409 = vmul.f32 %v373, %v386
      %v410 = vmul.f32 %v374, %v386
      %v411 = vmul.f32 %v375, %v386
      %v412 = vmul.f32 %v376, %v386
      %v413 = vmul.f32 %v377, %v386
      %v414 = vmul.f32 %v378, %v386
      %v415 = vmul.f32 %v379, %v386
      %v416 = vmul.f32 %v380, %v386
      %v417 = vmul.f32 %v381, %v386
      %v418 = vmul.f32 %v382, %v386
      %v419 = vadd.f32 %v387, 0.0
      %v420 = vadd.f32 %v388, 0.0
      %v421 = vadd.f32 %v389, 0.0
      %v422 = vadd.f32 %v390, 0.0
      %v423 = vadd.f32 %v391, 0.0
      %v424 = vadd.f32 %v392, 0.0
      %v425 = vadd.f32 %v393, 0.0
      %v426 = vadd.f32 %v394, 0.0
      %v427 = vadd.f32 %v395, 0.0
      %v428 = vadd.f32 %v396, 0.0
      %v429 = vadd.f32 %v397, 0.0
      %v430 = vadd.f32 %v398, 0.0
      %v431 = vadd.f32 %v399, 0.0
      %v432 = vadd.f32 %v400, 0.0
      %v433 = vadd.f32 %v401, 0.0
      %v434 = vadd.f32 %v402, 0.0
      %v435 = vadd.f32 %v403, 0.0
      %v436 = vadd.f32 %v404, 0.0
      %v437 = vadd.f32 %v405, 0.0
      %v438 = vadd.f32 %v406, 0.0
      %v439 = vadd.f32 %v407, 0.0
      %v440 = vadd.f32 %v408, 0.0
      %v441 = vadd.f32 %v409, 0.0
      %v442 = vadd.f32 %v410, 0.0
      %v443 = vadd.f32 %v411, 0.0
      %v444 = vadd.f32 %v412, 0.0
      %v445 = vadd.f32 %v413, 0.0
      %v446 = vadd.f32 %v414, 0.0
      %v447 = vadd.f32 %v415, 0.0
      %v448 = vadd.f32 %v416, 0.0
      %v449 = vadd.f32 %v417, 0.0
      %v450 = vadd.f32 %v418, 0.0
      %v451 = vld [vmem:[%s1 + $0x1] sm:$0x1]
      %v452 = vld [vmem:[#allocation2 + $0x8] sm:$0xff]
      %v453 = vld [vmem:[#allocation2 + $0x10] sm:$0xff]
      %v454 = vld [vmem:[#allocation2 + $0x28] sm:$0xff]
      %v455 = vld [vmem:[#allocation2 + $0x30] sm:$0xff]
      %v456 = vld [vmem:[#allocation2 + $0x48] sm:$0xff]
      %v457 = vld [vmem:[#allocation2 + $0x50] sm:$0xff]
      %v458 = vld [vmem:[#allocation2 + $0x68] sm:$0xff]
      %v459 = vld [vmem:[#allocation2 + $0x70] sm:$0xff]
      %v460 = vld [vmem:[#allocation2 + $0x88] sm:$0xff]
      %v461 = vld [vmem:[#allocation2 + $0x90] sm:$0xff]
      %v462 = vld [vmem:[#allocation2 + $0xa8] sm:$0xff]
      %v463 = vld [vmem:[#allocation2 + $0xb0] sm:$0xff]
      %v464 = vld [vmem:[#allocation2 + $0xc8] sm:$0xff]
      %v465 = vld [vmem:[#allocation2 + $0xd0] sm:$0xff]
      %v466 = vld [vmem:[#allocation2 + $0xe8] sm:$0xff]
      %v467 = vld [vmem:[#allocation2 + $0xf0] sm:$0xff]
      %v468 = vld [vmem:[#allocation2 + $0x108] sm:$0xff]
      %v469 = vld [vmem:[#allocation2 + $0x110] sm:$0xff]
      %v470 = vld [vmem:[#allocation2 + $0x128] sm:$0xff]
      %v471 = vld [vmem:[#allocation2 + $0x130] sm:$0xff]
      %v472 = vld [vmem:[#allocation2 + $0x148] sm:$0xff]
      %v473 = vld [vmem:[#allocation2 + $0x150] sm:$0xff]
      %v474 = vld [vmem:[#allocation2 + $0x168] sm:$0xff]
      %v475 = vld [vmem:[#allocation2 + $0x170] sm:$0xff]
      %v476 = vld [vmem:[#allocation2 + $0x188] sm:$0xff]
      %v477 = vld [vmem:[#allocation2 + $0x190] sm:$0xff]
      %v478 = vld [vmem:[#allocation2 + $0x1a8] sm:$0xff]
      %v479 = vld [vmem:[#allocation2 + $0x1b0] sm:$0xff]
      %v480 = vld [vmem:[#allocation2 + $0x1c8] sm:$0xff]
      %v481 = vld [vmem:[#allocation2 + $0x1d0] sm:$0xff]
      %v482 = vld [vmem:[#allocation2 + $0x1e8] sm:$0xff]
      %v483 = vld [vmem:[#allocation2 + $0x1f0] sm:$0xff]
      %v484 = vlaneseq
      %v485 = vshrl.u32 %v484, 7
      %v486 = vsub.s32 0, %v485
      %v487 = vrot.slane %v451, %v486
      %v488 = vmul.f32 %v452, %v487
      %v489 = vmul.f32 %v453, %v487
      %v490 = vmul.f32 %v454, %v487
      %v491 = vmul.f32 %v455, %v487
      %v492 = vmul.f32 %v456, %v487
      %v493 = vmul.f32 %v457, %v487
      %v494 = vmul.f32 %v458, %v487
      %v495 = vmul.f32 %v459, %v487
      %v496 = vmul.f32 %v460, %v487
      %v497 = vmul.f32 %v461, %v487
      %v498 = vmul.f32 %v462, %v487
      %v499 = vmul.f32 %v463, %v487
      %v500 = vmul.f32 %v464, %v487
      %v501 = vmul.f32 %v465, %v487
      %v502 = vmul.f32 %v466, %v487
      %v503 = vmul.f32 %v467, %v487
      %v504 = vmul.f32 %v468, %v487
      %v505 = vmul.f32 %v469, %v487
      %v506 = vmul.f32 %v470, %v487
      %v507 = vmul.f32 %v471, %v487
      %v508 = vmul.f32 %v472, %v487
      %v509 = vmul.f32 %v473, %v487
      %v510 = vmul.f32 %v474, %v487
      %v511 = vmul.f32 %v475, %v487
      %v512 = vmul.f32 %v476, %v487
      %v513 = vmul.f32 %v477, %v487
      %v514 = vmul.f32 %v478, %v487
      %v515 = vmul.f32 %v479, %v487
      %v516 = vmul.f32 %v480, %v487
      %v517 = vmul.f32 %v481, %v487
      %v518 = vmul.f32 %v482, %v487
      %v519 = vmul.f32 %v483, %v487
      %v520 = vadd.f32 %v419, %v488
      %v521 = vadd.f32 %v420, %v489
      %v522 = vadd.f32 %v421, %v490
      %v523 = vadd.f32 %v422, %v491
      %v524 = vadd.f32 %v423, %v492
      %v525 = vadd.f32 %v424, %v493
      %v526 = vadd.f32 %v425, %v494
      %v527 = vadd.f32 %v426, %v495
      %v528 = vadd.f32 %v427, %v496
      %v529 = vadd.f32 %v428, %v497
      %v530 = vadd.f32 %v429, %v498
      %v531 = vadd.f32 %v430, %v499
      %v532 = vadd.f32 %v431, %v500
      %v533 = vadd.f32 %v432, %v501
      %v534 = vadd.f32 %v433, %v502
      %v535 = vadd.f32 %v434, %v503
      %v536 = vadd.f32 %v435, %v504
      %v537 = vadd.f32 %v436, %v505
      %v538 = vadd.f32 %v437, %v506
      %v539 = vadd.f32 %v438, %v507
      %v540 = vadd.f32 %v439, %v508
      %v541 = vadd.f32 %v440, %v509
      %v542 = vadd.f32 %v441, %v510
      %v543 = vadd.f32 %v442, %v511
      %v544 = vadd.f32 %v443, %v512
      %v545 = vadd.f32 %v444, %v513
      %v546 = vadd.f32 %v445, %v514
      %v547 = vadd.f32 %v446, %v515
      %v548 = vadd.f32 %v447, %v516
      %v549 = vadd.f32 %v448, %v517
      %v550 = vadd.f32 %v449, %v518
      %v551 = vadd.f32 %v450, %v519
      %v552 = vld [vmem:[%s1 + $0x2] sm:$0x1]
      %v553 = vld [vmem:[#allocation2 + $0x9] sm:$0xff]
      %v554 = vld [vmem:[#allocation2 + $0x11] sm:$0xff]
      %v555 = vld [vmem:[#allocation2 + $0x29] sm:$0xff]
      %v556 = vld [vmem:[#allocation2 + $0x31] sm:$0xff]
      %v557 = vld [vmem:[#allocation2 + $0x49] sm:$0xff]
      %v558 = vld [vmem:[#allocation2 + $0x51] sm:$0xff]
      %v559 = vld [vmem:[#allocation2 + $0x69] sm:$0xff]
      %v560 = vld [vmem:[#allocation2 + $0x71] sm:$0xff]
      %v561 = vld [vmem:[#allocation2 + $0x89] sm:$0xff]
      %v562 = vld [vmem:[#allocation2 + $0x91] sm:$0xff]
      %v563 = vld [vmem:[#allocation2 + $0xa9] sm:$0xff]
      %v564 = vld [vmem:[#allocation2 + $0xb1] sm:$0xff]
      %v565 = vld [vmem:[#allocation2 + $0xc9] sm:$0xff]
      %v566 = vld [vmem:[#allocation2 + $0xd1] sm:$0xff]
      %v567 = vld [vmem:[#allocation2 + $0xe9] sm:$0xff]
      %v568 = vld [vmem:[#allocation2 + $0xf1] sm:$0xff]
      %v569 = vld [vmem:[#allocation2 + $0x109] sm:$0xff]
      %v570 = vld [vmem:[#allocation2 + $0x111] sm:$0xff]
      %v571 = vld [vmem:[#allocation2 + $0x129] sm:$0xff]
      %v572 = vld [vmem:[#allocation2 + $0x131] sm:$0xff]
      %v573 = vld [vmem:[#allocation2 + $0x149] sm:$0xff]
      %v574 = vld [vmem:[#allocation2 + $0x151] sm:$0xff]
      %v575 = vld [vmem:[#allocation2 + $0x169] sm:$0xff]
      %v576 = vld [vmem:[#allocation2 + $0x171] sm:$0xff]
      %v577 = vld [vmem:[#allocation2 + $0x189] sm:$0xff]
      %v578 = vld [vmem:[#allocation2 + $0x191] sm:$0xff]
      %v579 = vld [vmem:[#allocation2 + $0x1a9] sm:$0xff]
      %v580 = vld [vmem:[#allocation2 + $0x1b1] sm:$0xff]
      %v581 = vld [vmem:[#allocation2 + $0x1c9] sm:$0xff]
      %v582 = vld [vmem:[#allocation2 + $0x1d1] sm:$0xff]
      %v583 = vld [vmem:[#allocation2 + $0x1e9] sm:$0xff]
      %v584 = vld [vmem:[#allocation2 + $0x1f1] sm:$0xff]
      %v585 = vlaneseq
      %v586 = vshrl.u32 %v585, 7
      %v587 = vsub.s32 0, %v586
      %v588 = vrot.slane %v552, %v587
      %v589 = vmul.f32 %v553, %v588
      %v590 = vmul.f32 %v554, %v588
      %v591 = vmul.f32 %v555, %v588
      %v592 = vmul.f32 %v556, %v588
      %v593 = vmul.f32 %v557, %v588
      %v594 = vmul.f32 %v558, %v588
      %v595 = vmul.f32 %v559, %v588
      %v596 = vmul.f32 %v560, %v588
      %v597 = vmul.f32 %v561, %v588
      %v598 = vmul.f32 %v562, %v588
      %v599 = vmul.f32 %v563, %v588
      %v600 = vmul.f32 %v564, %v588
      %v601 = vmul.f32 %v565, %v588
      %v602 = vmul.f32 %v566, %v588
      %v603 = vmul.f32 %v567, %v588
      %v604 = vmul.f32 %v568, %v588
      %v605 = vmul.f32 %v569, %v588
      %v606 = vmul.f32 %v570, %v588
      %v607 = vmul.f32 %v571, %v588
      %v608 = vmul.f32 %v572, %v588
      %v609 = vmul.f32 %v573, %v588
      %v610 = vmul.f32 %v574, %v588
      %v611 = vmul.f32 %v575, %v588
      %v612 = vmul.f32 %v576, %v588
      %v613 = vmul.f32 %v577, %v588
      %v614 = vmul.f32 %v578, %v588
      %v615 = vmul.f32 %v579, %v588
      %v616 = vmul.f32 %v580, %v588
      %v617 = vmul.f32 %v581, %v588
      %v618 = vmul.f32 %v582, %v588
      %v619 = vmul.f32 %v583, %v588
      %v620 = vmul.f32 %v584, %v588
      %v621 = vadd.f32 %v520, %v589
      %v622 = vadd.f32 %v521, %v590
      %v623 = vadd.f32 %v522, %v591
      %v624 = vadd.f32 %v523, %v592
      %v625 = vadd.f32 %v524, %v593
      %v626 = vadd.f32 %v525, %v594
      %v627 = vadd.f32 %v526, %v595
      %v628 = vadd.f32 %v527, %v596
      %v629 = vadd.f32 %v528, %v597
      %v630 = vadd.f32 %v529, %v598
      %v631 = vadd.f32 %v530, %v599
      %v632 = vadd.f32 %v531, %v600
      %v633 = vadd.f32 %v532, %v601
      %v634 = vadd.f32 %v533, %v602
      %v635 = vadd.f32 %v534, %v603
      %v636 = vadd.f32 %v535, %v604
      %v637 = vadd.f32 %v536, %v605
      %v638 = vadd.f32 %v537, %v606
      %v639 = vadd.f32 %v538, %v607
      %v640 = vadd.f32 %v539, %v608
      %v641 = vadd.f32 %v540, %v609
      %v642 = vadd.f32 %v541, %v610
      %v643 = vadd.f32 %v542, %v611
      %v644 = vadd.f32 %v543, %v612
      %v645 = vadd.f32 %v544, %v613
      %v646 = vadd.f32 %v545, %v614
      %v647 = vadd.f32 %v546, %v615
      %v648 = vadd.f32 %v547, %v616
      %v649 = vadd.f32 %v548, %v617
      %v650 = vadd.f32 %v549, %v618
      %v651 = vadd.f32 %v550, %v619
      %v652 = vadd.f32 %v551, %v620
      %v653 = vld [vmem:[%s1 + $0x3] sm:$0x1]
      %v654 = vld [vmem:[%s253 + $0x7] sm:$0xff]
      %v655 = vld [vmem:[%s253 + $0xf] sm:$0xff]
      %v656 = vld [vmem:[%s253 + $0x27] sm:$0xff]
      %v657 = vld [vmem:[%s253 + $0x2f] sm:$0xff]
      %v658 = vld [vmem:[%s253 + $0x47] sm:$0xff]
      %v659 = vld [vmem:[%s253 + $0x4f] sm:$0xff]
      %v660 = vld [vmem:[%s253 + $0x67] sm:$0xff]
      %v661 = vld [vmem:[%s253 + $0x6f] sm:$0xff]
      %v662 = vld [vmem:[%s253 + $0x87] sm:$0xff]
      %v663 = vld [vmem:[%s253 + $0x8f] sm:$0xff]
      %v664 = vld [vmem:[%s253 + $0xa7] sm:$0xff]
      %v665 = vld [vmem:[%s253 + $0xaf] sm:$0xff]
      %v666 = vld [vmem:[%s253 + $0xc7] sm:$0xff]
      %v667 = vld [vmem:[%s253 + $0xcf] sm:$0xff]
      %v668 = vld [vmem:[%s253 + $0xe7] sm:$0xff]
      %v669 = vld [vmem:[%s253 + $0xef] sm:$0xff]
      %v670 = vld [vmem:[%s253 + $0x107] sm:$0xff]
      %v671 = vld [vmem:[%s253 + $0x10f] sm:$0xff]
      %v672 = vld [vmem:[%s253 + $0x127] sm:$0xff]
      %v673 = vld [vmem:[%s253 + $0x12f] sm:$0xff]
      %v674 = vld [vmem:[%s253 + $0x147] sm:$0xff]
      %v675 = vld [vmem:[%s253 + $0x14f] sm:$0xff]
      %v676 = vld [vmem:[%s253 + $0x167] sm:$0xff]
      %v677 = vld [vmem:[%s253 + $0x16f] sm:$0xff]
      %v678 = vld [vmem:[%s253 + $0x187] sm:$0xff]
      %v679 = vld [vmem:[%s253 + $0x18f] sm:$0xff]
      %v680 = vld [vmem:[%s253 + $0x1a7] sm:$0xff]
      %v681 = vld [vmem:[%s253 + $0x1af] sm:$0xff]
      %v682 = vld [vmem:[%s253 + $0x1c7] sm:$0xff]
      %v683 = vld [vmem:[%s253 + $0x1cf] sm:$0xff]
      %v684 = vld [vmem:[%s253 + $0x1e7] sm:$0xff]
      %v685 = vld [vmem:[%s253 + $0x1ef] sm:$0xff]
      %v686 = vlaneseq
      %v687 = vshrl.u32 %v686, 7
      %v688 = vsub.s32 0, %v687
      %v689 = vrot.slane %v653, %v688
      %v690 = vmul.f32 %v654, %v689
      %v691 = vmul.f32 %v655, %v689
      %v692 = vmul.f32 %v656, %v689
      %v693 = vmul.f32 %v657, %v689
      %v694 = vmul.f32 %v658, %v689
      %v695 = vmul.f32 %v659, %v689
      %v696 = vmul.f32 %v660, %v689
      %v697 = vmul.f32 %v661, %v689
      %v698 = vmul.f32 %v662, %v689
      %v699 = vmul.f32 %v663, %v689
      %v700 = vmul.f32 %v664, %v689
      %v701 = vmul.f32 %v665, %v689
      %v702 = vmul.f32 %v666, %v689
      %v703 = vmul.f32 %v667, %v689
      %v704 = vmul.f32 %v668, %v689
      %v705 = vmul.f32 %v669, %v689
      %v706 = vmul.f32 %v670, %v689
      %v707 = vmul.f32 %v671, %v689
      %v708 = vmul.f32 %v672, %v689
      %v709 = vmul.f32 %v673, %v689
      %v710 = vmul.f32 %v674, %v689
      %v711 = vmul.f32 %v675, %v689
      %v712 = vmul.f32 %v676, %v689
      %v713 = vmul.f32 %v677, %v689
      %v714 = vmul.f32 %v678, %v689
      %v715 = vmul.f32 %v679, %v689
      %v716 = vmul.f32 %v680, %v689
      %v717 = vmul.f32 %v681, %v689
      %v718 = vmul.f32 %v682, %v689
      %v719 = vmul.f32 %v683, %v689
      %v720 = vmul.f32 %v684, %v689
      %v721 = vmul.f32 %v685, %v689
      %v722 = vadd.f32 %v621, %v690
      %v723 = vadd.f32 %v622, %v691
      %v724 = vadd.f32 %v623, %v692
      %v725 = vadd.f32 %v624, %v693
      %v726 = vadd.f32 %v625, %v694
      %v727 = vadd.f32 %v626, %v695
      %v728 = vadd.f32 %v627, %v696
      %v729 = vadd.f32 %v628, %v697
      %v730 = vadd.f32 %v629, %v698
      %v731 = vadd.f32 %v630, %v699
      %v732 = vadd.f32 %v631, %v700
      %v733 = vadd.f32 %v632, %v701
      %v734 = vadd.f32 %v633, %v702
      %v735 = vadd.f32 %v634, %v703
      %v736 = vadd.f32 %v635, %v704
      %v737 = vadd.f32 %v636, %v705
      %v738 = vadd.f32 %v637, %v706
      %v739 = vadd.f32 %v638, %v707
      %v740 = vadd.f32 %v639, %v708
      %v741 = vadd.f32 %v640, %v709
      %v742 = vadd.f32 %v641, %v710
      %v743 = vadd.f32 %v642, %v711
      %v744 = vadd.f32 %v643, %v712
      %v745 = vadd.f32 %v644, %v713
      %v746 = vadd.f32 %v645, %v714
      %v747 = vadd.f32 %v646, %v715
      %v748 = vadd.f32 %v647, %v716
      %v749 = vadd.f32 %v648, %v717
      %v750 = vadd.f32 %v649, %v718
      %v751 = vadd.f32 %v650, %v719
      %v752 = vadd.f32 %v651, %v720
      %v753 = vadd.f32 %v652, %v721
      %v754 = vld [vmem:[%s1 + $0x4] sm:$0x1]
      %v755 = vld [vmem:[%s253 + $0x8] sm:$0xff]
      %v756 = vld [vmem:[%s253 + $0x10] sm:$0xff]
      %v757 = vld [vmem:[%s253 + $0x28] sm:$0xff]
      %v758 = vld [vmem:[%s253 + $0x30] sm:$0xff]
      %v759 = vld [vmem:[%s253 + $0x48] sm:$0xff]
      %v760 = vld [vmem:[%s253 + $0x50] sm:$0xff]
      %v761 = vld [vmem:[%s253 + $0x68] sm:$0xff]
      %v762 = vld [vmem:[%s253 + $0x70] sm:$0xff]
      %v763 = vld [vmem:[%s253 + $0x88] sm:$0xff]
      %v764 = vld [vmem:[%s253 + $0x90] sm:$0xff]
      %v765 = vld [vmem:[%s253 + $0xa8] sm:$0xff]
      %v766 = vld [vmem:[%s253 + $0xb0] sm:$0xff]
      %v767 = vld [vmem:[%s253 + $0xc8] sm:$0xff]
      %v768 = vld [vmem:[%s253 + $0xd0] sm:$0xff]
      %v769 = vld [vmem:[%s253 + $0xe8] sm:$0xff]
      %v770 = vld [vmem:[%s253 + $0xf0] sm:$0xff]
      %v771 = vld [vmem:[%s253 + $0x108] sm:$0xff]
      %v772 = vld [vmem:[%s253 + $0x110] sm:$0xff]
      %v773 = vld [vmem:[%s253 + $0x128] sm:$0xff]
      %v774 = vld [vmem:[%s253 + $0x130] sm:$0xff]
      %v775 = vld [vmem:[%s253 + $0x148] sm:$0xff]
      %v776 = vld [vmem:[%s253 + $0x150] sm:$0xff]
      %v777 = vld [vmem:[%s253 + $0x168] sm:$0xff]
      %v778 = vld [vmem:[%s253 + $0x170] sm:$0xff]
      %v779 = vld [vmem:[%s253 + $0x188] sm:$0xff]
      %v780 = vld [vmem:[%s253 + $0x190] sm:$0xff]
      %v781 = vld [vmem:[%s253 + $0x1a8] sm:$0xff]
      %v782 = vld [vmem:[%s253 + $0x1b0] sm:$0xff]
      %v783 = vld [vmem:[%s253 + $0x1c8] sm:$0xff]
      %v784 = vld [vmem:[%s253 + $0x1d0] sm:$0xff]
      %v785 = vld [vmem:[%s253 + $0x1e8] sm:$0xff]
      %v786 = vld [vmem:[%s253 + $0x1f0] sm:$0xff]
      %v787 = vlaneseq
      %v788 = vshrl.u32 %v787, 7
      %v789 = vsub.s32 0, %v788
      %v790 = vrot.slane %v754, %v789
      %v791 = vmul.f32 %v755, %v790
      %v792 = vmul.f32 %v756, %v790
      %v793 = vmul.f32 %v757, %v790
      %v794 = vmul.f32 %v758, %v790
      %v795 = vmul.f32 %v759, %v790
      %v796 = vmul.f32 %v760, %v790
      %v797 = vmul.f32 %v761, %v790
      %v798 = vmul.f32 %v762, %v790
      %v799 = vmul.f32 %v763, %v790
      %v800 = vmul.f32 %v764, %v790
      %v801 = vmul.f32 %v765, %v790
      %v802 = vmul.f32 %v766, %v790
      %v803 = vmul.f32 %v767, %v790
      %v804 = vmul.f32 %v768, %v790
      %v805 = vmul.f32 %v769, %v790
      %v806 = vmul.f32 %v770, %v790
      %v807 = vmul.f32 %v771, %v790
      %v808 = vmul.f32 %v772, %v790
      %v809 = vmul.f32 %v773, %v790
      %v810 = vmul.f32 %v774, %v790
      %v811 = vmul.f32 %v775, %v790
      %v812 = vmul.f32 %v776, %v790
      %v813 = vmul.f32 %v777, %v790
      %v814 = vmul.f32 %v778, %v790
      %v815 = vmul.f32 %v779, %v790
      %v816 = vmul.f32 %v780, %v790
      %v817 = vmul.f32 %v781, %v790
      %v818 = vmul.f32 %v782, %v790
      %v819 = vmul.f32 %v783, %v790
      %v820 = vmul.f32 %v784, %v790
      %v821 = vmul.f32 %v785, %v790
      %v822 = vmul.f32 %v786, %v790
      %v823 = vadd.f32 %v722, %v791
      %v824 = vadd.f32 %v723, %v792
      %v825 = vadd.f32 %v724, %v793
      %v826 = vadd.f32 %v725, %v794
      %v827 = vadd.f32 %v726, %v795
      %v828 = vadd.f32 %v727, %v796
      %v829 = vadd.f32 %v728, %v797
      %v830 = vadd.f32 %v729, %v798
      %v831 = vadd.f32 %v730, %v799
      %v832 = vadd.f32 %v731, %v800
      %v833 = vadd.f32 %v732, %v801
      %v834 = vadd.f32 %v733, %v802
      %v835 = vadd.f32 %v734, %v803
      %v836 = vadd.f32 %v735, %v804
      %v837 = vadd.f32 %v736, %v805
      %v838 = vadd.f32 %v737, %v806
      %v839 = vadd.f32 %v738, %v807
      %v840 = vadd.f32 %v739, %v808
      %v841 = vadd.f32 %v740, %v809
      %v842 = vadd.f32 %v741, %v810
      %v843 = vadd.f32 %v742, %v811
      %v844 = vadd.f32 %v743, %v812
      %v845 = vadd.f32 %v744, %v813
      %v846 = vadd.f32 %v745, %v814
      %v847 = vadd.f32 %v746, %v815
      %v848 = vadd.f32 %v747, %v816
      %v849 = vadd.f32 %v748, %v817
      %v850 = vadd.f32 %v749, %v818
      %v851 = vadd.f32 %v750, %v819
      %v852 = vadd.f32 %v751, %v820
      %v853 = vadd.f32 %v752, %v821
      %v854 = vadd.f32 %v753, %v822
      %v855 = vld [vmem:[%s1 + $0x5] sm:$0x1]
      %v856 = vld [vmem:[%s253 + $0x9] sm:$0xff]
      %v857 = vld [vmem:[%s253 + $0x11] sm:$0xff]
      %v858 = vld [vmem:[%s253 + $0x29] sm:$0xff]
      %v859 = vld [vmem:[%s253 + $0x31] sm:$0xff]
      %v860 = vld [vmem:[%s253 + $0x49] sm:$0xff]
      %v861 = vld [vmem:[%s253 + $0x51] sm:$0xff]
      %v862 = vld [vmem:[%s253 + $0x69] sm:$0xff]
      %v863 = vld [vmem:[%s253 + $0x71] sm:$0xff]
      %v864 = vld [vmem:[%s253 + $0x89] sm:$0xff]
      %v865 = vld [vmem:[%s253 + $0x91] sm:$0xff]
      %v866 = vld [vmem:[%s253 + $0xa9] sm:$0xff]
      %v867 = vld [vmem:[%s253 + $0xb1] sm:$0xff]
      %v868 = vld [vmem:[%s253 + $0xc9] sm:$0xff]
      %v869 = vld [vmem:[%s253 + $0xd1] sm:$0xff]
      %v870 = vld [vmem:[%s253 + $0xe9] sm:$0xff]
      %v871 = vld [vmem:[%s253 + $0xf1] sm:$0xff]
      %v872 = vld [vmem:[%s253 + $0x109] sm:$0xff]
      %v873 = vld [vmem:[%s253 + $0x111] sm:$0xff]
      %v874 = vld [vmem:[%s253 + $0x129] sm:$0xff]
      %v875 = vld [vmem:[%s253 + $0x131] sm:$0xff]
      %v876 = vld [vmem:[%s253 + $0x149] sm:$0xff]
      %v877 = vld [vmem:[%s253 + $0x151] sm:$0xff]
      %v878 = vld [vmem:[%s253 + $0x169] sm:$0xff]
      %v879 = vld [vmem:[%s253 + $0x171] sm:$0xff]
      %v880 = vld [vmem:[%s253 + $0x189] sm:$0xff]
      %v881 = vld [vmem:[%s253 + $0x191] sm:$0xff]
      %v882 = vld [vmem:[%s253 + $0x1a9] sm:$0xff]
      %v883 = vld [vmem:[%s253 + $0x1b1] sm:$0xff]
      %v884 = vld [vmem:[%s253 + $0x1c9] sm:$0xff]
      %v885 = vld [vmem:[%s253 + $0x1d1] sm:$0xff]
      %v886 = vld [vmem:[%s253 + $0x1e9] sm:$0xff]
      %v887 = vld [vmem:[%s253 + $0x1f1] sm:$0xff]
      %v888 = vlaneseq
      %v889 = vshrl.u32 %v888, 7
      %v890 = vsub.s32 0, %v889
      %v891 = vrot.slane %v855, %v890
      %v892 = vmul.f32 %v856, %v891
      %v893 = vmul.f32 %v857, %v891
      %v894 = vmul.f32 %v858, %v891
      %v895 = vmul.f32 %v859, %v891
      %v896 = vmul.f32 %v860, %v891
      %v897 = vmul.f32 %v861, %v891
      %v898 = vmul.f32 %v862, %v891
      %v899 = vmul.f32 %v863, %v891
      %v900 = vmul.f32 %v864, %v891
      %v901 = vmul.f32 %v865, %v891
      %v902 = vmul.f32 %v866, %v891
      %v903 = vmul.f32 %v867, %v891
      %v904 = vmul.f32 %v868, %v891
      %v905 = vmul.f32 %v869, %v891
      %v906 = vmul.f32 %v870, %v891
      %v907 = vmul.f32 %v871, %v891
      %v908 = vmul.f32 %v872, %v891
      %v909 = vmul.f32 %v873, %v891
      %v910 = vmul.f32 %v874, %v891
      %v911 = vmul.f32 %v875, %v891
      %v912 = vmul.f32 %v876, %v891
      %v913 = vmul.f32 %v877, %v891
      %v914 = vmul.f32 %v878, %v891
      %v915 = vmul.f32 %v879, %v891
      %v916 = vmul.f32 %v880, %v891
      %v917 = vmul.f32 %v881, %v891
      %v918 = vmul.f32 %v882, %v891
      %v919 = vmul.f32 %v883, %v891
      %v920 = vmul.f32 %v884, %v891
      %v921 = vmul.f32 %v885, %v891
      %v922 = vmul.f32 %v886, %v891
      %v923 = vmul.f32 %v887, %v891
      %v924 = vadd.f32 %v823, %v892
      %v925 = vadd.f32 %v824, %v893
      %v926 = vadd.f32 %v825, %v894
      %v927 = vadd.f32 %v826, %v895
      %v928 = vadd.f32 %v827, %v896
      %v929 = vadd.f32 %v828, %v897
      %v930 = vadd.f32 %v829, %v898
      %v931 = vadd.f32 %v830, %v899
      %v932 = vadd.f32 %v831, %v900
      %v933 = vadd.f32 %v832, %v901
      %v934 = vadd.f32 %v833, %v902
      %v935 = vadd.f32 %v834, %v903
      %v936 = vadd.f32 %v835, %v904
      %v937 = vadd.f32 %v836, %v905
      %v938 = vadd.f32 %v837, %v906
      %v939 = vadd.f32 %v838, %v907
      %v940 = vadd.f32 %v839, %v908
      %v941 = vadd.f32 %v840, %v909
      %v942 = vadd.f32 %v841, %v910
      %v943 = vadd.f32 %v842, %v911
      %v944 = vadd.f32 %v843, %v912
      %v945 = vadd.f32 %v844, %v913
      %v946 = vadd.f32 %v845, %v914
      %v947 = vadd.f32 %v846, %v915
      %v948 = vadd.f32 %v847, %v916
      %v949 = vadd.f32 %v848, %v917
      %v950 = vadd.f32 %v849, %v918
      %v951 = vadd.f32 %v850, %v919
      %v952 = vadd.f32 %v851, %v920
      %v953 = vadd.f32 %v852, %v921
      %v954 = vadd.f32 %v853, %v922
      %v955 = vadd.f32 %v854, %v923
      %v956 = vld [vmem:[%s1 + $0x6] sm:$0x1]
      %s957 = scalar_lea.vmem [#allocation2], 64
      %v958 = vld [vmem:[%s957 + $0x7] sm:$0xff]
      %v959 = vld [vmem:[%s957 + $0xf] sm:$0xff]
      %v960 = vld [vmem:[%s957 + $0x27] sm:$0xff]
      %v961 = vld [vmem:[%s957 + $0x2f] sm:$0xff]
      %v962 = vld [vmem:[%s957 + $0x47] sm:$0xff]
      %v963 = vld [vmem:[%s957 + $0x4f] sm:$0xff]
      %v964 = vld [vmem:[%s957 + $0x67] sm:$0xff]
      %v965 = vld [vmem:[%s957 + $0x6f] sm:$0xff]
      %v966 = vld [vmem:[%s957 + $0x87] sm:$0xff]
      %v967 = vld [vmem:[%s957 + $0x8f] sm:$0xff]
      %v968 = vld [vmem:[%s957 + $0xa7] sm:$0xff]
      %v969 = vld [vmem:[%s957 + $0xaf] sm:$0xff]
      %v970 = vld [vmem:[%s957 + $0xc7] sm:$0xff]
      %v971 = vld [vmem:[%s957 + $0xcf] sm:$0xff]
      %v972 = vld [vmem:[%s957 + $0xe7] sm:$0xff]
      %v973 = vld [vmem:[%s957 + $0xef] sm:$0xff]
      %v974 = vld [vmem:[%s957 + $0x107] sm:$0xff]
      %v975 = vld [vmem:[%s957 + $0x10f] sm:$0xff]
      %v976 = vld [vmem:[%s957 + $0x127] sm:$0xff]
      %v977 = vld [vmem:[%s957 + $0x12f] sm:$0xff]
      %v978 = vld [vmem:[%s957 + $0x147] sm:$0xff]
      %v979 = vld [vmem:[%s957 + $0x14f] sm:$0xff]
      %v980 = vld [vmem:[%s957 + $0x167] sm:$0xff]
      %v981 = vld [vmem:[%s957 + $0x16f] sm:$0xff]
      %v982 = vld [vmem:[%s957 + $0x187] sm:$0xff]
      %v983 = vld [vmem:[%s957 + $0x18f] sm:$0xff]
      %v984 = vld [vmem:[%s957 + $0x1a7] sm:$0xff]
      %v985 = vld [vmem:[%s957 + $0x1af] sm:$0xff]
      %v986 = vld [vmem:[%s957 + $0x1c7] sm:$0xff]
      %v987 = vld [vmem:[%s957 + $0x1cf] sm:$0xff]
      %v988 = vld [vmem:[%s957 + $0x1e7] sm:$0xff]
      %v989 = vld [vmem:[%s957 + $0x1ef] sm:$0xff]
      %v990 = vlaneseq
      %v991 = vshrl.u32 %v990, 7
      %v992 = vsub.s32 0, %v991
      %v993 = vrot.slane %v956, %v992
      %v994 = vmul.f32 %v958, %v993
      %v995 = vmul.f32 %v959, %v993
      %v996 = vmul.f32 %v960, %v993
      %v997 = vmul.f32 %v961, %v993
      %v998 = vmul.f32 %v962, %v993
      %v999 = vmul.f32 %v963, %v993
      %v1000 = vmul.f32 %v964, %v993
      %v1001 = vmul.f32 %v965, %v993
      %v1002 = vmul.f32 %v966, %v993
      %v1003 = vmul.f32 %v967, %v993
      %v1004 = vmul.f32 %v968, %v993
      %v1005 = vmul.f32 %v969, %v993
      %v1006 = vmul.f32 %v970, %v993
      %v1007 = vmul.f32 %v971, %v993
      %v1008 = vmul.f32 %v972, %v993
      %v1009 = vmul.f32 %v973, %v993
      %v1010 = vmul.f32 %v974, %v993
      %v1011 = vmul.f32 %v975, %v993
      %v1012 = vmul.f32 %v976, %v993
      %v1013 = vmul.f32 %v977, %v993
      %v1014 = vmul.f32 %v978, %v993
      %v1015 = vmul.f32 %v979, %v993
      %v1016 = vmul.f32 %v980, %v993
      %v1017 = vmul.f32 %v981, %v993
      %v1018 = vmul.f32 %v982, %v993
      %v1019 = vmul.f32 %v983, %v993
      %v1020 = vmul.f32 %v984, %v993
      %v1021 = vmul.f32 %v985, %v993
      %v1022 = vmul.f32 %v986, %v993
      %v1023 = vmul.f32 %v987, %v993
      %v1024 = vmul.f32 %v988, %v993
      %v1025 = vmul.f32 %v989, %v993
      %v1026 = vadd.f32 %v924, %v994
      %v1027 = vadd.f32 %v925, %v995
      %v1028 = vadd.f32 %v926, %v996
      %v1029 = vadd.f32 %v927, %v997
      %v1030 = vadd.f32 %v928, %v998
      %v1031 = vadd.f32 %v929, %v999
      %v1032 = vadd.f32 %v930, %v1000
      %v1033 = vadd.f32 %v931, %v1001
      %v1034 = vadd.f32 %v932, %v1002
      %v1035 = vadd.f32 %v933, %v1003
      %v1036 = vadd.f32 %v934, %v1004
      %v1037 = vadd.f32 %v935, %v1005
      %v1038 = vadd.f32 %v936, %v1006
      %v1039 = vadd.f32 %v937, %v1007
      %v1040 = vadd.f32 %v938, %v1008
      %v1041 = vadd.f32 %v939, %v1009
      %v1042 = vadd.f32 %v940, %v1010
      %v1043 = vadd.f32 %v941, %v1011
      %v1044 = vadd.f32 %v942, %v1012
      %v1045 = vadd.f32 %v943, %v1013
      %v1046 = vadd.f32 %v944, %v1014
      %v1047 = vadd.f32 %v945, %v1015
      %v1048 = vadd.f32 %v946, %v1016
      %v1049 = vadd.f32 %v947, %v1017
      %v1050 = vadd.f32 %v948, %v1018
      %v1051 = vadd.f32 %v949, %v1019
      %v1052 = vadd.f32 %v950, %v1020
      %v1053 = vadd.f32 %v951, %v1021
      %v1054 = vadd.f32 %v952, %v1022
      %v1055 = vadd.f32 %v953, %v1023
      %v1056 = vadd.f32 %v954, %v1024
      %v1057 = vadd.f32 %v955, %v1025
      %v1058 = vld [vmem:[%s1 + $0x7] sm:$0x1]
      %v1059 = vld [vmem:[%s957 + $0x8] sm:$0xff]
      %v1060 = vld [vmem:[%s957 + $0x10] sm:$0xff]
      %v1061 = vld [vmem:[%s957 + $0x28] sm:$0xff]
      %v1062 = vld [vmem:[%s957 + $0x30] sm:$0xff]
      %v1063 = vld [vmem:[%s957 + $0x48] sm:$0xff]
      %v1064 = vld [vmem:[%s957 + $0x50] sm:$0xff]
      %v1065 = vld [vmem:[%s957 + $0x68] sm:$0xff]
      %v1066 = vld [vmem:[%s957 + $0x70] sm:$0xff]
      %v1067 = vld [vmem:[%s957 + $0x88] sm:$0xff]
      %v1068 = vld [vmem:[%s957 + $0x90] sm:$0xff]
      %v1069 = vld [vmem:[%s957 + $0xa8] sm:$0xff]
      %v1070 = vld [vmem:[%s957 + $0xb0] sm:$0xff]
      %v1071 = vld [vmem:[%s957 + $0xc8] sm:$0xff]
      %v1072 = vld [vmem:[%s957 + $0xd0] sm:$0xff]
      %v1073 = vld [vmem:[%s957 + $0xe8] sm:$0xff]
      %v1074 = vld [vmem:[%s957 + $0xf0] sm:$0xff]
      %v1075 = vld [vmem:[%s957 + $0x108] sm:$0xff]
      %v1076 = vld [vmem:[%s957 + $0x110] sm:$0xff]
      %v1077 = vld [vmem:[%s957 + $0x128] sm:$0xff]
      %v1078 = vld [vmem:[%s957 + $0x130] sm:$0xff]
      %v1079 = vld [vmem:[%s957 + $0x148] sm:$0xff]
      %v1080 = vld [vmem:[%s957 + $0x150] sm:$0xff]
      %v1081 = vld [vmem:[%s957 + $0x168] sm:$0xff]
      %v1082 = vld [vmem:[%s957 + $0x170] sm:$0xff]
      %v1083 = vld [vmem:[%s957 + $0x188] sm:$0xff]
      %v1084 = vld [vmem:[%s957 + $0x190] sm:$0xff]
      %v1085 = vld [vmem:[%s957 + $0x1a8] sm:$0xff]
      %v1086 = vld [vmem:[%s957 + $0x1b0] sm:$0xff]
      %v1087 = vld [vmem:[%s957 + $0x1c8] sm:$0xff]
      %v1088 = vld [vmem:[%s957 + $0x1d0] sm:$0xff]
      %v1089 = vld [vmem:[%s957 + $0x1e8] sm:$0xff]
      %v1090 = vld [vmem:[%s957 + $0x1f0] sm:$0xff]
      %v1091 = vlaneseq
      %v1092 = vshrl.u32 %v1091, 7
      %v1093 = vsub.s32 0, %v1092
      %v1094 = vrot.slane %v1058, %v1093
      %v1095 = vmul.f32 %v1059, %v1094
      %v1096 = vmul.f32 %v1060, %v1094
      %v1097 = vmul.f32 %v1061, %v1094
      %v1098 = vmul.f32 %v1062, %v1094
      %v1099 = vmul.f32 %v1063, %v1094
      %v1100 = vmul.f32 %v1064, %v1094
      %v1101 = vmul.f32 %v1065, %v1094
      %v1102 = vmul.f32 %v1066, %v1094
      %v1103 = vmul.f32 %v1067, %v1094
      %v1104 = vmul.f32 %v1068, %v1094
      %v1105 = vmul.f32 %v1069, %v1094
      %v1106 = vmul.f32 %v1070, %v1094
      %v1107 = vmul.f32 %v1071, %v1094
      %v1108 = vmul.f32 %v1072, %v1094
      %v1109 = vmul.f32 %v1073, %v1094
      %v1110 = vmul.f32 %v1074, %v1094
      %v1111 = vmul.f32 %v1075, %v1094
      %v1112 = vmul.f32 %v1076, %v1094
      %v1113 = vmul.f32 %v1077, %v1094
      %v1114 = vmul.f32 %v1078, %v1094
      %v1115 = vmul.f32 %v1079, %v1094
      %v1116 = vmul.f32 %v1080, %v1094
      %v1117 = vmul.f32 %v1081, %v1094
      %v1118 = vmul.f32 %v1082, %v1094
      %v1119 = vmul.f32 %v1083, %v1094
      %v1120 = vmul.f32 %v1084, %v1094
      %v1121 = vmul.f32 %v1085, %v1094
      %v1122 = vmul.f32 %v1086, %v1094
      %v1123 = vmul.f32 %v1087, %v1094
      %v1124 = vmul.f32 %v1088, %v1094
      %v1125 = vmul.f32 %v1089, %v1094
      %v1126 = vmul.f32 %v1090, %v1094
      %v1127 = vadd.f32 %v1026, %v1095
      %v1128 = vadd.f32 %v1027, %v1096
      %v1129 = vadd.f32 %v1028, %v1097
      %v1130 = vadd.f32 %v1029, %v1098
      %v1131 = vadd.f32 %v1030, %v1099
      %v1132 = vadd.f32 %v1031, %v1100
      %v1133 = vadd.f32 %v1032, %v1101
      %v1134 = vadd.f32 %v1033, %v1102
      %v1135 = vadd.f32 %v1034, %v1103
      %v1136 = vadd.f32 %v1035, %v1104
      %v1137 = vadd.f32 %v1036, %v1105
      %v1138 = vadd.f32 %v1037, %v1106
      %v1139 = vadd.f32 %v1038, %v1107
      %v1140 = vadd.f32 %v1039, %v1108
      %v1141 = vadd.f32 %v1040, %v1109
      %v1142 = vadd.f32 %v1041, %v1110
      %v1143 = vadd.f32 %v1042, %v1111
      %v1144 = vadd.f32 %v1043, %v1112
      %v1145 = vadd.f32 %v1044, %v1113
      %v1146 = vadd.f32 %v1045, %v1114
      %v1147 = vadd.f32 %v1046, %v1115
      %v1148 = vadd.f32 %v1047, %v1116
      %v1149 = vadd.f32 %v1048, %v1117
      %v1150 = vadd.f32 %v1049, %v1118
      %v1151 = vadd.f32 %v1050, %v1119
      %v1152 = vadd.f32 %v1051, %v1120
      %v1153 = vadd.f32 %v1052, %v1121
      %v1154 = vadd.f32 %v1053, %v1122
      %v1155 = vadd.f32 %v1054, %v1123
      %v1156 = vadd.f32 %v1055, %v1124
      %v1157 = vadd.f32 %v1056, %v1125
      %v1158 = vadd.f32 %v1057, %v1126
      %v1159 = vld [vmem:[%s1 + $0x8] sm:$0x1]
      %v1160 = vld [vmem:[%s957 + $0x9] sm:$0xff]
      %v1161 = vld [vmem:[%s957 + $0x11] sm:$0xff]
      %v1162 = vld [vmem:[%s957 + $0x29] sm:$0xff]
      %v1163 = vld [vmem:[%s957 + $0x31] sm:$0xff]
      %v1164 = vld [vmem:[%s957 + $0x49] sm:$0xff]
      %v1165 = vld [vmem:[%s957 + $0x51] sm:$0xff]
      %v1166 = vld [vmem:[%s957 + $0x69] sm:$0xff]
      %v1167 = vld [vmem:[%s957 + $0x71] sm:$0xff]
      %v1168 = vld [vmem:[%s957 + $0x89] sm:$0xff]
      %v1169 = vld [vmem:[%s957 + $0x91] sm:$0xff]
      %v1170 = vld [vmem:[%s957 + $0xa9] sm:$0xff]
      %v1171 = vld [vmem:[%s957 + $0xb1] sm:$0xff]
      %v1172 = vld [vmem:[%s957 + $0xc9] sm:$0xff]
      %v1173 = vld [vmem:[%s957 + $0xd1] sm:$0xff]
      %v1174 = vld [vmem:[%s957 + $0xe9] sm:$0xff]
      %v1175 = vld [vmem:[%s957 + $0xf1] sm:$0xff]
      %v1176 = vld [vmem:[%s957 + $0x109] sm:$0xff]
      %v1177 = vld [vmem:[%s957 + $0x111] sm:$0xff]
      %v1178 = vld [vmem:[%s957 + $0x129] sm:$0xff]
      %v1179 = vld [vmem:[%s957 + $0x131] sm:$0xff]
      %v1180 = vld [vmem:[%s957 + $0x149] sm:$0xff]
      %v1181 = vld [vmem:[%s957 + $0x151] sm:$0xff]
      %v1182 = vld [vmem:[%s957 + $0x169] sm:$0xff]
      %v1183 = vld [vmem:[%s957 + $0x171] sm:$0xff]
      %v1184 = vld [vmem:[%s957 + $0x189] sm:$0xff]
      %v1185 = vld [vmem:[%s957 + $0x191] sm:$0xff]
      %v1186 = vld [vmem:[%s957 + $0x1a9] sm:$0xff]
      %v1187 = vld [vmem:[%s957 + $0x1b1] sm:$0xff]
      %v1188 = vld [vmem:[%s957 + $0x1c9] sm:$0xff]
      %v1189 = vld [vmem:[%s957 + $0x1d1] sm:$0xff]
      %v1190 = vld [vmem:[%s957 + $0x1e9] sm:$0xff]
      %v1191 = vld [vmem:[%s957 + $0x1f1] sm:$0xff]
      %v1192 = vlaneseq
      %v1193 = vshrl.u32 %v1192, 7
      %v1194 = vsub.s32 0, %v1193
      %v1195 = vrot.slane %v1159, %v1194
      %v1196 = vmul.f32 %v1160, %v1195
      %v1197 = vmul.f32 %v1161, %v1195
      %v1198 = vmul.f32 %v1162, %v1195
      %v1199 = vmul.f32 %v1163, %v1195
      %v1200 = vmul.f32 %v1164, %v1195
      %v1201 = vmul.f32 %v1165, %v1195
      %v1202 = vmul.f32 %v1166, %v1195
      %v1203 = vmul.f32 %v1167, %v1195
      %v1204 = vmul.f32 %v1168, %v1195
      %v1205 = vmul.f32 %v1169, %v1195
      %v1206 = vmul.f32 %v1170, %v1195
      %v1207 = vmul.f32 %v1171, %v1195
      %v1208 = vmul.f32 %v1172, %v1195
      %v1209 = vmul.f32 %v1173, %v1195
      %v1210 = vmul.f32 %v1174, %v1195
      %v1211 = vmul.f32 %v1175, %v1195
      %v1212 = vmul.f32 %v1176, %v1195
      %v1213 = vmul.f32 %v1177, %v1195
      %v1214 = vmul.f32 %v1178, %v1195
      %v1215 = vmul.f32 %v1179, %v1195
      %v1216 = vmul.f32 %v1180, %v1195
      %v1217 = vmul.f32 %v1181, %v1195
      %v1218 = vmul.f32 %v1182, %v1195
      %v1219 = vmul.f32 %v1183, %v1195
      %v1220 = vmul.f32 %v1184, %v1195
      %v1221 = vmul.f32 %v1185, %v1195
      %v1222 = vmul.f32 %v1186, %v1195
      %v1223 = vmul.f32 %v1187, %v1195
      %v1224 = vmul.f32 %v1188, %v1195
      %v1225 = vmul.f32 %v1189, %v1195
      %v1226 = vmul.f32 %v1190, %v1195
      %v1227 = vmul.f32 %v1191, %v1195
      %v1228 = vadd.f32 %v1127, %v1196
      %v1229 = vadd.f32 %v1128, %v1197
      %v1230 = vadd.f32 %v1129, %v1198
      %v1231 = vadd.f32 %v1130, %v1199
      %v1232 = vadd.f32 %v1131, %v1200
      %v1233 = vadd.f32 %v1132, %v1201
      %v1234 = vadd.f32 %v1133, %v1202
      %v1235 = vadd.f32 %v1134, %v1203
      %v1236 = vadd.f32 %v1135, %v1204
      %v1237 = vadd.f32 %v1136, %v1205
      %v1238 = vadd.f32 %v1137, %v1206
      %v1239 = vadd.f32 %v1138, %v1207
      %v1240 = vadd.f32 %v1139, %v1208
      %v1241 = vadd.f32 %v1140, %v1209
      %v1242 = vadd.f32 %v1141, %v1210
      %v1243 = vadd.f32 %v1142, %v1211
      %v1244 = vadd.f32 %v1143, %v1212
      %v1245 = vadd.f32 %v1144, %v1213
      %v1246 = vadd.f32 %v1145, %v1214
      %v1247 = vadd.f32 %v1146, %v1215
      %v1248 = vadd.f32 %v1147, %v1216
      %v1249 = vadd.f32 %v1148, %v1217
      %v1250 = vadd.f32 %v1149, %v1218
      %v1251 = vadd.f32 %v1150, %v1219
      %v1252 = vadd.f32 %v1151, %v1220
      %v1253 = vadd.f32 %v1152, %v1221
      %v1254 = vadd.f32 %v1153, %v1222
      %v1255 = vadd.f32 %v1154, %v1223
      %v1256 = vadd.f32 %v1155, %v1224
      %v1257 = vadd.f32 %v1156, %v1225
      %v1258 = vadd.f32 %v1157, %v1226
      %v1259 = vadd.f32 %v1158, %v1227
      %v1260 = vld [vmem:[%s2] sm:$0x1]
      %v1262 = vlaneseq
      %v1263 = vshrl.u32 %v1262, 7
      %v1264 = vsub.s32 0, %v1263
      %v1265 = vrot.slane %v1260, %v1264
      %v1267 = vadd.f32 %v1228, %v1265
      %v1268 = vadd.f32 %v1229, %v1265
      %v1269 = vadd.f32 %v1230, %v1265
      %v1270 = vadd.f32 %v1231, %v1265
      %v1271 = vadd.f32 %v1232, %v1265
      %v1272 = vadd.f32 %v1233, %v1265
      %v1273 = vadd.f32 %v1234, %v1265
      %v1274 = vadd.f32 %v1235, %v1265
      %v1275 = vadd.f32 %v1236, %v1265
      %v1276 = vadd.f32 %v1237, %v1265
      %v1277 = vadd.f32 %v1238, %v1265
      %v1278 = vadd.f32 %v1239, %v1265
      %v1279 = vadd.f32 %v1240, %v1265
      %v1280 = vadd.f32 %v1241, %v1265
      %v1281 = vadd.f32 %v1242, %v1265
      %v1282 = vadd.f32 %v1243, %v1265
      %v1283 = vadd.f32 %v1244, %v1265
      %v1284 = vadd.f32 %v1245, %v1265
      %v1285 = vadd.f32 %v1246, %v1265
      %v1286 = vadd.f32 %v1247, %v1265
      %v1287 = vadd.f32 %v1248, %v1265
      %v1288 = vadd.f32 %v1249, %v1265
      %v1289 = vadd.f32 %v1250, %v1265
      %v1290 = vadd.f32 %v1251, %v1265
      %v1291 = vadd.f32 %v1252, %v1265
      %v1292 = vadd.f32 %v1253, %v1265
      %v1293 = vadd.f32 %v1254, %v1265
      %v1294 = vadd.f32 %v1255, %v1265
      %v1295 = vadd.f32 %v1256, %v1265
      %v1296 = vadd.f32 %v1257, %v1265
      %v1297 = vadd.f32 %v1258, %v1265
      %v1298 = vadd.f32 %v1259, %v1265
      %v1299 = vmul.f32 %v1267, 0.5
      %v1300 = vmul.f32 %v1268, 0.5
      %v1301 = vmul.f32 %v1269, 0.5
      %v1302 = vmul.f32 %v1270, 0.5
      %v1303 = vmul.f32 %v1271, 0.5
      %v1304 = vmul.f32 %v1272, 0.5
      %v1305 = vmul.f32 %v1273, 0.5
      %v1306 = vmul.f32 %v1274, 0.5
      %v1307 = vmul.f32 %v1275, 0.5
      %v1308 = vmul.f32 %v1276, 0.5
      %v1309 = vmul.f32 %v1277, 0.5
      %v1310 = vmul.f32 %v1278, 0.5
      %v1311 = vmul.f32 %v1279, 0.5
      %v1312 = vmul.f32 %v1280, 0.5
      %v1313 = vmul.f32 %v1281, 0.5
      %v1314 = vmul.f32 %v1282, 0.5
      %v1315 = vmul.f32 %v1283, 0.5
      %v1316 = vmul.f32 %v1284, 0.5
      %v1317 = vmul.f32 %v1285, 0.5
      %v1318 = vmul.f32 %v1286, 0.5
      %v1319 = vmul.f32 %v1287, 0.5
      %v1320 = vmul.f32 %v1288, 0.5
      %v1321 = vmul.f32 %v1289, 0.5
      %v1322 = vmul.f32 %v1290, 0.5
      %v1323 = vmul.f32 %v1291, 0.5
      %v1324 = vmul.f32 %v1292, 0.5
      %v1325 = vmul.f32 %v1293, 0.5
      %v1326 = vmul.f32 %v1294, 0.5
      %v1327 = vmul.f32 %v1295, 0.5
      %v1328 = vmul.f32 %v1296, 0.5
      %v1329 = vmul.f32 %v1297, 0.5
      %v1330 = vmul.f32 %v1298, 0.5
      %v1331 = vmul.f32 %v1267, 0.70710677
      %v1332 = vmul.f32 %v1268, 0.70710677
      %v1333 = vmul.f32 %v1269, 0.70710677
      %v1334 = vmul.f32 %v1270, 0.70710677
      %v1335 = vmul.f32 %v1271, 0.70710677
      %v1336 = vmul.f32 %v1272, 0.70710677
      %v1337 = vmul.f32 %v1273, 0.70710677
      %v1338 = vmul.f32 %v1274, 0.70710677
      %v1339 = vmul.f32 %v1275, 0.70710677
      %v1340 = vmul.f32 %v1276, 0.70710677
      %v1341 = vmul.f32 %v1277, 0.70710677
      %v1342 = vmul.f32 %v1278, 0.70710677
      %v1343 = vmul.f32 %v1279, 0.70710677
      %v1344 = vmul.f32 %v1280, 0.70710677
      %v1345 = vmul.f32 %v1281, 0.70710677
      %v1346 = vmul.f32 %v1282, 0.70710677
      %v1347 = vmul.f32 %v1283, 0.70710677
      %v1348 = vmul.f32 %v1284, 0.70710677
      %v1349 = vmul.f32 %v1285, 0.70710677
      %v1350 = vmul.f32 %v1286, 0.70710677
      %v1351 = vmul.f32 %v1287, 0.70710677
      %v1352 = vmul.f32 %v1288, 0.70710677
      %v1353 = vmul.f32 %v1289, 0.70710677
      %v1354 = vmul.f32 %v1290, 0.70710677
      %v1355 = vmul.f32 %v1291, 0.70710677
      %v1356 = vmul.f32 %v1292, 0.70710677
      %v1357 = vmul.f32 %v1293, 0.70710677
      %v1358 = vmul.f32 %v1294, 0.70710677
      %v1359 = vmul.f32 %v1295, 0.70710677
      %v1360 = vmul.f32 %v1296, 0.70710677
      %v1361 = vmul.f32 %v1297, 0.70710677
      %v1362 = vmul.f32 %v1298, 0.70710677
      %vm1363 = vcmp.ge.f32.partialorder %v1331, 0.0
      %vm1364 = vcmp.ge.f32.partialorder %v1332, 0.0
      %vm1365 = vcmp.ge.f32.partialorder %v1333, 0.0
      %vm1366 = vcmp.ge.f32.partialorder %v1334, 0.0
      %vm1367 = vcmp.ge.f32.partialorder %v1335, 0.0
      %vm1368 = vcmp.ge.f32.partialorder %v1336, 0.0
      %vm1369 = vcmp.ge.f32.partialorder %v1337, 0.0
      %vm1370 = vcmp.ge.f32.partialorder %v1338, 0.0
      %vm1371 = vcmp.ge.f32.partialorder %v1339, 0.0
      %vm1372 = vcmp.ge.f32.partialorder %v1340, 0.0
      %vm1373 = vcmp.ge.f32.partialorder %v1341, 0.0
      %vm1374 = vcmp.ge.f32.partialorder %v1342, 0.0
      %vm1375 = vcmp.ge.f32.partialorder %v1343, 0.0
      %vm1376 = vcmp.ge.f32.partialorder %v1344, 0.0
      %vm1377 = vcmp.ge.f32.partialorder %v1345, 0.0
      %vm1378 = vcmp.ge.f32.partialorder %v1346, 0.0
      %vm1379 = vcmp.ge.f32.partialorder %v1347, 0.0
      %vm1380 = vcmp.ge.f32.partialorder %v1348, 0.0
      %vm1381 = vcmp.ge.f32.partialorder %v1349, 0.0
      %vm1382 = vcmp.ge.f32.partialorder %v1350, 0.0
      %vm1383 = vcmp.ge.f32.partialorder %v1351, 0.0
      %vm1384 = vcmp.ge.f32.partialorder %v1352, 0.0
      %vm1385 = vcmp.ge.f32.partialorder %v1353, 0.0
      %vm1386 = vcmp.ge.f32.partialorder %v1354, 0.0
      %vm1387 = vcmp.ge.f32.partialorder %v1355, 0.0
      %vm1388 = vcmp.ge.f32.partialorder %v1356, 0.0
      %vm1389 = vcmp.ge.f32.partialorder %v1357, 0.0
      %vm1390 = vcmp.ge.f32.partialorder %v1358, 0.0
      %vm1391 = vcmp.ge.f32.partialorder %v1359, 0.0
      %vm1392 = vcmp.ge.f32.partialorder %v1360, 0.0
      %vm1393 = vcmp.ge.f32.partialorder %v1361, 0.0
      %vm1394 = vcmp.ge.f32.partialorder %v1362, 0.0
      %v1395 = vsel %vm1363, 1.0, -1.0
      %v1396 = vsel %vm1364, 1.0, -1.0
      %v1397 = vsel %vm1365, 1.0, -1.0
      %v1398 = vsel %vm1366, 1.0, -1.0
      %v1399 = vsel %vm1367, 1.0, -1.0
      %v1400 = vsel %vm1368, 1.0, -1.0
      %v1401 = vsel %vm1369, 1.0, -1.0
      %v1402 = vsel %vm1370, 1.0, -1.0
      %v1403 = vsel %vm1371, 1.0, -1.0
      %v1404 = vsel %vm1372, 1.0, -1.0
      %v1405 = vsel %vm1373, 1.0, -1.0
      %v1406 = vsel %vm1374, 1.0, -1.0
      %v1407 = vsel %vm1375, 1.0, -1.0
      %v1408 = vsel %vm1376, 1.0, -1.0
      %v1409 = vsel %vm1377, 1.0, -1.0
      %v1410 = vsel %vm1378, 1.0, -1.0
      %v1411 = vsel %vm1379, 1.0, -1.0
      %v1412 = vsel %vm1380, 1.0, -1.0
      %v1413 = vsel %vm1381, 1.0, -1.0
      %v1414 = vsel %vm1382, 1.0, -1.0
      %v1415 = vsel %vm1383, 1.0, -1.0
      %v1416 = vsel %vm1384, 1.0, -1.0
      %v1417 = vsel %vm1385, 1.0, -1.0
      %v1418 = vsel %vm1386, 1.0, -1.0
      %v1419 = vsel %vm1387, 1.0, -1.0
      %v1420 = vsel %vm1388, 1.0, -1.0
      %v1421 = vsel %vm1389, 1.0, -1.0
      %v1422 = vsel %vm1390, 1.0, -1.0
      %v1423 = vsel %vm1391, 1.0, -1.0
      %v1424 = vsel %vm1392, 1.0, -1.0
      %v1425 = vsel %vm1393, 1.0, -1.0
      %v1426 = vsel %vm1394, 1.0, -1.0
      %v1427 = vand.u32 2147483647, %v1331
      %v1428 = vand.u32 2147483647, %v1332
      %v1429 = vand.u32 2147483647, %v1333
      %v1430 = vand.u32 2147483647, %v1334
      %v1431 = vand.u32 2147483647, %v1335
      %v1432 = vand.u32 2147483647, %v1336
      %v1433 = vand.u32 2147483647, %v1337
      %v1434 = vand.u32 2147483647, %v1338
      %v1435 = vand.u32 2147483647, %v1339
      %v1436 = vand.u32 2147483647, %v1340
      %v1437 = vand.u32 2147483647, %v1341
      %v1438 = vand.u32 2147483647, %v1342
      %v1439 = vand.u32 2147483647, %v1343
      %v1440 = vand.u32 2147483647, %v1344
      %v1441 = vand.u32 2147483647, %v1345
      %v1442 = vand.u32 2147483647, %v1346
      %v1443 = vand.u32 2147483647, %v1347
      %v1444 = vand.u32 2147483647, %v1348
      %v1445 = vand.u32 2147483647, %v1349
      %v1446 = vand.u32 2147483647, %v1350
      %v1447 = vand.u32 2147483647, %v1351
      %v1448 = vand.u32 2147483647, %v1352
      %v1449 = vand.u32 2147483647, %v1353
      %v1450 = vand.u32 2147483647, %v1354
      %v1451 = vand.u32 2147483647, %v1355
      %v1452 = vand.u32 2147483647, %v1356
      %v1453 = vand.u32 2147483647, %v1357
      %v1454 = vand.u32 2147483647, %v1358
      %v1455 = vand.u32 2147483647, %v1359
      %v1456 = vand.u32 2147483647, %v1360
      %v1457 = vand.u32 2147483647, %v1361
      %v1458 = vand.u32 2147483647, %v1362
      %v1459 = vmul.f32 %v1427, 0.3275911
      %v1460 = vmul.f32 %v1428, 0.3275911
      %v1461 = vmul.f32 %v1429, 0.3275911
      %v1462 = vmul.f32 %v1430, 0.3275911
      %v1463 = vmul.f32 %v1431, 0.3275911
      %v1464 = vmul.f32 %v1432, 0.3275911
      %v1465 = vmul.f32 %v1433, 0.3275911
      %v1466 = vmul.f32 %v1434, 0.3275911
      %v1467 = vmul.f32 %v1435, 0.3275911
      %v1468 = vmul.f32 %v1436, 0.3275911
      %v1469 = vmul.f32 %v1437, 0.3275911
      %v1470 = vmul.f32 %v1438, 0.3275911
      %v1471 = vmul.f32 %v1439, 0.3275911
      %v1472 = vmul.f32 %v1440, 0.3275911
      %v1473 = vmul.f32 %v1441, 0.3275911
      %v1474 = vmul.f32 %v1442, 0.3275911
      %v1475 = vmul.f32 %v1443, 0.3275911
      %v1476 = vmul.f32 %v1444, 0.3275911
      %v1477 = vmul.f32 %v1445, 0.3275911
      %v1478 = vmul.f32 %v1446, 0.3275911
      %v1479 = vmul.f32 %v1447, 0.3275911
      %v1480 = vmul.f32 %v1448, 0.3275911
      %v1481 = vmul.f32 %v1449, 0.3275911
      %v1482 = vmul.f32 %v1450, 0.3275911
      %v1483 = vmul.f32 %v1451, 0.3275911
      %v1484 = vmul.f32 %v1452, 0.3275911
      %v1485 = vmul.f32 %v1453, 0.3275911
      %v1486 = vmul.f32 %v1454, 0.3275911
      %v1487 = vmul.f32 %v1455, 0.3275911
      %v1488 = vmul.f32 %v1456, 0.3275911
      %v1489 = vmul.f32 %v1457, 0.3275911
      %v1490 = vmul.f32 %v1458, 0.3275911
      %v1491 = vadd.f32 %v1459, 1.0
      %v1492 = vadd.f32 %v1460, 1.0
      %v1493 = vadd.f32 %v1461, 1.0
      %v1494 = vadd.f32 %v1462, 1.0
      %v1495 = vadd.f32 %v1463, 1.0
      %v1496 = vadd.f32 %v1464, 1.0
      %v1497 = vadd.f32 %v1465, 1.0
      %v1498 = vadd.f32 %v1466, 1.0
      %v1499 = vadd.f32 %v1467, 1.0
      %v1500 = vadd.f32 %v1468, 1.0
      %v1501 = vadd.f32 %v1469, 1.0
      %v1502 = vadd.f32 %v1470, 1.0
      %v1503 = vadd.f32 %v1471, 1.0
      %v1504 = vadd.f32 %v1472, 1.0
      %v1505 = vadd.f32 %v1473, 1.0
      %v1506 = vadd.f32 %v1474, 1.0
      %v1507 = vadd.f32 %v1475, 1.0
      %v1508 = vadd.f32 %v1476, 1.0
      %v1509 = vadd.f32 %v1477, 1.0
      %v1510 = vadd.f32 %v1478, 1.0
      %v1511 = vadd.f32 %v1479, 1.0
      %v1512 = vadd.f32 %v1480, 1.0
      %v1513 = vadd.f32 %v1481, 1.0
      %v1514 = vadd.f32 %v1482, 1.0
      %v1515 = vadd.f32 %v1483, 1.0
      %v1516 = vadd.f32 %v1484, 1.0
      %v1517 = vadd.f32 %v1485, 1.0
      %v1518 = vadd.f32 %v1486, 1.0
      %v1519 = vadd.f32 %v1487, 1.0
      %v1520 = vadd.f32 %v1488, 1.0
      %v1521 = vadd.f32 %v1489, 1.0
      %v1522 = vadd.f32 %v1490, 1.0
      %v1523 = vrcp.pop %v1491
      %v1524 = vrcp.pop %v1492
      %v1525 = vrcp.pop %v1493
      %v1526 = vrcp.pop %v1494
      %v1527 = vrcp.pop %v1495
      %v1528 = vrcp.pop %v1496
      %v1529 = vrcp.pop %v1497
      %v1530 = vrcp.pop %v1498
      %v1531 = vrcp.pop %v1499
      %v1532 = vrcp.pop %v1500
      %v1533 = vrcp.pop %v1501
      %v1534 = vrcp.pop %v1502
      %v1535 = vrcp.pop %v1503
      %v1536 = vrcp.pop %v1504
      %v1537 = vrcp.pop %v1505
      %v1538 = vrcp.pop %v1506
      %v1539 = vrcp.pop %v1507
      %v1540 = vrcp.pop %v1508
      %v1541 = vrcp.pop %v1509
      %v1542 = vrcp.pop %v1510
      %v1543 = vrcp.pop %v1511
      %v1544 = vrcp.pop %v1512
      %v1545 = vrcp.pop %v1513
      %v1546 = vrcp.pop %v1514
      %v1547 = vrcp.pop %v1515
      %v1548 = vrcp.pop %v1516
      %v1549 = vrcp.pop %v1517
      %v1550 = vrcp.pop %v1518
      %v1551 = vrcp.pop %v1519
      %v1552 = vrcp.pop %v1520
      %v1553 = vrcp.pop %v1521
      %v1554 = vrcp.pop %v1522
      %v1555 = vmul.f32 %v1523, 1.0614054
      %v1556 = vmul.f32 %v1524, 1.0614054
      %v1557 = vmul.f32 %v1525, 1.0614054
      %v1558 = vmul.f32 %v1526, 1.0614054
      %v1559 = vmul.f32 %v1527, 1.0614054
      %v1560 = vmul.f32 %v1528, 1.0614054
      %v1561 = vmul.f32 %v1529, 1.0614054
      %v1562 = vmul.f32 %v1530, 1.0614054
      %v1563 = vmul.f32 %v1531, 1.0614054
      %v1564 = vmul.f32 %v1532, 1.0614054
      %v1565 = vmul.f32 %v1533, 1.0614054
      %v1566 = vmul.f32 %v1534, 1.0614054
      %v1567 = vmul.f32 %v1535, 1.0614054
      %v1568 = vmul.f32 %v1536, 1.0614054
      %v1569 = vmul.f32 %v1537, 1.0614054
      %v1570 = vmul.f32 %v1538, 1.0614054
      %v1571 = vmul.f32 %v1539, 1.0614054
      %v1572 = vmul.f32 %v1540, 1.0614054
      %v1573 = vmul.f32 %v1541, 1.0614054
      %v1574 = vmul.f32 %v1542, 1.0614054
      %v1575 = vmul.f32 %v1543, 1.0614054
      %v1576 = vmul.f32 %v1544, 1.0614054
      %v1577 = vmul.f32 %v1545, 1.0614054
      %v1578 = vmul.f32 %v1546, 1.0614054
      %v1579 = vmul.f32 %v1547, 1.0614054
      %v1580 = vmul.f32 %v1548, 1.0614054
      %v1581 = vmul.f32 %v1549, 1.0614054
      %v1582 = vmul.f32 %v1550, 1.0614054
      %v1583 = vmul.f32 %v1551, 1.0614054
      %v1584 = vmul.f32 %v1552, 1.0614054
      %v1585 = vmul.f32 %v1553, 1.0614054
      %v1586 = vmul.f32 %v1554, 1.0614054
      %v1587 = vadd.f32 %v1555, -1.4531521
      %v1588 = vadd.f32 %v1556, -1.4531521
      %v1589 = vadd.f32 %v1557, -1.4531521
      %v1590 = vadd.f32 %v1558, -1.4531521
      %v1591 = vadd.f32 %v1559, -1.4531521
      %v1592 = vadd.f32 %v1560, -1.4531521
      %v1593 = vadd.f32 %v1561, -1.4531521
      %v1594 = vadd.f32 %v1562, -1.4531521
      %v1595 = vadd.f32 %v1563, -1.4531521
      %v1596 = vadd.f32 %v1564, -1.4531521
      %v1597 = vadd.f32 %v1565, -1.4531521
      %v1598 = vadd.f32 %v1566, -1.4531521
      %v1599 = vadd.f32 %v1567, -1.4531521
      %v1600 = vadd.f32 %v1568, -1.4531521
      %v1601 = vadd.f32 %v1569, -1.4531521
      %v1602 = vadd.f32 %v1570, -1.4531521
      %v1603 = vadd.f32 %v1571, -1.4531521
      %v1604 = vadd.f32 %v1572, -1.4531521
      %v1605 = vadd.f32 %v1573, -1.4531521
      %v1606 = vadd.f32 %v1574, -1.4531521
      %v1607 = vadd.f32 %v1575, -1.4531521
      %v1608 = vadd.f32 %v1576, -1.4531521
      %v1609 = vadd.f32 %v1577, -1.4531521
      %v1610 = vadd.f32 %v1578, -1.4531521
      %v1611 = vadd.f32 %v1579, -1.4531521
      %v1612 = vadd.f32 %v1580, -1.4531521
      %v1613 = vadd.f32 %v1581, -1.4531521
      %v1614 = vadd.f32 %v1582, -1.4531521
      %v1615 = vadd.f32 %v1583, -1.4531521
      %v1616 = vadd.f32 %v1584, -1.4531521
      %v1617 = vadd.f32 %v1585, -1.4531521
      %v1618 = vadd.f32 %v1586, -1.4531521
      %v1619 = vmul.f32 %v1587, %v1523
      %v1620 = vmul.f32 %v1588, %v1524
      %v1621 = vmul.f32 %v1589, %v1525
      %v1622 = vmul.f32 %v1590, %v1526
      %v1623 = vmul.f32 %v1591, %v1527
      %v1624 = vmul.f32 %v1592, %v1528
      %v1625 = vmul.f32 %v1593, %v1529
      %v1626 = vmul.f32 %v1594, %v1530
      %v1627 = vmul.f32 %v1595, %v1531
      %v1628 = vmul.f32 %v1596, %v1532
      %v1629 = vmul.f32 %v1597, %v1533
      %v1630 = vmul.f32 %v1598, %v1534
      %v1631 = vmul.f32 %v1599, %v1535
      %v1632 = vmul.f32 %v1600, %v1536
      %v1633 = vmul.f32 %v1601, %v1537
      %v1634 = vmul.f32 %v1602, %v1538
      %v1635 = vmul.f32 %v1603, %v1539
      %v1636 = vmul.f32 %v1604, %v1540
      %v1637 = vmul.f32 %v1605, %v1541
      %v1638 = vmul.f32 %v1606, %v1542
      %v1639 = vmul.f32 %v1607, %v1543
      %v1640 = vmul.f32 %v1608, %v1544
      %v1641 = vmul.f32 %v1609, %v1545
      %v1642 = vmul.f32 %v1610, %v1546
      %v1643 = vmul.f32 %v1611, %v1547
      %v1644 = vmul.f32 %v1612, %v1548
      %v1645 = vmul.f32 %v1613, %v1549
      %v1646 = vmul.f32 %v1614, %v1550
      %v1647 = vmul.f32 %v1615, %v1551
      %v1648 = vmul.f32 %v1616, %v1552
      %v1649 = vmul.f32 %v1617, %v1553
      %v1650 = vmul.f32 %v1618, %v1554
      %v1651 = vadd.f32 %v1619, 1.4214138
      %v1652 = vadd.f32 %v1620, 1.4214138
      %v1653 = vadd.f32 %v1621, 1.4214138
      %v1654 = vadd.f32 %v1622, 1.4214138
      %v1655 = vadd.f32 %v1623, 1.4214138
      %v1656 = vadd.f32 %v1624, 1.4214138
      %v1657 = vadd.f32 %v1625, 1.4214138
      %v1658 = vadd.f32 %v1626, 1.4214138
      %v1659 = vadd.f32 %v1627, 1.4214138
      %v1660 = vadd.f32 %v1628, 1.4214138
      %v1661 = vadd.f32 %v1629, 1.4214138
      %v1662 = vadd.f32 %v1630, 1.4214138
      %v1663 = vadd.f32 %v1631, 1.4214138
      %v1664 = vadd.f32 %v1632, 1.4214138
      %v1665 = vadd.f32 %v1633, 1.4214138
      %v1666 = vadd.f32 %v1634, 1.4214138
      %v1667 = vadd.f32 %v1635, 1.4214138
      %v1668 = vadd.f32 %v1636, 1.4214138
      %v1669 = vadd.f32 %v1637, 1.4214138
      %v1670 = vadd.f32 %v1638, 1.4214138
      %v1671 = vadd.f32 %v1639, 1.4214138
      %v1672 = vadd.f32 %v1640, 1.4214138
      %v1673 = vadd.f32 %v1641, 1.4214138
      %v1674 = vadd.f32 %v1642, 1.4214138
      %v1675 = vadd.f32 %v1643, 1.4214138
      %v1676 = vadd.f32 %v1644, 1.4214138
      %v1677 = vadd.f32 %v1645, 1.4214138
      %v1678 = vadd.f32 %v1646, 1.4214138
      %v1679 = vadd.f32 %v1647, 1.4214138
      %v1680 = vadd.f32 %v1648, 1.4214138
      %v1681 = vadd.f32 %v1649, 1.4214138
      %v1682 = vadd.f32 %v1650, 1.4214138
      %v1683 = vmul.f32 %v1651, %v1523
      %v1684 = vmul.f32 %v1652, %v1524
      %v1685 = vmul.f32 %v1653, %v1525
      %v1686 = vmul.f32 %v1654, %v1526
      %v1687 = vmul.f32 %v1655, %v1527
      %v1688 = vmul.f32 %v1656, %v1528
      %v1689 = vmul.f32 %v1657, %v1529
      %v1690 = vmul.f32 %v1658, %v1530
      %v1691 = vmul.f32 %v1659, %v1531
      %v1692 = vmul.f32 %v1660, %v1532
      %v1693 = vmul.f32 %v1661, %v1533
      %v1694 = vmul.f32 %v1662, %v1534
      %v1695 = vmul.f32 %v1663, %v1535
      %v1696 = vmul.f32 %v1664, %v1536
      %v1697 = vmul.f32 %v1665, %v1537
      %v1698 = vmul.f32 %v1666, %v1538
      %v1699 = vmul.f32 %v1667, %v1539
      %v1700 = vmul.f32 %v1668, %v1540
      %v1701 = vmul.f32 %v1669, %v1541
      %v1702 = vmul.f32 %v1670, %v1542
      %v1703 = vmul.f32 %v1671, %v1543
      %v1704 = vmul.f32 %v1672, %v1544
      %v1705 = vmul.f32 %v1673, %v1545
      %v1706 = vmul.f32 %v1674, %v1546
      %v1707 = vmul.f32 %v1675, %v1547
      %v1708 = vmul.f32 %v1676, %v1548
      %v1709 = vmul.f32 %v1677, %v1549
      %v1710 = vmul.f32 %v1678, %v1550
      %v1711 = vmul.f32 %v1679, %v1551
      %v1712 = vmul.f32 %v1680, %v1552
      %v1713 = vmul.f32 %v1681, %v1553
      %v1714 = vmul.f32 %v1682, %v1554
      %v1715 = vadd.f32 %v1683, -0.28449672
      %v1716 = vadd.f32 %v1684, -0.28449672
      %v1717 = vadd.f32 %v1685, -0.28449672
      %v1718 = vadd.f32 %v1686, -0.28449672
      %v1719 = vadd.f32 %v1687, -0.28449672
      %v1720 = vadd.f32 %v1688, -0.28449672
      %v1721 = vadd.f32 %v1689, -0.28449672
      %v1722 = vadd.f32 %v1690, -0.28449672
      %v1723 = vadd.f32 %v1691, -0.28449672
      %v1724 = vadd.f32 %v1692, -0.28449672
      %v1725 = vadd.f32 %v1693, -0.28449672
      %v1726 = vadd.f32 %v1694, -0.28449672
      %v1727 = vadd.f32 %v1695, -0.28449672
      %v1728 = vadd.f32 %v1696, -0.28449672
      %v1729 = vadd.f32 %v1697, -0.28449672
      %v1730 = vadd.f32 %v1698, -0.28449672
      %v1731 = vadd.f32 %v1699, -0.28449672
      %v1732 = vadd.f32 %v1700, -0.28449672
      %v1733 = vadd.f32 %v1701, -0.28449672
      %v1734 = vadd.f32 %v1702, -0.28449672
      %v1735 = vadd.f32 %v1703, -0.28449672
      %v1736 = vadd.f32 %v1704, -0.28449672
      %v1737 = vadd.f32 %v1705, -0.28449672
      %v1738 = vadd.f32 %v1706, -0.28449672
      %v1739 = vadd.f32 %v1707, -0.28449672
      %v1740 = vadd.f32 %v1708, -0.28449672
      %v1741 = vadd.f32 %v1709, -0.28449672
      %v1742 = vadd.f32 %v1710, -0.28449672
      %v1743 = vadd.f32 %v1711, -0.28449672
      %v1744 = vadd.f32 %v1712, -0.28449672
      %v1745 = vadd.f32 %v1713, -0.28449672
      %v1746 = vadd.f32 %v1714, -0.28449672
      %v1747 = vmul.f32 %v1715, %v1523
      %v1748 = vmul.f32 %v1716, %v1524
      %v1749 = vmul.f32 %v1717, %v1525
      %v1750 = vmul.f32 %v1718, %v1526
      %v1751 = vmul.f32 %v1719, %v1527
      %v1752 = vmul.f32 %v1720, %v1528
      %v1753 = vmul.f32 %v1721, %v1529
      %v1754 = vmul.f32 %v1722, %v1530
      %v1755 = vmul.f32 %v1723, %v1531
      %v1756 = vmul.f32 %v1724, %v1532
      %v1757 = vmul.f32 %v1725, %v1533
      %v1758 = vmul.f32 %v1726, %v1534
      %v1759 = vmul.f32 %v1727, %v1535
      %v1760 = vmul.f32 %v1728, %v1536
      %v1761 = vmul.f32 %v1729, %v1537
      %v1762 = vmul.f32 %v1730, %v1538
      %v1763 = vmul.f32 %v1731, %v1539
      %v1764 = vmul.f32 %v1732, %v1540
      %v1765 = vmul.f32 %v1733, %v1541
      %v1766 = vmul.f32 %v1734, %v1542
      %v1767 = vmul.f32 %v1735, %v1543
      %v1768 = vmul.f32 %v1736, %v1544
      %v1769 = vmul.f32 %v1737, %v1545
      %v1770 = vmul.f32 %v1738, %v1546
      %v1771 = vmul.f32 %v1739, %v1547
      %v1772 = vmul.f32 %v1740, %v1548
      %v1773 = vmul.f32 %v1741, %v1549
      %v1774 = vmul.f32 %v1742, %v1550
      %v1775 = vmul.f32 %v1743, %v1551
      %v1776 = vmul.f32 %v1744, %v1552
      %v1777 = vmul.f32 %v1745, %v1553
      %v1778 = vmul.f32 %v1746, %v1554
      %v1779 = vadd.f32 %v1747, 0.2548296
      %v1780 = vadd.f32 %v1748, 0.2548296
      %v1781 = vadd.f32 %v1749, 0.2548296
      %v1782 = vadd.f32 %v1750, 0.2548296
      %v1783 = vadd.f32 %v1751, 0.2548296
      %v1784 = vadd.f32 %v1752, 0.2548296
      %v1785 = vadd.f32 %v1753, 0.2548296
      %v1786 = vadd.f32 %v1754, 0.2548296
      %v1787 = vadd.f32 %v1755, 0.2548296
      %v1788 = vadd.f32 %v1756, 0.2548296
      %v1789 = vadd.f32 %v1757, 0.2548296
      %v1790 = vadd.f32 %v1758, 0.2548296
      %v1791 = vadd.f32 %v1759, 0.2548296
      %v1792 = vadd.f32 %v1760, 0.2548296
      %v1793 = vadd.f32 %v1761, 0.2548296
      %v1794 = vadd.f32 %v1762, 0.2548296
      %v1795 = vadd.f32 %v1763, 0.2548296
      %v1796 = vadd.f32 %v1764, 0.2548296
      %v1797 = vadd.f32 %v1765, 0.2548296
      %v1798 = vadd.f32 %v1766, 0.2548296
      %v1799 = vadd.f32 %v1767, 0.2548296
      %v1800 = vadd.f32 %v1768, 0.2548296
      %v1801 = vadd.f32 %v1769, 0.2548296
      %v1802 = vadd.f32 %v1770, 0.2548296
      %v1803 = vadd.f32 %v1771, 0.2548296
      %v1804 = vadd.f32 %v1772, 0.2548296
      %v1805 = vadd.f32 %v1773, 0.2548296
      %v1806 = vadd.f32 %v1774, 0.2548296
      %v1807 = vadd.f32 %v1775, 0.2548296
      %v1808 = vadd.f32 %v1776, 0.2548296
      %v1809 = vadd.f32 %v1777, 0.2548296
      %v1810 = vadd.f32 %v1778, 0.2548296
      %v1811 = vmul.f32 %v1779, %v1523
      %v1812 = vmul.f32 %v1780, %v1524
      %v1813 = vmul.f32 %v1781, %v1525
      %v1814 = vmul.f32 %v1782, %v1526
      %v1815 = vmul.f32 %v1783, %v1527
      %v1816 = vmul.f32 %v1784, %v1528
      %v1817 = vmul.f32 %v1785, %v1529
      %v1818 = vmul.f32 %v1786, %v1530
      %v1819 = vmul.f32 %v1787, %v1531
      %v1820 = vmul.f32 %v1788, %v1532
      %v1821 = vmul.f32 %v1789, %v1533
      %v1822 = vmul.f32 %v1790, %v1534
      %v1823 = vmul.f32 %v1791, %v1535
      %v1824 = vmul.f32 %v1792, %v1536
      %v1825 = vmul.f32 %v1793, %v1537
      %v1826 = vmul.f32 %v1794, %v1538
      %v1827 = vmul.f32 %v1795, %v1539
      %v1828 = vmul.f32 %v1796, %v1540
      %v1829 = vmul.f32 %v1797, %v1541
      %v1830 = vmul.f32 %v1798, %v1542
      %v1831 = vmul.f32 %v1799, %v1543
      %v1832 = vmul.f32 %v1800, %v1544
      %v1833 = vmul.f32 %v1801, %v1545
      %v1834 = vmul.f32 %v1802, %v1546
      %v1835 = vmul.f32 %v1803, %v1547
      %v1836 = vmul.f32 %v1804, %v1548
      %v1837 = vmul.f32 %v1805, %v1549
      %v1838 = vmul.f32 %v1806, %v1550
      %v1839 = vmul.f32 %v1807, %v1551
      %v1840 = vmul.f32 %v1808, %v1552
      %v1841 = vmul.f32 %v1809, %v1553
      %v1842 = vmul.f32 %v1810, %v1554
      %v1843 = vsub.f32 0.0, %v1427
      %v1844 = vsub.f32 0.0, %v1428
      %v1845 = vsub.f32 0.0, %v1429
      %v1846 = vsub.f32 0.0, %v1430
      %v1847 = vsub.f32 0.0, %v1431
      %v1848 = vsub.f32 0.0, %v1432
      %v1849 = vsub.f32 0.0, %v1433
      %v1850 = vsub.f32 0.0, %v1434
      %v1851 = vsub.f32 0.0, %v1435
      %v1852 = vsub.f32 0.0, %v1436
      %v1853 = vsub.f32 0.0, %v1437
      %v1854 = vsub.f32 0.0, %v1438
      %v1855 = vsub.f32 0.0, %v1439
      %v1856 = vsub.f32 0.0, %v1440
      %v1857 = vsub.f32 0.0, %v1441
      %v1858 = vsub.f32 0.0, %v1442
      %v1859 = vsub.f32 0.0, %v1443
      %v1860 = vsub.f32 0.0, %v1444
      %v1861 = vsub.f32 0.0, %v1445
      %v1862 = vsub.f32 0.0, %v1446
      %v1863 = vsub.f32 0.0, %v1447
      %v1864 = vsub.f32 0.0, %v1448
      %v1865 = vsub.f32 0.0, %v1449
      %v1866 = vsub.f32 0.0, %v1450
      %v1867 = vsub.f32 0.0, %v1451
      %v1868 = vsub.f32 0.0, %v1452
      %v1869 = vsub.f32 0.0, %v1453
      %v1870 = vsub.f32 0.0, %v1454
      %v1871 = vsub.f32 0.0, %v1455
      %v1872 = vsub.f32 0.0, %v1456
      %v1873 = vsub.f32 0.0, %v1457
      %v1874 = vsub.f32 0.0, %v1458
      %v1875 = vmul.f32 %v1843, %v1427
      %v1876 = vmul.f32 %v1844, %v1428
      %v1877 = vmul.f32 %v1845, %v1429
      %v1878 = vmul.f32 %v1846, %v1430
      %v1879 = vmul.f32 %v1847, %v1431
      %v1880 = vmul.f32 %v1848, %v1432
      %v1881 = vmul.f32 %v1849, %v1433
      %v1882 = vmul.f32 %v1850, %v1434
      %v1883 = vmul.f32 %v1851, %v1435
      %v1884 = vmul.f32 %v1852, %v1436
      %v1885 = vmul.f32 %v1853, %v1437
      %v1886 = vmul.f32 %v1854, %v1438
      %v1887 = vmul.f32 %v1855, %v1439
      %v1888 = vmul.f32 %v1856, %v1440
      %v1889 = vmul.f32 %v1857, %v1441
      %v1890 = vmul.f32 %v1858, %v1442
      %v1891 = vmul.f32 %v1859, %v1443
      %v1892 = vmul.f32 %v1860, %v1444
      %v1893 = vmul.f32 %v1861, %v1445
      %v1894 = vmul.f32 %v1862, %v1446
      %v1895 = vmul.f32 %v1863, %v1447
      %v1896 = vmul.f32 %v1864, %v1448
      %v1897 = vmul.f32 %v1865, %v1449
      %v1898 = vmul.f32 %v1866, %v1450
      %v1899 = vmul.f32 %v1867, %v1451
      %v1900 = vmul.f32 %v1868, %v1452
      %v1901 = vmul.f32 %v1869, %v1453
      %v1902 = vmul.f32 %v1870, %v1454
      %v1903 = vmul.f32 %v1871, %v1455
      %v1904 = vmul.f32 %v1872, %v1456
      %v1905 = vmul.f32 %v1873, %v1457
      %v1906 = vmul.f32 %v1874, %v1458
      %v1907 = vmul.f32 %v1875, 1.442695
      %v1908 = vpow.pop %v1907
      %v1909 = vmul.f32 %v1876, 1.442695
      %v1910 = vpow.pop %v1909
      %v1911 = vmul.f32 %v1877, 1.442695
      %v1912 = vpow.pop %v1911
      %v1913 = vmul.f32 %v1878, 1.442695
      %v1914 = vpow.pop %v1913
      %v1915 = vmul.f32 %v1879, 1.442695
      %v1916 = vpow.pop %v1915
      %v1917 = vmul.f32 %v1880, 1.442695
      %v1918 = vpow.pop %v1917
      %v1919 = vmul.f32 %v1881, 1.442695
      %v1920 = vpow.pop %v1919
      %v1921 = vmul.f32 %v1882, 1.442695
      %v1922 = vpow.pop %v1921
      %v1923 = vmul.f32 %v1883, 1.442695
      %v1924 = vpow.pop %v1923
      %v1925 = vmul.f32 %v1884, 1.442695
      %v1926 = vpow.pop %v1925
      %v1927 = vmul.f32 %v1885, 1.442695
      %v1928 = vpow.pop %v1927
      %v1929 = vmul.f32 %v1886, 1.442695
      %v1930 = vpow.pop %v1929
      %v1931 = vmul.f32 %v1887, 1.442695
      %v1932 = vpow.pop %v1931
      %v1933 = vmul.f32 %v1888, 1.442695
      %v1934 = vpow.pop %v1933
      %v1935 = vmul.f32 %v1889, 1.442695
      %v1936 = vpow.pop %v1935
      %v1937 = vmul.f32 %v1890, 1.442695
      %v1938 = vpow.pop %v1937
      %v1939 = vmul.f32 %v1891, 1.442695
      %v1940 = vpow.pop %v1939
      %v1941 = vmul.f32 %v1892, 1.442695
      %v1942 = vpow.pop %v1941
      %v1943 = vmul.f32 %v1893, 1.442695
      %v1944 = vpow.pop %v1943
      %v1945 = vmul.f32 %v1894, 1.442695
      %v1946 = vpow.pop %v1945
      %v1947 = vmul.f32 %v1895, 1.442695
      %v1948 = vpow.pop %v1947
      %v1949 = vmul.f32 %v1896, 1.442695
      %v1950 = vpow.pop %v1949
      %v1951 = vmul.f32 %v1897, 1.442695
      %v1952 = vpow.pop %v1951
      %v1953 = vmul.f32 %v1898, 1.442695
      %v1954 = vpow.pop %v1953
      %v1955 = vmul.f32 %v1899, 1.442695
      %v1956 = vpow.pop %v1955
      %v1957 = vmul.f32 %v1900, 1.442695
      %v1958 = vpow.pop %v1957
      %v1959 = vmul.f32 %v1901, 1.442695
      %v1960 = vpow.pop %v1959
      %v1961 = vmul.f32 %v1902, 1.442695
      %v1962 = vpow.pop %v1961
      %v1963 = vmul.f32 %v1903, 1.442695
      %v1964 = vpow.pop %v1963
      %v1965 = vmul.f32 %v1904, 1.442695
      %v1966 = vpow.pop %v1965
      %v1967 = vmul.f32 %v1905, 1.442695
      %v1968 = vpow.pop %v1967
      %v1969 = vmul.f32 %v1906, 1.442695
      %v1970 = vpow.pop %v1969
      %v1971 = vmul.f32 %v1811, %v1908
      %v1972 = vmul.f32 %v1812, %v1910
      %v1973 = vmul.f32 %v1813, %v1912
      %v1974 = vmul.f32 %v1814, %v1914
      %v1975 = vmul.f32 %v1815, %v1916
      %v1976 = vmul.f32 %v1816, %v1918
      %v1977 = vmul.f32 %v1817, %v1920
      %v1978 = vmul.f32 %v1818, %v1922
      %v1979 = vmul.f32 %v1819, %v1924
      %v1980 = vmul.f32 %v1820, %v1926
      %v1981 = vmul.f32 %v1821, %v1928
      %v1982 = vmul.f32 %v1822, %v1930
      %v1983 = vmul.f32 %v1823, %v1932
      %v1984 = vmul.f32 %v1824, %v1934
      %v1985 = vmul.f32 %v1825, %v1936
      %v1986 = vmul.f32 %v1826, %v1938
      %v1987 = vmul.f32 %v1827, %v1940
      %v1988 = vmul.f32 %v1828, %v1942
      %v1989 = vmul.f32 %v1829, %v1944
      %v1990 = vmul.f32 %v1830, %v1946
      %v1991 = vmul.f32 %v1831, %v1948
      %v1992 = vmul.f32 %v1832, %v1950
      %v1993 = vmul.f32 %v1833, %v1952
      %v1994 = vmul.f32 %v1834, %v1954
      %v1995 = vmul.f32 %v1835, %v1956
      %v1996 = vmul.f32 %v1836, %v1958
      %v1997 = vmul.f32 %v1837, %v1960
      %v1998 = vmul.f32 %v1838, %v1962
      %v1999 = vmul.f32 %v1839, %v1964
      %v2000 = vmul.f32 %v1840, %v1966
      %v2001 = vmul.f32 %v1841, %v1968
      %v2002 = vmul.f32 %v1842, %v1970
      %v2003 = vsub.f32 1.0, %v1971
      %v2004 = vsub.f32 1.0, %v1972
      %v2005 = vsub.f32 1.0, %v1973
      %v2006 = vsub.f32 1.0, %v1974
      %v2007 = vsub.f32 1.0, %v1975
      %v2008 = vsub.f32 1.0, %v1976
      %v2009 = vsub.f32 1.0, %v1977
      %v2010 = vsub.f32 1.0, %v1978
      %v2011 = vsub.f32 1.0, %v1979
      %v2012 = vsub.f32 1.0, %v1980
      %v2013 = vsub.f32 1.0, %v1981
      %v2014 = vsub.f32 1.0, %v1982
      %v2015 = vsub.f32 1.0, %v1983
      %v2016 = vsub.f32 1.0, %v1984
      %v2017 = vsub.f32 1.0, %v1985
      %v2018 = vsub.f32 1.0, %v1986
      %v2019 = vsub.f32 1.0, %v1987
      %v2020 = vsub.f32 1.0, %v1988
      %v2021 = vsub.f32 1.0, %v1989
      %v2022 = vsub.f32 1.0, %v1990
      %v2023 = vsub.f32 1.0, %v1991
      %v2024 = vsub.f32 1.0, %v1992
      %v2025 = vsub.f32 1.0, %v1993
      %v2026 = vsub.f32 1.0, %v1994
      %v2027 = vsub.f32 1.0, %v1995
      %v2028 = vsub.f32 1.0, %v1996
      %v2029 = vsub.f32 1.0, %v1997
      %v2030 = vsub.f32 1.0, %v1998
      %v2031 = vsub.f32 1.0, %v1999
      %v2032 = vsub.f32 1.0, %v2000
      %v2033 = vsub.f32 1.0, %v2001
      %v2034 = vsub.f32 1.0, %v2002
      %v2035 = vmul.f32 %v1395, %v2003
      %v2036 = vmul.f32 %v1396, %v2004
      %v2037 = vmul.f32 %v1397, %v2005
      %v2038 = vmul.f32 %v1398, %v2006
      %v2039 = vmul.f32 %v1399, %v2007
      %v2040 = vmul.f32 %v1400, %v2008
      %v2041 = vmul.f32 %v1401, %v2009
      %v2042 = vmul.f32 %v1402, %v2010
      %v2043 = vmul.f32 %v1403, %v2011
      %v2044 = vmul.f32 %v1404, %v2012
      %v2045 = vmul.f32 %v1405, %v2013
      %v2046 = vmul.f32 %v1406, %v2014
      %v2047 = vmul.f32 %v1407, %v2015
      %v2048 = vmul.f32 %v1408, %v2016
      %v2049 = vmul.f32 %v1409, %v2017
      %v2050 = vmul.f32 %v1410, %v2018
      %v2051 = vmul.f32 %v1411, %v2019
      %v2052 = vmul.f32 %v1412, %v2020
      %v2053 = vmul.f32 %v1413, %v2021
      %v2054 = vmul.f32 %v1414, %v2022
      %v2055 = vmul.f32 %v1415, %v2023
      %v2056 = vmul.f32 %v1416, %v2024
      %v2057 = vmul.f32 %v1417, %v2025
      %v2058 = vmul.f32 %v1418, %v2026
      %v2059 = vmul.f32 %v1419, %v2027
      %v2060 = vmul.f32 %v1420, %v2028
      %v2061 = vmul.f32 %v1421, %v2029
      %v2062 = vmul.f32 %v1422, %v2030
      %v2063 = vmul.f32 %v1423, %v2031
      %v2064 = vmul.f32 %v1424, %v2032
      %v2065 = vmul.f32 %v1425, %v2033
      %v2066 = vmul.f32 %v1426, %v2034
      %v2067 = vadd.f32 %v2035, 1.0
      %v2068 = vadd.f32 %v2036, 1.0
      %v2069 = vadd.f32 %v2037, 1.0
      %v2070 = vadd.f32 %v2038, 1.0
      %v2071 = vadd.f32 %v2039, 1.0
      %v2072 = vadd.f32 %v2040, 1.0
      %v2073 = vadd.f32 %v2041, 1.0
      %v2074 = vadd.f32 %v2042, 1.0
      %v2075 = vadd.f32 %v2043, 1.0
      %v2076 = vadd.f32 %v2044, 1.0
      %v2077 = vadd.f32 %v2045, 1.0
      %v2078 = vadd.f32 %v2046, 1.0
      %v2079 = vadd.f32 %v2047, 1.0
      %v2080 = vadd.f32 %v2048, 1.0
      %v2081 = vadd.f32 %v2049, 1.0
      %v2082 = vadd.f32 %v2050, 1.0
      %v2083 = vadd.f32 %v2051, 1.0
      %v2084 = vadd.f32 %v2052, 1.0
      %v2085 = vadd.f32 %v2053, 1.0
      %v2086 = vadd.f32 %v2054, 1.0
      %v2087 = vadd.f32 %v2055, 1.0
      %v2088 = vadd.f32 %v2056, 1.0
      %v2089 = vadd.f32 %v2057, 1.0
      %v2090 = vadd.f32 %v2058, 1.0
      %v2091 = vadd.f32 %v2059, 1.0
      %v2092 = vadd.f32 %v2060, 1.0
      %v2093 = vadd.f32 %v2061, 1.0
      %v2094 = vadd.f32 %v2062, 1.0
      %v2095 = vadd.f32 %v2063, 1.0
      %v2096 = vadd.f32 %v2064, 1.0
      %v2097 = vadd.f32 %v2065, 1.0
      %v2098 = vadd.f32 %v2066, 1.0
      %v2099 = vmul.f32 %v1299, %v2067
      %v2100 = vmul.f32 %v1300, %v2068
      %v2101 = vmul.f32 %v1301, %v2069
      %v2102 = vmul.f32 %v1302, %v2070
      %v2103 = vmul.f32 %v1303, %v2071
      %v2104 = vmul.f32 %v1304, %v2072
      %v2105 = vmul.f32 %v1305, %v2073
      %v2106 = vmul.f32 %v1306, %v2074
      %v2107 = vmul.f32 %v1307, %v2075
      %v2108 = vmul.f32 %v1308, %v2076
      %v2109 = vmul.f32 %v1309, %v2077
      %v2110 = vmul.f32 %v1310, %v2078
      %v2111 = vmul.f32 %v1311, %v2079
      %v2112 = vmul.f32 %v1312, %v2080
      %v2113 = vmul.f32 %v1313, %v2081
      %v2114 = vmul.f32 %v1314, %v2082
      %v2115 = vmul.f32 %v1315, %v2083
      %v2116 = vmul.f32 %v1316, %v2084
      %v2117 = vmul.f32 %v1317, %v2085
      %v2118 = vmul.f32 %v1318, %v2086
      %v2119 = vmul.f32 %v1319, %v2087
      %v2120 = vmul.f32 %v1320, %v2088
      %v2121 = vmul.f32 %v1321, %v2089
      %v2122 = vmul.f32 %v1322, %v2090
      %v2123 = vmul.f32 %v1323, %v2091
      %v2124 = vmul.f32 %v1324, %v2092
      %v2125 = vmul.f32 %v1325, %v2093
      %v2126 = vmul.f32 %v1326, %v2094
      %v2127 = vmul.f32 %v1327, %v2095
      %v2128 = vmul.f32 %v1328, %v2096
      %v2129 = vmul.f32 %v1329, %v2097
      %v2130 = vmul.f32 %v1330, %v2098
      %2131 = vst.msk [vmem:[%s235] sm:$0xff] %vm242, %v2099
      %2132 = vst.msk [vmem:[%s235 + $0x8] sm:$0xff] %vm242, %v2100
      %2133 = vst.msk [vmem:[%s235 + $0x10] sm:$0xff] %vm242, %v2101
      %2134 = vst.msk [vmem:[%s235 + $0x18] sm:$0xff] %vm242, %v2102
      %2135 = vst.msk [vmem:[%s235 + $0x20] sm:$0xff] %vm242, %v2103
      %2136 = vst.msk [vmem:[%s235 + $0x28] sm:$0xff] %vm242, %v2104
      %2137 = vst.msk [vmem:[%s235 + $0x30] sm:$0xff] %vm242, %v2105
      %2138 = vst.msk [vmem:[%s235 + $0x38] sm:$0xff] %vm242, %v2106
      %2139 = vst.msk [vmem:[%s235 + $0x40] sm:$0xff] %vm242, %v2107
      %2140 = vst.msk [vmem:[%s235 + $0x48] sm:$0xff] %vm242, %v2108
      %2141 = vst.msk [vmem:[%s235 + $0x50] sm:$0xff] %vm242, %v2109
      %2142 = vst.msk [vmem:[%s235 + $0x58] sm:$0xff] %vm242, %v2110
      %2143 = vst.msk [vmem:[%s235 + $0x60] sm:$0xff] %vm242, %v2111
      %2144 = vst.msk [vmem:[%s235 + $0x68] sm:$0xff] %vm242, %v2112
      %2145 = vst.msk [vmem:[%s235 + $0x70] sm:$0xff] %vm242, %v2113
      %2146 = vst.msk [vmem:[%s235 + $0x78] sm:$0xff] %vm242, %v2114
      %2147 = vst.msk [vmem:[%s235 + $0x80] sm:$0xff] %vm242, %v2115
      %2148 = vst.msk [vmem:[%s235 + $0x88] sm:$0xff] %vm242, %v2116
      %2149 = vst.msk [vmem:[%s235 + $0x90] sm:$0xff] %vm242, %v2117
      %2150 = vst.msk [vmem:[%s235 + $0x98] sm:$0xff] %vm242, %v2118
      %2151 = vst.msk [vmem:[%s235 + $0xa0] sm:$0xff] %vm242, %v2119
      %2152 = vst.msk [vmem:[%s235 + $0xa8] sm:$0xff] %vm242, %v2120
      %2153 = vst.msk [vmem:[%s235 + $0xb0] sm:$0xff] %vm242, %v2121
      %2154 = vst.msk [vmem:[%s235 + $0xb8] sm:$0xff] %vm242, %v2122
      %2155 = vst.msk [vmem:[%s235 + $0xc0] sm:$0xff] %vm242, %v2123
      %2156 = vst.msk [vmem:[%s235 + $0xc8] sm:$0xff] %vm242, %v2124
      %2157 = vst.msk [vmem:[%s235 + $0xd0] sm:$0xff] %vm242, %v2125
      %2158 = vst.msk [vmem:[%s235 + $0xd8] sm:$0xff] %vm242, %v2126
      %2159 = vst.msk [vmem:[%s235 + $0xe0] sm:$0xff] %vm242, %v2127
      %2160 = vst.msk [vmem:[%s235 + $0xe8] sm:$0xff] %vm242, %v2128
      %2161 = vst.msk [vmem:[%s235 + $0xf0] sm:$0xff] %vm242, %v2129
      %2162 = vst.msk [vmem:[%s235 + $0xf8] sm:$0xff] %vm242, %v2130
      %v2163 = vsel %vm242, %v2099, 0.0
      %v2164 = vsel %vm242, %v2100, 0.0
      %v2165 = vadd.f32 %v2163, %v2164
      %v2166 = vsel %vm242, %v2101, 0.0
      %v2167 = vadd.f32 %v2165, %v2166
      %v2168 = vsel %vm242, %v2102, 0.0
      %v2169 = vadd.f32 %v2167, %v2168
      %v2170 = vsel %vm242, %v2103, 0.0
      %v2171 = vadd.f32 %v2169, %v2170
      %v2172 = vsel %vm242, %v2104, 0.0
      %v2173 = vadd.f32 %v2171, %v2172
      %v2174 = vsel %vm242, %v2105, 0.0
      %v2175 = vadd.f32 %v2173, %v2174
      %v2176 = vsel %vm242, %v2106, 0.0
      %v2177 = vadd.f32 %v2175, %v2176
      %v2178 = vsel %vm242, %v2107, 0.0
      %v2179 = vadd.f32 %v2177, %v2178
      %v2180 = vsel %vm242, %v2108, 0.0
      %v2181 = vadd.f32 %v2179, %v2180
      %v2182 = vsel %vm242, %v2109, 0.0
      %v2183 = vadd.f32 %v2181, %v2182
      %v2184 = vsel %vm242, %v2110, 0.0
      %v2185 = vadd.f32 %v2183, %v2184
      %v2186 = vsel %vm242, %v2111, 0.0
      %v2187 = vadd.f32 %v2185, %v2186
      %v2188 = vsel %vm242, %v2112, 0.0
      %v2189 = vadd.f32 %v2187, %v2188
      %v2190 = vsel %vm242, %v2113, 0.0
      %v2191 = vadd.f32 %v2189, %v2190
      %v2192 = vsel %vm242, %v2114, 0.0
      %v2193 = vadd.f32 %v2191, %v2192
      %v2194 = vsel %vm242, %v2115, 0.0
      %v2195 = vadd.f32 %v2193, %v2194
      %v2196 = vsel %vm242, %v2116, 0.0
      %v2197 = vadd.f32 %v2195, %v2196
      %v2198 = vsel %vm242, %v2117, 0.0
      %v2199 = vadd.f32 %v2197, %v2198
      %v2200 = vsel %vm242, %v2118, 0.0
      %v2201 = vadd.f32 %v2199, %v2200
      %v2202 = vsel %vm242, %v2119, 0.0
      %v2203 = vadd.f32 %v2201, %v2202
      %v2204 = vsel %vm242, %v2120, 0.0
      %v2205 = vadd.f32 %v2203, %v2204
      %v2206 = vsel %vm242, %v2121, 0.0
      %v2207 = vadd.f32 %v2205, %v2206
      %v2208 = vsel %vm242, %v2122, 0.0
      %v2209 = vadd.f32 %v2207, %v2208
      %v2210 = vsel %vm242, %v2123, 0.0
      %v2211 = vadd.f32 %v2209, %v2210
      %v2212 = vsel %vm242, %v2124, 0.0
      %v2213 = vadd.f32 %v2211, %v2212
      %v2214 = vsel %vm242, %v2125, 0.0
      %v2215 = vadd.f32 %v2213, %v2214
      %v2216 = vsel %vm242, %v2126, 0.0
      %v2217 = vadd.f32 %v2215, %v2216
      %v2218 = vsel %vm242, %v2127, 0.0
      %v2219 = vadd.f32 %v2217, %v2218
      %v2220 = vsel %vm242, %v2128, 0.0
      %v2221 = vadd.f32 %v2219, %v2220
      %v2222 = vsel %vm242, %v2129, 0.0
      %v2223 = vadd.f32 %v2221, %v2222
      %v2224 = vsel %vm242, %v2130, 0.0
      %v2225 = vadd.f32 %v2223, %v2224
      %v2226 = vrot.slane %v2225, 4
      %v2227 = vadd.f32 %v2225, %v2226
      %v2228 = vrot.slane %v2227, 2
      %v2229 = vadd.f32 %v2227, %v2228
      %v2230 = vrot.slane %v2229, 1
      %v2231 = vadd.f32 %v2229, %v2230
      %2232 = vst.msk [vmem:[%s238] sm:$0x1] %vm246, %v2231
      %v2233 = vmul.f32 %v2099, %v2099
      %v2234 = vmul.f32 %v2100, %v2100
      %v2235 = vmul.f32 %v2101, %v2101
      %v2236 = vmul.f32 %v2102, %v2102
      %v2237 = vmul.f32 %v2103, %v2103
      %v2238 = vmul.f32 %v2104, %v2104
      %v2239 = vmul.f32 %v2105, %v2105
      %v2240 = vmul.f32 %v2106, %v2106
      %v2241 = vmul.f32 %v2107, %v2107
      %v2242 = vmul.f32 %v2108, %v2108
      %v2243 = vmul.f32 %v2109, %v2109
      %v2244 = vmul.f32 %v2110, %v2110
      %v2245 = vmul.f32 %v2111, %v2111
      %v2246 = vmul.f32 %v2112, %v2112
      %v2247 = vmul.f32 %v2113, %v2113
      %v2248 = vmul.f32 %v2114, %v2114
      %v2249 = vmul.f32 %v2115, %v2115
      %v2250 = vmul.f32 %v2116, %v2116
      %v2251 = vmul.f32 %v2117, %v2117
      %v2252 = vmul.f32 %v2118, %v2118
      %v2253 = vmul.f32 %v2119, %v2119
      %v2254 = vmul.f32 %v2120, %v2120
      %v2255 = vmul.f32 %v2121, %v2121
      %v2256 = vmul.f32 %v2122, %v2122
      %v2257 = vmul.f32 %v2123, %v2123
      %v2258 = vmul.f32 %v2124, %v2124
      %v2259 = vmul.f32 %v2125, %v2125
      %v2260 = vmul.f32 %v2126, %v2126
      %v2261 = vmul.f32 %v2127, %v2127
      %v2262 = vmul.f32 %v2128, %v2128
      %v2263 = vmul.f32 %v2129, %v2129
      %v2264 = vmul.f32 %v2130, %v2130
      %v2265 = vsel %vm242, %v2233, 0.0
      %v2266 = vsel %vm242, %v2234, 0.0
      %v2267 = vadd.f32 %v2265, %v2266
      %v2268 = vsel %vm242, %v2235, 0.0
      %v2269 = vadd.f32 %v2267, %v2268
      %v2270 = vsel %vm242, %v2236, 0.0
      %v2271 = vadd.f32 %v2269, %v2270
      %v2272 = vsel %vm242, %v2237, 0.0
      %v2273 = vadd.f32 %v2271, %v2272
      %v2274 = vsel %vm242, %v2238, 0.0
      %v2275 = vadd.f32 %v2273, %v2274
      %v2276 = vsel %vm242, %v2239, 0.0
      %v2277 = vadd.f32 %v2275, %v2276
      %v2278 = vsel %vm242, %v2240, 0.0
      %v2279 = vadd.f32 %v2277, %v2278
      %v2280 = vsel %vm242, %v2241, 0.0
      %v2281 = vadd.f32 %v2279, %v2280
      %v2282 = vsel %vm242, %v2242, 0.0
      %v2283 = vadd.f32 %v2281, %v2282
      %v2284 = vsel %vm242, %v2243, 0.0
      %v2285 = vadd.f32 %v2283, %v2284
      %v2286 = vsel %vm242, %v2244, 0.0
      %v2287 = vadd.f32 %v2285, %v2286
      %v2288 = vsel %vm242, %v2245, 0.0
      %v2289 = vadd.f32 %v2287, %v2288
      %v2290 = vsel %vm242, %v2246, 0.0
      %v2291 = vadd.f32 %v2289, %v2290
      %v2292 = vsel %vm242, %v2247, 0.0
      %v2293 = vadd.f32 %v2291, %v2292
      %v2294 = vsel %vm242, %v2248, 0.0
      %v2295 = vadd.f32 %v2293, %v2294
      %v2296 = vsel %vm242, %v2249, 0.0
      %v2297 = vadd.f32 %v2295, %v2296
      %v2298 = vsel %vm242, %v2250, 0.0
      %v2299 = vadd.f32 %v2297, %v2298
      %v2300 = vsel %vm242, %v2251, 0.0
      %v2301 = vadd.f32 %v2299, %v2300
      %v2302 = vsel %vm242, %v2252, 0.0
      %v2303 = vadd.f32 %v2301, %v2302
      %v2304 = vsel %vm242, %v2253, 0.0
      %v2305 = vadd.f32 %v2303, %v2304
      %v2306 = vsel %vm242, %v2254, 0.0
      %v2307 = vadd.f32 %v2305, %v2306
      %v2308 = vsel %vm242, %v2255, 0.0
      %v2309 = vadd.f32 %v2307, %v2308
      %v2310 = vsel %vm242, %v2256, 0.0
      %v2311 = vadd.f32 %v2309, %v2310
      %v2312 = vsel %vm242, %v2257, 0.0
      %v2313 = vadd.f32 %v2311, %v2312
      %v2314 = vsel %vm242, %v2258, 0.0
      %v2315 = vadd.f32 %v2313, %v2314
      %v2316 = vsel %vm242, %v2259, 0.0
      %v2317 = vadd.f32 %v2315, %v2316
      %v2318 = vsel %vm242, %v2260, 0.0
      %v2319 = vadd.f32 %v2317, %v2318
      %v2320 = vsel %vm242, %v2261, 0.0
      %v2321 = vadd.f32 %v2319, %v2320
      %v2322 = vsel %vm242, %v2262, 0.0
      %v2323 = vadd.f32 %v2321, %v2322
      %v2324 = vsel %vm242, %v2263, 0.0
      %v2325 = vadd.f32 %v2323, %v2324
      %v2326 = vsel %vm242, %v2264, 0.0
      %v2327 = vadd.f32 %v2325, %v2326
      %v2328 = vrot.slane %v2327, 4
      %v2329 = vadd.f32 %v2327, %v2328
      %v2330 = vrot.slane %v2329, 2
      %v2331 = vadd.f32 %v2329, %v2330
      %v2332 = vrot.slane %v2331, 1
      %v2333 = vadd.f32 %v2331, %v2332
      %2334 = vst.msk [vmem:[%s241] sm:$0x1] %vm246, %v2333
      %p2335 = scmp.lt.s32.totalorder %s17, 1
      %s2336 = scalar_select %p2335, %s17, 1
      %s2337 = smul.addr %s2336, 32
      %s2338 = smul.addr %s2337, 8
      %s2339 = scalar_lea.vmem %s3, %s2338
      %p2340 = scmp.lt.s32.totalorder %s17, 1
      %s2341 = scalar_select %p2340, %s17, 1
      %s2342 = scalar_lea.vmem %s4, %s2341
      %p2343 = scmp.lt.s32.totalorder %s17, 1
      %s2344 = scalar_select %p2343, %s17, 1
      %s2345 = scalar_lea.vmem %s5, %s2344
      // Predicated region
      $region33: #{convmixer_block.3} parent=31 // pred_check
        %p2346 = pneg %p103
      $region34: #{convmixer_block.3} parent=31 // pred_check_branch
        %2348 = sbr.rel (%p2346) target = $region36
      $region35: #{convmixer_block.3} parent=31 // pred_region
        _
      $region36: #{convmixer_block.3} parent=31 // pred_fallthru
        _
      // Predicated region
      $region37: #{convmixer_block.3} parent=31 // pred_check
        %p2349 = pneg %p129
      $region38: #{convmixer_block.3} parent=31 // pred_check_branch
        %2351 = sbr.rel (%p2349) target = $region40
      $region39: #{convmixer_block.3} parent=31 // pred_region
        _
      $region40: #{convmixer_block.3} parent=31 // pred_fallthru
        _
      // Predicated region
      $region41: #{convmixer_block.3} parent=31 // pred_check
        %p2352 = pneg %p155
      $region42: #{convmixer_block.3} parent=31 // pred_check_branch
        %2354 = sbr.rel (%p2352) target = $region44
      $region43: #{convmixer_block.3} parent=31 // pred_region
        _
      $region44: #{convmixer_block.3} parent=31 // pred_fallthru
        _
    $region32: #{convmixer_block.3} parent=5 // pred_fallthru
      _
    %p2355 = scmp.le.s32.totalorder 2, %s12
    // Predicated region
    $region45: #{convmixer_block.3} parent=5 // pred_check
      %p2356 = pneg %p2355
    $region46: #{convmixer_block.3} parent=5 // pred_check_branch
      %2358 = sbr.rel (%p2356) target = $region48
    $region47: #{convmixer_block.3} parent=5 // pred_region
      %s2359 = ssub.s32 %s12, 2
      // Predicated region
      $region49: #{convmixer_block.3} parent=47 // pred_check
        %p2360 = pneg %p109
      $region50: #{convmixer_block.3} parent=47 // pred_check_branch
        %2362 = sbr.rel (%p2360) target = $region52
      $region51: #{convmixer_block.3} parent=47 // pred_region
        %p2363 = scmp.lt.s32.totalorder %s18, 1
        %s2364 = scalar_select %p2363, %s18, 1
        %s2365 = smul.addr %s2364, 32
        %s2366 = smul.addr %s2365, 8
        %s2367 = scalar_lea.vmem %s3, %s2366
      $region52: #{convmixer_block.3} parent=47 // pred_fallthru
        _
      // Predicated region
      $region53: #{convmixer_block.3} parent=47 // pred_check
        %p2368 = pneg %p135
      $region54: #{convmixer_block.3} parent=47 // pred_check_branch
        %2370 = sbr.rel (%p2368) target = $region56
      $region55: #{convmixer_block.3} parent=47 // pred_region
        %p2371 = scmp.lt.s32.totalorder %s18, 1
        %s2372 = scalar_select %p2371, %s18, 1
        %s2373 = scalar_lea.vmem %s4, %s2372
      $region56: #{convmixer_block.3} parent=47 // pred_fallthru
        _
      // Predicated region
      $region57: #{convmixer_block.3} parent=47 // pred_check
        %p2374 = pneg %p161
      $region58: #{convmixer_block.3} parent=47 // pred_check_branch
        %2376 = sbr.rel (%p2374) target = $region60
      $region59: #{convmixer_block.3} parent=47 // pred_region
        %p2377 = scmp.lt.s32.totalorder %s18, 1
        %s2378 = scalar_select %p2377, %s18, 1
        %s2379 = scalar_lea.vmem %s5, %s2378
      $region60: #{convmixer_block.3} parent=47 // pred_fallthru
        _
    $region48: #{convmixer_block.3} parent=5 // pred_fallthru
      _
  $region6: #{convmixer_block.3} parent=0 // loop_footer
    %s16 = sadd.s32 1, %s12
  $region7: #{convmixer_block.3} parent=0 // loop_footer_branch
    %11 = sbr.rel target = $region3
  $region8: #{convmixer_block.3} parent=0 // loop_exit
    _

// kernel: convmixer_block.5
$region0: #{convmixer_block.5}
  #allocation0 [shape = 'u32[]', space=smem, size = 0x4, offset = 0x4, fixed_abs, tag = 'smem constant byte address 0x4 - core index']
  #allocation1 [shape = 'u32[144,128]{1,0:T(1,128)}', space=vmem, size = 0x12000, scoped, tag = 'internal scratch']
  %s0 = inlined_call_operand.vmem [shape: f32[512,4], index: 0, kind: input, shape index: {}]
  %s1 = inlined_call_operand.vmem [shape: f32[4,4], index: 1, kind: input, shape index: {}]
  %s2 = inlined_call_operand.vmem [shape: f32[1,4], index: 2, kind: input, shape index: {}]
  %s3 = inlined_call_operand.vmem [shape: f32[1,4], index: 3, kind: input, shape index: {}]
  %s4 = inlined_call_operand.vmem [shape: f32[1,4], index: 4, kind: input, shape index: {}]
  %s5 = inlined_call_operand.vmem [shape: f32[512,4], index: 5, kind: output, shape index: {}]
  %s6 = sld [smem:[#allocation0]]
  $region30: #{convmixer_block.5} parent=0
    _
  %s8 = ssub.s32 1, %s6
  %s9 = scalar_select 0, %s8, %s6
  // Predicated region
  $region2: #{convmixer_block.5} parent=0 // pred_check
    _
  $region3: #{convmixer_block.5} parent=0 // pred_check_branch
    %11 = sbr.rel (0) target = $region5
  $region4: #{convmixer_block.5} parent=0 // pred_region
    _
  $region5: #{convmixer_block.5} parent=0 // pred_fallthru
    _
  // Predicated region
  $region6: #{convmixer_block.5} parent=0 // pred_check
    _
  $region7: #{convmixer_block.5} parent=0 // pred_check_branch
    %13 = sbr.rel (0) target = $region9
  $region8: #{convmixer_block.5} parent=0 // pred_region
    _
  $region9: #{convmixer_block.5} parent=0 // pred_fallthru
    _
  // Predicated region
  $region10: #{convmixer_block.5} parent=0 // pred_check
    _
  $region11: #{convmixer_block.5} parent=0 // pred_check_branch
    %15 = sbr.rel (0) target = $region13
  $region12: #{convmixer_block.5} parent=0 // pred_region
    _
  $region13: #{convmixer_block.5} parent=0 // pred_fallthru
    _
  // Predicated region
  $region14: #{convmixer_block.5} parent=0 // pred_check
    _
  $region15: #{convmixer_block.5} parent=0 // pred_check_branch
    %17 = sbr.rel (0) target = $region17
  $region16: #{convmixer_block.5} parent=0 // pred_region
    _
  $region17: #{convmixer_block.5} parent=0 // pred_fallthru
    _
  // Predicated region
  $region18: #{convmixer_block.5} parent=0 // pred_check
    _
  $region19: #{convmixer_block.5} parent=0 // pred_check_branch
    %19 = sbr.rel (0) target = $region21
  $region20: #{convmixer_block.5} parent=0 // pred_region
    _
  $region21: #{convmixer_block.5} parent=0 // pred_fallthru
    _
  %v20 = vld [vmem:[%s0] sm:$0xff]
  %v21 = vld [vmem:[%s0 + $0x8] sm:$0xff]
  %v22 = vld [vmem:[%s0 + $0x10] sm:$0xff]
  %v23 = vld [vmem:[%s0 + $0x18] sm:$0xff]
  %v24 = vld [vmem:[%s0 + $0x20] sm:$0xff]
  %v25 = vld [vmem:[%s0 + $0x28] sm:$0xff]
  %v26 = vld [vmem:[%s0 + $0x30] sm:$0xff]
  %v27 = vld [vmem:[%s0 + $0x38] sm:$0xff]
  %v28 = vld [vmem:[%s0 + $0x40] sm:$0xff]
  %v29 = vld [vmem:[%s0 + $0x48] sm:$0xff]
  %v30 = vld [vmem:[%s0 + $0x50] sm:$0xff]
  %v31 = vld [vmem:[%s0 + $0x58] sm:$0xff]
  %v32 = vld [vmem:[%s0 + $0x60] sm:$0xff]
  %v33 = vld [vmem:[%s0 + $0x68] sm:$0xff]
  %v34 = vld [vmem:[%s0 + $0x70] sm:$0xff]
  %v35 = vld [vmem:[%s0 + $0x78] sm:$0xff]
  %v36 = vld [vmem:[%s0 + $0x80] sm:$0xff]
  %v37 = vld [vmem:[%s0 + $0x88] sm:$0xff]
  %v38 = vld [vmem:[%s0 + $0x90] sm:$0xff]
  %v39 = vld [vmem:[%s0 + $0x98] sm:$0xff]
  %v40 = vld [vmem:[%s0 + $0xa0] sm:$0xff]
  %v41 = vld [vmem:[%s0 + $0xa8] sm:$0xff]
  %v42 = vld [vmem:[%s0 + $0xb0] sm:$0xff]
  %v43 = vld [vmem:[%s0 + $0xb8] sm:$0xff]
  %v44 = vld [vmem:[%s0 + $0xc0] sm:$0xff]
  %v45 = vld [vmem:[%s0 + $0xc8] sm:$0xff]
  %v46 = vld [vmem:[%s0 + $0xd0] sm:$0xff]
  %v47 = vld [vmem:[%s0 + $0xd8] sm:$0xff]
  %v48 = vld [vmem:[%s0 + $0xe0] sm:$0xff]
  %v49 = vld [vmem:[%s0 + $0xe8] sm:$0xff]
  %v50 = vld [vmem:[%s0 + $0xf0] sm:$0xff]
  %v51 = vld [vmem:[%s0 + $0xf8] sm:$0xff]
  %v52 = vld [vmem:[%s0 + $0x100] sm:$0xff]
  %v53 = vld [vmem:[%s0 + $0x108] sm:$0xff]
  %v54 = vld [vmem:[%s0 + $0x110] sm:$0xff]
  %v55 = vld [vmem:[%s0 + $0x118] sm:$0xff]
  %v56 = vld [vmem:[%s0 + $0x120] sm:$0xff]
  %v57 = vld [vmem:[%s0 + $0x128] sm:$0xff]
  %v58 = vld [vmem:[%s0 + $0x130] sm:$0xff]
  %v59 = vld [vmem:[%s0 + $0x138] sm:$0xff]
  %v60 = vld [vmem:[%s0 + $0x140] sm:$0xff]
  %v61 = vld [vmem:[%s0 + $0x148] sm:$0xff]
  %v62 = vld [vmem:[%s0 + $0x150] sm:$0xff]
  %v63 = vld [vmem:[%s0 + $0x158] sm:$0xff]
  %v64 = vld [vmem:[%s0 + $0x160] sm:$0xff]
  %v65 = vld [vmem:[%s0 + $0x168] sm:$0xff]
  %v66 = vld [vmem:[%s0 + $0x170] sm:$0xff]
  %v67 = vld [vmem:[%s0 + $0x178] sm:$0xff]
  %v68 = vld [vmem:[%s0 + $0x180] sm:$0xff]
  %v69 = vld [vmem:[%s0 + $0x188] sm:$0xff]
  %v70 = vld [vmem:[%s0 + $0x190] sm:$0xff]
  %v71 = vld [vmem:[%s0 + $0x198] sm:$0xff]
  %v72 = vld [vmem:[%s0 + $0x1a0] sm:$0xff]
  %v73 = vld [vmem:[%s0 + $0x1a8] sm:$0xff]
  %v74 = vld [vmem:[%s0 + $0x1b0] sm:$0xff]
  %v75 = vld [vmem:[%s0 + $0x1b8] sm:$0xff]
  %v76 = vld [vmem:[%s0 + $0x1c0] sm:$0xff]
  %v77 = vld [vmem:[%s0 + $0x1c8] sm:$0xff]
  %v78 = vld [vmem:[%s0 + $0x1d0] sm:$0xff]
  %v79 = vld [vmem:[%s0 + $0x1d8] sm:$0xff]
  %v80 = vld [vmem:[%s0 + $0x1e0] sm:$0xff]
  %v81 = vld [vmem:[%s0 + $0x1e8] sm:$0xff]
  %v82 = vld [vmem:[%s0 + $0x1f0] sm:$0xff]
  %v83 = vld [vmem:[%s0 + $0x1f8] sm:$0xff]
  %v84 = vld [vmem:[%s1] sm:$0xf]
  %v85 = vld [vmem:[%s2] sm:$0x1]
  %v87 = vlaneseq
  %v88 = vshrl.u32 %v87, 7
  %v89 = vsub.s32 0, %v88
  %v90 = vrot.slane %v85, %v89
  %vm92 = vcmask 31744
  %v94 = vsel %vm92, %v20, 0
  %v97 = vsel %vm92, %v21, 0
  %v100 = vsel %vm92, %v22, 0
  %v103 = vsel %vm92, %v23, 0
  %v106 = vsel %vm92, %v24, 0
  %v109 = vsel %vm92, %v25, 0
  %v112 = vsel %vm92, %v26, 0
  %v115 = vsel %vm92, %v27, 0
  %v118 = vsel %vm92, %v28, 0
  %v121 = vsel %vm92, %v29, 0
  %v124 = vsel %vm92, %v30, 0
  %v127 = vsel %vm92, %v31, 0
  %v130 = vsel %vm92, %v32, 0
  %v133 = vsel %vm92, %v33, 0
  %v136 = vsel %vm92, %v34, 0
  %v139 = vsel %vm92, %v35, 0
  %v142 = vsel %vm92, %v36, 0
  %v145 = vsel %vm92, %v37, 0
  %v148 = vsel %vm92, %v38, 0
  %v151 = vsel %vm92, %v39, 0
  %v154 = vsel %vm92, %v40, 0
  %v157 = vsel %vm92, %v41, 0
  %v160 = vsel %vm92, %v42, 0
  %v163 = vsel %vm92, %v43, 0
  %v166 = vsel %vm92, %v44, 0
  %v169 = vsel %vm92, %v45, 0
  %v172 = vsel %vm92, %v46, 0
  %v175 = vsel %vm92, %v47, 0
  %v178 = vsel %vm92, %v48, 0
  %v181 = vsel %vm92, %v49, 0
  %v184 = vsel %vm92, %v50, 0
  %v187 = vsel %vm92, %v51, 0
  %v190 = vsel %vm92, %v52, 0
  %v193 = vsel %vm92, %v53, 0
  %v196 = vsel %vm92, %v54, 0
  %v199 = vsel %vm92, %v55, 0
  %v202 = vsel %vm92, %v56, 0
  %v205 = vsel %vm92, %v57, 0
  %v208 = vsel %vm92, %v58, 0
  %v211 = vsel %vm92, %v59, 0
  %v214 = vsel %vm92, %v60, 0
  %v217 = vsel %vm92, %v61, 0
  %v220 = vsel %vm92, %v62, 0
  %v223 = vsel %vm92, %v63, 0
  %v226 = vsel %vm92, %v64, 0
  %v229 = vsel %vm92, %v65, 0
  %v232 = vsel %vm92, %v66, 0
  %v235 = vsel %vm92, %v67, 0
  %v238 = vsel %vm92, %v68, 0
  %v241 = vsel %vm92, %v69, 0
  %v244 = vsel %vm92, %v70, 0
  %v247 = vsel %vm92, %v71, 0
  %v250 = vsel %vm92, %v72, 0
  %v253 = vsel %vm92, %v73, 0
  %v256 = vsel %vm92, %v74, 0
  %v259 = vsel %vm92, %v75, 0
  %v262 = vsel %vm92, %v76, 0
  %v265 = vsel %vm92, %v77, 0
  %v268 = vsel %vm92, %v78, 0
  %v271 = vsel %vm92, %v79, 0
  %v274 = vsel %vm92, %v80, 0
  %v277 = vsel %vm92, %v81, 0
  %v280 = vsel %vm92, %v82, 0
  %v283 = vsel %vm92, %v83, 0
  %vm285 = vcmask 1043456
  %v287 = vsel %vm285, %v84, 0
  %289 = vmatprep.subr.mxu0 0.0
  %290 = vmatpush1.msra.mxu0 %v287
  %291 = vmatprep.subr.mxu0 0.0
  %292 = vmatpush1.msra.mxu0 0.0
  %293 = vmatprep.subr.mxu0 0.0
  %294 = vmatpush1.msra.mxu0 0.0
  %295 = vmatprep.subr.mxu0 0.0
  %296 = vmatpush1.msra.mxu0 0.0
  %297 = vmatprep.subr.mxu0 0.0
  %298 = vmatpush1.msra.mxu0 0.0
  %299 = vmatprep.subr.mxu0 0.0
  %300 = vmatpush1.msra.mxu0 0.0
  %301 = vmatprep.subr.mxu0 0.0
  %302 = vmatpush1.msra.mxu0 0.0
  %303 = vmatprep.subr.mxu0 0.0
  %304 = vmatpush1.msra.mxu0 0.0
  %305 = vmatprep.subr.mxu0 0.0
  %306 = vmatpush1.msra.mxu0 0.0
  %307 = vmatprep.subr.mxu0 0.0
  %308 = vmatpush1.msra.mxu0 0.0
  %309 = vmatprep.subr.mxu0 0.0
  %310 = vmatpush1.msra.mxu0 0.0
  %311 = vmatprep.subr.mxu0 0.0
  %312 = vmatpush1.msra.mxu0 0.0
  %313 = vmatprep.subr.mxu0 0.0
  %314 = vmatpush1.msra.mxu0 0.0
  %315 = vmatprep.subr.mxu0 0.0
  %316 = vmatpush1.msra.mxu0 0.0
  %317 = vmatprep.subr.mxu0 0.0
  %318 = vmatpush1.msra.mxu0 0.0
  %319 = vmatprep.subr.mxu0 0.0
  %320 = vmatpush1.msra.mxu0 0.0
  %321 = vmatprep.subr.mxu0 0.0
  %322 = vmatpush1.msra.mxu0 0.0
  %323 = vmatprep.subr.mxu0 0.0
  %324 = vmatpush1.msra.mxu0 0.0
  %325 = vmatprep.subr.mxu0 0.0
  %326 = vmatpush1.msra.mxu0 0.0
  %327 = vmatprep.subr.mxu0 0.0
  %328 = vmatpush1.msra.mxu0 0.0
  %329 = vmatprep.subr.mxu0 0.0
  %330 = vmatpush1.msra.mxu0 0.0
  %331 = vmatprep.subr.mxu0 0.0
  %332 = vmatpush1.msra.mxu0 0.0
  %333 = vmatprep.subr.mxu0 0.0
  %334 = vmatpush1.msra.mxu0 0.0
  %335 = vmatprep.subr.mxu0 0.0
  %336 = vmatpush1.msra.mxu0 0.0
  %337 = vmatprep.subr.mxu0 0.0
  %338 = vmatpush1.msra.mxu0 0.0
  %339 = vmatprep.subr.mxu0 0.0
  %340 = vmatpush1.msra.mxu0 0.0
  %341 = vmatprep.subr.mxu0 0.0
  %342 = vmatpush1.msra.mxu0 0.0
  %343 = vmatprep.subr.mxu0 0.0
  %344 = vmatpush1.msra.mxu0 0.0
  %345 = vmatprep.subr.mxu0 0.0
  %346 = vmatpush1.msra.mxu0 0.0
  %347 = vmatprep.subr.mxu0 0.0
  %348 = vmatpush1.msra.mxu0 0.0
  %349 = vmatprep.subr.mxu0 0.0
  %350 = vmatpush1.msra.mxu0 0.0
  %351 = vmatprep.subr.mxu0 0.0
  %352 = vmatpush1.msra.mxu0 0.0
  %353 = vmatprep.mubr.f32.mxu0 0.0
  %354 = vmatmul.mubr.f32.gmra.mrb[0].mxu0 %v94
  %v355 = vpop.f32.mrb[0].mxu0
  %v356 = vadd.f32 %v90, %v355
  %v357 = vpop.f32.mrb[0].mxu0
  %358 = vmatprep.mubr.f32.mxu0 0.0
  %359 = vmatmul.mubr.f32.gmra.mrb[0].mxu0 %v97
  %v360 = vpop.f32.mrb[0].mxu0
  %v361 = vadd.f32 %v90, %v360
  %v362 = vpop.f32.mrb[0].mxu0
  %363 = vmatprep.mubr.f32.mxu0 0.0
  %364 = vmatmul.mubr.f32.gmra.mrb[0].mxu0 %v100
  %v365 = vpop.f32.mrb[0].mxu0
  %v366 = vadd.f32 %v90, %v365
  %v367 = vpop.f32.mrb[0].mxu0
  %368 = vmatprep.mubr.f32.mxu0 0.0
  %369 = vmatmul.mubr.f32.gmra.mrb[0].mxu0 %v103
  %v370 = vpop.f32.mrb[0].mxu0
  %v371 = vadd.f32 %v90, %v370
  %v372 = vpop.f32.mrb[0].mxu0
  %373 = vmatprep.mubr.f32.mxu0 0.0
  %374 = vmatmul.mubr.f32.gmra.mrb[0].mxu0 %v106
  %v375 = vpop.f32.mrb[0].mxu0
  %v376 = vadd.f32 %v90, %v375
  %v377 = vpop.f32.mrb[0].mxu0
  %378 = vmatprep.mubr.f32.mxu0 0.0
  %379 = vmatmul.mubr.f32.gmra.mrb[0].mxu0 %v109
  %v380 = vpop.f32.mrb[0].mxu0
  %v381 = vadd.f32 %v90, %v380
  %v382 = vpop.f32.mrb[0].mxu0
  %383 = vmatprep.mubr.f32.mxu0 0.0
  %384 = vmatmul.mubr.f32.gmra.mrb[0].mxu0 %v112
  %v385 = vpop.f32.mrb[0].mxu0
  %v386 = vadd.f32 %v90, %v385
  %v387 = vpop.f32.mrb[0].mxu0
  %388 = vmatprep.mubr.f32.mxu0 0.0
  %389 = vmatmul.mubr.f32.gmra.mrb[0].mxu0 %v115
  %v390 = vpop.f32.mrb[0].mxu0
  %v391 = vadd.f32 %v90, %v390
  %v392 = vpop.f32.mrb[0].mxu0
  %393 = vmatprep.mubr.f32.mxu0 0.0
  %394 = vmatmul.mubr.f32.gmra.mrb[0].mxu0 %v118
  %v395 = vpop.f32.mrb[0].mxu0
  %v396 = vadd.f32 %v90, %v395
  %v397 = vpop.f32.mrb[0].mxu0
  %398 = vmatprep.mubr.f32.mxu0 0.0
  %399 = vmatmul.mubr.f32.gmra.mrb[0].mxu0 %v121
  %v400 = vpop.f32.mrb[0].mxu0
  %v401 = vadd.f32 %v90, %v400
  %v402 = vpop.f32.mrb[0].mxu0
  %403 = vmatprep.mubr.f32.mxu0 0.0
  %404 = vmatmul.mubr.f32.gmra.mrb[0].mxu0 %v124
  %v405 = vpop.f32.mrb[0].mxu0
  %v406 = vadd.f32 %v90, %v405
  %v407 = vpop.f32.mrb[0].mxu0
  %408 = vmatprep.mubr.f32.mxu0 0.0
  %409 = vmatmul.mubr.f32.gmra.mrb[0].mxu0 %v127
  %v410 = vpop.f32.mrb[0].mxu0
  %v411 = vadd.f32 %v90, %v410
  %v412 = vpop.f32.mrb[0].mxu0
  %413 = vmatprep.mubr.f32.mxu0 0.0
  %414 = vmatmul.mubr.f32.gmra.mrb[0].mxu0 %v130
  %v415 = vpop.f32.mrb[0].mxu0
  %v416 = vadd.f32 %v90, %v415
  %v417 = vpop.f32.mrb[0].mxu0
  %418 = vmatprep.mubr.f32.mxu0 0.0
  %419 = vmatmul.mubr.f32.gmra.mrb[0].mxu0 %v133
  %v420 = vpop.f32.mrb[0].mxu0
  %v421 = vadd.f32 %v90, %v420
  %v422 = vpop.f32.mrb[0].mxu0
  %423 = vmatprep.mubr.f32.mxu0 0.0
  %424 = vmatmul.mubr.f32.gmra.mrb[0].mxu0 %v136
  %v425 = vpop.f32.mrb[0].mxu0
  %v426 = vadd.f32 %v90, %v425
  %v427 = vpop.f32.mrb[0].mxu0
  %428 = vmatprep.mubr.f32.mxu0 0.0
  %429 = vmatmul.mubr.f32.gmra.mrb[0].mxu0 %v139
  %v430 = vpop.f32.mrb[0].mxu0
  %v431 = vadd.f32 %v90, %v430
  %v432 = vpop.f32.mrb[0].mxu0
  %433 = vmatprep.mubr.f32.mxu0 0.0
  %434 = vmatmul.mubr.f32.gmra.mrb[0].mxu0 %v142
  %v435 = vpop.f32.mrb[0].mxu0
  %v436 = vadd.f32 %v90, %v435
  %v437 = vpop.f32.mrb[0].mxu0
  %438 = vmatprep.mubr.f32.mxu0 0.0
  %439 = vmatmul.mubr.f32.gmra.mrb[0].mxu0 %v145
  %v440 = vpop.f32.mrb[0].mxu0
  %v441 = vadd.f32 %v90, %v440
  %v442 = vpop.f32.mrb[0].mxu0
  %443 = vmatprep.mubr.f32.mxu0 0.0
  %444 = vmatmul.mubr.f32.gmra.mrb[0].mxu0 %v148
  %v445 = vpop.f32.mrb[0].mxu0
  %v446 = vadd.f32 %v90, %v445
  %v447 = vpop.f32.mrb[0].mxu0
  %448 = vmatprep.mubr.f32.mxu0 0.0
  %449 = vmatmul.mubr.f32.gmra.mrb[0].mxu0 %v151
  %v450 = vpop.f32.mrb[0].mxu0
  %v451 = vadd.f32 %v90, %v450
  %v452 = vpop.f32.mrb[0].mxu0
  %453 = vmatprep.mubr.f32.mxu0 0.0
  %454 = vmatmul.mubr.f32.gmra.mrb[0].mxu0 %v154
  %v455 = vpop.f32.mrb[0].mxu0
  %v456 = vadd.f32 %v90, %v455
  %v457 = vpop.f32.mrb[0].mxu0
  %458 = vmatprep.mubr.f32.mxu0 0.0
  %459 = vmatmul.mubr.f32.gmra.mrb[0].mxu0 %v157
  %v460 = vpop.f32.mrb[0].mxu0
  %v461 = vadd.f32 %v90, %v460
  %v462 = vpop.f32.mrb[0].mxu0
  %463 = vmatprep.mubr.f32.mxu0 0.0
  %464 = vmatmul.mubr.f32.gmra.mrb[0].mxu0 %v160
  %v465 = vpop.f32.mrb[0].mxu0
  %v466 = vadd.f32 %v90, %v465
  %v467 = vpop.f32.mrb[0].mxu0
  %468 = vmatprep.mubr.f32.mxu0 0.0
  %469 = vmatmul.mubr.f32.gmra.mrb[0].mxu0 %v163
  %v470 = vpop.f32.mrb[0].mxu0
  %v471 = vadd.f32 %v90, %v470
  %v472 = vpop.f32.mrb[0].mxu0
  %473 = vmatprep.mubr.f32.mxu0 0.0
  %474 = vmatmul.mubr.f32.gmra.mrb[0].mxu0 %v166
  %v475 = vpop.f32.mrb[0].mxu0
  %v476 = vadd.f32 %v90, %v475
  %v477 = vpop.f32.mrb[0].mxu0
  %478 = vmatprep.mubr.f32.mxu0 0.0
  %479 = vmatmul.mubr.f32.gmra.mrb[0].mxu0 %v169
  %v480 = vpop.f32.mrb[0].mxu0
  %v481 = vadd.f32 %v90, %v480
  %v482 = vpop.f32.mrb[0].mxu0
  %483 = vmatprep.mubr.f32.mxu0 0.0
  %484 = vmatmul.mubr.f32.gmra.mrb[0].mxu0 %v172
  %v485 = vpop.f32.mrb[0].mxu0
  %v486 = vadd.f32 %v90, %v485
  %v487 = vpop.f32.mrb[0].mxu0
  %488 = vmatprep.mubr.f32.mxu0 0.0
  %489 = vmatmul.mubr.f32.gmra.mrb[0].mxu0 %v175
  %v490 = vpop.f32.mrb[0].mxu0
  %v491 = vadd.f32 %v90, %v490
  %v492 = vpop.f32.mrb[0].mxu0
  %493 = vmatprep.mubr.f32.mxu0 0.0
  %494 = vmatmul.mubr.f32.gmra.mrb[0].mxu0 %v178
  %v495 = vpop.f32.mrb[0].mxu0
  %v496 = vadd.f32 %v90, %v495
  %v497 = vpop.f32.mrb[0].mxu0
  %498 = vmatprep.mubr.f32.mxu0 0.0
  %499 = vmatmul.mubr.f32.gmra.mrb[0].mxu0 %v181
  %v500 = vpop.f32.mrb[0].mxu0
  %v501 = vadd.f32 %v90, %v500
  %v502 = vpop.f32.mrb[0].mxu0
  %503 = vmatprep.mubr.f32.mxu0 0.0
  %504 = vmatmul.mubr.f32.gmra.mrb[0].mxu0 %v184
  %v505 = vpop.f32.mrb[0].mxu0
  %v506 = vadd.f32 %v90, %v505
  %v507 = vpop.f32.mrb[0].mxu0
  %508 = vmatprep.mubr.f32.mxu0 0.0
  %509 = vmatmul.mubr.f32.gmra.mrb[0].mxu0 %v187
  %v510 = vpop.f32.mrb[0].mxu0
  %v511 = vadd.f32 %v90, %v510
  %v512 = vpop.f32.mrb[0].mxu0
  %513 = vmatprep.mubr.f32.mxu0 0.0
  %514 = vmatmul.mubr.f32.gmra.mrb[0].mxu0 %v190
  %v515 = vpop.f32.mrb[0].mxu0
  %v516 = vadd.f32 %v90, %v515
  %v517 = vpop.f32.mrb[0].mxu0
  %518 = vmatprep.mubr.f32.mxu0 0.0
  %519 = vmatmul.mubr.f32.gmra.mrb[0].mxu0 %v193
  %v520 = vpop.f32.mrb[0].mxu0
  %v521 = vadd.f32 %v90, %v520
  %v522 = vpop.f32.mrb[0].mxu0
  %523 = vmatprep.mubr.f32.mxu0 0.0
  %524 = vmatmul.mubr.f32.gmra.mrb[0].mxu0 %v196
  %v525 = vpop.f32.mrb[0].mxu0
  %v526 = vadd.f32 %v90, %v525
  %v527 = vpop.f32.mrb[0].mxu0
  %528 = vmatprep.mubr.f32.mxu0 0.0
  %529 = vmatmul.mubr.f32.gmra.mrb[0].mxu0 %v199
  %v530 = vpop.f32.mrb[0].mxu0
  %v531 = vadd.f32 %v90, %v530
  %v532 = vpop.f32.mrb[0].mxu0
  %533 = vmatprep.mubr.f32.mxu0 0.0
  %534 = vmatmul.mubr.f32.gmra.mrb[0].mxu0 %v202
  %v535 = vpop.f32.mrb[0].mxu0
  %v536 = vadd.f32 %v90, %v535
  %v537 = vpop.f32.mrb[0].mxu0
  %538 = vmatprep.mubr.f32.mxu0 0.0
  %539 = vmatmul.mubr.f32.gmra.mrb[0].mxu0 %v205
  %v540 = vpop.f32.mrb[0].mxu0
  %v541 = vadd.f32 %v90, %v540
  %v542 = vpop.f32.mrb[0].mxu0
  %543 = vmatprep.mubr.f32.mxu0 0.0
  %544 = vmatmul.mubr.f32.gmra.mrb[0].mxu0 %v208
  %v545 = vpop.f32.mrb[0].mxu0
  %v546 = vadd.f32 %v90, %v545
  %v547 = vpop.f32.mrb[0].mxu0
  %548 = vmatprep.mubr.f32.mxu0 0.0
  %549 = vmatmul.mubr.f32.gmra.mrb[0].mxu0 %v211
  %v550 = vpop.f32.mrb[0].mxu0
  %v551 = vadd.f32 %v90, %v550
  %v552 = vpop.f32.mrb[0].mxu0
  %553 = vmatprep.mubr.f32.mxu0 0.0
  %554 = vmatmul.mubr.f32.gmra.mrb[0].mxu0 %v214
  %v555 = vpop.f32.mrb[0].mxu0
  %v556 = vadd.f32 %v90, %v555
  %v557 = vpop.f32.mrb[0].mxu0
  %558 = vmatprep.mubr.f32.mxu0 0.0
  %559 = vmatmul.mubr.f32.gmra.mrb[0].mxu0 %v217
  %v560 = vpop.f32.mrb[0].mxu0
  %v561 = vadd.f32 %v90, %v560
  %v562 = vpop.f32.mrb[0].mxu0
  %563 = vmatprep.mubr.f32.mxu0 0.0
  %564 = vmatmul.mubr.f32.gmra.mrb[0].mxu0 %v220
  %v565 = vpop.f32.mrb[0].mxu0
  %v566 = vadd.f32 %v90, %v565
  %v567 = vpop.f32.mrb[0].mxu0
  %568 = vmatprep.mubr.f32.mxu0 0.0
  %569 = vmatmul.mubr.f32.gmra.mrb[0].mxu0 %v223
  %v570 = vpop.f32.mrb[0].mxu0
  %v571 = vadd.f32 %v90, %v570
  %v572 = vpop.f32.mrb[0].mxu0
  %573 = vmatprep.mubr.f32.mxu0 0.0
  %574 = vmatmul.mubr.f32.gmra.mrb[0].mxu0 %v226
  %v575 = vpop.f32.mrb[0].mxu0
  %v576 = vadd.f32 %v90, %v575
  %v577 = vpop.f32.mrb[0].mxu0
  %578 = vmatprep.mubr.f32.mxu0 0.0
  %579 = vmatmul.mubr.f32.gmra.mrb[0].mxu0 %v229
  %v580 = vpop.f32.mrb[0].mxu0
  %v581 = vadd.f32 %v90, %v580
  %v582 = vpop.f32.mrb[0].mxu0
  %583 = vmatprep.mubr.f32.mxu0 0.0
  %584 = vmatmul.mubr.f32.gmra.mrb[0].mxu0 %v232
  %v585 = vpop.f32.mrb[0].mxu0
  %v586 = vadd.f32 %v90, %v585
  %v587 = vpop.f32.mrb[0].mxu0
  %588 = vmatprep.mubr.f32.mxu0 0.0
  %589 = vmatmul.mubr.f32.gmra.mrb[0].mxu0 %v235
  %v590 = vpop.f32.mrb[0].mxu0
  %v591 = vadd.f32 %v90, %v590
  %v592 = vpop.f32.mrb[0].mxu0
  %593 = vmatprep.mubr.f32.mxu0 0.0
  %594 = vmatmul.mubr.f32.gmra.mrb[0].mxu0 %v238
  %v595 = vpop.f32.mrb[0].mxu0
  %v596 = vadd.f32 %v90, %v595
  %v597 = vpop.f32.mrb[0].mxu0
  %598 = vmatprep.mubr.f32.mxu0 0.0
  %599 = vmatmul.mubr.f32.gmra.mrb[0].mxu0 %v241
  %v600 = vpop.f32.mrb[0].mxu0
  %v601 = vadd.f32 %v90, %v600
  %v602 = vpop.f32.mrb[0].mxu0
  %603 = vmatprep.mubr.f32.mxu0 0.0
  %604 = vmatmul.mubr.f32.gmra.mrb[0].mxu0 %v244
  %v605 = vpop.f32.mrb[0].mxu0
  %v606 = vadd.f32 %v90, %v605
  %v607 = vpop.f32.mrb[0].mxu0
  %608 = vmatprep.mubr.f32.mxu0 0.0
  %609 = vmatmul.mubr.f32.gmra.mrb[0].mxu0 %v247
  %v610 = vpop.f32.mrb[0].mxu0
  %v611 = vadd.f32 %v90, %v610
  %v612 = vpop.f32.mrb[0].mxu0
  %613 = vmatprep.mubr.f32.mxu0 0.0
  %614 = vmatmul.mubr.f32.gmra.mrb[0].mxu0 %v250
  %v615 = vpop.f32.mrb[0].mxu0
  %v616 = vadd.f32 %v90, %v615
  %v617 = vpop.f32.mrb[0].mxu0
  %618 = vmatprep.mubr.f32.mxu0 0.0
  %619 = vmatmul.mubr.f32.gmra.mrb[0].mxu0 %v253
  %v620 = vpop.f32.mrb[0].mxu0
  %v621 = vadd.f32 %v90, %v620
  %v622 = vpop.f32.mrb[0].mxu0
  %623 = vmatprep.mubr.f32.mxu0 0.0
  %624 = vmatmul.mubr.f32.gmra.mrb[0].mxu0 %v256
  %v625 = vpop.f32.mrb[0].mxu0
  %v626 = vadd.f32 %v90, %v625
  %v627 = vpop.f32.mrb[0].mxu0
  %628 = vmatprep.mubr.f32.mxu0 0.0
  %629 = vmatmul.mubr.f32.gmra.mrb[0].mxu0 %v259
  %v630 = vpop.f32.mrb[0].mxu0
  %v631 = vadd.f32 %v90, %v630
  %v632 = vpop.f32.mrb[0].mxu0
  %633 = vmatprep.mubr.f32.mxu0 0.0
  %634 = vmatmul.mubr.f32.gmra.mrb[0].mxu0 %v262
  %v635 = vpop.f32.mrb[0].mxu0
  %v636 = vadd.f32 %v90, %v635
  %v637 = vpop.f32.mrb[0].mxu0
  %638 = vmatprep.mubr.f32.mxu0 0.0
  %639 = vmatmul.mubr.f32.gmra.mrb[0].mxu0 %v265
  %v640 = vpop.f32.mrb[0].mxu0
  %v641 = vadd.f32 %v90, %v640
  %v642 = vpop.f32.mrb[0].mxu0
  %643 = vmatprep.mubr.f32.mxu0 0.0
  %644 = vmatmul.mubr.f32.gmra.mrb[0].mxu0 %v268
  %v645 = vpop.f32.mrb[0].mxu0
  %v646 = vadd.f32 %v90, %v645
  %v647 = vpop.f32.mrb[0].mxu0
  %648 = vmatprep.mubr.f32.mxu0 0.0
  %649 = vmatmul.mubr.f32.gmra.mrb[0].mxu0 %v271
  %v650 = vpop.f32.mrb[0].mxu0
  %v651 = vadd.f32 %v90, %v650
  %v652 = vpop.f32.mrb[0].mxu0
  %653 = vmatprep.mubr.f32.mxu0 0.0
  %654 = vmatmul.mubr.f32.gmra.mrb[0].mxu0 %v274
  %v655 = vpop.f32.mrb[0].mxu0
  %v656 = vadd.f32 %v90, %v655
  %v657 = vpop.f32.mrb[0].mxu0
  %658 = vmatprep.mubr.f32.mxu0 0.0
  %659 = vmatmul.mubr.f32.gmra.mrb[0].mxu0 %v277
  %v660 = vpop.f32.mrb[0].mxu0
  %v661 = vadd.f32 %v90, %v660
  %v662 = vpop.f32.mrb[0].mxu0
  %663 = vmatprep.mubr.f32.mxu0 0.0
  %664 = vmatmul.mubr.f32.gmra.mrb[0].mxu0 %v280
  %v665 = vpop.f32.mrb[0].mxu0
  %v666 = vadd.f32 %v90, %v665
  %v667 = vpop.f32.mrb[0].mxu0
  %668 = vmatprep.mubr.f32.mxu0 0.0
  %669 = vmatmul.mubr.f32.gmra.mrb[0].mxu0 %v283
  %v670 = vpop.f32.mrb[0].mxu0
  %v671 = vadd.f32 %v90, %v670
  %v672 = vpop.f32.mrb[0].mxu0
  %673 = vdwg.mxu0
  %v674 = vmul.f32 %v356, 0.5
  %v675 = vmul.f32 %v361, 0.5
  %v676 = vmul.f32 %v366, 0.5
  %v677 = vmul.f32 %v371, 0.5
  %v678 = vmul.f32 %v376, 0.5
  %v679 = vmul.f32 %v381, 0.5
  %v680 = vmul.f32 %v386, 0.5
  %v681 = vmul.f32 %v391, 0.5
  %v682 = vmul.f32 %v396, 0.5
  %v683 = vmul.f32 %v401, 0.5
  %v684 = vmul.f32 %v406, 0.5
  %v685 = vmul.f32 %v411, 0.5
  %v686 = vmul.f32 %v416, 0.5
  %v687 = vmul.f32 %v421, 0.5
  %v688 = vmul.f32 %v426, 0.5
  %v689 = vmul.f32 %v431, 0.5
  %v690 = vmul.f32 %v436, 0.5
  %v691 = vmul.f32 %v441, 0.5
  %v692 = vmul.f32 %v446, 0.5
  %v693 = vmul.f32 %v451, 0.5
  %v694 = vmul.f32 %v456, 0.5
  %v695 = vmul.f32 %v461, 0.5
  %v696 = vmul.f32 %v466, 0.5
  %v697 = vmul.f32 %v471, 0.5
  %v698 = vmul.f32 %v476, 0.5
  %v699 = vmul.f32 %v481, 0.5
  %v700 = vmul.f32 %v486, 0.5
  %v701 = vmul.f32 %v491, 0.5
  %v702 = vmul.f32 %v496, 0.5
  %v703 = vmul.f32 %v501, 0.5
  %v704 = vmul.f32 %v506, 0.5
  %v705 = vmul.f32 %v511, 0.5
  %v706 = vmul.f32 %v516, 0.5
  %v707 = vmul.f32 %v521, 0.5
  %v708 = vmul.f32 %v526, 0.5
  %v709 = vmul.f32 %v531, 0.5
  %v710 = vmul.f32 %v536, 0.5
  %v711 = vmul.f32 %v541, 0.5
  %v712 = vmul.f32 %v546, 0.5
  %v713 = vmul.f32 %v551, 0.5
  %v714 = vmul.f32 %v556, 0.5
  %v715 = vmul.f32 %v561, 0.5
  %v716 = vmul.f32 %v566, 0.5
  %v717 = vmul.f32 %v571, 0.5
  %v718 = vmul.f32 %v576, 0.5
  %v719 = vmul.f32 %v581, 0.5
  %v720 = vmul.f32 %v586, 0.5
  %v721 = vmul.f32 %v591, 0.5
  %v722 = vmul.f32 %v596, 0.5
  %v723 = vmul.f32 %v601, 0.5
  %v724 = vmul.f32 %v606, 0.5
  %v725 = vmul.f32 %v611, 0.5
  %v726 = vmul.f32 %v616, 0.5
  %v727 = vmul.f32 %v621, 0.5
  %v728 = vmul.f32 %v626, 0.5
  %v729 = vmul.f32 %v631, 0.5
  %v730 = vmul.f32 %v636, 0.5
  %v731 = vmul.f32 %v641, 0.5
  %v732 = vmul.f32 %v646, 0.5
  %v733 = vmul.f32 %v651, 0.5
  %v734 = vmul.f32 %v656, 0.5
  %v735 = vmul.f32 %v661, 0.5
  %v736 = vmul.f32 %v666, 0.5
  %v737 = vmul.f32 %v671, 0.5
  %v738 = vmul.f32 %v356, 0.70710677
  %v739 = vmul.f32 %v361, 0.70710677
  %v740 = vmul.f32 %v366, 0.70710677
  %v741 = vmul.f32 %v371, 0.70710677
  %v742 = vmul.f32 %v376, 0.70710677
  %v743 = vmul.f32 %v381, 0.70710677
  %v744 = vmul.f32 %v386, 0.70710677
  %v745 = vmul.f32 %v391, 0.70710677
  %v746 = vmul.f32 %v396, 0.70710677
  %v747 = vmul.f32 %v401, 0.70710677
  %v748 = vmul.f32 %v406, 0.70710677
  %v749 = vmul.f32 %v411, 0.70710677
  %v750 = vmul.f32 %v416, 0.70710677
  %v751 = vmul.f32 %v421, 0.70710677
  %v752 = vmul.f32 %v426, 0.70710677
  %v753 = vmul.f32 %v431, 0.70710677
  %v754 = vmul.f32 %v436, 0.70710677
  %v755 = vmul.f32 %v441, 0.70710677
  %v756 = vmul.f32 %v446, 0.70710677
  %v757 = vmul.f32 %v451, 0.70710677
  %v758 = vmul.f32 %v456, 0.70710677
  %v759 = vmul.f32 %v461, 0.70710677
  %v760 = vmul.f32 %v466, 0.70710677
  %v761 = vmul.f32 %v471, 0.70710677
  %v762 = vmul.f32 %v476, 0.70710677
  %v763 = vmul.f32 %v481, 0.70710677
  %v764 = vmul.f32 %v486, 0.70710677
  %v765 = vmul.f32 %v491, 0.70710677
  %v766 = vmul.f32 %v496, 0.70710677
  %v767 = vmul.f32 %v501, 0.70710677
  %v768 = vmul.f32 %v506, 0.70710677
  %v769 = vmul.f32 %v511, 0.70710677
  %v770 = vmul.f32 %v516, 0.70710677
  %v771 = vmul.f32 %v521, 0.70710677
  %v772 = vmul.f32 %v526, 0.70710677
  %v773 = vmul.f32 %v531, 0.70710677
  %v774 = vmul.f32 %v536, 0.70710677
  %v775 = vmul.f32 %v541, 0.70710677
  %v776 = vmul.f32 %v546, 0.70710677
  %v777 = vmul.f32 %v551, 0.70710677
  %v778 = vmul.f32 %v556, 0.70710677
  %v779 = vmul.f32 %v561, 0.70710677
  %v780 = vmul.f32 %v566, 0.70710677
  %v781 = vmul.f32 %v571, 0.70710677
  %v782 = vmul.f32 %v576, 0.70710677
  %v783 = vmul.f32 %v581, 0.70710677
  %v784 = vmul.f32 %v586, 0.70710677
  %v785 = vmul.f32 %v591, 0.70710677
  %v786 = vmul.f32 %v596, 0.70710677
  %v787 = vmul.f32 %v601, 0.70710677
  %v788 = vmul.f32 %v606, 0.70710677
  %v789 = vmul.f32 %v611, 0.70710677
  %v790 = vmul.f32 %v616, 0.70710677
  %v791 = vmul.f32 %v621, 0.70710677
  %v792 = vmul.f32 %v626, 0.70710677
  %v793 = vmul.f32 %v631, 0.70710677
  %v794 = vmul.f32 %v636, 0.70710677
  %v795 = vmul.f32 %v641, 0.70710677
  %v796 = vmul.f32 %v646, 0.70710677
  %v797 = vmul.f32 %v651, 0.70710677
  %v798 = vmul.f32 %v656, 0.70710677
  %v799 = vmul.f32 %v661, 0.70710677
  %v800 = vmul.f32 %v666, 0.70710677
  %v801 = vmul.f32 %v671, 0.70710677
  %vm802 = vcmp.ge.f32.partialorder %v738, 0.0
  %vm803 = vcmp.ge.f32.partialorder %v739, 0.0
  %vm804 = vcmp.ge.f32.partialorder %v740, 0.0
  %vm805 = vcmp.ge.f32.partialorder %v741, 0.0
  %vm806 = vcmp.ge.f32.partialorder %v742, 0.0
  %vm807 = vcmp.ge.f32.partialorder %v743, 0.0
  %vm808 = vcmp.ge.f32.partialorder %v744, 0.0
  %vm809 = vcmp.ge.f32.partialorder %v745, 0.0
  %vm810 = vcmp.ge.f32.partialorder %v746, 0.0
  %vm811 = vcmp.ge.f32.partialorder %v747, 0.0
  %vm812 = vcmp.ge.f32.partialorder %v748, 0.0
  %vm813 = vcmp.ge.f32.partialorder %v749, 0.0
  %vm814 = vcmp.ge.f32.partialorder %v750, 0.0
  %vm815 = vcmp.ge.f32.partialorder %v751, 0.0
  %vm816 = vcmp.ge.f32.partialorder %v752, 0.0
  %vm817 = vcmp.ge.f32.partialorder %v753, 0.0
  %vm818 = vcmp.ge.f32.partialorder %v754, 0.0
  %vm819 = vcmp.ge.f32.partialorder %v755, 0.0
  %vm820 = vcmp.ge.f32.partialorder %v756, 0.0
  %vm821 = vcmp.ge.f32.partialorder %v757, 0.0
  %vm822 = vcmp.ge.f32.partialorder %v758, 0.0
  %vm823 = vcmp.ge.f32.partialorder %v759, 0.0
  %vm824 = vcmp.ge.f32.partialorder %v760, 0.0
  %vm825 = vcmp.ge.f32.partialorder %v761, 0.0
  %vm826 = vcmp.ge.f32.partialorder %v762, 0.0
  %vm827 = vcmp.ge.f32.partialorder %v763, 0.0
  %vm828 = vcmp.ge.f32.partialorder %v764, 0.0
  %vm829 = vcmp.ge.f32.partialorder %v765, 0.0
  %vm830 = vcmp.ge.f32.partialorder %v766, 0.0
  %vm831 = vcmp.ge.f32.partialorder %v767, 0.0
  %vm832 = vcmp.ge.f32.partialorder %v768, 0.0
  %vm833 = vcmp.ge.f32.partialorder %v769, 0.0
  %vm834 = vcmp.ge.f32.partialorder %v770, 0.0
  %vm835 = vcmp.ge.f32.partialorder %v771, 0.0
  %vm836 = vcmp.ge.f32.partialorder %v772, 0.0
  %vm837 = vcmp.ge.f32.partialorder %v773, 0.0
  %vm838 = vcmp.ge.f32.partialorder %v774, 0.0
  %vm839 = vcmp.ge.f32.partialorder %v775, 0.0
  %vm840 = vcmp.ge.f32.partialorder %v776, 0.0
  %vm841 = vcmp.ge.f32.partialorder %v777, 0.0
  %vm842 = vcmp.ge.f32.partialorder %v778, 0.0
  %vm843 = vcmp.ge.f32.partialorder %v779, 0.0
  %vm844 = vcmp.ge.f32.partialorder %v780, 0.0
  %vm845 = vcmp.ge.f32.partialorder %v781, 0.0
  %vm846 = vcmp.ge.f32.partialorder %v782, 0.0
  %vm847 = vcmp.ge.f32.partialorder %v783, 0.0
  %vm848 = vcmp.ge.f32.partialorder %v784, 0.0
  %vm849 = vcmp.ge.f32.partialorder %v785, 0.0
  %vm850 = vcmp.ge.f32.partialorder %v786, 0.0
  %vm851 = vcmp.ge.f32.partialorder %v787, 0.0
  %vm852 = vcmp.ge.f32.partialorder %v788, 0.0
  %vm853 = vcmp.ge.f32.partialorder %v789, 0.0
  %vm854 = vcmp.ge.f32.partialorder %v790, 0.0
  %vm855 = vcmp.ge.f32.partialorder %v791, 0.0
  %vm856 = vcmp.ge.f32.partialorder %v792, 0.0
  %vm857 = vcmp.ge.f32.partialorder %v793, 0.0
  %vm858 = vcmp.ge.f32.partialorder %v794, 0.0
  %vm859 = vcmp.ge.f32.partialorder %v795, 0.0
  %vm860 = vcmp.ge.f32.partialorder %v796, 0.0
  %vm861 = vcmp.ge.f32.partialorder %v797, 0.0
  %vm862 = vcmp.ge.f32.partialorder %v798, 0.0
  %vm863 = vcmp.ge.f32.partialorder %v799, 0.0
  %vm864 = vcmp.ge.f32.partialorder %v800, 0.0
  %vm865 = vcmp.ge.f32.partialorder %v801, 0.0
  %v866 = vsel %vm802, 1.0, -1.0
  %v867 = vsel %vm803, 1.0, -1.0
  %v868 = vsel %vm804, 1.0, -1.0
  %v869 = vsel %vm805, 1.0, -1.0
  %v870 = vsel %vm806, 1.0, -1.0
  %v871 = vsel %vm807, 1.0, -1.0
  %v872 = vsel %vm808, 1.0, -1.0
  %v873 = vsel %vm809, 1.0, -1.0
  %v874 = vsel %vm810, 1.0, -1.0
  %v875 = vsel %vm811, 1.0, -1.0
  %v876 = vsel %vm812, 1.0, -1.0
  %v877 = vsel %vm813, 1.0, -1.0
  %v878 = vsel %vm814, 1.0, -1.0
  %v879 = vsel %vm815, 1.0, -1.0
  %v880 = vsel %vm816, 1.0, -1.0
  %v881 = vsel %vm817, 1.0, -1.0
  %v882 = vsel %vm818, 1.0, -1.0
  %v883 = vsel %vm819, 1.0, -1.0
  %v884 = vsel %vm820, 1.0, -1.0
  %v885 = vsel %vm821, 1.0, -1.0
  %v886 = vsel %vm822, 1.0, -1.0
  %v887 = vsel %vm823, 1.0, -1.0
  %v888 = vsel %vm824, 1.0, -1.0
  %v889 = vsel %vm825, 1.0, -1.0
  %v890 = vsel %vm826, 1.0, -1.0
  %v891 = vsel %vm827, 1.0, -1.0
  %v892 = vsel %vm828, 1.0, -1.0
  %v893 = vsel %vm829, 1.0, -1.0
  %v894 = vsel %vm830, 1.0, -1.0
  %v895 = vsel %vm831, 1.0, -1.0
  %v896 = vsel %vm832, 1.0, -1.0
  %v897 = vsel %vm833, 1.0, -1.0
  %v898 = vsel %vm834, 1.0, -1.0
  %v899 = vsel %vm835, 1.0, -1.0
  %v900 = vsel %vm836, 1.0, -1.0
  %v901 = vsel %vm837, 1.0, -1.0
  %v902 = vsel %vm838, 1.0, -1.0
  %v903 = vsel %vm839, 1.0, -1.0
  %v904 = vsel %vm840, 1.0, -1.0
  %v905 = vsel %vm841, 1.0, -1.0
  %v906 = vsel %vm842, 1.0, -1.0
  %v907 = vsel %vm843, 1.0, -1.0
  %v908 = vsel %vm844, 1.0, -1.0
  %v909 = vsel %vm845, 1.0, -1.0
  %v910 = vsel %vm846, 1.0, -1.0
  %v911 = vsel %vm847, 1.0, -1.0
  %v912 = vsel %vm848, 1.0, -1.0
  %v913 = vsel %vm849, 1.0, -1.0
  %v914 = vsel %vm850, 1.0, -1.0
  %v915 = vsel %vm851, 1.0, -1.0
  %v916 = vsel %vm852, 1.0, -1.0
  %v917 = vsel %vm853, 1.0, -1.0
  %v918 = vsel %vm854, 1.0, -1.0
  %v919 = vsel %vm855, 1.0, -1.0
  %v920 = vsel %vm856, 1.0, -1.0
  %v921 = vsel %vm857, 1.0, -1.0
  %v922 = vsel %vm858, 1.0, -1.0
  %v923 = vsel %vm859, 1.0, -1.0
  %v924 = vsel %vm860, 1.0, -1.0
  %v925 = vsel %vm861, 1.0, -1.0
  %v926 = vsel %vm862, 1.0, -1.0
  %v927 = vsel %vm863, 1.0, -1.0
  %v928 = vsel %vm864, 1.0, -1.0
  %v929 = vsel %vm865, 1.0, -1.0
  %v930 = vand.u32 2147483647, %v738
  %v931 = vand.u32 2147483647, %v739
  %v932 = vand.u32 2147483647, %v740
  %v933 = vand.u32 2147483647, %v741
  %v934 = vand.u32 2147483647, %v742
  %v935 = vand.u32 2147483647, %v743
  %v936 = vand.u32 2147483647, %v744
  %v937 = vand.u32 2147483647, %v745
  %v938 = vand.u32 2147483647, %v746
  %v939 = vand.u32 2147483647, %v747
  %v940 = vand.u32 2147483647, %v748
  %v941 = vand.u32 2147483647, %v749
  %v942 = vand.u32 2147483647, %v750
  %v943 = vand.u32 2147483647, %v751
  %v944 = vand.u32 2147483647, %v752
  %v945 = vand.u32 2147483647, %v753
  %v946 = vand.u32 2147483647, %v754
  %v947 = vand.u32 2147483647, %v755
  %v948 = vand.u32 2147483647, %v756
  %v949 = vand.u32 2147483647, %v757
  %v950 = vand.u32 2147483647, %v758
  %v951 = vand.u32 2147483647, %v759
  %v952 = vand.u32 2147483647, %v760
  %v953 = vand.u32 2147483647, %v761
  %v954 = vand.u32 2147483647, %v762
  %v955 = vand.u32 2147483647, %v763
  %v956 = vand.u32 2147483647, %v764
  %v957 = vand.u32 2147483647, %v765
  %v958 = vand.u32 2147483647, %v766
  %v959 = vand.u32 2147483647, %v767
  %v960 = vand.u32 2147483647, %v768
  %v961 = vand.u32 2147483647, %v769
  %v962 = vand.u32 2147483647, %v770
  %v963 = vand.u32 2147483647, %v771
  %v964 = vand.u32 2147483647, %v772
  %v965 = vand.u32 2147483647, %v773
  %v966 = vand.u32 2147483647, %v774
  %v967 = vand.u32 2147483647, %v775
  %v968 = vand.u32 2147483647, %v776
  %v969 = vand.u32 2147483647, %v777
  %v970 = vand.u32 2147483647, %v778
  %v971 = vand.u32 2147483647, %v779
  %v972 = vand.u32 2147483647, %v780
  %v973 = vand.u32 2147483647, %v781
  %v974 = vand.u32 2147483647, %v782
  %v975 = vand.u32 2147483647, %v783
  %v976 = vand.u32 2147483647, %v784
  %v977 = vand.u32 2147483647, %v785
  %v978 = vand.u32 2147483647, %v786
  %v979 = vand.u32 2147483647, %v787
  %v980 = vand.u32 2147483647, %v788
  %v981 = vand.u32 2147483647, %v789
  %v982 = vand.u32 2147483647, %v790
  %v983 = vand.u32 2147483647, %v791
  %v984 = vand.u32 2147483647, %v792
  %v985 = vand.u32 2147483647, %v793
  %v986 = vand.u32 2147483647, %v794
  %v987 = vand.u32 2147483647, %v795
  %v988 = vand.u32 2147483647, %v796
  %v989 = vand.u32 2147483647, %v797
  %v990 = vand.u32 2147483647, %v798
  %v991 = vand.u32 2147483647, %v799
  %v992 = vand.u32 2147483647, %v800
  %v993 = vand.u32 2147483647, %v801
  %v994 = vmul.f32 %v930, 0.3275911
  %v995 = vmul.f32 %v931, 0.3275911
  %v996 = vmul.f32 %v932, 0.3275911
  %v997 = vmul.f32 %v933, 0.3275911
  %v998 = vmul.f32 %v934, 0.3275911
  %v999 = vmul.f32 %v935, 0.3275911
  %v1000 = vmul.f32 %v936, 0.3275911
  %v1001 = vmul.f32 %v937, 0.3275911
  %v1002 = vmul.f32 %v938, 0.3275911
  %v1003 = vmul.f32 %v939, 0.3275911
  %v1004 = vmul.f32 %v940, 0.3275911
  %v1005 = vmul.f32 %v941, 0.3275911
  %v1006 = vmul.f32 %v942, 0.3275911
  %v1007 = vmul.f32 %v943, 0.3275911
  %v1008 = vmul.f32 %v944, 0.3275911
  %v1009 = vmul.f32 %v945, 0.3275911
  %v1010 = vmul.f32 %v946, 0.3275911
  %v1011 = vmul.f32 %v947, 0.3275911
  %v1012 = vmul.f32 %v948, 0.3275911
  %v1013 = vmul.f32 %v949, 0.3275911
  %v1014 = vmul.f32 %v950, 0.3275911
  %v1015 = vmul.f32 %v951, 0.3275911
  %v1016 = vmul.f32 %v952, 0.3275911
  %v1017 = vmul.f32 %v953, 0.3275911
  %v1018 = vmul.f32 %v954, 0.3275911
  %v1019 = vmul.f32 %v955, 0.3275911
  %v1020 = vmul.f32 %v956, 0.3275911
  %v1021 = vmul.f32 %v957, 0.3275911
  %v1022 = vmul.f32 %v958, 0.3275911
  %v1023 = vmul.f32 %v959, 0.3275911
  %v1024 = vmul.f32 %v960, 0.3275911
  %v1025 = vmul.f32 %v961, 0.3275911
  %v1026 = vmul.f32 %v962, 0.3275911
  %v1027 = vmul.f32 %v963, 0.3275911
  %v1028 = vmul.f32 %v964, 0.3275911
  %v1029 = vmul.f32 %v965, 0.3275911
  %v1030 = vmul.f32 %v966, 0.3275911
  %v1031 = vmul.f32 %v967, 0.3275911
  %v1032 = vmul.f32 %v968, 0.3275911
  %v1033 = vmul.f32 %v969, 0.3275911
  %v1034 = vmul.f32 %v970, 0.3275911
  %v1035 = vmul.f32 %v971, 0.3275911
  %v1036 = vmul.f32 %v972, 0.3275911
  %v1037 = vmul.f32 %v973, 0.3275911
  %v1038 = vmul.f32 %v974, 0.3275911
  %v1039 = vmul.f32 %v975, 0.3275911
  %v1040 = vmul.f32 %v976, 0.3275911
  %v1041 = vmul.f32 %v977, 0.3275911
  %v1042 = vmul.f32 %v978, 0.3275911
  %v1043 = vmul.f32 %v979, 0.3275911
  %v1044 = vmul.f32 %v980, 0.3275911
  %v1045 = vmul.f32 %v981, 0.3275911
  %v1046 = vmul.f32 %v982, 0.3275911
  %v1047 = vmul.f32 %v983, 0.3275911
  %v1048 = vmul.f32 %v984, 0.3275911
  %v1049 = vmul.f32 %v985, 0.3275911
  %v1050 = vmul.f32 %v986, 0.3275911
  %v1051 = vmul.f32 %v987, 0.3275911
  %v1052 = vmul.f32 %v988, 0.3275911
  %v1053 = vmul.f32 %v989, 0.3275911
  %v1054 = vmul.f32 %v990, 0.3275911
  %v1055 = vmul.f32 %v991, 0.3275911
  %v1056 = vmul.f32 %v992, 0.3275911
  %v1057 = vmul.f32 %v993, 0.3275911
  %v1058 = vadd.f32 %v994, 1.0
  %v1059 = vadd.f32 %v995, 1.0
  %v1060 = vadd.f32 %v996, 1.0
  %v1061 = vadd.f32 %v997, 1.0
  %v1062 = vadd.f32 %v998, 1.0
  %v1063 = vadd.f32 %v999, 1.0
  %v1064 = vadd.f32 %v1000, 1.0
  %v1065 = vadd.f32 %v1001, 1.0
  %v1066 = vadd.f32 %v1002, 1.0
  %v1067 = vadd.f32 %v1003, 1.0
  %v1068 = vadd.f32 %v1004, 1.0
  %v1069 = vadd.f32 %v1005, 1.0
  %v1070 = vadd.f32 %v1006, 1.0
  %v1071 = vadd.f32 %v1007, 1.0
  %v1072 = vadd.f32 %v1008, 1.0
  %v1073 = vadd.f32 %v1009, 1.0
  %v1074 = vadd.f32 %v1010, 1.0
  %v1075 = vadd.f32 %v1011, 1.0
  %v1076 = vadd.f32 %v1012, 1.0
  %v1077 = vadd.f32 %v1013, 1.0
  %v1078 = vadd.f32 %v1014, 1.0
  %v1079 = vadd.f32 %v1015, 1.0
  %v1080 = vadd.f32 %v1016, 1.0
  %v1081 = vadd.f32 %v1017, 1.0
  %v1082 = vadd.f32 %v1018, 1.0
  %v1083 = vadd.f32 %v1019, 1.0
  %v1084 = vadd.f32 %v1020, 1.0
  %v1085 = vadd.f32 %v1021, 1.0
  %v1086 = vadd.f32 %v1022, 1.0
  %v1087 = vadd.f32 %v1023, 1.0
  %v1088 = vadd.f32 %v1024, 1.0
  %v1089 = vadd.f32 %v1025, 1.0
  %v1090 = vadd.f32 %v1026, 1.0
  %v1091 = vadd.f32 %v1027, 1.0
  %v1092 = vadd.f32 %v1028, 1.0
  %v1093 = vadd.f32 %v1029, 1.0
  %v1094 = vadd.f32 %v1030, 1.0
  %v1095 = vadd.f32 %v1031, 1.0
  %v1096 = vadd.f32 %v1032, 1.0
  %v1097 = vadd.f32 %v1033, 1.0
  %v1098 = vadd.f32 %v1034, 1.0
  %v1099 = vadd.f32 %v1035, 1.0
  %v1100 = vadd.f32 %v1036, 1.0
  %v1101 = vadd.f32 %v1037, 1.0
  %v1102 = vadd.f32 %v1038, 1.0
  %v1103 = vadd.f32 %v1039, 1.0
  %v1104 = vadd.f32 %v1040, 1.0
  %v1105 = vadd.f32 %v1041, 1.0
  %v1106 = vadd.f32 %v1042, 1.0
  %v1107 = vadd.f32 %v1043, 1.0
  %v1108 = vadd.f32 %v1044, 1.0
  %v1109 = vadd.f32 %v1045, 1.0
  %v1110 = vadd.f32 %v1046, 1.0
  %v1111 = vadd.f32 %v1047, 1.0
  %v1112 = vadd.f32 %v1048, 1.0
  %v1113 = vadd.f32 %v1049, 1.0
  %v1114 = vadd.f32 %v1050, 1.0
  %v1115 = vadd.f32 %v1051, 1.0
  %v1116 = vadd.f32 %v1052, 1.0
  %v1117 = vadd.f32 %v1053, 1.0
  %v1118 = vadd.f32 %v1054, 1.0
  %v1119 = vadd.f32 %v1055, 1.0
  %v1120 = vadd.f32 %v1056, 1.0
  %v1121 = vadd.f32 %v1057, 1.0
  %v1122 = vrcp.pop %v1058
  %v1123 = vrcp.pop %v1059
  %v1124 = vrcp.pop %v1060
  %v1125 = vrcp.pop %v1061
  %v1126 = vrcp.pop %v1062
  %v1127 = vrcp.pop %v1063
  %v1128 = vrcp.pop %v1064
  %v1129 = vrcp.pop %v1065
  %v1130 = vrcp.pop %v1066
  %v1131 = vrcp.pop %v1067
  %v1132 = vrcp.pop %v1068
  %v1133 = vrcp.pop %v1069
  %v1134 = vrcp.pop %v1070
  %v1135 = vrcp.pop %v1071
  %v1136 = vrcp.pop %v1072
  %v1137 = vrcp.pop %v1073
  %v1138 = vrcp.pop %v1074
  %v1139 = vrcp.pop %v1075
  %v1140 = vrcp.pop %v1076
  %v1141 = vrcp.pop %v1077
  %v1142 = vrcp.pop %v1078
  %v1143 = vrcp.pop %v1079
  %v1144 = vrcp.pop %v1080
  %v1145 = vrcp.pop %v1081
  %v1146 = vrcp.pop %v1082
  %v1147 = vrcp.pop %v1083
  %v1148 = vrcp.pop %v1084
  %v1149 = vrcp.pop %v1085
  %v1150 = vrcp.pop %v1086
  %v1151 = vrcp.pop %v1087
  %v1152 = vrcp.pop %v1088
  %v1153 = vrcp.pop %v1089
  %v1154 = vrcp.pop %v1090
  %v1155 = vrcp.pop %v1091
  %v1156 = vrcp.pop %v1092
  %v1157 = vrcp.pop %v1093
  %v1158 = vrcp.pop %v1094
  %v1159 = vrcp.pop %v1095
  %v1160 = vrcp.pop %v1096
  %v1161 = vrcp.pop %v1097
  %v1162 = vrcp.pop %v1098
  %v1163 = vrcp.pop %v1099
  %v1164 = vrcp.pop %v1100
  %v1165 = vrcp.pop %v1101
  %v1166 = vrcp.pop %v1102
  %v1167 = vrcp.pop %v1103
  %v1168 = vrcp.pop %v1104
  %v1169 = vrcp.pop %v1105
  %v1170 = vrcp.pop %v1106
  %v1171 = vrcp.pop %v1107
  %v1172 = vrcp.pop %v1108
  %v1173 = vrcp.pop %v1109
  %v1174 = vrcp.pop %v1110
  %v1175 = vrcp.pop %v1111
  %v1176 = vrcp.pop %v1112
  %v1177 = vrcp.pop %v1113
  %v1178 = vrcp.pop %v1114
  %v1179 = vrcp.pop %v1115
  %v1180 = vrcp.pop %v1116
  %v1181 = vrcp.pop %v1117
  %v1182 = vrcp.pop %v1118
  %v1183 = vrcp.pop %v1119
  %v1184 = vrcp.pop %v1120
  %v1185 = vrcp.pop %v1121
  %v1186 = vmul.f32 %v1122, 1.0614054
  %v1187 = vmul.f32 %v1123, 1.0614054
  %v1188 = vmul.f32 %v1124, 1.0614054
  %v1189 = vmul.f32 %v1125, 1.0614054
  %v1190 = vmul.f32 %v1126, 1.0614054
  %v1191 = vmul.f32 %v1127, 1.0614054
  %v1192 = vmul.f32 %v1128, 1.0614054
  %v1193 = vmul.f32 %v1129, 1.0614054
  %v1194 = vmul.f32 %v1130, 1.0614054
  %v1195 = vmul.f32 %v1131, 1.0614054
  %v1196 = vmul.f32 %v1132, 1.0614054
  %v1197 = vmul.f32 %v1133, 1.0614054
  %v1198 = vmul.f32 %v1134, 1.0614054
  %v1199 = vmul.f32 %v1135, 1.0614054
  %v1200 = vmul.f32 %v1136, 1.0614054
  %v1201 = vmul.f32 %v1137, 1.0614054
  %v1202 = vmul.f32 %v1138, 1.0614054
  %v1203 = vmul.f32 %v1139, 1.0614054
  %v1204 = vmul.f32 %v1140, 1.0614054
  %v1205 = vmul.f32 %v1141, 1.0614054
  %v1206 = vmul.f32 %v1142, 1.0614054
  %v1207 = vmul.f32 %v1143, 1.0614054
  %v1208 = vmul.f32 %v1144, 1.0614054
  %v1209 = vmul.f32 %v1145, 1.0614054
  %v1210 = vmul.f32 %v1146, 1.0614054
  %v1211 = vmul.f32 %v1147, 1.0614054
  %v1212 = vmul.f32 %v1148, 1.0614054
  %v1213 = vmul.f32 %v1149, 1.0614054
  %v1214 = vmul.f32 %v1150, 1.0614054
  %v1215 = vmul.f32 %v1151, 1.0614054
  %v1216 = vmul.f32 %v1152, 1.0614054
  %v1217 = vmul.f32 %v1153, 1.0614054
  %v1218 = vmul.f32 %v1154, 1.0614054
  %v1219 = vmul.f32 %v1155, 1.0614054
  %v1220 = vmul.f32 %v1156, 1.0614054
  %v1221 = vmul.f32 %v1157, 1.0614054
  %v1222 = vmul.f32 %v1158, 1.0614054
  %v1223 = vmul.f32 %v1159, 1.0614054
  %v1224 = vmul.f32 %v1160, 1.0614054
  %v1225 = vmul.f32 %v1161, 1.0614054
  %v1226 = vmul.f32 %v1162, 1.0614054
  %v1227 = vmul.f32 %v1163, 1.0614054
  %v1228 = vmul.f32 %v1164, 1.0614054
  %v1229 = vmul.f32 %v1165, 1.0614054
  %v1230 = vmul.f32 %v1166, 1.0614054
  %v1231 = vmul.f32 %v1167, 1.0614054
  %v1232 = vmul.f32 %v1168, 1.0614054
  %v1233 = vmul.f32 %v1169, 1.0614054
  %v1234 = vmul.f32 %v1170, 1.0614054
  %v1235 = vmul.f32 %v1171, 1.0614054
  %v1236 = vmul.f32 %v1172, 1.0614054
  %v1237 = vmul.f32 %v1173, 1.0614054
  %v1238 = vmul.f32 %v1174, 1.0614054
  %v1239 = vmul.f32 %v1175, 1.0614054
  %v1240 = vmul.f32 %v1176, 1.0614054
  %v1241 = vmul.f32 %v1177, 1.0614054
  %v1242 = vmul.f32 %v1178, 1.0614054
  %v1243 = vmul.f32 %v1179, 1.0614054
  %v1244 = vmul.f32 %v1180, 1.0614054
  %v1245 = vmul.f32 %v1181, 1.0614054
  %v1246 = vmul.f32 %v1182, 1.0614054
  %v1247 = vmul.f32 %v1183, 1.0614054
  %v1248 = vmul.f32 %v1184, 1.0614054
  %v1249 = vmul.f32 %v1185, 1.0614054
  %v1250 = vadd.f32 %v1186, -1.4531521
  %v1251 = vadd.f32 %v1187, -1.4531521
  %v1252 = vadd.f32 %v1188, -1.4531521
  %v1253 = vadd.f32 %v1189, -1.4531521
  %v1254 = vadd.f32 %v1190, -1.4531521
  %v1255 = vadd.f32 %v1191, -1.4531521
  %v1256 = vadd.f32 %v1192, -1.4531521
  %v1257 = vadd.f32 %v1193, -1.4531521
  %v1258 = vadd.f32 %v1194, -1.4531521
  %v1259 = vadd.f32 %v1195, -1.4531521
  %v1260 = vadd.f32 %v1196, -1.4531521
  %v1261 = vadd.f32 %v1197, -1.4531521
  %v1262 = vadd.f32 %v1198, -1.4531521
  %v1263 = vadd.f32 %v1199, -1.4531521
  %v1264 = vadd.f32 %v1200, -1.4531521
  %v1265 = vadd.f32 %v1201, -1.4531521
  %v1266 = vadd.f32 %v1202, -1.4531521
  %v1267 = vadd.f32 %v1203, -1.4531521
  %v1268 = vadd.f32 %v1204, -1.4531521
  %v1269 = vadd.f32 %v1205, -1.4531521
  %v1270 = vadd.f32 %v1206, -1.4531521
  %v1271 = vadd.f32 %v1207, -1.4531521
  %v1272 = vadd.f32 %v1208, -1.4531521
  %v1273 = vadd.f32 %v1209, -1.4531521
  %v1274 = vadd.f32 %v1210, -1.4531521
  %v1275 = vadd.f32 %v1211, -1.4531521
  %v1276 = vadd.f32 %v1212, -1.4531521
  %v1277 = vadd.f32 %v1213, -1.4531521
  %v1278 = vadd.f32 %v1214, -1.4531521
  %v1279 = vadd.f32 %v1215, -1.4531521
  %v1280 = vadd.f32 %v1216, -1.4531521
  %v1281 = vadd.f32 %v1217, -1.4531521
  %v1282 = vadd.f32 %v1218, -1.4531521
  %v1283 = vadd.f32 %v1219, -1.4531521
  %v1284 = vadd.f32 %v1220, -1.4531521
  %v1285 = vadd.f32 %v1221, -1.4531521
  %v1286 = vadd.f32 %v1222, -1.4531521
  %v1287 = vadd.f32 %v1223, -1.4531521
  %v1288 = vadd.f32 %v1224, -1.4531521
  %v1289 = vadd.f32 %v1225, -1.4531521
  %v1290 = vadd.f32 %v1226, -1.4531521
  %v1291 = vadd.f32 %v1227, -1.4531521
  %v1292 = vadd.f32 %v1228, -1.4531521
  %v1293 = vadd.f32 %v1229, -1.4531521
  %v1294 = vadd.f32 %v1230, -1.4531521
  %v1295 = vadd.f32 %v1231, -1.4531521
  %v1296 = vadd.f32 %v1232, -1.4531521
  %v1297 = vadd.f32 %v1233, -1.4531521
  %v1298 = vadd.f32 %v1234, -1.4531521
  %v1299 = vadd.f32 %v1235, -1.4531521
  %v1300 = vadd.f32 %v1236, -1.4531521
  %v1301 = vadd.f32 %v1237, -1.4531521
  %v1302 = vadd.f32 %v1238, -1.4531521
  %v1303 = vadd.f32 %v1239, -1.4531521
  %v1304 = vadd.f32 %v1240, -1.4531521
  %v1305 = vadd.f32 %v1241, -1.4531521
  %v1306 = vadd.f32 %v1242, -1.4531521
  %v1307 = vadd.f32 %v1243, -1.4531521
  %v1308 = vadd.f32 %v1244, -1.4531521
  %v1309 = vadd.f32 %v1245, -1.4531521
  %v1310 = vadd.f32 %v1246, -1.4531521
  %v1311 = vadd.f32 %v1247, -1.4531521
  %v1312 = vadd.f32 %v1248, -1.4531521
  %v1313 = vadd.f32 %v1249, -1.4531521
  %v1314 = vmul.f32 %v1250, %v1122
  %v1315 = vmul.f32 %v1251, %v1123
  %v1316 = vmul.f32 %v1252, %v1124
  %v1317 = vmul.f32 %v1253, %v1125
  %v1318 = vmul.f32 %v1254, %v1126
  %v1319 = vmul.f32 %v1255, %v1127
  %v1320 = vmul.f32 %v1256, %v1128
  %v1321 = vmul.f32 %v1257, %v1129
  %v1322 = vmul.f32 %v1258, %v1130
  %v1323 = vmul.f32 %v1259, %v1131
  %v1324 = vmul.f32 %v1260, %v1132
  %v1325 = vmul.f32 %v1261, %v1133
  %v1326 = vmul.f32 %v1262, %v1134
  %v1327 = vmul.f32 %v1263, %v1135
  %v1328 = vmul.f32 %v1264, %v1136
  %v1329 = vmul.f32 %v1265, %v1137
  %v1330 = vmul.f32 %v1266, %v1138
  %v1331 = vmul.f32 %v1267, %v1139
  %v1332 = vmul.f32 %v1268, %v1140
  %v1333 = vmul.f32 %v1269, %v1141
  %v1334 = vmul.f32 %v1270, %v1142
  %v1335 = vmul.f32 %v1271, %v1143
  %v1336 = vmul.f32 %v1272, %v1144
  %v1337 = vmul.f32 %v1273, %v1145
  %v1338 = vmul.f32 %v1274, %v1146
  %v1339 = vmul.f32 %v1275, %v1147
  %v1340 = vmul.f32 %v1276, %v1148
  %v1341 = vmul.f32 %v1277, %v1149
  %v1342 = vmul.f32 %v1278, %v1150
  %v1343 = vmul.f32 %v1279, %v1151
  %v1344 = vmul.f32 %v1280, %v1152
  %v1345 = vmul.f32 %v1281, %v1153
  %v1346 = vmul.f32 %v1282, %v1154
  %v1347 = vmul.f32 %v1283, %v1155
  %v1348 = vmul.f32 %v1284, %v1156
  %v1349 = vmul.f32 %v1285, %v1157
  %v1350 = vmul.f32 %v1286, %v1158
  %v1351 = vmul.f32 %v1287, %v1159
  %v1352 = vmul.f32 %v1288, %v1160
  %v1353 = vmul.f32 %v1289, %v1161
  %v1354 = vmul.f32 %v1290, %v1162
  %v1355 = vmul.f32 %v1291, %v1163
  %v1356 = vmul.f32 %v1292, %v1164
  %v1357 = vmul.f32 %v1293, %v1165
  %v1358 = vmul.f32 %v1294, %v1166
  %v1359 = vmul.f32 %v1295, %v1167
  %v1360 = vmul.f32 %v1296, %v1168
  %v1361 = vmul.f32 %v1297, %v1169
  %v1362 = vmul.f32 %v1298, %v1170
  %v1363 = vmul.f32 %v1299, %v1171
  %v1364 = vmul.f32 %v1300, %v1172
  %v1365 = vmul.f32 %v1301, %v1173
  %v1366 = vmul.f32 %v1302, %v1174
  %v1367 = vmul.f32 %v1303, %v1175
  %v1368 = vmul.f32 %v1304, %v1176
  %v1369 = vmul.f32 %v1305, %v1177
  %v1370 = vmul.f32 %v1306, %v1178
  %v1371 = vmul.f32 %v1307, %v1179
  %v1372 = vmul.f32 %v1308, %v1180
  %v1373 = vmul.f32 %v1309, %v1181
  %v1374 = vmul.f32 %v1310, %v1182
  %v1375 = vmul.f32 %v1311, %v1183
  %v1376 = vmul.f32 %v1312, %v1184
  %v1377 = vmul.f32 %v1313, %v1185
  %v1378 = vadd.f32 %v1314, 1.4214138
  %v1379 = vadd.f32 %v1315, 1.4214138
  %v1380 = vadd.f32 %v1316, 1.4214138
  %v1381 = vadd.f32 %v1317, 1.4214138
  %v1382 = vadd.f32 %v1318, 1.4214138
  %v1383 = vadd.f32 %v1319, 1.4214138
  %v1384 = vadd.f32 %v1320, 1.4214138
  %v1385 = vadd.f32 %v1321, 1.4214138
  %v1386 = vadd.f32 %v1322, 1.4214138
  %v1387 = vadd.f32 %v1323, 1.4214138
  %v1388 = vadd.f32 %v1324, 1.4214138
  %v1389 = vadd.f32 %v1325, 1.4214138
  %v1390 = vadd.f32 %v1326, 1.4214138
  %v1391 = vadd.f32 %v1327, 1.4214138
  %v1392 = vadd.f32 %v1328, 1.4214138
  %v1393 = vadd.f32 %v1329, 1.4214138
  %v1394 = vadd.f32 %v1330, 1.4214138
  %v1395 = vadd.f32 %v1331, 1.4214138
  %v1396 = vadd.f32 %v1332, 1.4214138
  %v1397 = vadd.f32 %v1333, 1.4214138
  %v1398 = vadd.f32 %v1334, 1.4214138
  %v1399 = vadd.f32 %v1335, 1.4214138
  %v1400 = vadd.f32 %v1336, 1.4214138
  %v1401 = vadd.f32 %v1337, 1.4214138
  %v1402 = vadd.f32 %v1338, 1.4214138
  %v1403 = vadd.f32 %v1339, 1.4214138
  %v1404 = vadd.f32 %v1340, 1.4214138
  %v1405 = vadd.f32 %v1341, 1.4214138
  %v1406 = vadd.f32 %v1342, 1.4214138
  %v1407 = vadd.f32 %v1343, 1.4214138
  %v1408 = vadd.f32 %v1344, 1.4214138
  %v1409 = vadd.f32 %v1345, 1.4214138
  %v1410 = vadd.f32 %v1346, 1.4214138
  %v1411 = vadd.f32 %v1347, 1.4214138
  %v1412 = vadd.f32 %v1348, 1.4214138
  %v1413 = vadd.f32 %v1349, 1.4214138
  %v1414 = vadd.f32 %v1350, 1.4214138
  %v1415 = vadd.f32 %v1351, 1.4214138
  %v1416 = vadd.f32 %v1352, 1.4214138
  %v1417 = vadd.f32 %v1353, 1.4214138
  %v1418 = vadd.f32 %v1354, 1.4214138
  %v1419 = vadd.f32 %v1355, 1.4214138
  %v1420 = vadd.f32 %v1356, 1.4214138
  %v1421 = vadd.f32 %v1357, 1.4214138
  %v1422 = vadd.f32 %v1358, 1.4214138
  %v1423 = vadd.f32 %v1359, 1.4214138
  %v1424 = vadd.f32 %v1360, 1.4214138
  %v1425 = vadd.f32 %v1361, 1.4214138
  %v1426 = vadd.f32 %v1362, 1.4214138
  %v1427 = vadd.f32 %v1363, 1.4214138
  %v1428 = vadd.f32 %v1364, 1.4214138
  %v1429 = vadd.f32 %v1365, 1.4214138
  %v1430 = vadd.f32 %v1366, 1.4214138
  %v1431 = vadd.f32 %v1367, 1.4214138
  %v1432 = vadd.f32 %v1368, 1.4214138
  %v1433 = vadd.f32 %v1369, 1.4214138
  %v1434 = vadd.f32 %v1370, 1.4214138
  %v1435 = vadd.f32 %v1371, 1.4214138
  %v1436 = vadd.f32 %v1372, 1.4214138
  %v1437 = vadd.f32 %v1373, 1.4214138
  %v1438 = vadd.f32 %v1374, 1.4214138
  %v1439 = vadd.f32 %v1375, 1.4214138
  %v1440 = vadd.f32 %v1376, 1.4214138
  %v1441 = vadd.f32 %v1377, 1.4214138
  %v1442 = vmul.f32 %v1378, %v1122
  %v1443 = vmul.f32 %v1379, %v1123
  %v1444 = vmul.f32 %v1380, %v1124
  %v1445 = vmul.f32 %v1381, %v1125
  %v1446 = vmul.f32 %v1382, %v1126
  %v1447 = vmul.f32 %v1383, %v1127
  %v1448 = vmul.f32 %v1384, %v1128
  %v1449 = vmul.f32 %v1385, %v1129
  %v1450 = vmul.f32 %v1386, %v1130
  %v1451 = vmul.f32 %v1387, %v1131
  %v1452 = vmul.f32 %v1388, %v1132
  %v1453 = vmul.f32 %v1389, %v1133
  %v1454 = vmul.f32 %v1390, %v1134
  %v1455 = vmul.f32 %v1391, %v1135
  %v1456 = vmul.f32 %v1392, %v1136
  %v1457 = vmul.f32 %v1393, %v1137
  %v1458 = vmul.f32 %v1394, %v1138
  %v1459 = vmul.f32 %v1395, %v1139
  %v1460 = vmul.f32 %v1396, %v1140
  %v1461 = vmul.f32 %v1397, %v1141
  %v1462 = vmul.f32 %v1398, %v1142
  %v1463 = vmul.f32 %v1399, %v1143
  %v1464 = vmul.f32 %v1400, %v1144
  %v1465 = vmul.f32 %v1401, %v1145
  %v1466 = vmul.f32 %v1402, %v1146
  %v1467 = vmul.f32 %v1403, %v1147
  %v1468 = vmul.f32 %v1404, %v1148
  %v1469 = vmul.f32 %v1405, %v1149
  %v1470 = vmul.f32 %v1406, %v1150
  %v1471 = vmul.f32 %v1407, %v1151
  %v1472 = vmul.f32 %v1408, %v1152
  %v1473 = vmul.f32 %v1409, %v1153
  %v1474 = vmul.f32 %v1410, %v1154
  %v1475 = vmul.f32 %v1411, %v1155
  %v1476 = vmul.f32 %v1412, %v1156
  %v1477 = vmul.f32 %v1413, %v1157
  %v1478 = vmul.f32 %v1414, %v1158
  %v1479 = vmul.f32 %v1415, %v1159
  %v1480 = vmul.f32 %v1416, %v1160
  %v1481 = vmul.f32 %v1417, %v1161
  %v1482 = vmul.f32 %v1418, %v1162
  %v1483 = vmul.f32 %v1419, %v1163
  %v1484 = vmul.f32 %v1420, %v1164
  %v1485 = vmul.f32 %v1421, %v1165
  %v1486 = vmul.f32 %v1422, %v1166
  %v1487 = vmul.f32 %v1423, %v1167
  %v1488 = vmul.f32 %v1424, %v1168
  %v1489 = vmul.f32 %v1425, %v1169
  %v1490 = vmul.f32 %v1426, %v1170
  %v1491 = vmul.f32 %v1427, %v1171
  %v1492 = vmul.f32 %v1428, %v1172
  %v1493 = vmul.f32 %v1429, %v1173
  %v1494 = vmul.f32 %v1430, %v1174
  %v1495 = vmul.f32 %v1431, %v1175
  %v1496 = vmul.f32 %v1432, %v1176
  %v1497 = vmul.f32 %v1433, %v1177
  %v1498 = vmul.f32 %v1434, %v1178
  %v1499 = vmul.f32 %v1435, %v1179
  %v1500 = vmul.f32 %v1436, %v1180
  %v1501 = vmul.f32 %v1437, %v1181
  %v1502 = vmul.f32 %v1438, %v1182
  %v1503 = vmul.f32 %v1439, %v1183
  %v1504 = vmul.f32 %v1440, %v1184
  %v1505 = vmul.f32 %v1441, %v1185
  %v1506 = vadd.f32 %v1442, -0.28449672
  %v1507 = vadd.f32 %v1443, -0.28449672
  %v1508 = vadd.f32 %v1444, -0.28449672
  %v1509 = vadd.f32 %v1445, -0.28449672
  %v1510 = vadd.f32 %v1446, -0.28449672
  %v1511 = vadd.f32 %v1447, -0.28449672
  %v1512 = vadd.f32 %v1448, -0.28449672
  %v1513 = vadd.f32 %v1449, -0.28449672
  %v1514 = vadd.f32 %v1450, -0.28449672
  %v1515 = vadd.f32 %v1451, -0.28449672
  %v1516 = vadd.f32 %v1452, -0.28449672
  %v1517 = vadd.f32 %v1453, -0.28449672
  %v1518 = vadd.f32 %v1454, -0.28449672
  %v1519 = vadd.f32 %v1455, -0.28449672
  %v1520 = vadd.f32 %v1456, -0.28449672
  %v1521 = vadd.f32 %v1457, -0.28449672
  %v1522 = vadd.f32 %v1458, -0.28449672
  %v1523 = vadd.f32 %v1459, -0.28449672
  %v1524 = vadd.f32 %v1460, -0.28449672
  %v1525 = vadd.f32 %v1461, -0.28449672
  %v1526 = vadd.f32 %v1462, -0.28449672
  %v1527 = vadd.f32 %v1463, -0.28449672
  %v1528 = vadd.f32 %v1464, -0.28449672
  %v1529 = vadd.f32 %v1465, -0.28449672
  %v1530 = vadd.f32 %v1466, -0.28449672
  %v1531 = vadd.f32 %v1467, -0.28449672
  %v1532 = vadd.f32 %v1468, -0.28449672
  %v1533 = vadd.f32 %v1469, -0.28449672
  %v1534 = vadd.f32 %v1470, -0.28449672
  %v1535 = vadd.f32 %v1471, -0.28449672
  %v1536 = vadd.f32 %v1472, -0.28449672
  %v1537 = vadd.f32 %v1473, -0.28449672
  %v1538 = vadd.f32 %v1474, -0.28449672
  %v1539 = vadd.f32 %v1475, -0.28449672
  %v1540 = vadd.f32 %v1476, -0.28449672
  %v1541 = vadd.f32 %v1477, -0.28449672
  %v1542 = vadd.f32 %v1478, -0.28449672
  %v1543 = vadd.f32 %v1479, -0.28449672
  %v1544 = vadd.f32 %v1480, -0.28449672
  %v1545 = vadd.f32 %v1481, -0.28449672
  %v1546 = vadd.f32 %v1482, -0.28449672
  %v1547 = vadd.f32 %v1483, -0.28449672
  %v1548 = vadd.f32 %v1484, -0.28449672
  %v1549 = vadd.f32 %v1485, -0.28449672
  %v1550 = vadd.f32 %v1486, -0.28449672
  %v1551 = vadd.f32 %v1487, -0.28449672
  %v1552 = vadd.f32 %v1488, -0.28449672
  %v1553 = vadd.f32 %v1489, -0.28449672
  %v1554 = vadd.f32 %v1490, -0.28449672
  %v1555 = vadd.f32 %v1491, -0.28449672
  %v1556 = vadd.f32 %v1492, -0.28449672
  %v1557 = vadd.f32 %v1493, -0.28449672
  %v1558 = vadd.f32 %v1494, -0.28449672
  %v1559 = vadd.f32 %v1495, -0.28449672
  %v1560 = vadd.f32 %v1496, -0.28449672
  %v1561 = vadd.f32 %v1497, -0.28449672
  %v1562 = vadd.f32 %v1498, -0.28449672
  %v1563 = vadd.f32 %v1499, -0.28449672
  %v1564 = vadd.f32 %v1500, -0.28449672
  %v1565 = vadd.f32 %v1501, -0.28449672
  %v1566 = vadd.f32 %v1502, -0.28449672
  %v1567 = vadd.f32 %v1503, -0.28449672
  %v1568 = vadd.f32 %v1504, -0.28449672
  %v1569 = vadd.f32 %v1505, -0.28449672
  %v1570 = vmul.f32 %v1506, %v1122
  %v1571 = vmul.f32 %v1507, %v1123
  %v1572 = vmul.f32 %v1508, %v1124
  %v1573 = vmul.f32 %v1509, %v1125
  %v1574 = vmul.f32 %v1510, %v1126
  %v1575 = vmul.f32 %v1511, %v1127
  %v1576 = vmul.f32 %v1512, %v1128
  %v1577 = vmul.f32 %v1513, %v1129
  %v1578 = vmul.f32 %v1514, %v1130
  %v1579 = vmul.f32 %v1515, %v1131
  %v1580 = vmul.f32 %v1516, %v1132
  %v1581 = vmul.f32 %v1517, %v1133
  %v1582 = vmul.f32 %v1518, %v1134
  %v1583 = vmul.f32 %v1519, %v1135
  %v1584 = vmul.f32 %v1520, %v1136
  %v1585 = vmul.f32 %v1521, %v1137
  %v1586 = vmul.f32 %v1522, %v1138
  %v1587 = vmul.f32 %v1523, %v1139
  %v1588 = vmul.f32 %v1524, %v1140
  %v1589 = vmul.f32 %v1525, %v1141
  %v1590 = vmul.f32 %v1526, %v1142
  %v1591 = vmul.f32 %v1527, %v1143
  %v1592 = vmul.f32 %v1528, %v1144
  %v1593 = vmul.f32 %v1529, %v1145
  %v1594 = vmul.f32 %v1530, %v1146
  %v1595 = vmul.f32 %v1531, %v1147
  %v1596 = vmul.f32 %v1532, %v1148
  %v1597 = vmul.f32 %v1533, %v1149
  %v1598 = vmul.f32 %v1534, %v1150
  %v1599 = vmul.f32 %v1535, %v1151
  %v1600 = vmul.f32 %v1536, %v1152
  %v1601 = vmul.f32 %v1537, %v1153
  %v1602 = vmul.f32 %v1538, %v1154
  %v1603 = vmul.f32 %v1539, %v1155
  %v1604 = vmul.f32 %v1540, %v1156
  %v1605 = vmul.f32 %v1541, %v1157
  %v1606 = vmul.f32 %v1542, %v1158
  %v1607 = vmul.f32 %v1543, %v1159
  %v1608 = vmul.f32 %v1544, %v1160
  %v1609 = vmul.f32 %v1545, %v1161
  %v1610 = vmul.f32 %v1546, %v1162
  %v1611 = vmul.f32 %v1547, %v1163
  %v1612 = vmul.f32 %v1548, %v1164
  %v1613 = vmul.f32 %v1549, %v1165
  %v1614 = vmul.f32 %v1550, %v1166
  %v1615 = vmul.f32 %v1551, %v1167
  %v1616 = vmul.f32 %v1552, %v1168
  %v1617 = vmul.f32 %v1553, %v1169
  %v1618 = vmul.f32 %v1554, %v1170
  %v1619 = vmul.f32 %v1555, %v1171
  %v1620 = vmul.f32 %v1556, %v1172
  %v1621 = vmul.f32 %v1557, %v1173
  %v1622 = vmul.f32 %v1558, %v1174
  %v1623 = vmul.f32 %v1559, %v1175
  %v1624 = vmul.f32 %v1560, %v1176
  %v1625 = vmul.f32 %v1561, %v1177
  %v1626 = vmul.f32 %v1562, %v1178
  %v1627 = vmul.f32 %v1563, %v1179
  %v1628 = vmul.f32 %v1564, %v1180
  %v1629 = vmul.f32 %v1565, %v1181
  %v1630 = vmul.f32 %v1566, %v1182
  %v1631 = vmul.f32 %v1567, %v1183
  %v1632 = vmul.f32 %v1568, %v1184
  %v1633 = vmul.f32 %v1569, %v1185
  %v1634 = vadd.f32 %v1570, 0.2548296
  %v1635 = vadd.f32 %v1571, 0.2548296
  %v1636 = vadd.f32 %v1572, 0.2548296
  %v1637 = vadd.f32 %v1573, 0.2548296
  %v1638 = vadd.f32 %v1574, 0.2548296
  %v1639 = vadd.f32 %v1575, 0.2548296
  %v1640 = vadd.f32 %v1576, 0.2548296
  %v1641 = vadd.f32 %v1577, 0.2548296
  %v1642 = vadd.f32 %v1578, 0.2548296
  %v1643 = vadd.f32 %v1579, 0.2548296
  %v1644 = vadd.f32 %v1580, 0.2548296
  %v1645 = vadd.f32 %v1581, 0.2548296
  %v1646 = vadd.f32 %v1582, 0.2548296
  %v1647 = vadd.f32 %v1583, 0.2548296
  %v1648 = vadd.f32 %v1584, 0.2548296
  %v1649 = vadd.f32 %v1585, 0.2548296
  %v1650 = vadd.f32 %v1586, 0.2548296
  %v1651 = vadd.f32 %v1587, 0.2548296
  %v1652 = vadd.f32 %v1588, 0.2548296
  %v1653 = vadd.f32 %v1589, 0.2548296
  %v1654 = vadd.f32 %v1590, 0.2548296
  %v1655 = vadd.f32 %v1591, 0.2548296
  %v1656 = vadd.f32 %v1592, 0.2548296
  %v1657 = vadd.f32 %v1593, 0.2548296
  %v1658 = vadd.f32 %v1594, 0.2548296
  %v1659 = vadd.f32 %v1595, 0.2548296
  %v1660 = vadd.f32 %v1596, 0.2548296
  %v1661 = vadd.f32 %v1597, 0.2548296
  %v1662 = vadd.f32 %v1598, 0.2548296
  %v1663 = vadd.f32 %v1599, 0.2548296
  %v1664 = vadd.f32 %v1600, 0.2548296
  %v1665 = vadd.f32 %v1601, 0.2548296
  %v1666 = vadd.f32 %v1602, 0.2548296
  %v1667 = vadd.f32 %v1603, 0.2548296
  %v1668 = vadd.f32 %v1604, 0.2548296
  %v1669 = vadd.f32 %v1605, 0.2548296
  %v1670 = vadd.f32 %v1606, 0.2548296
  %v1671 = vadd.f32 %v1607, 0.2548296
  %v1672 = vadd.f32 %v1608, 0.2548296
  %v1673 = vadd.f32 %v1609, 0.2548296
  %v1674 = vadd.f32 %v1610, 0.2548296
  %v1675 = vadd.f32 %v1611, 0.2548296
  %v1676 = vadd.f32 %v1612, 0.2548296
  %v1677 = vadd.f32 %v1613, 0.2548296
  %v1678 = vadd.f32 %v1614, 0.2548296
  %v1679 = vadd.f32 %v1615, 0.2548296
  %v1680 = vadd.f32 %v1616, 0.2548296
  %v1681 = vadd.f32 %v1617, 0.2548296
  %v1682 = vadd.f32 %v1618, 0.2548296
  %v1683 = vadd.f32 %v1619, 0.2548296
  %v1684 = vadd.f32 %v1620, 0.2548296
  %v1685 = vadd.f32 %v1621, 0.2548296
  %v1686 = vadd.f32 %v1622, 0.2548296
  %v1687 = vadd.f32 %v1623, 0.2548296
  %v1688 = vadd.f32 %v1624, 0.2548296
  %v1689 = vadd.f32 %v1625, 0.2548296
  %v1690 = vadd.f32 %v1626, 0.2548296
  %v1691 = vadd.f32 %v1627, 0.2548296
  %v1692 = vadd.f32 %v1628, 0.2548296
  %v1693 = vadd.f32 %v1629, 0.2548296
  %v1694 = vadd.f32 %v1630, 0.2548296
  %v1695 = vadd.f32 %v1631, 0.2548296
  %v1696 = vadd.f32 %v1632, 0.2548296
  %v1697 = vadd.f32 %v1633, 0.2548296
  %v1698 = vmul.f32 %v1634, %v1122
  %v1699 = vmul.f32 %v1635, %v1123
  %v1700 = vmul.f32 %v1636, %v1124
  %v1701 = vmul.f32 %v1637, %v1125
  %v1702 = vmul.f32 %v1638, %v1126
  %v1703 = vmul.f32 %v1639, %v1127
  %v1704 = vmul.f32 %v1640, %v1128
  %v1705 = vmul.f32 %v1641, %v1129
  %v1706 = vmul.f32 %v1642, %v1130
  %v1707 = vmul.f32 %v1643, %v1131
  %v1708 = vmul.f32 %v1644, %v1132
  %v1709 = vmul.f32 %v1645, %v1133
  %v1710 = vmul.f32 %v1646, %v1134
  %v1711 = vmul.f32 %v1647, %v1135
  %v1712 = vmul.f32 %v1648, %v1136
  %v1713 = vmul.f32 %v1649, %v1137
  %v1714 = vmul.f32 %v1650, %v1138
  %v1715 = vmul.f32 %v1651, %v1139
  %v1716 = vmul.f32 %v1652, %v1140
  %v1717 = vmul.f32 %v1653, %v1141
  %v1718 = vmul.f32 %v1654, %v1142
  %v1719 = vmul.f32 %v1655, %v1143
  %v1720 = vmul.f32 %v1656, %v1144
  %v1721 = vmul.f32 %v1657, %v1145
  %v1722 = vmul.f32 %v1658, %v1146
  %v1723 = vmul.f32 %v1659, %v1147
  %v1724 = vmul.f32 %v1660, %v1148
  %v1725 = vmul.f32 %v1661, %v1149
  %v1726 = vmul.f32 %v1662, %v1150
  %v1727 = vmul.f32 %v1663, %v1151
  %v1728 = vmul.f32 %v1664, %v1152
  %v1729 = vmul.f32 %v1665, %v1153
  %v1730 = vmul.f32 %v1666, %v1154
  %v1731 = vmul.f32 %v1667, %v1155
  %v1732 = vmul.f32 %v1668, %v1156
  %v1733 = vmul.f32 %v1669, %v1157
  %v1734 = vmul.f32 %v1670, %v1158
  %v1735 = vmul.f32 %v1671, %v1159
  %v1736 = vmul.f32 %v1672, %v1160
  %v1737 = vmul.f32 %v1673, %v1161
  %v1738 = vmul.f32 %v1674, %v1162
  %v1739 = vmul.f32 %v1675, %v1163
  %v1740 = vmul.f32 %v1676, %v1164
  %v1741 = vmul.f32 %v1677, %v1165
  %v1742 = vmul.f32 %v1678, %v1166
  %v1743 = vmul.f32 %v1679, %v1167
  %v1744 = vmul.f32 %v1680, %v1168
  %v1745 = vmul.f32 %v1681, %v1169
  %v1746 = vmul.f32 %v1682, %v1170
  %v1747 = vmul.f32 %v1683, %v1171
  %v1748 = vmul.f32 %v1684, %v1172
  %v1749 = vmul.f32 %v1685, %v1173
  %v1750 = vmul.f32 %v1686, %v1174
  %v1751 = vmul.f32 %v1687, %v1175
  %v1752 = vmul.f32 %v1688, %v1176
  %v1753 = vmul.f32 %v1689, %v1177
  %v1754 = vmul.f32 %v1690, %v1178
  %v1755 = vmul.f32 %v1691, %v1179
  %v1756 = vmul.f32 %v1692, %v1180
  %v1757 = vmul.f32 %v1693, %v1181
  %v1758 = vmul.f32 %v1694, %v1182
  %v1759 = vmul.f32 %v1695, %v1183
  %v1760 = vmul.f32 %v1696, %v1184
  %v1761 = vmul.f32 %v1697, %v1185
  %v1762 = vsub.f32 0.0, %v930
  %v1763 = vsub.f32 0.0, %v931
  %v1764 = vsub.f32 0.0, %v932
  %v1765 = vsub.f32 0.0, %v933
  %v1766 = vsub.f32 0.0, %v934
  %v1767 = vsub.f32 0.0, %v935
  %v1768 = vsub.f32 0.0, %v936
  %v1769 = vsub.f32 0.0, %v937
  %v1770 = vsub.f32 0.0, %v938
  %v1771 = vsub.f32 0.0, %v939
  %v1772 = vsub.f32 0.0, %v940
  %v1773 = vsub.f32 0.0, %v941
  %v1774 = vsub.f32 0.0, %v942
  %v1775 = vsub.f32 0.0, %v943
  %v1776 = vsub.f32 0.0, %v944
  %v1777 = vsub.f32 0.0, %v945
  %v1778 = vsub.f32 0.0, %v946
  %v1779 = vsub.f32 0.0, %v947
  %v1780 = vsub.f32 0.0, %v948
  %v1781 = vsub.f32 0.0, %v949
  %v1782 = vsub.f32 0.0, %v950
  %v1783 = vsub.f32 0.0, %v951
  %v1784 = vsub.f32 0.0, %v952
  %v1785 = vsub.f32 0.0, %v953
  %v1786 = vsub.f32 0.0, %v954
  %v1787 = vsub.f32 0.0, %v955
  %v1788 = vsub.f32 0.0, %v956
  %v1789 = vsub.f32 0.0, %v957
  %v1790 = vsub.f32 0.0, %v958
  %v1791 = vsub.f32 0.0, %v959
  %v1792 = vsub.f32 0.0, %v960
  %v1793 = vsub.f32 0.0, %v961
  %v1794 = vsub.f32 0.0, %v962
  %v1795 = vsub.f32 0.0, %v963
  %v1796 = vsub.f32 0.0, %v964
  %v1797 = vsub.f32 0.0, %v965
  %v1798 = vsub.f32 0.0, %v966
  %v1799 = vsub.f32 0.0, %v967
  %v1800 = vsub.f32 0.0, %v968
  %v1801 = vsub.f32 0.0, %v969
  %v1802 = vsub.f32 0.0, %v970
  %v1803 = vsub.f32 0.0, %v971
  %v1804 = vsub.f32 0.0, %v972
  %v1805 = vsub.f32 0.0, %v973
  %v1806 = vsub.f32 0.0, %v974
  %v1807 = vsub.f32 0.0, %v975
  %v1808 = vsub.f32 0.0, %v976
  %v1809 = vsub.f32 0.0, %v977
  %v1810 = vsub.f32 0.0, %v978
  %v1811 = vsub.f32 0.0, %v979
  %v1812 = vsub.f32 0.0, %v980
  %v1813 = vsub.f32 0.0, %v981
  %v1814 = vsub.f32 0.0, %v982
  %v1815 = vsub.f32 0.0, %v983
  %v1816 = vsub.f32 0.0, %v984
  %v1817 = vsub.f32 0.0, %v985
  %v1818 = vsub.f32 0.0, %v986
  %v1819 = vsub.f32 0.0, %v987
  %v1820 = vsub.f32 0.0, %v988
  %v1821 = vsub.f32 0.0, %v989
  %v1822 = vsub.f32 0.0, %v990
  %v1823 = vsub.f32 0.0, %v991
  %v1824 = vsub.f32 0.0, %v992
  %v1825 = vsub.f32 0.0, %v993
  %v1826 = vmul.f32 %v1762, %v930
  %v1827 = vmul.f32 %v1763, %v931
  %v1828 = vmul.f32 %v1764, %v932
  %v1829 = vmul.f32 %v1765, %v933
  %v1830 = vmul.f32 %v1766, %v934
  %v1831 = vmul.f32 %v1767, %v935
  %v1832 = vmul.f32 %v1768, %v936
  %v1833 = vmul.f32 %v1769, %v937
  %v1834 = vmul.f32 %v1770, %v938
  %v1835 = vmul.f32 %v1771, %v939
  %v1836 = vmul.f32 %v1772, %v940
  %v1837 = vmul.f32 %v1773, %v941
  %v1838 = vmul.f32 %v1774, %v942
  %v1839 = vmul.f32 %v1775, %v943
  %v1840 = vmul.f32 %v1776, %v944
  %v1841 = vmul.f32 %v1777, %v945
  %v1842 = vmul.f32 %v1778, %v946
  %v1843 = vmul.f32 %v1779, %v947
  %v1844 = vmul.f32 %v1780, %v948
  %v1845 = vmul.f32 %v1781, %v949
  %v1846 = vmul.f32 %v1782, %v950
  %v1847 = vmul.f32 %v1783, %v951
  %v1848 = vmul.f32 %v1784, %v952
  %v1849 = vmul.f32 %v1785, %v953
  %v1850 = vmul.f32 %v1786, %v954
  %v1851 = vmul.f32 %v1787, %v955
  %v1852 = vmul.f32 %v1788, %v956
  %v1853 = vmul.f32 %v1789, %v957
  %v1854 = vmul.f32 %v1790, %v958
  %v1855 = vmul.f32 %v1791, %v959
  %v1856 = vmul.f32 %v1792, %v960
  %v1857 = vmul.f32 %v1793, %v961
  %v1858 = vmul.f32 %v1794, %v962
  %v1859 = vmul.f32 %v1795, %v963
  %v1860 = vmul.f32 %v1796, %v964
  %v1861 = vmul.f32 %v1797, %v965
  %v1862 = vmul.f32 %v1798, %v966
  %v1863 = vmul.f32 %v1799, %v967
  %v1864 = vmul.f32 %v1800, %v968
  %v1865 = vmul.f32 %v1801, %v969
  %v1866 = vmul.f32 %v1802, %v970
  %v1867 = vmul.f32 %v1803, %v971
  %v1868 = vmul.f32 %v1804, %v972
  %v1869 = vmul.f32 %v1805, %v973
  %v1870 = vmul.f32 %v1806, %v974
  %v1871 = vmul.f32 %v1807, %v975
  %v1872 = vmul.f32 %v1808, %v976
  %v1873 = vmul.f32 %v1809, %v977
  %v1874 = vmul.f32 %v1810, %v978
  %v1875 = vmul.f32 %v1811, %v979
  %v1876 = vmul.f32 %v1812, %v980
  %v1877 = vmul.f32 %v1813, %v981
  %v1878 = vmul.f32 %v1814, %v982
  %v1879 = vmul.f32 %v1815, %v983
  %v1880 = vmul.f32 %v1816, %v984
  %v1881 = vmul.f32 %v1817, %v985
  %v1882 = vmul.f32 %v1818, %v986
  %v1883 = vmul.f32 %v1819, %v987
  %v1884 = vmul.f32 %v1820, %v988
  %v1885 = vmul.f32 %v1821, %v989
  %v1886 = vmul.f32 %v1822, %v990
  %v1887 = vmul.f32 %v1823, %v991
  %v1888 = vmul.f32 %v1824, %v992
  %v1889 = vmul.f32 %v1825, %v993
  %v1890 = vmul.f32 %v1826, 1.442695
  %v1891 = vpow.pop %v1890
  %v1892 = vmul.f32 %v1827, 1.442695
  %v1893 = vpow.pop %v1892
  %v1894 = vmul.f32 %v1828, 1.442695
  %v1895 = vpow.pop %v1894
  %v1896 = vmul.f32 %v1829, 1.442695
  %v1897 = vpow.pop %v1896
  %v1898 = vmul.f32 %v1830, 1.442695
  %v1899 = vpow.pop %v1898
  %v1900 = vmul.f32 %v1831, 1.442695
  %v1901 = vpow.pop %v1900
  %v1902 = vmul.f32 %v1832, 1.442695
  %v1903 = vpow.pop %v1902
  %v1904 = vmul.f32 %v1833, 1.442695
  %v1905 = vpow.pop %v1904
  %v1906 = vmul.f32 %v1834, 1.442695
  %v1907 = vpow.pop %v1906
  %v1908 = vmul.f32 %v1835, 1.442695
  %v1909 = vpow.pop %v1908
  %v1910 = vmul.f32 %v1836, 1.442695
  %v1911 = vpow.pop %v1910
  %v1912 = vmul.f32 %v1837, 1.442695
  %v1913 = vpow.pop %v1912
  %v1914 = vmul.f32 %v1838, 1.442695
  %v1915 = vpow.pop %v1914
  %v1916 = vmul.f32 %v1839, 1.442695
  %v1917 = vpow.pop %v1916
  %v1918 = vmul.f32 %v1840, 1.442695
  %v1919 = vpow.pop %v1918
  %v1920 = vmul.f32 %v1841, 1.442695
  %v1921 = vpow.pop %v1920
  %v1922 = vmul.f32 %v1842, 1.442695
  %v1923 = vpow.pop %v1922
  %v1924 = vmul.f32 %v1843, 1.442695
  %v1925 = vpow.pop %v1924
  %v1926 = vmul.f32 %v1844, 1.442695
  %v1927 = vpow.pop %v1926
  %v1928 = vmul.f32 %v1845, 1.442695
  %v1929 = vpow.pop %v1928
  %v1930 = vmul.f32 %v1846, 1.442695
  %v1931 = vpow.pop %v1930
  %v1932 = vmul.f32 %v1847, 1.442695
  %v1933 = vpow.pop %v1932
  %v1934 = vmul.f32 %v1848, 1.442695
  %v1935 = vpow.pop %v1934
  %v1936 = vmul.f32 %v1849, 1.442695
  %v1937 = vpow.pop %v1936
  %v1938 = vmul.f32 %v1850, 1.442695
  %v1939 = vpow.pop %v1938
  %v1940 = vmul.f32 %v1851, 1.442695
  %v1941 = vpow.pop %v1940
  %v1942 = vmul.f32 %v1852, 1.442695
  %v1943 = vpow.pop %v1942
  %v1944 = vmul.f32 %v1853, 1.442695
  %v1945 = vpow.pop %v1944
  %v1946 = vmul.f32 %v1854, 1.442695
  %v1947 = vpow.pop %v1946
  %v1948 = vmul.f32 %v1855, 1.442695
  %v1949 = vpow.pop %v1948
  %v1950 = vmul.f32 %v1856, 1.442695
  %v1951 = vpow.pop %v1950
  %v1952 = vmul.f32 %v1857, 1.442695
  %v1953 = vpow.pop %v1952
  %v1954 = vmul.f32 %v1858, 1.442695
  %v1955 = vpow.pop %v1954
  %v1956 = vmul.f32 %v1859, 1.442695
  %v1957 = vpow.pop %v1956
  %v1958 = vmul.f32 %v1860, 1.442695
  %v1959 = vpow.pop %v1958
  %v1960 = vmul.f32 %v1861, 1.442695
  %v1961 = vpow.pop %v1960
  %v1962 = vmul.f32 %v1862, 1.442695
  %v1963 = vpow.pop %v1962
  %v1964 = vmul.f32 %v1863, 1.442695
  %v1965 = vpow.pop %v1964
  %v1966 = vmul.f32 %v1864, 1.442695
  %v1967 = vpow.pop %v1966
  %v1968 = vmul.f32 %v1865, 1.442695
  %v1969 = vpow.pop %v1968
  %v1970 = vmul.f32 %v1866, 1.442695
  %v1971 = vpow.pop %v1970
  %v1972 = vmul.f32 %v1867, 1.442695
  %v1973 = vpow.pop %v1972
  %v1974 = vmul.f32 %v1868, 1.442695
  %v1975 = vpow.pop %v1974
  %v1976 = vmul.f32 %v1869, 1.442695
  %v1977 = vpow.pop %v1976
  %v1978 = vmul.f32 %v1870, 1.442695
  %v1979 = vpow.pop %v1978
  %v1980 = vmul.f32 %v1871, 1.442695
  %v1981 = vpow.pop %v1980
  %v1982 = vmul.f32 %v1872, 1.442695
  %v1983 = vpow.pop %v1982
  %v1984 = vmul.f32 %v1873, 1.442695
  %v1985 = vpow.pop %v1984
  %v1986 = vmul.f32 %v1874, 1.442695
  %v1987 = vpow.pop %v1986
  %v1988 = vmul.f32 %v1875, 1.442695
  %v1989 = vpow.pop %v1988
  %v1990 = vmul.f32 %v1876, 1.442695
  %v1991 = vpow.pop %v1990
  %v1992 = vmul.f32 %v1877, 1.442695
  %v1993 = vpow.pop %v1992
  %v1994 = vmul.f32 %v1878, 1.442695
  %v1995 = vpow.pop %v1994
  %v1996 = vmul.f32 %v1879, 1.442695
  %v1997 = vpow.pop %v1996
  %v1998 = vmul.f32 %v1880, 1.442695
  %v1999 = vpow.pop %v1998
  %v2000 = vmul.f32 %v1881, 1.442695
  %v2001 = vpow.pop %v2000
  %v2002 = vmul.f32 %v1882, 1.442695
  %v2003 = vpow.pop %v2002
  %v2004 = vmul.f32 %v1883, 1.442695
  %v2005 = vpow.pop %v2004
  %v2006 = vmul.f32 %v1884, 1.442695
  %v2007 = vpow.pop %v2006
  %v2008 = vmul.f32 %v1885, 1.442695
  %v2009 = vpow.pop %v2008
  %v2010 = vmul.f32 %v1886, 1.442695
  %v2011 = vpow.pop %v2010
  %v2012 = vmul.f32 %v1887, 1.442695
  %v2013 = vpow.pop %v2012
  %v2014 = vmul.f32 %v1888, 1.442695
  %v2015 = vpow.pop %v2014
  %v2016 = vmul.f32 %v1889, 1.442695
  %v2017 = vpow.pop %v2016
  %v2018 = vmul.f32 %v1698, %v1891
  %v2019 = vmul.f32 %v1699, %v1893
  %v2020 = vmul.f32 %v1700, %v1895
  %v2021 = vmul.f32 %v1701, %v1897
  %v2022 = vmul.f32 %v1702, %v1899
  %v2023 = vmul.f32 %v1703, %v1901
  %v2024 = vmul.f32 %v1704, %v1903
  %v2025 = vmul.f32 %v1705, %v1905
  %v2026 = vmul.f32 %v1706, %v1907
  %v2027 = vmul.f32 %v1707, %v1909
  %v2028 = vmul.f32 %v1708, %v1911
  %v2029 = vmul.f32 %v1709, %v1913
  %v2030 = vmul.f32 %v1710, %v1915
  %v2031 = vmul.f32 %v1711, %v1917
  %v2032 = vmul.f32 %v1712, %v1919
  %v2033 = vmul.f32 %v1713, %v1921
  %v2034 = vmul.f32 %v1714, %v1923
  %v2035 = vmul.f32 %v1715, %v1925
  %v2036 = vmul.f32 %v1716, %v1927
  %v2037 = vmul.f32 %v1717, %v1929
  %v2038 = vmul.f32 %v1718, %v1931
  %v2039 = vmul.f32 %v1719, %v1933
  %v2040 = vmul.f32 %v1720, %v1935
  %v2041 = vmul.f32 %v1721, %v1937
  %v2042 = vmul.f32 %v1722, %v1939
  %v2043 = vmul.f32 %v1723, %v1941
  %v2044 = vmul.f32 %v1724, %v1943
  %v2045 = vmul.f32 %v1725, %v1945
  %v2046 = vmul.f32 %v1726, %v1947
  %v2047 = vmul.f32 %v1727, %v1949
  %v2048 = vmul.f32 %v1728, %v1951
  %v2049 = vmul.f32 %v1729, %v1953
  %v2050 = vmul.f32 %v1730, %v1955
  %v2051 = vmul.f32 %v1731, %v1957
  %v2052 = vmul.f32 %v1732, %v1959
  %v2053 = vmul.f32 %v1733, %v1961
  %v2054 = vmul.f32 %v1734, %v1963
  %v2055 = vmul.f32 %v1735, %v1965
  %v2056 = vmul.f32 %v1736, %v1967
  %v2057 = vmul.f32 %v1737, %v1969
  %v2058 = vmul.f32 %v1738, %v1971
  %v2059 = vmul.f32 %v1739, %v1973
  %v2060 = vmul.f32 %v1740, %v1975
  %v2061 = vmul.f32 %v1741, %v1977
  %v2062 = vmul.f32 %v1742, %v1979
  %v2063 = vmul.f32 %v1743, %v1981
  %v2064 = vmul.f32 %v1744, %v1983
  %v2065 = vmul.f32 %v1745, %v1985
  %v2066 = vmul.f32 %v1746, %v1987
  %v2067 = vmul.f32 %v1747, %v1989
  %v2068 = vmul.f32 %v1748, %v1991
  %v2069 = vmul.f32 %v1749, %v1993
  %v2070 = vmul.f32 %v1750, %v1995
  %v2071 = vmul.f32 %v1751, %v1997
  %v2072 = vmul.f32 %v1752, %v1999
  %v2073 = vmul.f32 %v1753, %v2001
  %v2074 = vmul.f32 %v1754, %v2003
  %v2075 = vmul.f32 %v1755, %v2005
  %v2076 = vmul.f32 %v1756, %v2007
  %v2077 = vmul.f32 %v1757, %v2009
  %v2078 = vmul.f32 %v1758, %v2011
  %v2079 = vmul.f32 %v1759, %v2013
  %v2080 = vmul.f32 %v1760, %v2015
  %v2081 = vmul.f32 %v1761, %v2017
  %v2082 = vsub.f32 1.0, %v2018
  %v2083 = vsub.f32 1.0, %v2019
  %v2084 = vsub.f32 1.0, %v2020
  %v2085 = vsub.f32 1.0, %v2021
  %v2086 = vsub.f32 1.0, %v2022
  %v2087 = vsub.f32 1.0, %v2023
  %v2088 = vsub.f32 1.0, %v2024
  %v2089 = vsub.f32 1.0, %v2025
  %v2090 = vsub.f32 1.0, %v2026
  %v2091 = vsub.f32 1.0, %v2027
  %v2092 = vsub.f32 1.0, %v2028
  %v2093 = vsub.f32 1.0, %v2029
  %v2094 = vsub.f32 1.0, %v2030
  %v2095 = vsub.f32 1.0, %v2031
  %v2096 = vsub.f32 1.0, %v2032
  %v2097 = vsub.f32 1.0, %v2033
  %v2098 = vsub.f32 1.0, %v2034
  %v2099 = vsub.f32 1.0, %v2035
  %v2100 = vsub.f32 1.0, %v2036
  %v2101 = vsub.f32 1.0, %v2037
  %v2102 = vsub.f32 1.0, %v2038
  %v2103 = vsub.f32 1.0, %v2039
  %v2104 = vsub.f32 1.0, %v2040
  %v2105 = vsub.f32 1.0, %v2041
  %v2106 = vsub.f32 1.0, %v2042
  %v2107 = vsub.f32 1.0, %v2043
  %v2108 = vsub.f32 1.0, %v2044
  %v2109 = vsub.f32 1.0, %v2045
  %v2110 = vsub.f32 1.0, %v2046
  %v2111 = vsub.f32 1.0, %v2047
  %v2112 = vsub.f32 1.0, %v2048
  %v2113 = vsub.f32 1.0, %v2049
  %v2114 = vsub.f32 1.0, %v2050
  %v2115 = vsub.f32 1.0, %v2051
  %v2116 = vsub.f32 1.0, %v2052
  %v2117 = vsub.f32 1.0, %v2053
  %v2118 = vsub.f32 1.0, %v2054
  %v2119 = vsub.f32 1.0, %v2055
  %v2120 = vsub.f32 1.0, %v2056
  %v2121 = vsub.f32 1.0, %v2057
  %v2122 = vsub.f32 1.0, %v2058
  %v2123 = vsub.f32 1.0, %v2059
  %v2124 = vsub.f32 1.0, %v2060
  %v2125 = vsub.f32 1.0, %v2061
  %v2126 = vsub.f32 1.0, %v2062
  %v2127 = vsub.f32 1.0, %v2063
  %v2128 = vsub.f32 1.0, %v2064
  %v2129 = vsub.f32 1.0, %v2065
  %v2130 = vsub.f32 1.0, %v2066
  %v2131 = vsub.f32 1.0, %v2067
  %v2132 = vsub.f32 1.0, %v2068
  %v2133 = vsub.f32 1.0, %v2069
  %v2134 = vsub.f32 1.0, %v2070
  %v2135 = vsub.f32 1.0, %v2071
  %v2136 = vsub.f32 1.0, %v2072
  %v2137 = vsub.f32 1.0, %v2073
  %v2138 = vsub.f32 1.0, %v2074
  %v2139 = vsub.f32 1.0, %v2075
  %v2140 = vsub.f32 1.0, %v2076
  %v2141 = vsub.f32 1.0, %v2077
  %v2142 = vsub.f32 1.0, %v2078
  %v2143 = vsub.f32 1.0, %v2079
  %v2144 = vsub.f32 1.0, %v2080
  %v2145 = vsub.f32 1.0, %v2081
  %v2146 = vmul.f32 %v866, %v2082
  %v2147 = vmul.f32 %v867, %v2083
  %v2148 = vmul.f32 %v868, %v2084
  %v2149 = vmul.f32 %v869, %v2085
  %v2150 = vmul.f32 %v870, %v2086
  %v2151 = vmul.f32 %v871, %v2087
  %v2152 = vmul.f32 %v872, %v2088
  %v2153 = vmul.f32 %v873, %v2089
  %v2154 = vmul.f32 %v874, %v2090
  %v2155 = vmul.f32 %v875, %v2091
  %v2156 = vmul.f32 %v876, %v2092
  %v2157 = vmul.f32 %v877, %v2093
  %v2158 = vmul.f32 %v878, %v2094
  %v2159 = vmul.f32 %v879, %v2095
  %v2160 = vmul.f32 %v880, %v2096
  %v2161 = vmul.f32 %v881, %v2097
  %v2162 = vmul.f32 %v882, %v2098
  %v2163 = vmul.f32 %v883, %v2099
  %v2164 = vmul.f32 %v884, %v2100
  %v2165 = vmul.f32 %v885, %v2101
  %v2166 = vmul.f32 %v886, %v2102
  %v2167 = vmul.f32 %v887, %v2103
  %v2168 = vmul.f32 %v888, %v2104
  %v2169 = vmul.f32 %v889, %v2105
  %v2170 = vmul.f32 %v890, %v2106
  %v2171 = vmul.f32 %v891, %v2107
  %v2172 = vmul.f32 %v892, %v2108
  %v2173 = vmul.f32 %v893, %v2109
  %v2174 = vmul.f32 %v894, %v2110
  %v2175 = vmul.f32 %v895, %v2111
  %v2176 = vmul.f32 %v896, %v2112
  %v2177 = vmul.f32 %v897, %v2113
  %v2178 = vmul.f32 %v898, %v2114
  %v2179 = vmul.f32 %v899, %v2115
  %v2180 = vmul.f32 %v900, %v2116
  %v2181 = vmul.f32 %v901, %v2117
  %v2182 = vmul.f32 %v902, %v2118
  %v2183 = vmul.f32 %v903, %v2119
  %v2184 = vmul.f32 %v904, %v2120
  %v2185 = vmul.f32 %v905, %v2121
  %v2186 = vmul.f32 %v906, %v2122
  %v2187 = vmul.f32 %v907, %v2123
  %v2188 = vmul.f32 %v908, %v2124
  %v2189 = vmul.f32 %v909, %v2125
  %v2190 = vmul.f32 %v910, %v2126
  %v2191 = vmul.f32 %v911, %v2127
  %v2192 = vmul.f32 %v912, %v2128
  %v2193 = vmul.f32 %v913, %v2129
  %v2194 = vmul.f32 %v914, %v2130
  %v2195 = vmul.f32 %v915, %v2131
  %v2196 = vmul.f32 %v916, %v2132
  %v2197 = vmul.f32 %v917, %v2133
  %v2198 = vmul.f32 %v918, %v2134
  %v2199 = vmul.f32 %v919, %v2135
  %v2200 = vmul.f32 %v920, %v2136
  %v2201 = vmul.f32 %v921, %v2137
  %v2202 = vmul.f32 %v922, %v2138
  %v2203 = vmul.f32 %v923, %v2139
  %v2204 = vmul.f32 %v924, %v2140
  %v2205 = vmul.f32 %v925, %v2141
  %v2206 = vmul.f32 %v926, %v2142
  %v2207 = vmul.f32 %v927, %v2143
  %v2208 = vmul.f32 %v928, %v2144
  %v2209 = vmul.f32 %v929, %v2145
  %v2210 = vadd.f32 %v2146, 1.0
  %v2211 = vadd.f32 %v2147, 1.0
  %v2212 = vadd.f32 %v2148, 1.0
  %v2213 = vadd.f32 %v2149, 1.0
  %v2214 = vadd.f32 %v2150, 1.0
  %v2215 = vadd.f32 %v2151, 1.0
  %v2216 = vadd.f32 %v2152, 1.0
  %v2217 = vadd.f32 %v2153, 1.0
  %v2218 = vadd.f32 %v2154, 1.0
  %v2219 = vadd.f32 %v2155, 1.0
  %v2220 = vadd.f32 %v2156, 1.0
  %v2221 = vadd.f32 %v2157, 1.0
  %v2222 = vadd.f32 %v2158, 1.0
  %v2223 = vadd.f32 %v2159, 1.0
  %v2224 = vadd.f32 %v2160, 1.0
  %v2225 = vadd.f32 %v2161, 1.0
  %v2226 = vadd.f32 %v2162, 1.0
  %v2227 = vadd.f32 %v2163, 1.0
  %v2228 = vadd.f32 %v2164, 1.0
  %v2229 = vadd.f32 %v2165, 1.0
  %v2230 = vadd.f32 %v2166, 1.0
  %v2231 = vadd.f32 %v2167, 1.0
  %v2232 = vadd.f32 %v2168, 1.0
  %v2233 = vadd.f32 %v2169, 1.0
  %v2234 = vadd.f32 %v2170, 1.0
  %v2235 = vadd.f32 %v2171, 1.0
  %v2236 = vadd.f32 %v2172, 1.0
  %v2237 = vadd.f32 %v2173, 1.0
  %v2238 = vadd.f32 %v2174, 1.0
  %v2239 = vadd.f32 %v2175, 1.0
  %v2240 = vadd.f32 %v2176, 1.0
  %v2241 = vadd.f32 %v2177, 1.0
  %v2242 = vadd.f32 %v2178, 1.0
  %v2243 = vadd.f32 %v2179, 1.0
  %v2244 = vadd.f32 %v2180, 1.0
  %v2245 = vadd.f32 %v2181, 1.0
  %v2246 = vadd.f32 %v2182, 1.0
  %v2247 = vadd.f32 %v2183, 1.0
  %v2248 = vadd.f32 %v2184, 1.0
  %v2249 = vadd.f32 %v2185, 1.0
  %v2250 = vadd.f32 %v2186, 1.0
  %v2251 = vadd.f32 %v2187, 1.0
  %v2252 = vadd.f32 %v2188, 1.0
  %v2253 = vadd.f32 %v2189, 1.0
  %v2254 = vadd.f32 %v2190, 1.0
  %v2255 = vadd.f32 %v2191, 1.0
  %v2256 = vadd.f32 %v2192, 1.0
  %v2257 = vadd.f32 %v2193, 1.0
  %v2258 = vadd.f32 %v2194, 1.0
  %v2259 = vadd.f32 %v2195, 1.0
  %v2260 = vadd.f32 %v2196, 1.0
  %v2261 = vadd.f32 %v2197, 1.0
  %v2262 = vadd.f32 %v2198, 1.0
  %v2263 = vadd.f32 %v2199, 1.0
  %v2264 = vadd.f32 %v2200, 1.0
  %v2265 = vadd.f32 %v2201, 1.0
  %v2266 = vadd.f32 %v2202, 1.0
  %v2267 = vadd.f32 %v2203, 1.0
  %v2268 = vadd.f32 %v2204, 1.0
  %v2269 = vadd.f32 %v2205, 1.0
  %v2270 = vadd.f32 %v2206, 1.0
  %v2271 = vadd.f32 %v2207, 1.0
  %v2272 = vadd.f32 %v2208, 1.0
  %v2273 = vadd.f32 %v2209, 1.0
  %v2274 = vmul.f32 %v674, %v2210
  %v2275 = vmul.f32 %v675, %v2211
  %v2276 = vmul.f32 %v676, %v2212
  %v2277 = vmul.f32 %v677, %v2213
  %v2278 = vmul.f32 %v678, %v2214
  %v2279 = vmul.f32 %v679, %v2215
  %v2280 = vmul.f32 %v680, %v2216
  %v2281 = vmul.f32 %v681, %v2217
  %v2282 = vmul.f32 %v682, %v2218
  %v2283 = vmul.f32 %v683, %v2219
  %v2284 = vmul.f32 %v684, %v2220
  %v2285 = vmul.f32 %v685, %v2221
  %v2286 = vmul.f32 %v686, %v2222
  %v2287 = vmul.f32 %v687, %v2223
  %v2288 = vmul.f32 %v688, %v2224
  %v2289 = vmul.f32 %v689, %v2225
  %v2290 = vmul.f32 %v690, %v2226
  %v2291 = vmul.f32 %v691, %v2227
  %v2292 = vmul.f32 %v692, %v2228
  %v2293 = vmul.f32 %v693, %v2229
  %v2294 = vmul.f32 %v694, %v2230
  %v2295 = vmul.f32 %v695, %v2231
  %v2296 = vmul.f32 %v696, %v2232
  %v2297 = vmul.f32 %v697, %v2233
  %v2298 = vmul.f32 %v698, %v2234
  %v2299 = vmul.f32 %v699, %v2235
  %v2300 = vmul.f32 %v700, %v2236
  %v2301 = vmul.f32 %v701, %v2237
  %v2302 = vmul.f32 %v702, %v2238
  %v2303 = vmul.f32 %v703, %v2239
  %v2304 = vmul.f32 %v704, %v2240
  %v2305 = vmul.f32 %v705, %v2241
  %v2306 = vmul.f32 %v706, %v2242
  %v2307 = vmul.f32 %v707, %v2243
  %v2308 = vmul.f32 %v708, %v2244
  %v2309 = vmul.f32 %v709, %v2245
  %v2310 = vmul.f32 %v710, %v2246
  %v2311 = vmul.f32 %v711, %v2247
  %v2312 = vmul.f32 %v712, %v2248
  %v2313 = vmul.f32 %v713, %v2249
  %v2314 = vmul.f32 %v714, %v2250
  %v2315 = vmul.f32 %v715, %v2251
  %v2316 = vmul.f32 %v716, %v2252
  %v2317 = vmul.f32 %v717, %v2253
  %v2318 = vmul.f32 %v718, %v2254
  %v2319 = vmul.f32 %v719, %v2255
  %v2320 = vmul.f32 %v720, %v2256
  %v2321 = vmul.f32 %v721, %v2257
  %v2322 = vmul.f32 %v722, %v2258
  %v2323 = vmul.f32 %v723, %v2259
  %v2324 = vmul.f32 %v724, %v2260
  %v2325 = vmul.f32 %v725, %v2261
  %v2326 = vmul.f32 %v726, %v2262
  %v2327 = vmul.f32 %v727, %v2263
  %v2328 = vmul.f32 %v728, %v2264
  %v2329 = vmul.f32 %v729, %v2265
  %v2330 = vmul.f32 %v730, %v2266
  %v2331 = vmul.f32 %v731, %v2267
  %v2332 = vmul.f32 %v732, %v2268
  %v2333 = vmul.f32 %v733, %v2269
  %v2334 = vmul.f32 %v734, %v2270
  %v2335 = vmul.f32 %v735, %v2271
  %v2336 = vmul.f32 %v736, %v2272
  %v2337 = vmul.f32 %v737, %v2273
  %v2338 = vld [vmem:[%s3] sm:$0x1]
  %v2340 = vlaneseq
  %v2341 = vshrl.u32 %v2340, 7
  %v2342 = vsub.s32 0, %v2341
  %v2343 = vrot.slane %v2338, %v2342
  %v2345 = vmul.f32 %v2274, %v2343
  %v2346 = vmul.f32 %v2275, %v2343
  %v2347 = vmul.f32 %v2276, %v2343
  %v2348 = vmul.f32 %v2277, %v2343
  %v2349 = vmul.f32 %v2278, %v2343
  %v2350 = vmul.f32 %v2279, %v2343
  %v2351 = vmul.f32 %v2280, %v2343
  %v2352 = vmul.f32 %v2281, %v2343
  %v2353 = vmul.f32 %v2282, %v2343
  %v2354 = vmul.f32 %v2283, %v2343
  %v2355 = vmul.f32 %v2284, %v2343
  %v2356 = vmul.f32 %v2285, %v2343
  %v2357 = vmul.f32 %v2286, %v2343
  %v2358 = vmul.f32 %v2287, %v2343
  %v2359 = vmul.f32 %v2288, %v2343
  %v2360 = vmul.f32 %v2289, %v2343
  %v2361 = vmul.f32 %v2290, %v2343
  %v2362 = vmul.f32 %v2291, %v2343
  %v2363 = vmul.f32 %v2292, %v2343
  %v2364 = vmul.f32 %v2293, %v2343
  %v2365 = vmul.f32 %v2294, %v2343
  %v2366 = vmul.f32 %v2295, %v2343
  %v2367 = vmul.f32 %v2296, %v2343
  %v2368 = vmul.f32 %v2297, %v2343
  %v2369 = vmul.f32 %v2298, %v2343
  %v2370 = vmul.f32 %v2299, %v2343
  %v2371 = vmul.f32 %v2300, %v2343
  %v2372 = vmul.f32 %v2301, %v2343
  %v2373 = vmul.f32 %v2302, %v2343
  %v2374 = vmul.f32 %v2303, %v2343
  %v2375 = vmul.f32 %v2304, %v2343
  %v2376 = vmul.f32 %v2305, %v2343
  %v2377 = vmul.f32 %v2306, %v2343
  %v2378 = vmul.f32 %v2307, %v2343
  %v2379 = vmul.f32 %v2308, %v2343
  %v2380 = vmul.f32 %v2309, %v2343
  %v2381 = vmul.f32 %v2310, %v2343
  %v2382 = vmul.f32 %v2311, %v2343
  %v2383 = vmul.f32 %v2312, %v2343
  %v2384 = vmul.f32 %v2313, %v2343
  %v2385 = vmul.f32 %v2314, %v2343
  %v2386 = vmul.f32 %v2315, %v2343
  %v2387 = vmul.f32 %v2316, %v2343
  %v2388 = vmul.f32 %v2317, %v2343
  %v2389 = vmul.f32 %v2318, %v2343
  %v2390 = vmul.f32 %v2319, %v2343
  %v2391 = vmul.f32 %v2320, %v2343
  %v2392 = vmul.f32 %v2321, %v2343
  %v2393 = vmul.f32 %v2322, %v2343
  %v2394 = vmul.f32 %v2323, %v2343
  %v2395 = vmul.f32 %v2324, %v2343
  %v2396 = vmul.f32 %v2325, %v2343
  %v2397 = vmul.f32 %v2326, %v2343
  %v2398 = vmul.f32 %v2327, %v2343
  %v2399 = vmul.f32 %v2328, %v2343
  %v2400 = vmul.f32 %v2329, %v2343
  %v2401 = vmul.f32 %v2330, %v2343
  %v2402 = vmul.f32 %v2331, %v2343
  %v2403 = vmul.f32 %v2332, %v2343
  %v2404 = vmul.f32 %v2333, %v2343
  %v2405 = vmul.f32 %v2334, %v2343
  %v2406 = vmul.f32 %v2335, %v2343
  %v2407 = vmul.f32 %v2336, %v2343
  %v2408 = vmul.f32 %v2337, %v2343
  %v2409 = vld [vmem:[%s4] sm:$0x1]
  %v2411 = vlaneseq
  %v2412 = vshrl.u32 %v2411, 7
  %v2413 = vsub.s32 0, %v2412
  %v2414 = vrot.slane %v2409, %v2413
  %v2416 = vadd.f32 %v2345, %v2414
  %v2417 = vadd.f32 %v2346, %v2414
  %v2418 = vadd.f32 %v2347, %v2414
  %v2419 = vadd.f32 %v2348, %v2414
  %v2420 = vadd.f32 %v2349, %v2414
  %v2421 = vadd.f32 %v2350, %v2414
  %v2422 = vadd.f32 %v2351, %v2414
  %v2423 = vadd.f32 %v2352, %v2414
  %v2424 = vadd.f32 %v2353, %v2414
  %v2425 = vadd.f32 %v2354, %v2414
  %v2426 = vadd.f32 %v2355, %v2414
  %v2427 = vadd.f32 %v2356, %v2414
  %v2428 = vadd.f32 %v2357, %v2414
  %v2429 = vadd.f32 %v2358, %v2414
  %v2430 = vadd.f32 %v2359, %v2414
  %v2431 = vadd.f32 %v2360, %v2414
  %v2432 = vadd.f32 %v2361, %v2414
  %v2433 = vadd.f32 %v2362, %v2414
  %v2434 = vadd.f32 %v2363, %v2414
  %v2435 = vadd.f32 %v2364, %v2414
  %v2436 = vadd.f32 %v2365, %v2414
  %v2437 = vadd.f32 %v2366, %v2414
  %v2438 = vadd.f32 %v2367, %v2414
  %v2439 = vadd.f32 %v2368, %v2414
  %v2440 = vadd.f32 %v2369, %v2414
  %v2441 = vadd.f32 %v2370, %v2414
  %v2442 = vadd.f32 %v2371, %v2414
  %v2443 = vadd.f32 %v2372, %v2414
  %v2444 = vadd.f32 %v2373, %v2414
  %v2445 = vadd.f32 %v2374, %v2414
  %v2446 = vadd.f32 %v2375, %v2414
  %v2447 = vadd.f32 %v2376, %v2414
  %v2448 = vadd.f32 %v2377, %v2414
  %v2449 = vadd.f32 %v2378, %v2414
  %v2450 = vadd.f32 %v2379, %v2414
  %v2451 = vadd.f32 %v2380, %v2414
  %v2452 = vadd.f32 %v2381, %v2414
  %v2453 = vadd.f32 %v2382, %v2414
  %v2454 = vadd.f32 %v2383, %v2414
  %v2455 = vadd.f32 %v2384, %v2414
  %v2456 = vadd.f32 %v2385, %v2414
  %v2457 = vadd.f32 %v2386, %v2414
  %v2458 = vadd.f32 %v2387, %v2414
  %v2459 = vadd.f32 %v2388, %v2414
  %v2460 = vadd.f32 %v2389, %v2414
  %v2461 = vadd.f32 %v2390, %v2414
  %v2462 = vadd.f32 %v2391, %v2414
  %v2463 = vadd.f32 %v2392, %v2414
  %v2464 = vadd.f32 %v2393, %v2414
  %v2465 = vadd.f32 %v2394, %v2414
  %v2466 = vadd.f32 %v2395, %v2414
  %v2467 = vadd.f32 %v2396, %v2414
  %v2468 = vadd.f32 %v2397, %v2414
  %v2469 = vadd.f32 %v2398, %v2414
  %v2470 = vadd.f32 %v2399, %v2414
  %v2471 = vadd.f32 %v2400, %v2414
  %v2472 = vadd.f32 %v2401, %v2414
  %v2473 = vadd.f32 %v2402, %v2414
  %v2474 = vadd.f32 %v2403, %v2414
  %v2475 = vadd.f32 %v2404, %v2414
  %v2476 = vadd.f32 %v2405, %v2414
  %v2477 = vadd.f32 %v2406, %v2414
  %v2478 = vadd.f32 %v2407, %v2414
  %v2479 = vadd.f32 %v2408, %v2414
  %v2480 = vadd.f32 %v2416, %v20
  %v2481 = vadd.f32 %v2417, %v21
  %v2482 = vadd.f32 %v2418, %v22
  %v2483 = vadd.f32 %v2419, %v23
  %v2484 = vadd.f32 %v2420, %v24
  %v2485 = vadd.f32 %v2421, %v25
  %v2486 = vadd.f32 %v2422, %v26
  %v2487 = vadd.f32 %v2423, %v27
  %v2488 = vadd.f32 %v2424, %v28
  %v2489 = vadd.f32 %v2425, %v29
  %v2490 = vadd.f32 %v2426, %v30
  %v2491 = vadd.f32 %v2427, %v31
  %v2492 = vadd.f32 %v2428, %v32
  %v2493 = vadd.f32 %v2429, %v33
  %v2494 = vadd.f32 %v2430, %v34
  %v2495 = vadd.f32 %v2431, %v35
  %v2496 = vadd.f32 %v2432, %v36
  %v2497 = vadd.f32 %v2433, %v37
  %v2498 = vadd.f32 %v2434, %v38
  %v2499 = vadd.f32 %v2435, %v39
  %v2500 = vadd.f32 %v2436, %v40
  %v2501 = vadd.f32 %v2437, %v41
  %v2502 = vadd.f32 %v2438, %v42
  %v2503 = vadd.f32 %v2439, %v43
  %v2504 = vadd.f32 %v2440, %v44
  %v2505 = vadd.f32 %v2441, %v45
  %v2506 = vadd.f32 %v2442, %v46
  %v2507 = vadd.f32 %v2443, %v47
  %v2508 = vadd.f32 %v2444, %v48
  %v2509 = vadd.f32 %v2445, %v49
  %v2510 = vadd.f32 %v2446, %v50
  %v2511 = vadd.f32 %v2447, %v51
  %v2512 = vadd.f32 %v2448, %v52
  %v2513 = vadd.f32 %v2449, %v53
  %v2514 = vadd.f32 %v2450, %v54
  %v2515 = vadd.f32 %v2451, %v55
  %v2516 = vadd.f32 %v2452, %v56
  %v2517 = vadd.f32 %v2453, %v57
  %v2518 = vadd.f32 %v2454, %v58
  %v2519 = vadd.f32 %v2455, %v59
  %v2520 = vadd.f32 %v2456, %v60
  %v2521 = vadd.f32 %v2457, %v61
  %v2522 = vadd.f32 %v2458, %v62
  %v2523 = vadd.f32 %v2459, %v63
  %v2524 = vadd.f32 %v2460, %v64
  %v2525 = vadd.f32 %v2461, %v65
  %v2526 = vadd.f32 %v2462, %v66
  %v2527 = vadd.f32 %v2463, %v67
  %v2528 = vadd.f32 %v2464, %v68
  %v2529 = vadd.f32 %v2465, %v69
  %v2530 = vadd.f32 %v2466, %v70
  %v2531 = vadd.f32 %v2467, %v71
  %v2532 = vadd.f32 %v2468, %v72
  %v2533 = vadd.f32 %v2469, %v73
  %v2534 = vadd.f32 %v2470, %v74
  %v2535 = vadd.f32 %v2471, %v75
  %v2536 = vadd.f32 %v2472, %v76
  %v2537 = vadd.f32 %v2473, %v77
  %v2538 = vadd.f32 %v2474, %v78
  %v2539 = vadd.f32 %v2475, %v79
  %v2540 = vadd.f32 %v2476, %v80
  %v2541 = vadd.f32 %v2477, %v81
  %v2542 = vadd.f32 %v2478, %v82
  %v2543 = vadd.f32 %v2479, %v83
  %2544 = vst.msk [vmem:[%s5] sm:$0xff] %vm92, %v2480
  %2545 = vst.msk [vmem:[%s5 + $0x8] sm:$0xff] %vm92, %v2481
  %2546 = vst.msk [vmem:[%s5 + $0x10] sm:$0xff] %vm92, %v2482
  %2547 = vst.msk [vmem:[%s5 + $0x18] sm:$0xff] %vm92, %v2483
  %2548 = vst.msk [vmem:[%s5 + $0x20] sm:$0xff] %vm92, %v2484
  %2549 = vst.msk [vmem:[%s5 + $0x28] sm:$0xff] %vm92, %v2485
  %2550 = vst.msk [vmem:[%s5 + $0x30] sm:$0xff] %vm92, %v2486
  %2551 = vst.msk [vmem:[%s5 + $0x38] sm:$0xff] %vm92, %v2487
  %2552 = vst.msk [vmem:[%s5 + $0x40] sm:$0xff] %vm92, %v2488
  %2553 = vst.msk [vmem:[%s5 + $0x48] sm:$0xff] %vm92, %v2489
  %2554 = vst.msk [vmem:[%s5 + $0x50] sm:$0xff] %vm92, %v2490
  %2555 = vst.msk [vmem:[%s5 + $0x58] sm:$0xff] %vm92, %v2491
  %2556 = vst.msk [vmem:[%s5 + $0x60] sm:$0xff] %vm92, %v2492
  %2557 = vst.msk [vmem:[%s5 + $0x68] sm:$0xff] %vm92, %v2493
  %2558 = vst.msk [vmem:[%s5 + $0x70] sm:$0xff] %vm92, %v2494
  %2559 = vst.msk [vmem:[%s5 + $0x78] sm:$0xff] %vm92, %v2495
  %2560 = vst.msk [vmem:[%s5 + $0x80] sm:$0xff] %vm92, %v2496
  %2561 = vst.msk [vmem:[%s5 + $0x88] sm:$0xff] %vm92, %v2497
  %2562 = vst.msk [vmem:[%s5 + $0x90] sm:$0xff] %vm92, %v2498
  %2563 = vst.msk [vmem:[%s5 + $0x98] sm:$0xff] %vm92, %v2499
  %2564 = vst.msk [vmem:[%s5 + $0xa0] sm:$0xff] %vm92, %v2500
  %2565 = vst.msk [vmem:[%s5 + $0xa8] sm:$0xff] %vm92, %v2501
  %2566 = vst.msk [vmem:[%s5 + $0xb0] sm:$0xff] %vm92, %v2502
  %2567 = vst.msk [vmem:[%s5 + $0xb8] sm:$0xff] %vm92, %v2503
  %2568 = vst.msk [vmem:[%s5 + $0xc0] sm:$0xff] %vm92, %v2504
  %2569 = vst.msk [vmem:[%s5 + $0xc8] sm:$0xff] %vm92, %v2505
  %2570 = vst.msk [vmem:[%s5 + $0xd0] sm:$0xff] %vm92, %v2506
  %2571 = vst.msk [vmem:[%s5 + $0xd8] sm:$0xff] %vm92, %v2507
  %2572 = vst.msk [vmem:[%s5 + $0xe0] sm:$0xff] %vm92, %v2508
  %2573 = vst.msk [vmem:[%s5 + $0xe8] sm:$0xff] %vm92, %v2509
  %2574 = vst.msk [vmem:[%s5 + $0xf0] sm:$0xff] %vm92, %v2510
  %2575 = vst.msk [vmem:[%s5 + $0xf8] sm:$0xff] %vm92, %v2511
  %2576 = vst.msk [vmem:[%s5 + $0x100] sm:$0xff] %vm92, %v2512
  %2577 = vst.msk [vmem:[%s5 + $0x108] sm:$0xff] %vm92, %v2513
  %2578 = vst.msk [vmem:[%s5 + $0x110] sm:$0xff] %vm92, %v2514
  %2579 = vst.msk [vmem:[%s5 + $0x118] sm:$0xff] %vm92, %v2515
  %2580 = vst.msk [vmem:[%s5 + $0x120] sm:$0xff] %vm92, %v2516
  %2581 = vst.msk [vmem:[%s5 + $0x128] sm:$0xff] %vm92, %v2517
  %2582 = vst.msk [vmem:[%s5 + $0x130] sm:$0xff] %vm92, %v2518
  %2583 = vst.msk [vmem:[%s5 + $0x138] sm:$0xff] %vm92, %v2519
  %2584 = vst.msk [vmem:[%s5 + $0x140] sm:$0xff] %vm92, %v2520
  %2585 = vst.msk [vmem:[%s5 + $0x148] sm:$0xff] %vm92, %v2521
  %2586 = vst.msk [vmem:[%s5 + $0x150] sm:$0xff] %vm92, %v2522
  %2587 = vst.msk [vmem:[%s5 + $0x158] sm:$0xff] %vm92, %v2523
  %2588 = vst.msk [vmem:[%s5 + $0x160] sm:$0xff] %vm92, %v2524
  %2589 = vst.msk [vmem:[%s5 + $0x168] sm:$0xff] %vm92, %v2525
  %2590 = vst.msk [vmem:[%s5 + $0x170] sm:$0xff] %vm92, %v2526
  %2591 = vst.msk [vmem:[%s5 + $0x178] sm:$0xff] %vm92, %v2527
  %2592 = vst.msk [vmem:[%s5 + $0x180] sm:$0xff] %vm92, %v2528
  %2593 = vst.msk [vmem:[%s5 + $0x188] sm:$0xff] %vm92, %v2529
  %2594 = vst.msk [vmem:[%s5 + $0x190] sm:$0xff] %vm92, %v2530
  %2595 = vst.msk [vmem:[%s5 + $0x198] sm:$0xff] %vm92, %v2531
  %2596 = vst.msk [vmem:[%s5 + $0x1a0] sm:$0xff] %vm92, %v2532
  %2597 = vst.msk [vmem:[%s5 + $0x1a8] sm:$0xff] %vm92, %v2533
  %2598 = vst.msk [vmem:[%s5 + $0x1b0] sm:$0xff] %vm92, %v2534
  %2599 = vst.msk [vmem:[%s5 + $0x1b8] sm:$0xff] %vm92, %v2535
  %2600 = vst.msk [vmem:[%s5 + $0x1c0] sm:$0xff] %vm92, %v2536
  %2601 = vst.msk [vmem:[%s5 + $0x1c8] sm:$0xff] %vm92, %v2537
  %2602 = vst.msk [vmem:[%s5 + $0x1d0] sm:$0xff] %vm92, %v2538
  %2603 = vst.msk [vmem:[%s5 + $0x1d8] sm:$0xff] %vm92, %v2539
  %2604 = vst.msk [vmem:[%s5 + $0x1e0] sm:$0xff] %vm92, %v2540
  %2605 = vst.msk [vmem:[%s5 + $0x1e8] sm:$0xff] %vm92, %v2541
  %2606 = vst.msk [vmem:[%s5 + $0x1f0] sm:$0xff] %vm92, %v2542
  %2607 = vst.msk [vmem:[%s5 + $0x1f8] sm:$0xff] %vm92, %v2543
  // Predicated region
  $region22: #{convmixer_block.5} parent=0 // pred_check
    _
  $region23: #{convmixer_block.5} parent=0 // pred_check_branch
    %2609 = sbr.rel (0) target = $region25
  $region24: #{convmixer_block.5} parent=0 // pred_region
    _
  $region25: #{convmixer_block.5} parent=0 // pred_fallthru
    _
  // Predicated region
  $region26: #{convmixer_block.5} parent=0 // pred_check
    _
  $region27: #{convmixer_block.5} parent=0 // pred_check_branch
    %2611 = sbr.rel (0) target = $region29
  $region28: #{convmixer_block.5} parent=0 // pred_region
    _
  $region29: #{convmixer_block.5} parent=0 // pred_fallthru
    _

</llo_original>
